<compile_context>
chip_gen: v5e
topology: v5e:2x2
jax: 0.10.0
libtpu: 0.0.40
codegen_flags: <defaults>
</compile_context>

<pallas_src>
import functools
import math

import jax
import jax.numpy as jnp
from jax.experimental import pallas as pl
from jax.experimental.pallas import tpu as pltpu


_CP = 32  # lane-friendly padded channel width used throughout the network


def _round(x):
    # mirrors deep_bac's _round (int(np.round(x))); no .5 ties in our configs
    return int(round(x))


# ----------------------------- in-kernel math --------------------------------

def _erf(x):
    # erfc rational approximation (Numerical Recipes, |err| < 1.2e-7), built
    # only from ops with guaranteed Mosaic lowerings (exp / mul / add / where).
    a = jnp.abs(x)
    t = 1.0 / (1.0 + 0.5 * a)
    poly = -1.26551223 + t * (1.00002368 + t * (0.37409196 + t * (0.09678418 +
           t * (-0.18628806 + t * (0.27886807 + t * (-1.13520398 + t * (
           1.48851587 + t * (-0.82215223 + t * 0.17087277))))))))
    erfc_pos = t * jnp.exp(-a * a + poly)
    erfc = jnp.where(x >= 0.0, erfc_pos, 2.0 - erfc_pos)
    return 1.0 - erfc


def _gelu_exact(x):
    # torch.nn.GELU() default (erf-based, NOT the tanh approximation)
    return 0.5 * x * (1.0 + _erf(x * (1.0 / math.sqrt(2.0))))


# ------------------------------ fused kernel ---------------------------------

def _fused_encoder_kernel(x_ref, wc_ref, b_ref, wd_ref, bd_ref, o_ref,
                          act, tmp, *, layers, lbuf, cin, seq_depth):
    # x_ref : (1, L0, cin)          raw input sample (NLC)
    # wc_ref: (sum_K, CP, CP)       all conv weights, BN-scale folded, stacked on taps
    # b_ref : (n_layers, CP)        per-layer folded bias (conv bias * scale + shift)
    # wd_ref: (seq_depth, CP, H)    bottleneck weight, permuted to (seq, chan) order
    # bd_ref: (1, H)                bottleneck bias
    # o_ref : (1, 1, H)             output block for this sample
    # act   : (lbuf, CP) VMEM       length-padded, channel-padded layer input
    # tmp   : (lbuf, CP) VMEM       pre-pool activations
    cp = act.shape[1]
    zeros = jnp.zeros((lbuf, cp), jnp.float32)

    # stage the stem input: zero halo + zero channel padding, data in the interior
    pad0, l0 = layers[0][2], layers[0][3]
    act[...] = zeros
    act[pad0:pad0 + l0, 0:cin] = x_ref[0]

    n_layers = len(layers)
    feat = None
    for li in range(n_layers):
        w_off, K, _pad, _L_in, L_conv, pool, L_out = layers[li]

        # Conv1d (+ folded eval-mode BN scale) as K shifted MXU dots.
        # TODO(synk): only eval-mode BatchNorm1d (running stats, folded into the
        # weights) is implemented; training-mode batch statistics are not.
        acc = jnp.dot(act[0:L_conv, :], wc_ref[w_off],
                      preferred_element_type=jnp.float32)
        for k in range(1, K):
            acc = acc + jnp.dot(act[k:k + L_conv, :], wc_ref[w_off + k],
                                preferred_element_type=jnp.float32)
        y = _gelu_exact(acc + b_ref[li:li + 1, :])

        # MaxPool1d(pool): kernel == stride == pool, no padding, floor mode
        tmp[0:L_conv, :] = y
        m = tmp[pl.ds(0, L_out, stride=pool), :]
        for j in range(1, pool):
            m = jnp.maximum(m, tmp[pl.ds(j, L_out, stride=pool), :])

        if li + 1 < n_layers:
            nxt_pad = layers[li + 1][2]
            act[...] = zeros                      # fresh zero halo for next layer
            act[nxt_pad:nxt_pad + L_out, :] = m
        else:
            feat = m                              # (seq_depth, CP), padded cols are 0

    # bottleneck Linear, fused: out = sum_s feat[s, :] @ Wd[s] + bd
    tmp[0:seq_depth, :] = feat
    out = jnp.dot(tmp[0:1, :], wd_ref[0], preferred_element_type=jnp.float32)
    for s in range(1, seq_depth):
        out = out + jnp.dot(tmp[s:s + 1, :], wd_ref[s],
                            preferred_element_type=jnp.float32)
    o_ref[0] = (out + bd_ref[...]).astype(o_ref.dtype)


# --------------------------- parameter construction --------------------------

def make_gene_bac_encoder_params(key, input_dim=4, n_filters_init=16,
                                 n_repeat_blocks_tower=2, filters_mult=1.122,
                                 n_bottleneck_layer=32, seq_len=168):
    seq_depth = 14          # hard-coded in GeneBacEncoder
    eps = 1e-5

    # static architecture: (Cin, Cout, kernel, pool)
    arch = [(input_dim, n_filters_init, 17, 3)]
    curr = n_filters_init
    for _ in range(n_repeat_blocks_tower):
        nxt = _round(curr * filters_mult)
        arch.append((curr, nxt, 6, 2))
        curr = nxt
    assert input_dim <= _CP and max(co for _, co, _, _ in arch) <= _CP

    # static per-layer geometry (matches PyTorch Conv1d/MaxPool1d shape rules)
    layers = []
    L, w_off = seq_len, 0
    for (ci, co, k, p) in arch:
        pad = k // 2
        l_conv = L + 2 * pad - k + 1
        l_out = l_conv // p
        layers.append((w_off, k, pad, L, l_conv, p, l_out))
        w_off += k
        L = l_out
    assert L == seq_depth, (L, seq_depth)
    lbuf = max(l[3] + 2 * l[2] for l in layers)
    lbuf = ((lbuf + 7) // 8) * 8

    # random parameters (as a freshly-initialised module), BN + bias folded
    wc_list, b_list = [], []
    for (ci, co, k, p) in arch:
        key, kw, kb, kg, kbe, km, kv = jax.random.split(key, 7)
        w_pt = jax.random.normal(kw, (co, ci, k), jnp.float32) / math.sqrt(ci * k)
        b = 0.05 * jax.random.normal(kb, (co,), jnp.float32)
        gamma = 1.0 + 0.1 * jax.random.normal(kg, (co,), jnp.float32)
        beta = 0.1 * jax.random.normal(kbe, (co,), jnp.float32)
        r_mean = 0.1 * jax.random.normal(km, (co,), jnp.float32)
        r_var = jax.random.uniform(kv, (co,), jnp.float32, 0.5, 1.5)
        scale = gamma / jnp.sqrt(r_var + eps)          # eval-mode BN fold
        shift = beta - r_mean * scale
        w_kio = jnp.transpose(w_pt, (2, 1, 0)) * scale[None, None, :]  # (K,Cin,Cout)
        w_kio = jnp.pad(w_kio, ((0, 0), (0, _CP - ci), (0, _CP - co)))
        b_fold = jnp.pad(b * scale + shift, (0, _CP - co))
        wc_list.append(w_kio)
        b_list.append(b_fold)
    wc = jnp.concatenate(wc_list, axis=0)              # (sum_K, CP, CP)
    b_all = jnp.stack(b_list, axis=0)                  # (n_layers, CP)

    # bottleneck Linear, rows permuted to the kernel's (seq, channel) order
    c_last = arch[-1][1]
    in_features = c_last * seq_depth
    key, kw, kb = jax.random.split(key, 3)
    dw_pt = jax.random.normal(kw, (n_bottleneck_layer, in_features),
                              jnp.float32) / math.sqrt(in_features)
    db = 0.05 * jax.random.normal(kb, (n_bottleneck_layer,), jnp.float32)
    wd = jnp.transpose(dw_pt.reshape(n_bottleneck_layer, c_last, seq_depth),
                       (2, 1, 0))                      # (S, c_last, H)
    wd = jnp.pad(wd, ((0, 0), (0, _CP - c_last), (0, 0)))  # (S, CP, H)
    bd = db.reshape(1, n_bottleneck_layer)

    cfg = dict(layers=tuple(layers), lbuf=lbuf, cin=input_dim, l0=seq_len,
               seq_depth=seq_depth, h=n_bottleneck_layer)
    params = dict(wc=wc, b=b_all, wd=wd, bd=bd)
    return cfg, params


# ----------------------------------- forward ---------------------------------

def gene_bac_encoder_forward(cfg, params, x_ncl):
    # x_ncl: (B, input_dim, L) -- PyTorch Conv1d NCL layout
    B = x_ncl.shape[0]
    x_nlc = jnp.transpose(x_ncl, (0, 2, 1)).astype(jnp.float32)   # (B, L, Cin)

    kernel = functools.partial(_fused_encoder_kernel,
                               layers=cfg["layers"], lbuf=cfg["lbuf"],
                               cin=cfg["cin"], seq_depth=cfg["seq_depth"])

    out = pl.pallas_call(
        kernel,
        out_shape=jax.ShapeDtypeStruct((B, 1, cfg["h"]), jnp.float32),
        grid_spec=pltpu.PrefetchScalarGridSpec(
            num_scalar_prefetch=0,
            grid=(B,),
            in_specs=[
                pl.BlockSpec((1, cfg["l0"], cfg["cin"]), lambda b: (b, 0, 0)),
                pl.BlockSpec(params["wc"].shape, lambda b: (0, 0, 0)),
                pl.BlockSpec(params["b"].shape, lambda b: (0, 0)),
                pl.BlockSpec(params["wd"].shape, lambda b: (0, 0, 0)),
                pl.BlockSpec(params["bd"].shape, lambda b: (0, 0)),
            ],
            out_specs=pl.BlockSpec((1, 1, cfg["h"]), lambda b: (b, 0, 0)),
            scratch_shapes=[pltpu.VMEM((cfg["lbuf"], _CP), jnp.float32),
                            pltpu.VMEM((cfg["lbuf"], _CP), jnp.float32)],
        ),
        compiler_params=pltpu.CompilerParams(
            dimension_semantics=("parallel",)),
    )(x_nlc, params["wc"], params["b"], params["wd"], params["bd"])

    return out.reshape(B, cfg["h"])


if __name__ == "__main__":
    key = jax.random.PRNGKey(0)
    k_params, k_x = jax.random.split(key)

    # Small config consistent with the module: input_dim=4, 2 tower blocks,
    # filters 16 -> 18 -> 20, bottleneck 32.  L = 168 reduces to seq_depth:
    # 168 -(k17,pool3)-> 56 -(k6,pool2)-> 28 -(k6,pool2)-> 14.
    B, C, L = 2, 4, 168
    n_bottleneck = 32
    cfg, params = make_gene_bac_encoder_params(
        k_params, input_dim=C, n_filters_init=16, n_repeat_blocks_tower=2,
        filters_mult=1.122, n_bottleneck_layer=n_bottleneck, seq_len=L)

    x = jax.random.normal(k_x, (B, C, L), dtype=jnp.float32)

    fwd = jax.jit(functools.partial(gene_bac_encoder_forward, cfg, params))
    out = jax.block_until_ready(fwd(x))

    assert out.shape == (B, n_bottleneck), out.shape
    assert bool(jnp.all(jnp.isfinite(out)))
    print("KERNEL_OK")
</pallas_src>

<mosaic_0001>
module attributes {stable_mosaic.version = 11 : i64} {
  func.func @_fused_encoder_kernel(%arg0: i32, %arg1: memref<1x168x4xf32, #tpu.memory_space<vmem>>, %arg2: memref<29x32x32xf32, #tpu.memory_space<vmem>>, %arg3: memref<3x32xf32, #tpu.memory_space<vmem>>, %arg4: memref<14x32x32xf32, #tpu.memory_space<vmem>>, %arg5: memref<1x32xf32, #tpu.memory_space<vmem>>, %arg6: memref<1x1x32xf32, #tpu.memory_space<vmem>>, %arg7: memref<184x32xf32, #tpu.memory_space<vmem>>, %arg8: memref<184x32xf32, #tpu.memory_space<vmem>>) attributes {dimension_semantics = [#tpu.dimension_semantics<parallel>], iteration_bounds = array<i64: 2>, scalar_prefetch = 0 : i64, scratch_operands = 2 : i64, tpu.core_type = #tpu.core_type<tc>, window_params = [{transform_indices = @transform_0, window_bounds = array<i64: 1, 168, 4>}, {pipeline_mode = #tpu.pipeline_mode<synchronous>, transform_indices = @transform_1, window_bounds = array<i64: 29, 32, 32>}, {pipeline_mode = #tpu.pipeline_mode<synchronous>, transform_indices = @transform_2, window_bounds = array<i64: 3, 32>}, {pipeline_mode = #tpu.pipeline_mode<synchronous>, transform_indices = @transform_3, window_bounds = array<i64: 14, 32, 32>}, {pipeline_mode = #tpu.pipeline_mode<synchronous>, transform_indices = @transform_4, window_bounds = array<i64: 1, 32>}, {transform_indices = @transform_5, window_bounds = array<i64: 1, 1, 32>}]} {
    %cst = arith.constant 0.000000e+00 : f32
    %0 = vector.broadcast %cst : f32 to vector<184x32xf32>
    %c0 = arith.constant 0 : index
    %c0_0 = arith.constant 0 : index
    %1 = vector.load %arg7[%c0, %c0_0] : memref<184x32xf32, #tpu.memory_space<vmem>>, vector<184x32xf32>
    tpu.vector_store %arg7[%c0, %c0_0], %0 {strides = array<i32>} : memref<184x32xf32, #tpu.memory_space<vmem>>, vector<184x32xf32>,
    %c0_1 = arith.constant 0 : index
    %c0_2 = arith.constant 0 : index
    %c0_3 = arith.constant 0 : index
    %2 = vector.load %arg1[%c0_1, %c0_2, %c0_3] : memref<1x168x4xf32, #tpu.memory_space<vmem>>, vector<1x168x4xf32>
    %3 = vector.shape_cast %2 : vector<1x168x4xf32> to vector<168x4xf32>
    %c8 = arith.constant 8 : index
    %c0_4 = arith.constant 0 : index
    %4 = vector.load %arg7[%c8, %c0_4] : memref<184x32xf32, #tpu.memory_space<vmem>>, vector<168x4xf32>
    tpu.vector_store %arg7[%c8, %c0_4], %3 {strides = array<i32>} : memref<184x32xf32, #tpu.memory_space<vmem>>, vector<168x4xf32>,
    %c0_5 = arith.constant 0 : index
    %c0_6 = arith.constant 0 : index
    %5 = vector.load %arg7[%c0_5, %c0_6] : memref<184x32xf32, #tpu.memory_space<vmem>>, vector<168x32xf32>
    %c0_7 = arith.constant 0 : index
    %c0_8 = arith.constant 0 : index
    %c0_9 = arith.constant 0 : index
    %6 = vector.load %arg2[%c0_7, %c0_8, %c0_9] : memref<29x32x32xf32, #tpu.memory_space<vmem>>, vector<1x32x32xf32>
    %7 = vector.shape_cast %6 : vector<1x32x32xf32> to vector<32x32xf32>
    %cst_10 = arith.constant dense<0.000000e+00> : vector<168x32xf32>
    %8 = tpu.matmul %5, %7, %cst_10 {dimension_numbers = #tpu.dot_dimension_numbers<[1], [0], [0], [1], [0, 0, 1, 1], [], []>} : vector<168x32xf32>, vector<32x32xf32>, vector<168x32xf32> -> vector<168x32xf32>
    %c1 = arith.constant 1 : index
    %c0_11 = arith.constant 0 : index
    %9 = vector.load %arg7[%c1, %c0_11] : memref<184x32xf32, #tpu.memory_space<vmem>>, vector<168x32xf32>
    %c1_12 = arith.constant 1 : index
    %c0_13 = arith.constant 0 : index
    %c0_14 = arith.constant 0 : index
    %10 = vector.load %arg2[%c1_12, %c0_13, %c0_14] : memref<29x32x32xf32, #tpu.memory_space<vmem>>, vector<1x32x32xf32>
    %11 = vector.shape_cast %10 : vector<1x32x32xf32> to vector<32x32xf32>
    %cst_15 = arith.constant dense<0.000000e+00> : vector<168x32xf32>
    %12 = tpu.matmul %9, %11, %cst_15 {dimension_numbers = #tpu.dot_dimension_numbers<[1], [0], [0], [1], [0, 0, 1, 1], [], []>} : vector<168x32xf32>, vector<32x32xf32>, vector<168x32xf32> -> vector<168x32xf32>
    %13 = arith.addf %8, %12 : vector<168x32xf32>
    %c2 = arith.constant 2 : index
    %c0_16 = arith.constant 0 : index
    %14 = vector.load %arg7[%c2, %c0_16] : memref<184x32xf32, #tpu.memory_space<vmem>>, vector<168x32xf32>
    %c2_17 = arith.constant 2 : index
    %c0_18 = arith.constant 0 : index
    %c0_19 = arith.constant 0 : index
    %15 = vector.load %arg2[%c2_17, %c0_18, %c0_19] : memref<29x32x32xf32, #tpu.memory_space<vmem>>, vector<1x32x32xf32>
    %16 = vector.shape_cast %15 : vector<1x32x32xf32> to vector<32x32xf32>
    %cst_20 = arith.constant dense<0.000000e+00> : vector<168x32xf32>
    %17 = tpu.matmul %14, %16, %cst_20 {dimension_numbers = #tpu.dot_dimension_numbers<[1], [0], [0], [1], [0, 0, 1, 1], [], []>} : vector<168x32xf32>, vector<32x32xf32>, vector<168x32xf32> -> vector<168x32xf32>
    %18 = arith.addf %13, %17 : vector<168x32xf32>
    %c3 = arith.constant 3 : index
    %c0_21 = arith.constant 0 : index
    %19 = vector.load %arg7[%c3, %c0_21] : memref<184x32xf32, #tpu.memory_space<vmem>>, vector<168x32xf32>
    %c3_22 = arith.constant 3 : index
    %c0_23 = arith.constant 0 : index
    %c0_24 = arith.constant 0 : index
    %20 = vector.load %arg2[%c3_22, %c0_23, %c0_24] : memref<29x32x32xf32, #tpu.memory_space<vmem>>, vector<1x32x32xf32>
    %21 = vector.shape_cast %20 : vector<1x32x32xf32> to vector<32x32xf32>
    %cst_25 = arith.constant dense<0.000000e+00> : vector<168x32xf32>
    %22 = tpu.matmul %19, %21, %cst_25 {dimension_numbers = #tpu.dot_dimension_numbers<[1], [0], [0], [1], [0, 0, 1, 1], [], []>} : vector<168x32xf32>, vector<32x32xf32>, vector<168x32xf32> -> vector<168x32xf32>
    %23 = arith.addf %18, %22 : vector<168x32xf32>
    %c4 = arith.constant 4 : index
    %c0_26 = arith.constant 0 : index
    %24 = vector.load %arg7[%c4, %c0_26] : memref<184x32xf32, #tpu.memory_space<vmem>>, vector<168x32xf32>
    %c4_27 = arith.constant 4 : index
    %c0_28 = arith.constant 0 : index
    %c0_29 = arith.constant 0 : index
    %25 = vector.load %arg2[%c4_27, %c0_28, %c0_29] : memref<29x32x32xf32, #tpu.memory_space<vmem>>, vector<1x32x32xf32>
    %26 = vector.shape_cast %25 : vector<1x32x32xf32> to vector<32x32xf32>
    %cst_30 = arith.constant dense<0.000000e+00> : vector<168x32xf32>
    %27 = tpu.matmul %24, %26, %cst_30 {dimension_numbers = #tpu.dot_dimension_numbers<[1], [0], [0], [1], [0, 0, 1, 1], [], []>} : vector<168x32xf32>, vector<32x32xf32>, vector<168x32xf32> -> vector<168x32xf32>
    %28 = arith.addf %23, %27 : vector<168x32xf32>
    %c5 = arith.constant 5 : index
    %c0_31 = arith.constant 0 : index
    %29 = vector.load %arg7[%c5, %c0_31] : memref<184x32xf32, #tpu.memory_space<vmem>>, vector<168x32xf32>
    %c5_32 = arith.constant 5 : index
    %c0_33 = arith.constant 0 : index
    %c0_34 = arith.constant 0 : index
    %30 = vector.load %arg2[%c5_32, %c0_33, %c0_34] : memref<29x32x32xf32, #tpu.memory_space<vmem>>, vector<1x32x32xf32>
    %31 = vector.shape_cast %30 : vector<1x32x32xf32> to vector<32x32xf32>
    %cst_35 = arith.constant dense<0.000000e+00> : vector<168x32xf32>
    %32 = tpu.matmul %29, %31, %cst_35 {dimension_numbers = #tpu.dot_dimension_numbers<[1], [0], [0], [1], [0, 0, 1, 1], [], []>} : vector<168x32xf32>, vector<32x32xf32>, vector<168x32xf32> -> vector<168x32xf32>
    %33 = arith.addf %28, %32 : vector<168x32xf32>
    %c6 = arith.constant 6 : index
    %c0_36 = arith.constant 0 : index
    %34 = vector.load %arg7[%c6, %c0_36] : memref<184x32xf32, #tpu.memory_space<vmem>>, vector<168x32xf32>
    %c6_37 = arith.constant 6 : index
    %c0_38 = arith.constant 0 : index
    %c0_39 = arith.constant 0 : index
    %35 = vector.load %arg2[%c6_37, %c0_38, %c0_39] : memref<29x32x32xf32, #tpu.memory_space<vmem>>, vector<1x32x32xf32>
    %36 = vector.shape_cast %35 : vector<1x32x32xf32> to vector<32x32xf32>
    %cst_40 = arith.constant dense<0.000000e+00> : vector<168x32xf32>
    %37 = tpu.matmul %34, %36, %cst_40 {dimension_numbers = #tpu.dot_dimension_numbers<[1], [0], [0], [1], [0, 0, 1, 1], [], []>} : vector<168x32xf32>, vector<32x32xf32>, vector<168x32xf32> -> vector<168x32xf32>
    %38 = arith.addf %33, %37 : vector<168x32xf32>
    %c7 = arith.constant 7 : index
    %c0_41 = arith.constant 0 : index
    %39 = vector.load %arg7[%c7, %c0_41] : memref<184x32xf32, #tpu.memory_space<vmem>>, vector<168x32xf32>
    %c7_42 = arith.constant 7 : index
    %c0_43 = arith.constant 0 : index
    %c0_44 = arith.constant 0 : index
    %40 = vector.load %arg2[%c7_42, %c0_43, %c0_44] : memref<29x32x32xf32, #tpu.memory_space<vmem>>, vector<1x32x32xf32>
    %41 = vector.shape_cast %40 : vector<1x32x32xf32> to vector<32x32xf32>
    %cst_45 = arith.constant dense<0.000000e+00> : vector<168x32xf32>
    %42 = tpu.matmul %39, %41, %cst_45 {dimension_numbers = #tpu.dot_dimension_numbers<[1], [0], [0], [1], [0, 0, 1, 1], [], []>} : vector<168x32xf32>, vector<32x32xf32>, vector<168x32xf32> -> vector<168x32xf32>
    %43 = arith.addf %38, %42 : vector<168x32xf32>
    %c8_46 = arith.constant 8 : index
    %c0_47 = arith.constant 0 : index
    %44 = vector.load %arg7[%c8_46, %c0_47] : memref<184x32xf32, #tpu.memory_space<vmem>>, vector<168x32xf32>
    %c8_48 = arith.constant 8 : index
    %c0_49 = arith.constant 0 : index
    %c0_50 = arith.constant 0 : index
    %45 = vector.load %arg2[%c8_48, %c0_49, %c0_50] : memref<29x32x32xf32, #tpu.memory_space<vmem>>, vector<1x32x32xf32>
    %46 = vector.shape_cast %45 : vector<1x32x32xf32> to vector<32x32xf32>
    %cst_51 = arith.constant dense<0.000000e+00> : vector<168x32xf32>
    %47 = tpu.matmul %44, %46, %cst_51 {dimension_numbers = #tpu.dot_dimension_numbers<[1], [0], [0], [1], [0, 0, 1, 1], [], []>} : vector<168x32xf32>, vector<32x32xf32>, vector<168x32xf32> -> vector<168x32xf32>
    %48 = arith.addf %43, %47 : vector<168x32xf32>
    %c9 = arith.constant 9 : index
    %c0_52 = arith.constant 0 : index
    %49 = vector.load %arg7[%c9, %c0_52] : memref<184x32xf32, #tpu.memory_space<vmem>>, vector<168x32xf32>
    %c9_53 = arith.constant 9 : index
    %c0_54 = arith.constant 0 : index
    %c0_55 = arith.constant 0 : index
    %50 = vector.load %arg2[%c9_53, %c0_54, %c0_55] : memref<29x32x32xf32, #tpu.memory_space<vmem>>, vector<1x32x32xf32>
    %51 = vector.shape_cast %50 : vector<1x32x32xf32> to vector<32x32xf32>
    %cst_56 = arith.constant dense<0.000000e+00> : vector<168x32xf32>
    %52 = tpu.matmul %49, %51, %cst_56 {dimension_numbers = #tpu.dot_dimension_numbers<[1], [0], [0], [1], [0, 0, 1, 1], [], []>} : vector<168x32xf32>, vector<32x32xf32>, vector<168x32xf32> -> vector<168x32xf32>
    %53 = arith.addf %48, %52 : vector<168x32xf32>
    %c10 = arith.constant 10 : index
    %c0_57 = arith.constant 0 : index
    %54 = vector.load %arg7[%c10, %c0_57] : memref<184x32xf32, #tpu.memory_space<vmem>>, vector<168x32xf32>
    %c10_58 = arith.constant 10 : index
    %c0_59 = arith.constant 0 : index
    %c0_60 = arith.constant 0 : index
    %55 = vector.load %arg2[%c10_58, %c0_59, %c0_60] : memref<29x32x32xf32, #tpu.memory_space<vmem>>, vector<1x32x32xf32>
    %56 = vector.shape_cast %55 : vector<1x32x32xf32> to vector<32x32xf32>
    %cst_61 = arith.constant dense<0.000000e+00> : vector<168x32xf32>
    %57 = tpu.matmul %54, %56, %cst_61 {dimension_numbers = #tpu.dot_dimension_numbers<[1], [0], [0], [1], [0, 0, 1, 1], [], []>} : vector<168x32xf32>, vector<32x32xf32>, vector<168x32xf32> -> vector<168x32xf32>
    %58 = arith.addf %53, %57 : vector<168x32xf32>
    %c11 = arith.constant 11 : index
    %c0_62 = arith.constant 0 : index
    %59 = vector.load %arg7[%c11, %c0_62] : memref<184x32xf32, #tpu.memory_space<vmem>>, vector<168x32xf32>
    %c11_63 = arith.constant 11 : index
    %c0_64 = arith.constant 0 : index
    %c0_65 = arith.constant 0 : index
    %60 = vector.load %arg2[%c11_63, %c0_64, %c0_65] : memref<29x32x32xf32, #tpu.memory_space<vmem>>, vector<1x32x32xf32>
    %61 = vector.shape_cast %60 : vector<1x32x32xf32> to vector<32x32xf32>
    %cst_66 = arith.constant dense<0.000000e+00> : vector<168x32xf32>
    %62 = tpu.matmul %59, %61, %cst_66 {dimension_numbers = #tpu.dot_dimension_numbers<[1], [0], [0], [1], [0, 0, 1, 1], [], []>} : vector<168x32xf32>, vector<32x32xf32>, vector<168x32xf32> -> vector<168x32xf32>
    %63 = arith.addf %58, %62 : vector<168x32xf32>
    %c12 = arith.constant 12 : index
    %c0_67 = arith.constant 0 : index
    %64 = vector.load %arg7[%c12, %c0_67] : memref<184x32xf32, #tpu.memory_space<vmem>>, vector<168x32xf32>
    %c12_68 = arith.constant 12 : index
    %c0_69 = arith.constant 0 : index
    %c0_70 = arith.constant 0 : index
    %65 = vector.load %arg2[%c12_68, %c0_69, %c0_70] : memref<29x32x32xf32, #tpu.memory_space<vmem>>, vector<1x32x32xf32>
    %66 = vector.shape_cast %65 : vector<1x32x32xf32> to vector<32x32xf32>
    %cst_71 = arith.constant dense<0.000000e+00> : vector<168x32xf32>
    %67 = tpu.matmul %64, %66, %cst_71 {dimension_numbers = #tpu.dot_dimension_numbers<[1], [0], [0], [1], [0, 0, 1, 1], [], []>} : vector<168x32xf32>, vector<32x32xf32>, vector<168x32xf32> -> vector<168x32xf32>
    %68 = arith.addf %63, %67 : vector<168x32xf32>
    %c13 = arith.constant 13 : index
    %c0_72 = arith.constant 0 : index
    %69 = vector.load %arg7[%c13, %c0_72] : memref<184x32xf32, #tpu.memory_space<vmem>>, vector<168x32xf32>
    %c13_73 = arith.constant 13 : index
    %c0_74 = arith.constant 0 : index
    %c0_75 = arith.constant 0 : index
    %70 = vector.load %arg2[%c13_73, %c0_74, %c0_75] : memref<29x32x32xf32, #tpu.memory_space<vmem>>, vector<1x32x32xf32>
    %71 = vector.shape_cast %70 : vector<1x32x32xf32> to vector<32x32xf32>
    %cst_76 = arith.constant dense<0.000000e+00> : vector<168x32xf32>
    %72 = tpu.matmul %69, %71, %cst_76 {dimension_numbers = #tpu.dot_dimension_numbers<[1], [0], [0], [1], [0, 0, 1, 1], [], []>} : vector<168x32xf32>, vector<32x32xf32>, vector<168x32xf32> -> vector<168x32xf32>
    %73 = arith.addf %68, %72 : vector<168x32xf32>
    %c14 = arith.constant 14 : index
    %c0_77 = arith.constant 0 : index
    %74 = vector.load %arg7[%c14, %c0_77] : memref<184x32xf32, #tpu.memory_space<vmem>>, vector<168x32xf32>
    %c14_78 = arith.constant 14 : index
    %c0_79 = arith.constant 0 : index
    %c0_80 = arith.constant 0 : index
    %75 = vector.load %arg2[%c14_78, %c0_79, %c0_80] : memref<29x32x32xf32, #tpu.memory_space<vmem>>, vector<1x32x32xf32>
    %76 = vector.shape_cast %75 : vector<1x32x32xf32> to vector<32x32xf32>
    %cst_81 = arith.constant dense<0.000000e+00> : vector<168x32xf32>
    %77 = tpu.matmul %74, %76, %cst_81 {dimension_numbers = #tpu.dot_dimension_numbers<[1], [0], [0], [1], [0, 0, 1, 1], [], []>} : vector<168x32xf32>, vector<32x32xf32>, vector<168x32xf32> -> vector<168x32xf32>
    %78 = arith.addf %73, %77 : vector<168x32xf32>
    %c15 = arith.constant 15 : index
    %c0_82 = arith.constant 0 : index
    %79 = vector.load %arg7[%c15, %c0_82] : memref<184x32xf32, #tpu.memory_space<vmem>>, vector<168x32xf32>
    %c15_83 = arith.constant 15 : index
    %c0_84 = arith.constant 0 : index
    %c0_85 = arith.constant 0 : index
    %80 = vector.load %arg2[%c15_83, %c0_84, %c0_85] : memref<29x32x32xf32, #tpu.memory_space<vmem>>, vector<1x32x32xf32>
    %81 = vector.shape_cast %80 : vector<1x32x32xf32> to vector<32x32xf32>
    %cst_86 = arith.constant dense<0.000000e+00> : vector<168x32xf32>
    %82 = tpu.matmul %79, %81, %cst_86 {dimension_numbers = #tpu.dot_dimension_numbers<[1], [0], [0], [1], [0, 0, 1, 1], [], []>} : vector<168x32xf32>, vector<32x32xf32>, vector<168x32xf32> -> vector<168x32xf32>
    %83 = arith.addf %78, %82 : vector<168x32xf32>
    %c16 = arith.constant 16 : index
    %c0_87 = arith.constant 0 : index
    %84 = vector.load %arg7[%c16, %c0_87] : memref<184x32xf32, #tpu.memory_space<vmem>>, vector<168x32xf32>
    %c16_88 = arith.constant 16 : index
    %c0_89 = arith.constant 0 : index
    %c0_90 = arith.constant 0 : index
    %85 = vector.load %arg2[%c16_88, %c0_89, %c0_90] : memref<29x32x32xf32, #tpu.memory_space<vmem>>, vector<1x32x32xf32>
    %86 = vector.shape_cast %85 : vector<1x32x32xf32> to vector<32x32xf32>
    %cst_91 = arith.constant dense<0.000000e+00> : vector<168x32xf32>
    %87 = tpu.matmul %84, %86, %cst_91 {dimension_numbers = #tpu.dot_dimension_numbers<[1], [0], [0], [1], [0, 0, 1, 1], [], []>} : vector<168x32xf32>, vector<32x32xf32>, vector<168x32xf32> -> vector<168x32xf32>
    %88 = arith.addf %83, %87 : vector<168x32xf32>
    %c0_92 = arith.constant 0 : index
    %c0_93 = arith.constant 0 : index
    %89 = vector.load %arg3[%c0_92, %c0_93] : memref<3x32xf32, #tpu.memory_space<vmem>>, vector<1x32xf32>
    %90 = vector.broadcast %89 : vector<1x32xf32> to vector<168x32xf32>
    %91 = arith.addf %88, %90 : vector<168x32xf32>
    %cst_94 = arith.constant 5.000000e-01 : f32
    %92 = vector.broadcast %cst_94 : f32 to vector<168x32xf32>
    %93 = arith.mulf %92, %91 : vector<168x32xf32>
    %cst_95 = arith.constant 0.707106769 : f32
    %94 = vector.broadcast %cst_95 : f32 to vector<168x32xf32>
    %95 = arith.mulf %91, %94 : vector<168x32xf32>
    %96 = math.absf %95 : vector<168x32xf32>
    %cst_96 = arith.constant 5.000000e-01 : f32
    %97 = vector.broadcast %cst_96 : f32 to vector<168x32xf32>
    %98 = arith.mulf %97, %96 : vector<168x32xf32>
    %cst_97 = arith.constant 1.000000e+00 : f32
    %99 = vector.broadcast %cst_97 : f32 to vector<168x32xf32>
    %100 = arith.addf %99, %98 : vector<168x32xf32>
    %cst_98 = arith.constant 1.000000e+00 : f32
    %101 = vector.broadcast %cst_98 : f32 to vector<168x32xf32>
    %102 = arith.divf %101, %100 : vector<168x32xf32>
    %cst_99 = arith.constant 0.170872763 : f32
    %103 = vector.broadcast %cst_99 : f32 to vector<168x32xf32>
    %104 = arith.mulf %102, %103 : vector<168x32xf32>
    %cst_100 = arith.constant -0.822152256 : f32
    %105 = vector.broadcast %cst_100 : f32 to vector<168x32xf32>
    %106 = arith.addf %105, %104 : vector<168x32xf32>
    %107 = arith.mulf %102, %106 : vector<168x32xf32>
    %cst_101 = arith.constant 1.48851585 : f32
    %108 = vector.broadcast %cst_101 : f32 to vector<168x32xf32>
    %109 = arith.addf %108, %107 : vector<168x32xf32>
    %110 = arith.mulf %102, %109 : vector<168x32xf32>
    %cst_102 = arith.constant -1.13520396 : f32
    %111 = vector.broadcast %cst_102 : f32 to vector<168x32xf32>
    %112 = arith.addf %111, %110 : vector<168x32xf32>
    %113 = arith.mulf %102, %112 : vector<168x32xf32>
    %cst_103 = arith.constant 0.278868079 : f32
    %114 = vector.broadcast %cst_103 : f32 to vector<168x32xf32>
    %115 = arith.addf %114, %113 : vector<168x32xf32>
    %116 = arith.mulf %102, %115 : vector<168x32xf32>
    %cst_104 = arith.constant -0.186288059 : f32
    %117 = vector.broadcast %cst_104 : f32 to vector<168x32xf32>
    %118 = arith.addf %117, %116 : vector<168x32xf32>
    %119 = arith.mulf %102, %118 : vector<168x32xf32>
    %cst_105 = arith.constant 0.0967841818 : f32
    %120 = vector.broadcast %cst_105 : f32 to vector<168x32xf32>
    %121 = arith.addf %120, %119 : vector<168x32xf32>
    %122 = arith.mulf %102, %121 : vector<168x32xf32>
    %cst_106 = arith.constant 0.374091953 : f32
    %123 = vector.broadcast %cst_106 : f32 to vector<168x32xf32>
    %124 = arith.addf %123, %122 : vector<168x32xf32>
    %125 = arith.mulf %102, %124 : vector<168x32xf32>
    %cst_107 = arith.constant 1.00002372 : f32
    %126 = vector.broadcast %cst_107 : f32 to vector<168x32xf32>
    %127 = arith.addf %126, %125 : vector<168x32xf32>
    %128 = arith.mulf %102, %127 : vector<168x32xf32>
    %cst_108 = arith.constant -1.26551223 : f32
    %129 = vector.broadcast %cst_108 : f32 to vector<168x32xf32>
    %130 = arith.addf %129, %128 : vector<168x32xf32>
    %cst_109 = arith.constant 0.000000e+00 : f32
    %131 = vector.broadcast %cst_109 : f32 to vector<168x32xf32>
    %132 = arith.subf %131, %96 : vector<168x32xf32>
    %133 = arith.mulf %132, %96 : vector<168x32xf32>
    %134 = arith.addf %133, %130 : vector<168x32xf32>
    %135 = math.exp %134 : vector<168x32xf32>
    %136 = arith.mulf %102, %135 : vector<168x32xf32>
    %cst_110 = arith.constant 0.000000e+00 : f32
    %137 = vector.broadcast %cst_110 : f32 to vector<168x32xf32>
    %138 = arith.cmpf oge, %95, %137 : vector<168x32xf32>
    %cst_111 = arith.constant 2.000000e+00 : f32
    %139 = vector.broadcast %cst_111 : f32 to vector<168x32xf32>
    %140 = arith.subf %139, %136 : vector<168x32xf32>
    %141 = arith.select %138, %136, %140 : vector<168x32xi1>, vector<168x32xf32>
    %cst_112 = arith.constant 1.000000e+00 : f32
    %142 = vector.broadcast %cst_112 : f32 to vector<168x32xf32>
    %143 = arith.subf %142, %141 : vector<168x32xf32>
    %cst_113 = arith.constant 1.000000e+00 : f32
    %144 = vector.broadcast %cst_113 : f32 to vector<168x32xf32>
    %145 = arith.addf %144, %143 : vector<168x32xf32>
    %146 = arith.mulf %93, %145 : vector<168x32xf32>
    %c0_114 = arith.constant 0 : index
    %c0_115 = arith.constant 0 : index
    %147 = vector.load %arg8[%c0_114, %c0_115] : memref<184x32xf32, #tpu.memory_space<vmem>>, vector<168x32xf32>
    tpu.vector_store %arg8[%c0_114, %c0_115], %146 {strides = array<i32>} : memref<184x32xf32, #tpu.memory_space<vmem>>, vector<168x32xf32>,
    %c0_116 = arith.constant 0 : index
    %c0_117 = arith.constant 0 : index
    %148 = tpu.strided_load %arg8[%c0_116, %c0_117] {strides = array<i32: 3, 1>} : memref<184x32xf32, #tpu.memory_space<vmem>>, vector<56x32xf32>
    %c1_118 = arith.constant 1 : index
    %c0_119 = arith.constant 0 : index
    %149 = tpu.strided_load %arg8[%c1_118, %c0_119] {strides = array<i32: 3, 1>} : memref<184x32xf32, #tpu.memory_space<vmem>>, vector<56x32xf32>
    %150 = arith.maximumf %148, %149 : vector<56x32xf32>
    %c2_120 = arith.constant 2 : index
    %c0_121 = arith.constant 0 : index
    %151 = tpu.strided_load %arg8[%c2_120, %c0_121] {strides = array<i32: 3, 1>} : memref<184x32xf32, #tpu.memory_space<vmem>>, vector<56x32xf32>
    %152 = arith.maximumf %150, %151 : vector<56x32xf32>
    %c0_122 = arith.constant 0 : index
    %c0_123 = arith.constant 0 : index
    %153 = vector.load %arg7[%c0_122, %c0_123] : memref<184x32xf32, #tpu.memory_space<vmem>>, vector<184x32xf32>
    tpu.vector_store %arg7[%c0_122, %c0_123], %0 {strides = array<i32>} : memref<184x32xf32, #tpu.memory_space<vmem>>, vector<184x32xf32>,
    %c3_124 = arith.constant 3 : index
    %c0_125 = arith.constant 0 : index
    %154 = vector.load %arg7[%c3_124, %c0_125] : memref<184x32xf32, #tpu.memory_space<vmem>>, vector<56x32xf32>
    tpu.vector_store %arg7[%c3_124, %c0_125], %152 {strides = array<i32>} : memref<184x32xf32, #tpu.memory_space<vmem>>, vector<56x32xf32>,
    %c0_126 = arith.constant 0 : index
    %c0_127 = arith.constant 0 : index
    %155 = vector.load %arg7[%c0_126, %c0_127] : memref<184x32xf32, #tpu.memory_space<vmem>>, vector<57x32xf32>
    %c17 = arith.constant 17 : index
    %c0_128 = arith.constant 0 : index
    %c0_129 = arith.constant 0 : index
    %156 = vector.load %arg2[%c17, %c0_128, %c0_129] : memref<29x32x32xf32, #tpu.memory_space<vmem>>, vector<1x32x32xf32>
    %157 = vector.shape_cast %156 : vector<1x32x32xf32> to vector<32x32xf32>
    %cst_130 = arith.constant dense<0.000000e+00> : vector<57x32xf32>
    %158 = tpu.matmul %155, %157, %cst_130 {dimension_numbers = #tpu.dot_dimension_numbers<[1], [0], [0], [1], [0, 0, 1, 1], [], []>} : vector<57x32xf32>, vector<32x32xf32>, vector<57x32xf32> -> vector<57x32xf32>
    %c1_131 = arith.constant 1 : index
    %c0_132 = arith.constant 0 : index
    %159 = vector.load %arg7[%c1_131, %c0_132] : memref<184x32xf32, #tpu.memory_space<vmem>>, vector<57x32xf32>
    %c18 = arith.constant 18 : index
    %c0_133 = arith.constant 0 : index
    %c0_134 = arith.constant 0 : index
    %160 = vector.load %arg2[%c18, %c0_133, %c0_134] : memref<29x32x32xf32, #tpu.memory_space<vmem>>, vector<1x32x32xf32>
    %161 = vector.shape_cast %160 : vector<1x32x32xf32> to vector<32x32xf32>
    %cst_135 = arith.constant dense<0.000000e+00> : vector<57x32xf32>
    %162 = tpu.matmul %159, %161, %cst_135 {dimension_numbers = #tpu.dot_dimension_numbers<[1], [0], [0], [1], [0, 0, 1, 1], [], []>} : vector<57x32xf32>, vector<32x32xf32>, vector<57x32xf32> -> vector<57x32xf32>
    %163 = arith.addf %158, %162 : vector<57x32xf32>
    %c2_136 = arith.constant 2 : index
    %c0_137 = arith.constant 0 : index
    %164 = vector.load %arg7[%c2_136, %c0_137] : memref<184x32xf32, #tpu.memory_space<vmem>>, vector<57x32xf32>
    %c19 = arith.constant 19 : index
    %c0_138 = arith.constant 0 : index
    %c0_139 = arith.constant 0 : index
    %165 = vector.load %arg2[%c19, %c0_138, %c0_139] : memref<29x32x32xf32, #tpu.memory_space<vmem>>, vector<1x32x32xf32>
    %166 = vector.shape_cast %165 : vector<1x32x32xf32> to vector<32x32xf32>
    %cst_140 = arith.constant dense<0.000000e+00> : vector<57x32xf32>
    %167 = tpu.matmul %164, %166, %cst_140 {dimension_numbers = #tpu.dot_dimension_numbers<[1], [0], [0], [1], [0, 0, 1, 1], [], []>} : vector<57x32xf32>, vector<32x32xf32>, vector<57x32xf32> -> vector<57x32xf32>
    %168 = arith.addf %163, %167 : vector<57x32xf32>
    %c3_141 = arith.constant 3 : index
    %c0_142 = arith.constant 0 : index
    %169 = vector.load %arg7[%c3_141, %c0_142] : memref<184x32xf32, #tpu.memory_space<vmem>>, vector<57x32xf32>
    %c20 = arith.constant 20 : index
    %c0_143 = arith.constant 0 : index
    %c0_144 = arith.constant 0 : index
    %170 = vector.load %arg2[%c20, %c0_143, %c0_144] : memref<29x32x32xf32, #tpu.memory_space<vmem>>, vector<1x32x32xf32>
    %171 = vector.shape_cast %170 : vector<1x32x32xf32> to vector<32x32xf32>
    %cst_145 = arith.constant dense<0.000000e+00> : vector<57x32xf32>
    %172 = tpu.matmul %169, %171, %cst_145 {dimension_numbers = #tpu.dot_dimension_numbers<[1], [0], [0], [1], [0, 0, 1, 1], [], []>} : vector<57x32xf32>, vector<32x32xf32>, vector<57x32xf32> -> vector<57x32xf32>
    %173 = arith.addf %168, %172 : vector<57x32xf32>
    %c4_146 = arith.constant 4 : index
    %c0_147 = arith.constant 0 : index
    %174 = vector.load %arg7[%c4_146, %c0_147] : memref<184x32xf32, #tpu.memory_space<vmem>>, vector<57x32xf32>
    %c21 = arith.constant 21 : index
    %c0_148 = arith.constant 0 : index
    %c0_149 = arith.constant 0 : index
    %175 = vector.load %arg2[%c21, %c0_148, %c0_149] : memref<29x32x32xf32, #tpu.memory_space<vmem>>, vector<1x32x32xf32>
    %176 = vector.shape_cast %175 : vector<1x32x32xf32> to vector<32x32xf32>
    %cst_150 = arith.constant dense<0.000000e+00> : vector<57x32xf32>
    %177 = tpu.matmul %174, %176, %cst_150 {dimension_numbers = #tpu.dot_dimension_numbers<[1], [0], [0], [1], [0, 0, 1, 1], [], []>} : vector<57x32xf32>, vector<32x32xf32>, vector<57x32xf32> -> vector<57x32xf32>
    %178 = arith.addf %173, %177 : vector<57x32xf32>
    %c5_151 = arith.constant 5 : index
    %c0_152 = arith.constant 0 : index
    %179 = vector.load %arg7[%c5_151, %c0_152] : memref<184x32xf32, #tpu.memory_space<vmem>>, vector<57x32xf32>
    %c22 = arith.constant 22 : index
    %c0_153 = arith.constant 0 : index
    %c0_154 = arith.constant 0 : index
    %180 = vector.load %arg2[%c22, %c0_153, %c0_154] : memref<29x32x32xf32, #tpu.memory_space<vmem>>, vector<1x32x32xf32>
    %181 = vector.shape_cast %180 : vector<1x32x32xf32> to vector<32x32xf32>
    %cst_155 = arith.constant dense<0.000000e+00> : vector<57x32xf32>
    %182 = tpu.matmul %179, %181, %cst_155 {dimension_numbers = #tpu.dot_dimension_numbers<[1], [0], [0], [1], [0, 0, 1, 1], [], []>} : vector<57x32xf32>, vector<32x32xf32>, vector<57x32xf32> -> vector<57x32xf32>
    %183 = arith.addf %178, %182 : vector<57x32xf32>
    %c1_156 = arith.constant 1 : index
    %c0_157 = arith.constant 0 : index
    %184 = vector.load %arg3[%c1_156, %c0_157] : memref<3x32xf32, #tpu.memory_space<vmem>>, vector<1x32xf32>
    %185 = vector.broadcast %184 : vector<1x32xf32> to vector<57x32xf32>
    %186 = arith.addf %183, %185 : vector<57x32xf32>
    %cst_158 = arith.constant 5.000000e-01 : f32
    %187 = vector.broadcast %cst_158 : f32 to vector<57x32xf32>
    %188 = arith.mulf %187, %186 : vector<57x32xf32>
    %cst_159 = arith.constant 0.707106769 : f32
    %189 = vector.broadcast %cst_159 : f32 to vector<57x32xf32>
    %190 = arith.mulf %186, %189 : vector<57x32xf32>
    %191 = math.absf %190 : vector<57x32xf32>
    %cst_160 = arith.constant 5.000000e-01 : f32
    %192 = vector.broadcast %cst_160 : f32 to vector<57x32xf32>
    %193 = arith.mulf %192, %191 : vector<57x32xf32>
    %cst_161 = arith.constant 1.000000e+00 : f32
    %194 = vector.broadcast %cst_161 : f32 to vector<57x32xf32>
    %195 = arith.addf %194, %193 : vector<57x32xf32>
    %cst_162 = arith.constant 1.000000e+00 : f32
    %196 = vector.broadcast %cst_162 : f32 to vector<57x32xf32>
    %197 = arith.divf %196, %195 : vector<57x32xf32>
    %cst_163 = arith.constant 0.170872763 : f32
    %198 = vector.broadcast %cst_163 : f32 to vector<57x32xf32>
    %199 = arith.mulf %197, %198 : vector<57x32xf32>
    %cst_164 = arith.constant -0.822152256 : f32
    %200 = vector.broadcast %cst_164 : f32 to vector<57x32xf32>
    %201 = arith.addf %200, %199 : vector<57x32xf32>
    %202 = arith.mulf %197, %201 : vector<57x32xf32>
    %cst_165 = arith.constant 1.48851585 : f32
    %203 = vector.broadcast %cst_165 : f32 to vector<57x32xf32>
    %204 = arith.addf %203, %202 : vector<57x32xf32>
    %205 = arith.mulf %197, %204 : vector<57x32xf32>
    %cst_166 = arith.constant -1.13520396 : f32
    %206 = vector.broadcast %cst_166 : f32 to vector<57x32xf32>
    %207 = arith.addf %206, %205 : vector<57x32xf32>
    %208 = arith.mulf %197, %207 : vector<57x32xf32>
    %cst_167 = arith.constant 0.278868079 : f32
    %209 = vector.broadcast %cst_167 : f32 to vector<57x32xf32>
    %210 = arith.addf %209, %208 : vector<57x32xf32>
    %211 = arith.mulf %197, %210 : vector<57x32xf32>
    %cst_168 = arith.constant -0.186288059 : f32
    %212 = vector.broadcast %cst_168 : f32 to vector<57x32xf32>
    %213 = arith.addf %212, %211 : vector<57x32xf32>
    %214 = arith.mulf %197, %213 : vector<57x32xf32>
    %cst_169 = arith.constant 0.0967841818 : f32
    %215 = vector.broadcast %cst_169 : f32 to vector<57x32xf32>
    %216 = arith.addf %215, %214 : vector<57x32xf32>
    %217 = arith.mulf %197, %216 : vector<57x32xf32>
    %cst_170 = arith.constant 0.374091953 : f32
    %218 = vector.broadcast %cst_170 : f32 to vector<57x32xf32>
    %219 = arith.addf %218, %217 : vector<57x32xf32>
    %220 = arith.mulf %197, %219 : vector<57x32xf32>
    %cst_171 = arith.constant 1.00002372 : f32
    %221 = vector.broadcast %cst_171 : f32 to vector<57x32xf32>
    %222 = arith.addf %221, %220 : vector<57x32xf32>
    %223 = arith.mulf %197, %222 : vector<57x32xf32>
    %cst_172 = arith.constant -1.26551223 : f32
    %224 = vector.broadcast %cst_172 : f32 to vector<57x32xf32>
    %225 = arith.addf %224, %223 : vector<57x32xf32>
    %cst_173 = arith.constant 0.000000e+00 : f32
    %226 = vector.broadcast %cst_173 : f32 to vector<57x32xf32>
    %227 = arith.subf %226, %191 : vector<57x32xf32>
    %228 = arith.mulf %227, %191 : vector<57x32xf32>
    %229 = arith.addf %228, %225 : vector<57x32xf32>
    %230 = math.exp %229 : vector<57x32xf32>
    %231 = arith.mulf %197, %230 : vector<57x32xf32>
    %cst_174 = arith.constant 0.000000e+00 : f32
    %232 = vector.broadcast %cst_174 : f32 to vector<57x32xf32>
    %233 = arith.cmpf oge, %190, %232 : vector<57x32xf32>
    %cst_175 = arith.constant 2.000000e+00 : f32
    %234 = vector.broadcast %cst_175 : f32 to vector<57x32xf32>
    %235 = arith.subf %234, %231 : vector<57x32xf32>
    %236 = arith.select %233, %231, %235 : vector<57x32xi1>, vector<57x32xf32>
    %cst_176 = arith.constant 1.000000e+00 : f32
    %237 = vector.broadcast %cst_176 : f32 to vector<57x32xf32>
    %238 = arith.subf %237, %236 : vector<57x32xf32>
    %cst_177 = arith.constant 1.000000e+00 : f32
    %239 = vector.broadcast %cst_177 : f32 to vector<57x32xf32>
    %240 = arith.addf %239, %238 : vector<57x32xf32>
    %241 = arith.mulf %188, %240 : vector<57x32xf32>
    %c0_178 = arith.constant 0 : index
    %c0_179 = arith.constant 0 : index
    %242 = vector.load %arg8[%c0_178, %c0_179] : memref<184x32xf32, #tpu.memory_space<vmem>>, vector<57x32xf32>
    tpu.vector_store %arg8[%c0_178, %c0_179], %241 {strides = array<i32>} : memref<184x32xf32, #tpu.memory_space<vmem>>, vector<57x32xf32>,
    %c0_180 = arith.constant 0 : index
    %c0_181 = arith.constant 0 : index
    %243 = tpu.strided_load %arg8[%c0_180, %c0_181] {strides = array<i32: 2, 1>} : memref<184x32xf32, #tpu.memory_space<vmem>>, vector<28x32xf32>
    %c1_182 = arith.constant 1 : index
    %c0_183 = arith.constant 0 : index
    %244 = tpu.strided_load %arg8[%c1_182, %c0_183] {strides = array<i32: 2, 1>} : memref<184x32xf32, #tpu.memory_space<vmem>>, vector<28x32xf32>
    %245 = arith.maximumf %243, %244 : vector<28x32xf32>
    %c0_184 = arith.constant 0 : index
    %c0_185 = arith.constant 0 : index
    %246 = vector.load %arg7[%c0_184, %c0_185] : memref<184x32xf32, #tpu.memory_space<vmem>>, vector<184x32xf32>
    tpu.vector_store %arg7[%c0_184, %c0_185], %0 {strides = array<i32>} : memref<184x32xf32, #tpu.memory_space<vmem>>, vector<184x32xf32>,
    %c3_186 = arith.constant 3 : index
    %c0_187 = arith.constant 0 : index
    %247 = vector.load %arg7[%c3_186, %c0_187] : memref<184x32xf32, #tpu.memory_space<vmem>>, vector<28x32xf32>
    tpu.vector_store %arg7[%c3_186, %c0_187], %245 {strides = array<i32>} : memref<184x32xf32, #tpu.memory_space<vmem>>, vector<28x32xf32>,
    %c0_188 = arith.constant 0 : index
    %c0_189 = arith.constant 0 : index
    %248 = vector.load %arg7[%c0_188, %c0_189] : memref<184x32xf32, #tpu.memory_space<vmem>>, vector<29x32xf32>
    %c23 = arith.constant 23 : index
    %c0_190 = arith.constant 0 : index
    %c0_191 = arith.constant 0 : index
    %249 = vector.load %arg2[%c23, %c0_190, %c0_191] : memref<29x32x32xf32, #tpu.memory_space<vmem>>, vector<1x32x32xf32>
    %250 = vector.shape_cast %249 : vector<1x32x32xf32> to vector<32x32xf32>
    %cst_192 = arith.constant dense<0.000000e+00> : vector<29x32xf32>
    %251 = tpu.matmul %248, %250, %cst_192 {dimension_numbers = #tpu.dot_dimension_numbers<[1], [0], [0], [1], [0, 0, 1, 1], [], []>} : vector<29x32xf32>, vector<32x32xf32>, vector<29x32xf32> -> vector<29x32xf32>
    %c1_193 = arith.constant 1 : index
    %c0_194 = arith.constant 0 : index
    %252 = vector.load %arg7[%c1_193, %c0_194] : memref<184x32xf32, #tpu.memory_space<vmem>>, vector<29x32xf32>
    %c24 = arith.constant 24 : index
    %c0_195 = arith.constant 0 : index
    %c0_196 = arith.constant 0 : index
    %253 = vector.load %arg2[%c24, %c0_195, %c0_196] : memref<29x32x32xf32, #tpu.memory_space<vmem>>, vector<1x32x32xf32>
    %254 = vector.shape_cast %253 : vector<1x32x32xf32> to vector<32x32xf32>
    %cst_197 = arith.constant dense<0.000000e+00> : vector<29x32xf32>
    %255 = tpu.matmul %252, %254, %cst_197 {dimension_numbers = #tpu.dot_dimension_numbers<[1], [0], [0], [1], [0, 0, 1, 1], [], []>} : vector<29x32xf32>, vector<32x32xf32>, vector<29x32xf32> -> vector<29x32xf32>
    %256 = arith.addf %251, %255 : vector<29x32xf32>
    %c2_198 = arith.constant 2 : index
    %c0_199 = arith.constant 0 : index
    %257 = vector.load %arg7[%c2_198, %c0_199] : memref<184x32xf32, #tpu.memory_space<vmem>>, vector<29x32xf32>
    %c25 = arith.constant 25 : index
    %c0_200 = arith.constant 0 : index
    %c0_201 = arith.constant 0 : index
    %258 = vector.load %arg2[%c25, %c0_200, %c0_201] : memref<29x32x32xf32, #tpu.memory_space<vmem>>, vector<1x32x32xf32>
    %259 = vector.shape_cast %258 : vector<1x32x32xf32> to vector<32x32xf32>
    %cst_202 = arith.constant dense<0.000000e+00> : vector<29x32xf32>
    %260 = tpu.matmul %257, %259, %cst_202 {dimension_numbers = #tpu.dot_dimension_numbers<[1], [0], [0], [1], [0, 0, 1, 1], [], []>} : vector<29x32xf32>, vector<32x32xf32>, vector<29x32xf32> -> vector<29x32xf32>
    %261 = arith.addf %256, %260 : vector<29x32xf32>
    %c3_203 = arith.constant 3 : index
    %c0_204 = arith.constant 0 : index
    %262 = vector.load %arg7[%c3_203, %c0_204] : memref<184x32xf32, #tpu.memory_space<vmem>>, vector<29x32xf32>
    %c26 = arith.constant 26 : index
    %c0_205 = arith.constant 0 : index
    %c0_206 = arith.constant 0 : index
    %263 = vector.load %arg2[%c26, %c0_205, %c0_206] : memref<29x32x32xf32, #tpu.memory_space<vmem>>, vector<1x32x32xf32>
    %264 = vector.shape_cast %263 : vector<1x32x32xf32> to vector<32x32xf32>
    %cst_207 = arith.constant dense<0.000000e+00> : vector<29x32xf32>
    %265 = tpu.matmul %262, %264, %cst_207 {dimension_numbers = #tpu.dot_dimension_numbers<[1], [0], [0], [1], [0, 0, 1, 1], [], []>} : vector<29x32xf32>, vector<32x32xf32>, vector<29x32xf32> -> vector<29x32xf32>
    %266 = arith.addf %261, %265 : vector<29x32xf32>
    %c4_208 = arith.constant 4 : index
    %c0_209 = arith.constant 0 : index
    %267 = vector.load %arg7[%c4_208, %c0_209] : memref<184x32xf32, #tpu.memory_space<vmem>>, vector<29x32xf32>
    %c27 = arith.constant 27 : index
    %c0_210 = arith.constant 0 : index
    %c0_211 = arith.constant 0 : index
    %268 = vector.load %arg2[%c27, %c0_210, %c0_211] : memref<29x32x32xf32, #tpu.memory_space<vmem>>, vector<1x32x32xf32>
    %269 = vector.shape_cast %268 : vector<1x32x32xf32> to vector<32x32xf32>
    %cst_212 = arith.constant dense<0.000000e+00> : vector<29x32xf32>
    %270 = tpu.matmul %267, %269, %cst_212 {dimension_numbers = #tpu.dot_dimension_numbers<[1], [0], [0], [1], [0, 0, 1, 1], [], []>} : vector<29x32xf32>, vector<32x32xf32>, vector<29x32xf32> -> vector<29x32xf32>
    %271 = arith.addf %266, %270 : vector<29x32xf32>
    %c5_213 = arith.constant 5 : index
    %c0_214 = arith.constant 0 : index
    %272 = vector.load %arg7[%c5_213, %c0_214] : memref<184x32xf32, #tpu.memory_space<vmem>>, vector<29x32xf32>
    %c28 = arith.constant 28 : index
    %c0_215 = arith.constant 0 : index
    %c0_216 = arith.constant 0 : index
    %273 = vector.load %arg2[%c28, %c0_215, %c0_216] : memref<29x32x32xf32, #tpu.memory_space<vmem>>, vector<1x32x32xf32>
    %274 = vector.shape_cast %273 : vector<1x32x32xf32> to vector<32x32xf32>
    %cst_217 = arith.constant dense<0.000000e+00> : vector<29x32xf32>
    %275 = tpu.matmul %272, %274, %cst_217 {dimension_numbers = #tpu.dot_dimension_numbers<[1], [0], [0], [1], [0, 0, 1, 1], [], []>} : vector<29x32xf32>, vector<32x32xf32>, vector<29x32xf32> -> vector<29x32xf32>
    %276 = arith.addf %271, %275 : vector<29x32xf32>
    %c2_218 = arith.constant 2 : index
    %c0_219 = arith.constant 0 : index
    %277 = vector.load %arg3[%c2_218, %c0_219] : memref<3x32xf32, #tpu.memory_space<vmem>>, vector<1x32xf32>
    %278 = vector.broadcast %277 : vector<1x32xf32> to vector<29x32xf32>
    %279 = arith.addf %276, %278 : vector<29x32xf32>
    %cst_220 = arith.constant 5.000000e-01 : f32
    %280 = vector.broadcast %cst_220 : f32 to vector<29x32xf32>
    %281 = arith.mulf %280, %279 : vector<29x32xf32>
    %cst_221 = arith.constant 0.707106769 : f32
    %282 = vector.broadcast %cst_221 : f32 to vector<29x32xf32>
    %283 = arith.mulf %279, %282 : vector<29x32xf32>
    %284 = math.absf %283 : vector<29x32xf32>
    %cst_222 = arith.constant 5.000000e-01 : f32
    %285 = vector.broadcast %cst_222 : f32 to vector<29x32xf32>
    %286 = arith.mulf %285, %284 : vector<29x32xf32>
    %cst_223 = arith.constant 1.000000e+00 : f32
    %287 = vector.broadcast %cst_223 : f32 to vector<29x32xf32>
    %288 = arith.addf %287, %286 : vector<29x32xf32>
    %cst_224 = arith.constant 1.000000e+00 : f32
    %289 = vector.broadcast %cst_224 : f32 to vector<29x32xf32>
    %290 = arith.divf %289, %288 : vector<29x32xf32>
    %cst_225 = arith.constant 0.170872763 : f32
    %291 = vector.broadcast %cst_225 : f32 to vector<29x32xf32>
    %292 = arith.mulf %290, %291 : vector<29x32xf32>
    %cst_226 = arith.constant -0.822152256 : f32
    %293 = vector.broadcast %cst_226 : f32 to vector<29x32xf32>
    %294 = arith.addf %293, %292 : vector<29x32xf32>
    %295 = arith.mulf %290, %294 : vector<29x32xf32>
    %cst_227 = arith.constant 1.48851585 : f32
    %296 = vector.broadcast %cst_227 : f32 to vector<29x32xf32>
    %297 = arith.addf %296, %295 : vector<29x32xf32>
    %298 = arith.mulf %290, %297 : vector<29x32xf32>
    %cst_228 = arith.constant -1.13520396 : f32
    %299 = vector.broadcast %cst_228 : f32 to vector<29x32xf32>
    %300 = arith.addf %299, %298 : vector<29x32xf32>
    %301 = arith.mulf %290, %300 : vector<29x32xf32>
    %cst_229 = arith.constant 0.278868079 : f32
    %302 = vector.broadcast %cst_229 : f32 to vector<29x32xf32>
    %303 = arith.addf %302, %301 : vector<29x32xf32>
    %304 = arith.mulf %290, %303 : vector<29x32xf32>
    %cst_230 = arith.constant -0.186288059 : f32
    %305 = vector.broadcast %cst_230 : f32 to vector<29x32xf32>
    %306 = arith.addf %305, %304 : vector<29x32xf32>
    %307 = arith.mulf %290, %306 : vector<29x32xf32>
    %cst_231 = arith.constant 0.0967841818 : f32
    %308 = vector.broadcast %cst_231 : f32 to vector<29x32xf32>
    %309 = arith.addf %308, %307 : vector<29x32xf32>
    %310 = arith.mulf %290, %309 : vector<29x32xf32>
    %cst_232 = arith.constant 0.374091953 : f32
    %311 = vector.broadcast %cst_232 : f32 to vector<29x32xf32>
    %312 = arith.addf %311, %310 : vector<29x32xf32>
    %313 = arith.mulf %290, %312 : vector<29x32xf32>
    %cst_233 = arith.constant 1.00002372 : f32
    %314 = vector.broadcast %cst_233 : f32 to vector<29x32xf32>
    %315 = arith.addf %314, %313 : vector<29x32xf32>
    %316 = arith.mulf %290, %315 : vector<29x32xf32>
    %cst_234 = arith.constant -1.26551223 : f32
    %317 = vector.broadcast %cst_234 : f32 to vector<29x32xf32>
    %318 = arith.addf %317, %316 : vector<29x32xf32>
    %cst_235 = arith.constant 0.000000e+00 : f32
    %319 = vector.broadcast %cst_235 : f32 to vector<29x32xf32>
    %320 = arith.subf %319, %284 : vector<29x32xf32>
    %321 = arith.mulf %320, %284 : vector<29x32xf32>
    %322 = arith.addf %321, %318 : vector<29x32xf32>
    %323 = math.exp %322 : vector<29x32xf32>
    %324 = arith.mulf %290, %323 : vector<29x32xf32>
    %cst_236 = arith.constant 0.000000e+00 : f32
    %325 = vector.broadcast %cst_236 : f32 to vector<29x32xf32>
    %326 = arith.cmpf oge, %283, %325 : vector<29x32xf32>
    %cst_237 = arith.constant 2.000000e+00 : f32
    %327 = vector.broadcast %cst_237 : f32 to vector<29x32xf32>
    %328 = arith.subf %327, %324 : vector<29x32xf32>
    %329 = arith.select %326, %324, %328 : vector<29x32xi1>, vector<29x32xf32>
    %cst_238 = arith.constant 1.000000e+00 : f32
    %330 = vector.broadcast %cst_238 : f32 to vector<29x32xf32>
    %331 = arith.subf %330, %329 : vector<29x32xf32>
    %cst_239 = arith.constant 1.000000e+00 : f32
    %332 = vector.broadcast %cst_239 : f32 to vector<29x32xf32>
    %333 = arith.addf %332, %331 : vector<29x32xf32>
    %334 = arith.mulf %281, %333 : vector<29x32xf32>
    %c0_240 = arith.constant 0 : index
    %c0_241 = arith.constant 0 : index
    %335 = vector.load %arg8[%c0_240, %c0_241] : memref<184x32xf32, #tpu.memory_space<vmem>>, vector<29x32xf32>
    tpu.vector_store %arg8[%c0_240, %c0_241], %334 {strides = array<i32>} : memref<184x32xf32, #tpu.memory_space<vmem>>, vector<29x32xf32>,
    %c0_242 = arith.constant 0 : index
    %c0_243 = arith.constant 0 : index
    %336 = tpu.strided_load %arg8[%c0_242, %c0_243] {strides = array<i32: 2, 1>} : memref<184x32xf32, #tpu.memory_space<vmem>>, vector<14x32xf32>
    %c1_244 = arith.constant 1 : index
    %c0_245 = arith.constant 0 : index
    %337 = tpu.strided_load %arg8[%c1_244, %c0_245] {strides = array<i32: 2, 1>} : memref<184x32xf32, #tpu.memory_space<vmem>>, vector<14x32xf32>
    %338 = arith.maximumf %336, %337 : vector<14x32xf32>
    %c0_246 = arith.constant 0 : index
    %c0_247 = arith.constant 0 : index
    %339 = vector.load %arg8[%c0_246, %c0_247] : memref<184x32xf32, #tpu.memory_space<vmem>>, vector<14x32xf32>
    tpu.vector_store %arg8[%c0_246, %c0_247], %338 {strides = array<i32>} : memref<184x32xf32, #tpu.memory_space<vmem>>, vector<14x32xf32>,
    %c0_248 = arith.constant 0 : index
    %c0_249 = arith.constant 0 : index
    %340 = vector.load %arg8[%c0_248, %c0_249] : memref<184x32xf32, #tpu.memory_space<vmem>>, vector<1x32xf32>
    %c0_250 = arith.constant 0 : index
    %c0_251 = arith.constant 0 : index
    %c0_252 = arith.constant 0 : index
    %341 = vector.load %arg4[%c0_250, %c0_251, %c0_252] : memref<14x32x32xf32, #tpu.memory_space<vmem>>, vector<1x32x32xf32>
    %342 = vector.shape_cast %341 : vector<1x32x32xf32> to vector<32x32xf32>
    %cst_253 = arith.constant dense<0.000000e+00> : vector<1x32xf32>
    %343 = tpu.matmul %340, %342, %cst_253 {dimension_numbers = #tpu.dot_dimension_numbers<[1], [0], [0], [1], [0, 0, 1, 1], [], []>} : vector<1x32xf32>, vector<32x32xf32>, vector<1x32xf32> -> vector<1x32xf32>
    %c1_254 = arith.constant 1 : index
    %c0_255 = arith.constant 0 : index
    %344 = vector.load %arg8[%c1_254, %c0_255] : memref<184x32xf32, #tpu.memory_space<vmem>>, vector<1x32xf32>
    %c1_256 = arith.constant 1 : index
    %c0_257 = arith.constant 0 : index
    %c0_258 = arith.constant 0 : index
    %345 = vector.load %arg4[%c1_256, %c0_257, %c0_258] : memref<14x32x32xf32, #tpu.memory_space<vmem>>, vector<1x32x32xf32>
    %346 = vector.shape_cast %345 : vector<1x32x32xf32> to vector<32x32xf32>
    %cst_259 = arith.constant dense<0.000000e+00> : vector<1x32xf32>
    %347 = tpu.matmul %344, %346, %cst_259 {dimension_numbers = #tpu.dot_dimension_numbers<[1], [0], [0], [1], [0, 0, 1, 1], [], []>} : vector<1x32xf32>, vector<32x32xf32>, vector<1x32xf32> -> vector<1x32xf32>
    %348 = arith.addf %343, %347 : vector<1x32xf32>
    %c2_260 = arith.constant 2 : index
    %c0_261 = arith.constant 0 : index
    %349 = vector.load %arg8[%c2_260, %c0_261] : memref<184x32xf32, #tpu.memory_space<vmem>>, vector<1x32xf32>
    %c2_262 = arith.constant 2 : index
    %c0_263 = arith.constant 0 : index
    %c0_264 = arith.constant 0 : index
    %350 = vector.load %arg4[%c2_262, %c0_263, %c0_264] : memref<14x32x32xf32, #tpu.memory_space<vmem>>, vector<1x32x32xf32>
    %351 = vector.shape_cast %350 : vector<1x32x32xf32> to vector<32x32xf32>
    %cst_265 = arith.constant dense<0.000000e+00> : vector<1x32xf32>
    %352 = tpu.matmul %349, %351, %cst_265 {dimension_numbers = #tpu.dot_dimension_numbers<[1], [0], [0], [1], [0, 0, 1, 1], [], []>} : vector<1x32xf32>, vector<32x32xf32>, vector<1x32xf32> -> vector<1x32xf32>
    %353 = arith.addf %348, %352 : vector<1x32xf32>
    %c3_266 = arith.constant 3 : index
    %c0_267 = arith.constant 0 : index
    %354 = vector.load %arg8[%c3_266, %c0_267] : memref<184x32xf32, #tpu.memory_space<vmem>>, vector<1x32xf32>
    %c3_268 = arith.constant 3 : index
    %c0_269 = arith.constant 0 : index
    %c0_270 = arith.constant 0 : index
    %355 = vector.load %arg4[%c3_268, %c0_269, %c0_270] : memref<14x32x32xf32, #tpu.memory_space<vmem>>, vector<1x32x32xf32>
    %356 = vector.shape_cast %355 : vector<1x32x32xf32> to vector<32x32xf32>
    %cst_271 = arith.constant dense<0.000000e+00> : vector<1x32xf32>
    %357 = tpu.matmul %354, %356, %cst_271 {dimension_numbers = #tpu.dot_dimension_numbers<[1], [0], [0], [1], [0, 0, 1, 1], [], []>} : vector<1x32xf32>, vector<32x32xf32>, vector<1x32xf32> -> vector<1x32xf32>
    %358 = arith.addf %353, %357 : vector<1x32xf32>
    %c4_272 = arith.constant 4 : index
    %c0_273 = arith.constant 0 : index
    %359 = vector.load %arg8[%c4_272, %c0_273] : memref<184x32xf32, #tpu.memory_space<vmem>>, vector<1x32xf32>
    %c4_274 = arith.constant 4 : index
    %c0_275 = arith.constant 0 : index
    %c0_276 = arith.constant 0 : index
    %360 = vector.load %arg4[%c4_274, %c0_275, %c0_276] : memref<14x32x32xf32, #tpu.memory_space<vmem>>, vector<1x32x32xf32>
    %361 = vector.shape_cast %360 : vector<1x32x32xf32> to vector<32x32xf32>
    %cst_277 = arith.constant dense<0.000000e+00> : vector<1x32xf32>
    %362 = tpu.matmul %359, %361, %cst_277 {dimension_numbers = #tpu.dot_dimension_numbers<[1], [0], [0], [1], [0, 0, 1, 1], [], []>} : vector<1x32xf32>, vector<32x32xf32>, vector<1x32xf32> -> vector<1x32xf32>
    %363 = arith.addf %358, %362 : vector<1x32xf32>
    %c5_278 = arith.constant 5 : index
    %c0_279 = arith.constant 0 : index
    %364 = vector.load %arg8[%c5_278, %c0_279] : memref<184x32xf32, #tpu.memory_space<vmem>>, vector<1x32xf32>
    %c5_280 = arith.constant 5 : index
    %c0_281 = arith.constant 0 : index
    %c0_282 = arith.constant 0 : index
    %365 = vector.load %arg4[%c5_280, %c0_281, %c0_282] : memref<14x32x32xf32, #tpu.memory_space<vmem>>, vector<1x32x32xf32>
    %366 = vector.shape_cast %365 : vector<1x32x32xf32> to vector<32x32xf32>
    %cst_283 = arith.constant dense<0.000000e+00> : vector<1x32xf32>
    %367 = tpu.matmul %364, %366, %cst_283 {dimension_numbers = #tpu.dot_dimension_numbers<[1], [0], [0], [1], [0, 0, 1, 1], [], []>} : vector<1x32xf32>, vector<32x32xf32>, vector<1x32xf32> -> vector<1x32xf32>
    %368 = arith.addf %363, %367 : vector<1x32xf32>
    %c6_284 = arith.constant 6 : index
    %c0_285 = arith.constant 0 : index
    %369 = vector.load %arg8[%c6_284, %c0_285] : memref<184x32xf32, #tpu.memory_space<vmem>>, vector<1x32xf32>
    %c6_286 = arith.constant 6 : index
    %c0_287 = arith.constant 0 : index
    %c0_288 = arith.constant 0 : index
    %370 = vector.load %arg4[%c6_286, %c0_287, %c0_288] : memref<14x32x32xf32, #tpu.memory_space<vmem>>, vector<1x32x32xf32>
    %371 = vector.shape_cast %370 : vector<1x32x32xf32> to vector<32x32xf32>
    %cst_289 = arith.constant dense<0.000000e+00> : vector<1x32xf32>
    %372 = tpu.matmul %369, %371, %cst_289 {dimension_numbers = #tpu.dot_dimension_numbers<[1], [0], [0], [1], [0, 0, 1, 1], [], []>} : vector<1x32xf32>, vector<32x32xf32>, vector<1x32xf32> -> vector<1x32xf32>
    %373 = arith.addf %368, %372 : vector<1x32xf32>
    %c7_290 = arith.constant 7 : index
    %c0_291 = arith.constant 0 : index
    %374 = vector.load %arg8[%c7_290, %c0_291] : memref<184x32xf32, #tpu.memory_space<vmem>>, vector<1x32xf32>
    %c7_292 = arith.constant 7 : index
    %c0_293 = arith.constant 0 : index
    %c0_294 = arith.constant 0 : index
    %375 = vector.load %arg4[%c7_292, %c0_293, %c0_294] : memref<14x32x32xf32, #tpu.memory_space<vmem>>, vector<1x32x32xf32>
    %376 = vector.shape_cast %375 : vector<1x32x32xf32> to vector<32x32xf32>
    %cst_295 = arith.constant dense<0.000000e+00> : vector<1x32xf32>
    %377 = tpu.matmul %374, %376, %cst_295 {dimension_numbers = #tpu.dot_dimension_numbers<[1], [0], [0], [1], [0, 0, 1, 1], [], []>} : vector<1x32xf32>, vector<32x32xf32>, vector<1x32xf32> -> vector<1x32xf32>
    %378 = arith.addf %373, %377 : vector<1x32xf32>
    %c8_296 = arith.constant 8 : index
    %c0_297 = arith.constant 0 : index
    %379 = vector.load %arg8[%c8_296, %c0_297] : memref<184x32xf32, #tpu.memory_space<vmem>>, vector<1x32xf32>
    %c8_298 = arith.constant 8 : index
    %c0_299 = arith.constant 0 : index
    %c0_300 = arith.constant 0 : index
    %380 = vector.load %arg4[%c8_298, %c0_299, %c0_300] : memref<14x32x32xf32, #tpu.memory_space<vmem>>, vector<1x32x32xf32>
    %381 = vector.shape_cast %380 : vector<1x32x32xf32> to vector<32x32xf32>
    %cst_301 = arith.constant dense<0.000000e+00> : vector<1x32xf32>
    %382 = tpu.matmul %379, %381, %cst_301 {dimension_numbers = #tpu.dot_dimension_numbers<[1], [0], [0], [1], [0, 0, 1, 1], [], []>} : vector<1x32xf32>, vector<32x32xf32>, vector<1x32xf32> -> vector<1x32xf32>
    %383 = arith.addf %378, %382 : vector<1x32xf32>
    %c9_302 = arith.constant 9 : index
    %c0_303 = arith.constant 0 : index
    %384 = vector.load %arg8[%c9_302, %c0_303] : memref<184x32xf32, #tpu.memory_space<vmem>>, vector<1x32xf32>
    %c9_304 = arith.constant 9 : index
    %c0_305 = arith.constant 0 : index
    %c0_306 = arith.constant 0 : index
    %385 = vector.load %arg4[%c9_304, %c0_305, %c0_306] : memref<14x32x32xf32, #tpu.memory_space<vmem>>, vector<1x32x32xf32>
    %386 = vector.shape_cast %385 : vector<1x32x32xf32> to vector<32x32xf32>
    %cst_307 = arith.constant dense<0.000000e+00> : vector<1x32xf32>
    %387 = tpu.matmul %384, %386, %cst_307 {dimension_numbers = #tpu.dot_dimension_numbers<[1], [0], [0], [1], [0, 0, 1, 1], [], []>} : vector<1x32xf32>, vector<32x32xf32>, vector<1x32xf32> -> vector<1x32xf32>
    %388 = arith.addf %383, %387 : vector<1x32xf32>
    %c10_308 = arith.constant 10 : index
    %c0_309 = arith.constant 0 : index
    %389 = vector.load %arg8[%c10_308, %c0_309] : memref<184x32xf32, #tpu.memory_space<vmem>>, vector<1x32xf32>
    %c10_310 = arith.constant 10 : index
    %c0_311 = arith.constant 0 : index
    %c0_312 = arith.constant 0 : index
    %390 = vector.load %arg4[%c10_310, %c0_311, %c0_312] : memref<14x32x32xf32, #tpu.memory_space<vmem>>, vector<1x32x32xf32>
    %391 = vector.shape_cast %390 : vector<1x32x32xf32> to vector<32x32xf32>
    %cst_313 = arith.constant dense<0.000000e+00> : vector<1x32xf32>
    %392 = tpu.matmul %389, %391, %cst_313 {dimension_numbers = #tpu.dot_dimension_numbers<[1], [0], [0], [1], [0, 0, 1, 1], [], []>} : vector<1x32xf32>, vector<32x32xf32>, vector<1x32xf32> -> vector<1x32xf32>
    %393 = arith.addf %388, %392 : vector<1x32xf32>
    %c11_314 = arith.constant 11 : index
    %c0_315 = arith.constant 0 : index
    %394 = vector.load %arg8[%c11_314, %c0_315] : memref<184x32xf32, #tpu.memory_space<vmem>>, vector<1x32xf32>
    %c11_316 = arith.constant 11 : index
    %c0_317 = arith.constant 0 : index
    %c0_318 = arith.constant 0 : index
    %395 = vector.load %arg4[%c11_316, %c0_317, %c0_318] : memref<14x32x32xf32, #tpu.memory_space<vmem>>, vector<1x32x32xf32>
    %396 = vector.shape_cast %395 : vector<1x32x32xf32> to vector<32x32xf32>
    %cst_319 = arith.constant dense<0.000000e+00> : vector<1x32xf32>
    %397 = tpu.matmul %394, %396, %cst_319 {dimension_numbers = #tpu.dot_dimension_numbers<[1], [0], [0], [1], [0, 0, 1, 1], [], []>} : vector<1x32xf32>, vector<32x32xf32>, vector<1x32xf32> -> vector<1x32xf32>
    %398 = arith.addf %393, %397 : vector<1x32xf32>
    %c12_320 = arith.constant 12 : index
    %c0_321 = arith.constant 0 : index
    %399 = vector.load %arg8[%c12_320, %c0_321] : memref<184x32xf32, #tpu.memory_space<vmem>>, vector<1x32xf32>
    %c12_322 = arith.constant 12 : index
    %c0_323 = arith.constant 0 : index
    %c0_324 = arith.constant 0 : index
    %400 = vector.load %arg4[%c12_322, %c0_323, %c0_324] : memref<14x32x32xf32, #tpu.memory_space<vmem>>, vector<1x32x32xf32>
    %401 = vector.shape_cast %400 : vector<1x32x32xf32> to vector<32x32xf32>
    %cst_325 = arith.constant dense<0.000000e+00> : vector<1x32xf32>
    %402 = tpu.matmul %399, %401, %cst_325 {dimension_numbers = #tpu.dot_dimension_numbers<[1], [0], [0], [1], [0, 0, 1, 1], [], []>} : vector<1x32xf32>, vector<32x32xf32>, vector<1x32xf32> -> vector<1x32xf32>
    %403 = arith.addf %398, %402 : vector<1x32xf32>
    %c13_326 = arith.constant 13 : index
    %c0_327 = arith.constant 0 : index
    %404 = vector.load %arg8[%c13_326, %c0_327] : memref<184x32xf32, #tpu.memory_space<vmem>>, vector<1x32xf32>
    %c13_328 = arith.constant 13 : index
    %c0_329 = arith.constant 0 : index
    %c0_330 = arith.constant 0 : index
    %405 = vector.load %arg4[%c13_328, %c0_329, %c0_330] : memref<14x32x32xf32, #tpu.memory_space<vmem>>, vector<1x32x32xf32>
    %406 = vector.shape_cast %405 : vector<1x32x32xf32> to vector<32x32xf32>
    %cst_331 = arith.constant dense<0.000000e+00> : vector<1x32xf32>
    %407 = tpu.matmul %404, %406, %cst_331 {dimension_numbers = #tpu.dot_dimension_numbers<[1], [0], [0], [1], [0, 0, 1, 1], [], []>} : vector<1x32xf32>, vector<32x32xf32>, vector<1x32xf32> -> vector<1x32xf32>
    %408 = arith.addf %403, %407 : vector<1x32xf32>
    %c0_332 = arith.constant 0 : index
    %c0_333 = arith.constant 0 : index
    %409 = vector.load %arg5[%c0_332, %c0_333] : memref<1x32xf32, #tpu.memory_space<vmem>>, vector<1x32xf32>
    %410 = arith.addf %408, %409 : vector<1x32xf32>
    %c0_334 = arith.constant 0 : index
    %c0_335 = arith.constant 0 : index
    %c0_336 = arith.constant 0 : index
    %411 = vector.load %arg6[%c0_334, %c0_335, %c0_336] : memref<1x1x32xf32, #tpu.memory_space<vmem>>, vector<1x1x32xf32>
    %412 = vector.shape_cast %411 : vector<1x1x32xf32> to vector<1x32xf32>
    %413 = vector.shape_cast %410 : vector<1x32xf32> to vector<1x1x32xf32>
    tpu.vector_store %arg6[%c0_334, %c0_335, %c0_336], %413 {strides = array<i32>} : memref<1x1x32xf32, #tpu.memory_space<vmem>>, vector<1x1x32xf32>,
    return
  }
  func.func @transform_0(%arg0: i32) -> (i32, i32, i32) {
    %c0_i32 = arith.constant 0 : i32
    %c0_i32_0 = arith.constant 0 : i32
    %c0_i32_1 = arith.constant 0 : i32
    return %arg0, %c0_i32, %c0_i32_0 : i32, i32, i32
  }
  func.func @transform_1(%arg0: i32) -> (i32, i32, i32) {
    %c0_i32 = arith.constant 0 : i32
    %c0_i32_0 = arith.constant 0 : i32
    %c0_i32_1 = arith.constant 0 : i32
    %c0_i32_2 = arith.constant 0 : i32
    return %c0_i32, %c0_i32_0, %c0_i32_1 : i32, i32, i32
  }
  func.func @transform_2(%arg0: i32) -> (i32, i32) {
    %c0_i32 = arith.constant 0 : i32
    %c0_i32_0 = arith.constant 0 : i32
    %c0_i32_1 = arith.constant 0 : i32
    return %c0_i32, %c0_i32_0 : i32, i32
  }
  func.func @transform_3(%arg0: i32) -> (i32, i32, i32) {
    %c0_i32 = arith.constant 0 : i32
    %c0_i32_0 = arith.constant 0 : i32
    %c0_i32_1 = arith.constant 0 : i32
    %c0_i32_2 = arith.constant 0 : i32
    return %c0_i32, %c0_i32_0, %c0_i32_1 : i32, i32, i32
  }
  func.func @transform_4(%arg0: i32) -> (i32, i32) {
    %c0_i32 = arith.constant 0 : i32
    %c0_i32_0 = arith.constant 0 : i32
    %c0_i32_1 = arith.constant 0 : i32
    return %c0_i32, %c0_i32_0 : i32, i32
  }
  func.func @transform_5(%arg0: i32) -> (i32, i32, i32) {
    %c0_i32 = arith.constant 0 : i32
    %c0_i32_0 = arith.constant 0 : i32
    %c0_i32_1 = arith.constant 0 : i32
    return %arg0, %c0_i32, %c0_i32_0 : i32, i32, i32
  }
}

</mosaic_0001>

<llo_original>
// kernel: gene_bac_encoder_forward.1
$region0: #{gene_bac_encoder_forward.1}
  #allocation0 [shape = 'u32[]', space=smem, size = 0x4, offset = 0x4, fixed_abs, tag = 'smem constant byte address 0x4 - core index']
  #allocation1 [shape = 'u32[72,128]{1,0:T(1,128)}', space=vmem, size = 0x9000, scoped, tag = 'internal scratch']
  #allocation2 [shape = 'f32[184,32]{1,0:T(8,128)}', space=vmem, size = 0x17000, scoped, tag = 'scratch operand']
  #allocation3 [shape = 'f32[184,32]{1,0:T(8,128)}', space=vmem, size = 0x17000, scoped, tag = 'scratch operand']
  %s0 = inlined_call_operand.vmem [shape: f32[2,168,4], index: 0, kind: input, shape index: {}]
  %s1 = inlined_call_operand.hbm [shape: f32[29,32,32], index: 1, kind: input, shape index: {}]
  %s2 = inlined_call_operand.vmem [shape: f32[3,32], index: 2, kind: input, shape index: {}]
  %s3 = inlined_call_operand.hbm [shape: f32[14,32,32], index: 3, kind: input, shape index: {}]
  %s4 = inlined_call_operand.vmem [shape: f32[1,32], index: 4, kind: input, shape index: {}]
  %s5 = inlined_call_operand.hbm [shape: f32[2,1,32], index: 5, kind: output, shape index: {}]
  %s6 = sld [smem:[#allocation0]]
  $region61: #{gene_bac_encoder_forward.1} parent=0
    _
  %s8 = ssub.s32 1, %s6
  %s9 = scalar_select 0, %s8, %s6
  $region1: #{gene_bac_encoder_forward.1} parent=0
    #allocation4 [shape = 'u8[475136]{0}', space=vmem, size = 0x74000, scoped, tag = 'input window, operand 1, single buffered']
    #allocation5 [shape = 's32[2]{0}', space=sflag, size = 0x8, scoped, tag = 'scoped memory for gene_bac_encoder_forward.1']
    #allocation6 [shape = 's32[2]{0}', space=sflag, size = 0x8, scoped, tag = 'scoped memory for gene_bac_encoder_forward.1']
    #allocation7 [shape = 'u8[229376]{0}', space=vmem, size = 0x38000, scoped, tag = 'input window, operand 3, single buffered']
    #allocation8 [shape = 's32[1]{0}', space=sflag, size = 0x4, scoped, tag = 'scoped memory for gene_bac_encoder_forward.1']
    #allocation9 [shape = 'u8[1024]{0}', space=vmem, size = 0x400, scoped, tag = 'output window, operand 0']
    %10 = vsyncpa [#allocation5], 0
    %11 = vsyncpa [#allocation8], 0
    %12 = vsyncpa [#allocation6], 0
    %s13 = scalar_lea.sflag [#allocation6], 1
    %14 = vsyncpa %s13, 0
    loop: start=0, step=1, limit=4
    $region2: #{gene_bac_encoder_forward.1} parent=1 // loop_pre_header
      _
    $region3: #{gene_bac_encoder_forward.1} parent=1 // loop_header
      %s16 = sphi 0, %s20
      %p17 = scmp.ge.s32.totalorder %s16, 4
      %s26 = sphi 0, %s28
      %s29 = sphi 0, %s26
      %s30 = sphi 0, %s29
      %s46 = sphi 0, %s30
      %s50 = sphi 0, %s50
      %s52 = sphi 0, %s50
      %s53 = sphi 0, %s52
      %s67 = sphi 0, %s53
      %s71 = sphi 0, %s71
      %s73 = sphi 0, %s71
      %s74 = sphi 0, %s73
      %s88 = sphi 0, %s74
      %s92 = sphi 0, %s92
      %s94 = sphi 0, %s92
      %s95 = sphi 0, %s94
      %s109 = sphi 0, %s95
      %s113 = sphi 0, %s113
      %s115 = sphi 0, %s113
      %s116 = sphi 0, %s115
      %s130 = sphi 0, %s116
      %s136 = sphi 0, %s138
      %s139 = sphi 0, %s136
      %s140 = sphi 0, %s139
      %s156 = sphi 0, %s140
    $region4: #{gene_bac_encoder_forward.1} parent=1 // loop_header_branch
      %19 = sbr.rel (%p17) target = $region8
    $region5: #{gene_bac_encoder_forward.1} parent=1 // loop_body
      %s21 = ssub.s32 %s16, 1
      %s22 = ssub.s32 %s16, 2
      %s23 = sadd.s32 %s16, 1
      %s24 = ssub.s32 %s16, %s23
      %p25 = scmp.eq.s32.totalorder %s24, 0
      %s27 = sadd.s32 %s26, 1
      %s28 = scalar_select %p25, %s26, %s27
      %p31 = pneg %p25
      %p32 = scmp.eq.s32.totalorder %s16, 1
      %p33 = por %p31, %p32
      %p34 = scmp.ne.s32.totalorder %s26, %s29
      %p35 = scmp.eq.s32.totalorder %s16, 0
      %p36 = por %p34, %p35
      %p37 = scmp.ne.s32.totalorder %s26, %s29
      %p38 = scmp.eq.s32.totalorder %s21, 1
      %p39 = por %p37, %p38
      %p40 = scmp.ne.s32.totalorder %s29, %s30
      %p41 = scmp.eq.s32.totalorder %s21, 0
      %p42 = por %p40, %p41
      %p43 = scmp.ne.s32.totalorder %s29, %s30
      %p44 = scmp.eq.s32.totalorder %s22, 1
      %p45 = por %p43, %p44
      %p47 = scmp.ne.s32.totalorder %s30, %s46
      %p48 = scmp.eq.s32.totalorder %s22, 0
      %p49 = por %p47, %p48
      %s51 = sadd.s32 %s50, 1
      %p54 = scmp.eq.s32.totalorder %s16, 1
      %p55 = scmp.ne.s32.totalorder %s50, %s52
      %p56 = scmp.eq.s32.totalorder %s16, 0
      %p57 = por %p55, %p56
      %p58 = scmp.ne.s32.totalorder %s50, %s52
      %p59 = scmp.eq.s32.totalorder %s21, 1
      %p60 = por %p58, %p59
      %p61 = scmp.ne.s32.totalorder %s52, %s53
      %p62 = scmp.eq.s32.totalorder %s21, 0
      %p63 = por %p61, %p62
      %p64 = scmp.ne.s32.totalorder %s52, %s53
      %p65 = scmp.eq.s32.totalorder %s22, 1
      %p66 = por %p64, %p65
      %p68 = scmp.ne.s32.totalorder %s53, %s67
      %p69 = scmp.eq.s32.totalorder %s22, 0
      %p70 = por %p68, %p69
      %s72 = sadd.s32 %s71, 1
      %p75 = scmp.eq.s32.totalorder %s16, 1
      %p76 = scmp.ne.s32.totalorder %s71, %s73
      %p77 = scmp.eq.s32.totalorder %s16, 0
      %p78 = por %p76, %p77
      %p79 = scmp.ne.s32.totalorder %s71, %s73
      %p80 = scmp.eq.s32.totalorder %s21, 1
      %p81 = por %p79, %p80
      %p82 = scmp.ne.s32.totalorder %s73, %s74
      %p83 = scmp.eq.s32.totalorder %s21, 0
      %p84 = por %p82, %p83
      %p85 = scmp.ne.s32.totalorder %s73, %s74
      %p86 = scmp.eq.s32.totalorder %s22, 1
      %p87 = por %p85, %p86
      %p89 = scmp.ne.s32.totalorder %s74, %s88
      %p90 = scmp.eq.s32.totalorder %s22, 0
      %p91 = por %p89, %p90
      %s93 = sadd.s32 %s92, 1
      %p96 = scmp.eq.s32.totalorder %s16, 1
      %p97 = scmp.ne.s32.totalorder %s92, %s94
      %p98 = scmp.eq.s32.totalorder %s16, 0
      %p99 = por %p97, %p98
      %p100 = scmp.ne.s32.totalorder %s92, %s94
      %p101 = scmp.eq.s32.totalorder %s21, 1
      %p102 = por %p100, %p101
      %p103 = scmp.ne.s32.totalorder %s94, %s95
      %p104 = scmp.eq.s32.totalorder %s21, 0
      %p105 = por %p103, %p104
      %p106 = scmp.ne.s32.totalorder %s94, %s95
      %p107 = scmp.eq.s32.totalorder %s22, 1
      %p108 = por %p106, %p107
      %p110 = scmp.ne.s32.totalorder %s95, %s109
      %p111 = scmp.eq.s32.totalorder %s22, 0
      %p112 = por %p110, %p111
      %s114 = sadd.s32 %s113, 1
      %p117 = scmp.eq.s32.totalorder %s16, 1
      %p118 = scmp.ne.s32.totalorder %s113, %s115
      %p119 = scmp.eq.s32.totalorder %s16, 0
      %p120 = por %p118, %p119
      %p121 = scmp.ne.s32.totalorder %s113, %s115
      %p122 = scmp.eq.s32.totalorder %s21, 1
      %p123 = por %p121, %p122
      %p124 = scmp.ne.s32.totalorder %s115, %s116
      %p125 = scmp.eq.s32.totalorder %s21, 0
      %p126 = por %p124, %p125
      %p127 = scmp.ne.s32.totalorder %s115, %s116
      %p128 = scmp.eq.s32.totalorder %s22, 1
      %p129 = por %p127, %p128
      %p131 = scmp.ne.s32.totalorder %s116, %s130
      %p132 = scmp.eq.s32.totalorder %s22, 0
      %p133 = por %p131, %p132
      %s134 = ssub.s32 %s16, %s23
      %p135 = scmp.eq.s32.totalorder %s134, 0
      %s137 = sadd.s32 %s136, 1
      %s138 = scalar_select %p135, %s136, %s137
      %p141 = pneg %p135
      %p142 = scmp.eq.s32.totalorder %s16, 1
      %p143 = por %p141, %p142
      %p144 = scmp.ne.s32.totalorder %s136, %s139
      %p145 = scmp.eq.s32.totalorder %s16, 0
      %p146 = por %p144, %p145
      %p147 = scmp.ne.s32.totalorder %s136, %s139
      %p148 = scmp.eq.s32.totalorder %s21, 1
      %p149 = por %p147, %p148
      %p150 = scmp.ne.s32.totalorder %s139, %s140
      %p151 = scmp.eq.s32.totalorder %s21, 0
      %p152 = por %p150, %p151
      %p153 = scmp.ne.s32.totalorder %s139, %s140
      %p154 = scmp.eq.s32.totalorder %s22, 1
      %p155 = por %p153, %p154
      %p157 = scmp.ne.s32.totalorder %s140, %s156
      %p158 = scmp.eq.s32.totalorder %s22, 0
      %p159 = por %p157, %p158
      %p160 = scmp.le.s32.totalorder 1, %s16
      %p161 = scmp.lt.s32.totalorder %s16, 3
      %p162 = pnand %p160, %p161
      %p163 = pneg %p162
      // Predicated region
      $region9: #{gene_bac_encoder_forward.1} parent=5 // pred_check
        _
      $region10: #{gene_bac_encoder_forward.1} parent=5 // pred_check_branch
        %165 = sbr.rel (%p162) target = $region12
      $region11: #{gene_bac_encoder_forward.1} parent=5 // pred_region
        %s166 = ssub.s32 %s16, 1
        // Predicated region
        $region13: #{gene_bac_encoder_forward.1} parent=11 // pred_check
          %p167 = pneg %p63
        $region14: #{gene_bac_encoder_forward.1} parent=11 // pred_check_branch
          %169 = sbr.rel (%p167) target = $region16
        $region15: #{gene_bac_encoder_forward.1} parent=11 // pred_region
          %171 = vsyncadd [#allocation5], 0
          %s172 = sshll.u32 %s1, 4
          %s173 = int_to_ptr.hbm [resolvable:$true] %s172
          %s174 = sshll.u32 [#allocation4], 4
          %s175 = int_to_ptr.vmem [resolvable:$true] %s174
          %180 = dma.hbm_to_vmem [thread:$0]  %s173, 14848, %s175, [#allocation5], 128, 128, 8
        $region16: #{gene_bac_encoder_forward.1} parent=11 // pred_fallthru
          _
        // Predicated region
        $region17: #{gene_bac_encoder_forward.1} parent=11 // pred_check
          %p181 = pneg %p84
        $region18: #{gene_bac_encoder_forward.1} parent=11 // pred_check_branch
          %183 = sbr.rel (%p181) target = $region20
        $region19: #{gene_bac_encoder_forward.1} parent=11 // pred_region
          _
        $region20: #{gene_bac_encoder_forward.1} parent=11 // pred_fallthru
          _
        // Predicated region
        $region21: #{gene_bac_encoder_forward.1} parent=11 // pred_check
          %p184 = pneg %p105
        $region22: #{gene_bac_encoder_forward.1} parent=11 // pred_check_branch
          %186 = sbr.rel (%p184) target = $region24
        $region23: #{gene_bac_encoder_forward.1} parent=11 // pred_region
          %188 = vsyncadd [#allocation8], 0
          %s189 = sshll.u32 %s3, 4
          %s190 = int_to_ptr.hbm [resolvable:$true] %s189
          %s191 = sshll.u32 [#allocation7], 4
          %s192 = int_to_ptr.vmem [resolvable:$true] %s191
          %197 = dma.hbm_to_vmem [thread:$0]  %s190, 7168, %s192, [#allocation8], 128, 128, 8
        $region24: #{gene_bac_encoder_forward.1} parent=11 // pred_fallthru
          _
        // Predicated region
        $region25: #{gene_bac_encoder_forward.1} parent=11 // pred_check
          %p198 = pneg %p126
        $region26: #{gene_bac_encoder_forward.1} parent=11 // pred_check_branch
          %200 = sbr.rel (%p198) target = $region28
        $region27: #{gene_bac_encoder_forward.1} parent=11 // pred_region
          _
        $region28: #{gene_bac_encoder_forward.1} parent=11 // pred_fallthru
          _
      $region12: #{gene_bac_encoder_forward.1} parent=5 // pred_fallthru
        _
      %p201 = scmp.lt.s32.totalorder %s16, 2
      // Predicated region
      $region29: #{gene_bac_encoder_forward.1} parent=5 // pred_check
        %p202 = pneg %p201
      $region30: #{gene_bac_encoder_forward.1} parent=5 // pred_check_branch
        %204 = sbr.rel (%p202) target = $region32
      $region31: #{gene_bac_encoder_forward.1} parent=5 // pred_region
        // Predicated region
        $region33: #{gene_bac_encoder_forward.1} parent=31 // pred_check
          %p205 = pneg %p36
        $region34: #{gene_bac_encoder_forward.1} parent=31 // pred_check_branch
          %207 = sbr.rel (%p205) target = $region36
        $region35: #{gene_bac_encoder_forward.1} parent=31 // pred_region
          %p208 = scmp.lt.s32.totalorder %s16, 1
          %s209 = scalar_select %p208, %s16, 1
          %s210 = smul.addr %s209, 21
          %s211 = smul.addr %s210, 8
          %s212 = scalar_lea.vmem %s0, %s211
        $region36: #{gene_bac_encoder_forward.1} parent=31 // pred_fallthru
          _
      $region32: #{gene_bac_encoder_forward.1} parent=5 // pred_fallthru
        _
      %p213 = scmp.le.s32.totalorder 1, %s16
      %p214 = scmp.lt.s32.totalorder %s16, 3
      %p215 = pnand %p213, %p214
      %p216 = pneg %p215
      // Predicated region
      $region37: #{gene_bac_encoder_forward.1} parent=5 // pred_check
        _
      $region38: #{gene_bac_encoder_forward.1} parent=5 // pred_check_branch
        %218 = sbr.rel (%p215) target = $region40
      $region39: #{gene_bac_encoder_forward.1} parent=5 // pred_region
        %s219 = ssub.s32 %s16, 1
        // Predicated region
        $region41: #{gene_bac_encoder_forward.1} parent=39 // pred_check
          %p220 = pneg %p63
        $region42: #{gene_bac_encoder_forward.1} parent=39 // pred_check_branch
          %222 = sbr.rel (%p220) target = $region44
        $region43: #{gene_bac_encoder_forward.1} parent=39 // pred_region
          %224 = dma.done [#allocation5], 14848
        $region44: #{gene_bac_encoder_forward.1} parent=39 // pred_fallthru
          _
        // Predicated region
        $region45: #{gene_bac_encoder_forward.1} parent=39 // pred_check
          %p225 = pneg %p105
        $region46: #{gene_bac_encoder_forward.1} parent=39 // pred_check_branch
          %227 = sbr.rel (%p225) target = $region48
        $region47: #{gene_bac_encoder_forward.1} parent=39 // pred_region
          %229 = dma.done [#allocation8], 7168
        $region48: #{gene_bac_encoder_forward.1} parent=39 // pred_fallthru
          _
        %p230 = scmp.lt.s32.totalorder %s21, 1
        %s231 = scalar_select %p230, %s21, 1
        %s232 = smul.addr %s231, 21
        %s233 = smul.addr %s232, 8
        %s234 = scalar_lea.vmem %s0, %s233
        %p235 = pneg %p42
        %p236 = pneg %p39
        %p237 = pneg %p63
        %p238 = pneg %p60
        %p239 = pneg %p84
        %p240 = pneg %p81
        %p241 = pneg %p105
        %p242 = pneg %p102
        %p243 = pneg %p126
        %p244 = pneg %p123
        %p245 = pneg %p152
        %p246 = pneg %p149
        %s247 = sand.u32 %s139, 1
        %s248 = scalar_lea.sflag [#allocation6], %s247
        %s249 = sand.u32 %s139, 1
        %s250 = scalar_lea.vmem [#allocation9], %s249
        %p251 = scmp.lt.s32.totalorder %s21, 1
        %s252 = scalar_select %p251, %s21, 1
        %s253 = smul.addr %s252, 21
        %s254 = smul.addr %s253, 8
        %s255 = scalar_lea.vmem %s0, %s254
        %vm256 = vcmask 261120
        %257 = vst.msk [vmem:[#allocation2] sm:$0xff] %vm256, 0.0
        %258 = vst.msk [vmem:[#allocation2 + $0x8] sm:$0xff] %vm256, 0.0
        %259 = vst.msk [vmem:[#allocation2 + $0x10] sm:$0xff] %vm256, 0.0
        %260 = vst.msk [vmem:[#allocation2 + $0x18] sm:$0xff] %vm256, 0.0
        %261 = vst.msk [vmem:[#allocation2 + $0x20] sm:$0xff] %vm256, 0.0
        %262 = vst.msk [vmem:[#allocation2 + $0x28] sm:$0xff] %vm256, 0.0
        %263 = vst.msk [vmem:[#allocation2 + $0x30] sm:$0xff] %vm256, 0.0
        %264 = vst.msk [vmem:[#allocation2 + $0x38] sm:$0xff] %vm256, 0.0
        %265 = vst.msk [vmem:[#allocation2 + $0x40] sm:$0xff] %vm256, 0.0
        %266 = vst.msk [vmem:[#allocation2 + $0x48] sm:$0xff] %vm256, 0.0
        %267 = vst.msk [vmem:[#allocation2 + $0x50] sm:$0xff] %vm256, 0.0
        %268 = vst.msk [vmem:[#allocation2 + $0x58] sm:$0xff] %vm256, 0.0
        %269 = vst.msk [vmem:[#allocation2 + $0x60] sm:$0xff] %vm256, 0.0
        %270 = vst.msk [vmem:[#allocation2 + $0x68] sm:$0xff] %vm256, 0.0
        %271 = vst.msk [vmem:[#allocation2 + $0x70] sm:$0xff] %vm256, 0.0
        %272 = vst.msk [vmem:[#allocation2 + $0x78] sm:$0xff] %vm256, 0.0
        %273 = vst.msk [vmem:[#allocation2 + $0x80] sm:$0xff] %vm256, 0.0
        %274 = vst.msk [vmem:[#allocation2 + $0x88] sm:$0xff] %vm256, 0.0
        %275 = vst.msk [vmem:[#allocation2 + $0x90] sm:$0xff] %vm256, 0.0
        %276 = vst.msk [vmem:[#allocation2 + $0x98] sm:$0xff] %vm256, 0.0
        %277 = vst.msk [vmem:[#allocation2 + $0xa0] sm:$0xff] %vm256, 0.0
        %278 = vst.msk [vmem:[#allocation2 + $0xa8] sm:$0xff] %vm256, 0.0
        %279 = vst.msk [vmem:[#allocation2 + $0xb0] sm:$0xff] %vm256, 0.0
        %v280 = vld [vmem:[%s255] sm:$0xff]
        %v281 = vld [vmem:[%s255 + $0x8] sm:$0xff]
        %v282 = vld [vmem:[%s255 + $0x10] sm:$0xff]
        %v283 = vld [vmem:[%s255 + $0x18] sm:$0xff]
        %v284 = vld [vmem:[%s255 + $0x20] sm:$0xff]
        %v285 = vld [vmem:[%s255 + $0x28] sm:$0xff]
        %v286 = vld [vmem:[%s255 + $0x30] sm:$0xff]
        %v287 = vld [vmem:[%s255 + $0x38] sm:$0xff]
        %v288 = vld [vmem:[%s255 + $0x40] sm:$0xff]
        %v289 = vld [vmem:[%s255 + $0x48] sm:$0xff]
        %v290 = vld [vmem:[%s255 + $0x50] sm:$0xff]
        %v291 = vld [vmem:[%s255 + $0x58] sm:$0xff]
        %v292 = vld [vmem:[%s255 + $0x60] sm:$0xff]
        %v293 = vld [vmem:[%s255 + $0x68] sm:$0xff]
        %v294 = vld [vmem:[%s255 + $0x70] sm:$0xff]
        %v295 = vld [vmem:[%s255 + $0x78] sm:$0xff]
        %v296 = vld [vmem:[%s255 + $0x80] sm:$0xff]
        %v297 = vld [vmem:[%s255 + $0x88] sm:$0xff]
        %v298 = vld [vmem:[%s255 + $0x90] sm:$0xff]
        %v299 = vld [vmem:[%s255 + $0x98] sm:$0xff]
        %v300 = vld [vmem:[%s255 + $0xa0] sm:$0xff]
        %vm301 = vcmask 31744
        %302 = vst.msk [vmem:[#allocation2 + $0x8] sm:$0xff] %vm301, %v280
        %303 = vst.msk [vmem:[#allocation2 + $0x10] sm:$0xff] %vm301, %v281
        %304 = vst.msk [vmem:[#allocation2 + $0x18] sm:$0xff] %vm301, %v282
        %305 = vst.msk [vmem:[#allocation2 + $0x20] sm:$0xff] %vm301, %v283
        %306 = vst.msk [vmem:[#allocation2 + $0x28] sm:$0xff] %vm301, %v284
        %307 = vst.msk [vmem:[#allocation2 + $0x30] sm:$0xff] %vm301, %v285
        %308 = vst.msk [vmem:[#allocation2 + $0x38] sm:$0xff] %vm301, %v286
        %309 = vst.msk [vmem:[#allocation2 + $0x40] sm:$0xff] %vm301, %v287
        %310 = vst.msk [vmem:[#allocation2 + $0x48] sm:$0xff] %vm301, %v288
        %311 = vst.msk [vmem:[#allocation2 + $0x50] sm:$0xff] %vm301, %v289
        %312 = vst.msk [vmem:[#allocation2 + $0x58] sm:$0xff] %vm301, %v290
        %313 = vst.msk [vmem:[#allocation2 + $0x60] sm:$0xff] %vm301, %v291
        %314 = vst.msk [vmem:[#allocation2 + $0x68] sm:$0xff] %vm301, %v292
        %315 = vst.msk [vmem:[#allocation2 + $0x70] sm:$0xff] %vm301, %v293
        %316 = vst.msk [vmem:[#allocation2 + $0x78] sm:$0xff] %vm301, %v294
        %317 = vst.msk [vmem:[#allocation2 + $0x80] sm:$0xff] %vm301, %v295
        %318 = vst.msk [vmem:[#allocation2 + $0x88] sm:$0xff] %vm301, %v296
        %319 = vst.msk [vmem:[#allocation2 + $0x90] sm:$0xff] %vm301, %v297
        %320 = vst.msk [vmem:[#allocation2 + $0x98] sm:$0xff] %vm301, %v298
        %321 = vst.msk [vmem:[#allocation2 + $0xa0] sm:$0xff] %vm301, %v299
        %322 = vst.msk [vmem:[#allocation2 + $0xa8] sm:$0xff] %vm301, %v300
        %v323 = vld [vmem:[#allocation2] sm:$0xff]
        %v324 = vld [vmem:[#allocation2 + $0x8] sm:$0xff]
        %v325 = vld [vmem:[#allocation2 + $0x10] sm:$0xff]
        %v326 = vld [vmem:[#allocation2 + $0x18] sm:$0xff]
        %v327 = vld [vmem:[#allocation2 + $0x20] sm:$0xff]
        %v328 = vld [vmem:[#allocation2 + $0x28] sm:$0xff]
        %v329 = vld [vmem:[#allocation2 + $0x30] sm:$0xff]
        %v330 = vld [vmem:[#allocation2 + $0x38] sm:$0xff]
        %v331 = vld [vmem:[#allocation2 + $0x40] sm:$0xff]
        %v332 = vld [vmem:[#allocation2 + $0x48] sm:$0xff]
        %v333 = vld [vmem:[#allocation2 + $0x50] sm:$0xff]
        %v334 = vld [vmem:[#allocation2 + $0x58] sm:$0xff]
        %v335 = vld [vmem:[#allocation2 + $0x60] sm:$0xff]
        %v336 = vld [vmem:[#allocation2 + $0x68] sm:$0xff]
        %v337 = vld [vmem:[#allocation2 + $0x70] sm:$0xff]
        %v338 = vld [vmem:[#allocation2 + $0x78] sm:$0xff]
        %v339 = vld [vmem:[#allocation2 + $0x80] sm:$0xff]
        %v340 = vld [vmem:[#allocation2 + $0x88] sm:$0xff]
        %v341 = vld [vmem:[#allocation2 + $0x90] sm:$0xff]
        %v342 = vld [vmem:[#allocation2 + $0x98] sm:$0xff]
        %v343 = vld [vmem:[#allocation2 + $0xa0] sm:$0xff]
        %v344 = vld [vmem:[#allocation4] sm:$0xff]
        %v345 = vld [vmem:[#allocation4 + $0x8] sm:$0xff]
        %v346 = vld [vmem:[#allocation4 + $0x10] sm:$0xff]
        %v347 = vld [vmem:[#allocation4 + $0x18] sm:$0xff]
        %v348 = vld [vmem:[#allocation2 + $0x1] sm:$0xff]
        %v349 = vld [vmem:[#allocation2 + $0x9] sm:$0xff]
        %v350 = vld [vmem:[#allocation2 + $0x11] sm:$0xff]
        %v351 = vld [vmem:[#allocation2 + $0x19] sm:$0xff]
        %v352 = vld [vmem:[#allocation2 + $0x21] sm:$0xff]
        %v353 = vld [vmem:[#allocation2 + $0x29] sm:$0xff]
        %v354 = vld [vmem:[#allocation2 + $0x31] sm:$0xff]
        %v355 = vld [vmem:[#allocation2 + $0x39] sm:$0xff]
        %v356 = vld [vmem:[#allocation2 + $0x41] sm:$0xff]
        %v357 = vld [vmem:[#allocation2 + $0x49] sm:$0xff]
        %v358 = vld [vmem:[#allocation2 + $0x51] sm:$0xff]
        %v359 = vld [vmem:[#allocation2 + $0x59] sm:$0xff]
        %v360 = vld [vmem:[#allocation2 + $0x61] sm:$0xff]
        %v361 = vld [vmem:[#allocation2 + $0x69] sm:$0xff]
        %v362 = vld [vmem:[#allocation2 + $0x71] sm:$0xff]
        %v363 = vld [vmem:[#allocation2 + $0x79] sm:$0xff]
        %v364 = vld [vmem:[#allocation2 + $0x81] sm:$0xff]
        %v365 = vld [vmem:[#allocation2 + $0x89] sm:$0xff]
        %v366 = vld [vmem:[#allocation2 + $0x91] sm:$0xff]
        %v367 = vld [vmem:[#allocation2 + $0x99] sm:$0xff]
        %v368 = vld [vmem:[#allocation2 + $0xa1] sm:$0xff]
        %s369 = scalar_lea.vmem [#allocation4], 32
        %v370 = vld [vmem:[%s369] sm:$0xff]
        %v371 = vld [vmem:[%s369 + $0x8] sm:$0xff]
        %v372 = vld [vmem:[%s369 + $0x10] sm:$0xff]
        %v373 = vld [vmem:[%s369 + $0x18] sm:$0xff]
        %v375 = vsel %vm256, %v348, 0
        %v378 = vsel %vm256, %v349, 0
        %v381 = vsel %vm256, %v350, 0
        %v384 = vsel %vm256, %v351, 0
        %v387 = vsel %vm256, %v352, 0
        %v390 = vsel %vm256, %v353, 0
        %v393 = vsel %vm256, %v354, 0
        %v396 = vsel %vm256, %v355, 0
        %v399 = vsel %vm256, %v356, 0
        %v402 = vsel %vm256, %v357, 0
        %v405 = vsel %vm256, %v358, 0
        %v408 = vsel %vm256, %v359, 0
        %v411 = vsel %vm256, %v360, 0
        %v414 = vsel %vm256, %v361, 0
        %v417 = vsel %vm256, %v362, 0
        %v420 = vsel %vm256, %v363, 0
        %v423 = vsel %vm256, %v364, 0
        %v426 = vsel %vm256, %v365, 0
        %v429 = vsel %vm256, %v366, 0
        %v432 = vsel %vm256, %v367, 0
        %v435 = vsel %vm256, %v368, 0
        %437 = vmatpush.msra.mxu0 0.0
        %438 = vmatpush.msra.mxu0 0.0
        %439 = vmatpush.msra.mxu0 0.0
        %440 = vmatpush.msra.mxu0 0.0
        %441 = vmatpush.msra.mxu0 0.0
        %442 = vmatpush.msra.mxu0 0.0
        %443 = vmatpush.msra.mxu0 0.0
        %444 = vmatpush.msra.mxu0 0.0
        %445 = vmatpush.msra.mxu0 0.0
        %446 = vmatpush.msra.mxu0 0.0
        %447 = vmatpush.msra.mxu0 0.0
        %448 = vmatpush.msra.mxu0 0.0
        %449 = vmatpush.msra.mxu0 %v373
        %450 = vmatpush.msra.mxu0 %v372
        %451 = vmatpush.msra.mxu0 %v371
        %452 = vmatpush.msra.mxu0 %v370
        %453 = vmatmul.f32.gmra.mxu0 %v375
        %v454 = vpop.f32.mrf.mxu0
        %v455 = vadd.f32 0.0, %v454
        %456 = vmatmul.f32.gmra.mxu0 %v378
        %v457 = vpop.f32.mrf.mxu0
        %v458 = vadd.f32 0.0, %v457
        %459 = vmatmul.f32.gmra.mxu0 %v381
        %v460 = vpop.f32.mrf.mxu0
        %v461 = vadd.f32 0.0, %v460
        %462 = vmatmul.f32.gmra.mxu0 %v384
        %v463 = vpop.f32.mrf.mxu0
        %v464 = vadd.f32 0.0, %v463
        %465 = vmatmul.f32.gmra.mxu0 %v387
        %v466 = vpop.f32.mrf.mxu0
        %v467 = vadd.f32 0.0, %v466
        %468 = vmatmul.f32.gmra.mxu0 %v390
        %v469 = vpop.f32.mrf.mxu0
        %v470 = vadd.f32 0.0, %v469
        %471 = vmatmul.f32.gmra.mxu0 %v393
        %v472 = vpop.f32.mrf.mxu0
        %v473 = vadd.f32 0.0, %v472
        %474 = vmatmul.f32.gmra.mxu0 %v396
        %v475 = vpop.f32.mrf.mxu0
        %v476 = vadd.f32 0.0, %v475
        %477 = vmatmul.f32.gmra.mxu0 %v399
        %v478 = vpop.f32.mrf.mxu0
        %v479 = vadd.f32 0.0, %v478
        %480 = vmatmul.f32.gmra.mxu0 %v402
        %v481 = vpop.f32.mrf.mxu0
        %v482 = vadd.f32 0.0, %v481
        %483 = vmatmul.f32.gmra.mxu0 %v405
        %v484 = vpop.f32.mrf.mxu0
        %v485 = vadd.f32 0.0, %v484
        %486 = vmatmul.f32.gmra.mxu0 %v408
        %v487 = vpop.f32.mrf.mxu0
        %v488 = vadd.f32 0.0, %v487
        %489 = vmatmul.f32.gmra.mxu0 %v411
        %v490 = vpop.f32.mrf.mxu0
        %v491 = vadd.f32 0.0, %v490
        %492 = vmatmul.f32.gmra.mxu0 %v414
        %v493 = vpop.f32.mrf.mxu0
        %v494 = vadd.f32 0.0, %v493
        %495 = vmatmul.f32.gmra.mxu0 %v417
        %v496 = vpop.f32.mrf.mxu0
        %v497 = vadd.f32 0.0, %v496
        %498 = vmatmul.f32.gmra.mxu0 %v420
        %v499 = vpop.f32.mrf.mxu0
        %v500 = vadd.f32 0.0, %v499
        %501 = vmatmul.f32.gmra.mxu0 %v423
        %v502 = vpop.f32.mrf.mxu0
        %v503 = vadd.f32 0.0, %v502
        %504 = vmatmul.f32.gmra.mxu0 %v426
        %v505 = vpop.f32.mrf.mxu0
        %v506 = vadd.f32 0.0, %v505
        %507 = vmatmul.f32.gmra.mxu0 %v429
        %v508 = vpop.f32.mrf.mxu0
        %v509 = vadd.f32 0.0, %v508
        %510 = vmatmul.f32.gmra.mxu0 %v432
        %v511 = vpop.f32.mrf.mxu0
        %v512 = vadd.f32 0.0, %v511
        %513 = vmatmul.f32.gmra.mxu0 %v435
        %v514 = vpop.f32.mrf.mxu0
        %v515 = vadd.f32 0.0, %v514
        %516 = vdwg.mxu0
        %v518 = vsel %vm256, %v323, 0
        %v521 = vsel %vm256, %v324, 0
        %v524 = vsel %vm256, %v325, 0
        %v527 = vsel %vm256, %v326, 0
        %v530 = vsel %vm256, %v327, 0
        %v533 = vsel %vm256, %v328, 0
        %v536 = vsel %vm256, %v329, 0
        %v539 = vsel %vm256, %v330, 0
        %v542 = vsel %vm256, %v331, 0
        %v545 = vsel %vm256, %v332, 0
        %v548 = vsel %vm256, %v333, 0
        %v551 = vsel %vm256, %v334, 0
        %v554 = vsel %vm256, %v335, 0
        %v557 = vsel %vm256, %v336, 0
        %v560 = vsel %vm256, %v337, 0
        %v563 = vsel %vm256, %v338, 0
        %v566 = vsel %vm256, %v339, 0
        %v569 = vsel %vm256, %v340, 0
        %v572 = vsel %vm256, %v341, 0
        %v575 = vsel %vm256, %v342, 0
        %v578 = vsel %vm256, %v343, 0
        %580 = vmatpush.msra.mxu0 0.0
        %581 = vmatpush.msra.mxu0 0.0
        %582 = vmatpush.msra.mxu0 0.0
        %583 = vmatpush.msra.mxu0 0.0
        %584 = vmatpush.msra.mxu0 0.0
        %585 = vmatpush.msra.mxu0 0.0
        %586 = vmatpush.msra.mxu0 0.0
        %587 = vmatpush.msra.mxu0 0.0
        %588 = vmatpush.msra.mxu0 0.0
        %589 = vmatpush.msra.mxu0 0.0
        %590 = vmatpush.msra.mxu0 0.0
        %591 = vmatpush.msra.mxu0 0.0
        %592 = vmatpush.msra.mxu0 %v347
        %593 = vmatpush.msra.mxu0 %v346
        %594 = vmatpush.msra.mxu0 %v345
        %595 = vmatpush.msra.mxu0 %v344
        %596 = vmatmul.f32.gmra.mxu0 %v518
        %v597 = vpop.f32.mrf.mxu0
        %v598 = vadd.f32 %v455, %v597
        %599 = vmatmul.f32.gmra.mxu0 %v521
        %v600 = vpop.f32.mrf.mxu0
        %v601 = vadd.f32 %v458, %v600
        %602 = vmatmul.f32.gmra.mxu0 %v524
        %v603 = vpop.f32.mrf.mxu0
        %v604 = vadd.f32 %v461, %v603
        %605 = vmatmul.f32.gmra.mxu0 %v527
        %v606 = vpop.f32.mrf.mxu0
        %v607 = vadd.f32 %v464, %v606
        %608 = vmatmul.f32.gmra.mxu0 %v530
        %v609 = vpop.f32.mrf.mxu0
        %v610 = vadd.f32 %v467, %v609
        %611 = vmatmul.f32.gmra.mxu0 %v533
        %v612 = vpop.f32.mrf.mxu0
        %v613 = vadd.f32 %v470, %v612
        %614 = vmatmul.f32.gmra.mxu0 %v536
        %v615 = vpop.f32.mrf.mxu0
        %v616 = vadd.f32 %v473, %v615
        %617 = vmatmul.f32.gmra.mxu0 %v539
        %v618 = vpop.f32.mrf.mxu0
        %v619 = vadd.f32 %v476, %v618
        %620 = vmatmul.f32.gmra.mxu0 %v542
        %v621 = vpop.f32.mrf.mxu0
        %v622 = vadd.f32 %v479, %v621
        %623 = vmatmul.f32.gmra.mxu0 %v545
        %v624 = vpop.f32.mrf.mxu0
        %v625 = vadd.f32 %v482, %v624
        %626 = vmatmul.f32.gmra.mxu0 %v548
        %v627 = vpop.f32.mrf.mxu0
        %v628 = vadd.f32 %v485, %v627
        %629 = vmatmul.f32.gmra.mxu0 %v551
        %v630 = vpop.f32.mrf.mxu0
        %v631 = vadd.f32 %v488, %v630
        %632 = vmatmul.f32.gmra.mxu0 %v554
        %v633 = vpop.f32.mrf.mxu0
        %v634 = vadd.f32 %v491, %v633
        %635 = vmatmul.f32.gmra.mxu0 %v557
        %v636 = vpop.f32.mrf.mxu0
        %v637 = vadd.f32 %v494, %v636
        %638 = vmatmul.f32.gmra.mxu0 %v560
        %v639 = vpop.f32.mrf.mxu0
        %v640 = vadd.f32 %v497, %v639
        %641 = vmatmul.f32.gmra.mxu0 %v563
        %v642 = vpop.f32.mrf.mxu0
        %v643 = vadd.f32 %v500, %v642
        %644 = vmatmul.f32.gmra.mxu0 %v566
        %v645 = vpop.f32.mrf.mxu0
        %v646 = vadd.f32 %v503, %v645
        %647 = vmatmul.f32.gmra.mxu0 %v569
        %v648 = vpop.f32.mrf.mxu0
        %v649 = vadd.f32 %v506, %v648
        %650 = vmatmul.f32.gmra.mxu0 %v572
        %v651 = vpop.f32.mrf.mxu0
        %v652 = vadd.f32 %v509, %v651
        %653 = vmatmul.f32.gmra.mxu0 %v575
        %v654 = vpop.f32.mrf.mxu0
        %v655 = vadd.f32 %v512, %v654
        %656 = vmatmul.f32.gmra.mxu0 %v578
        %v657 = vpop.f32.mrf.mxu0
        %v658 = vadd.f32 %v515, %v657
        %659 = vdwg.mxu0
        %v660 = vld [vmem:[#allocation2 + $0x2] sm:$0xff]
        %v661 = vld [vmem:[#allocation2 + $0xa] sm:$0xff]
        %v662 = vld [vmem:[#allocation2 + $0x12] sm:$0xff]
        %v663 = vld [vmem:[#allocation2 + $0x1a] sm:$0xff]
        %v664 = vld [vmem:[#allocation2 + $0x22] sm:$0xff]
        %v665 = vld [vmem:[#allocation2 + $0x2a] sm:$0xff]
        %v666 = vld [vmem:[#allocation2 + $0x32] sm:$0xff]
        %v667 = vld [vmem:[#allocation2 + $0x3a] sm:$0xff]
        %v668 = vld [vmem:[#allocation2 + $0x42] sm:$0xff]
        %v669 = vld [vmem:[#allocation2 + $0x4a] sm:$0xff]
        %v670 = vld [vmem:[#allocation2 + $0x52] sm:$0xff]
        %v671 = vld [vmem:[#allocation2 + $0x5a] sm:$0xff]
        %v672 = vld [vmem:[#allocation2 + $0x62] sm:$0xff]
        %v673 = vld [vmem:[#allocation2 + $0x6a] sm:$0xff]
        %v674 = vld [vmem:[#allocation2 + $0x72] sm:$0xff]
        %v675 = vld [vmem:[#allocation2 + $0x7a] sm:$0xff]
        %v676 = vld [vmem:[#allocation2 + $0x82] sm:$0xff]
        %v677 = vld [vmem:[#allocation2 + $0x8a] sm:$0xff]
        %v678 = vld [vmem:[#allocation2 + $0x92] sm:$0xff]
        %v679 = vld [vmem:[#allocation2 + $0x9a] sm:$0xff]
        %v680 = vld [vmem:[#allocation2 + $0xa2] sm:$0xff]
        %s681 = scalar_lea.vmem [#allocation4], 64
        %v682 = vld [vmem:[%s681] sm:$0xff]
        %v683 = vld [vmem:[%s681 + $0x8] sm:$0xff]
        %v684 = vld [vmem:[%s681 + $0x10] sm:$0xff]
        %v685 = vld [vmem:[%s681 + $0x18] sm:$0xff]
        %v687 = vsel %vm256, %v660, 0
        %v690 = vsel %vm256, %v661, 0
        %v693 = vsel %vm256, %v662, 0
        %v696 = vsel %vm256, %v663, 0
        %v699 = vsel %vm256, %v664, 0
        %v702 = vsel %vm256, %v665, 0
        %v705 = vsel %vm256, %v666, 0
        %v708 = vsel %vm256, %v667, 0
        %v711 = vsel %vm256, %v668, 0
        %v714 = vsel %vm256, %v669, 0
        %v717 = vsel %vm256, %v670, 0
        %v720 = vsel %vm256, %v671, 0
        %v723 = vsel %vm256, %v672, 0
        %v726 = vsel %vm256, %v673, 0
        %v729 = vsel %vm256, %v674, 0
        %v732 = vsel %vm256, %v675, 0
        %v735 = vsel %vm256, %v676, 0
        %v738 = vsel %vm256, %v677, 0
        %v741 = vsel %vm256, %v678, 0
        %v744 = vsel %vm256, %v679, 0
        %v747 = vsel %vm256, %v680, 0
        %749 = vmatpush.msra.mxu0 0.0
        %750 = vmatpush.msra.mxu0 0.0
        %751 = vmatpush.msra.mxu0 0.0
        %752 = vmatpush.msra.mxu0 0.0
        %753 = vmatpush.msra.mxu0 0.0
        %754 = vmatpush.msra.mxu0 0.0
        %755 = vmatpush.msra.mxu0 0.0
        %756 = vmatpush.msra.mxu0 0.0
        %757 = vmatpush.msra.mxu0 0.0
        %758 = vmatpush.msra.mxu0 0.0
        %759 = vmatpush.msra.mxu0 0.0
        %760 = vmatpush.msra.mxu0 0.0
        %761 = vmatpush.msra.mxu0 %v685
        %762 = vmatpush.msra.mxu0 %v684
        %763 = vmatpush.msra.mxu0 %v683
        %764 = vmatpush.msra.mxu0 %v682
        %765 = vmatmul.f32.gmra.mxu0 %v687
        %v766 = vpop.f32.mrf.mxu0
        %v767 = vadd.f32 0.0, %v766
        %768 = vmatmul.f32.gmra.mxu0 %v690
        %v769 = vpop.f32.mrf.mxu0
        %v770 = vadd.f32 0.0, %v769
        %771 = vmatmul.f32.gmra.mxu0 %v693
        %v772 = vpop.f32.mrf.mxu0
        %v773 = vadd.f32 0.0, %v772
        %774 = vmatmul.f32.gmra.mxu0 %v696
        %v775 = vpop.f32.mrf.mxu0
        %v776 = vadd.f32 0.0, %v775
        %777 = vmatmul.f32.gmra.mxu0 %v699
        %v778 = vpop.f32.mrf.mxu0
        %v779 = vadd.f32 0.0, %v778
        %780 = vmatmul.f32.gmra.mxu0 %v702
        %v781 = vpop.f32.mrf.mxu0
        %v782 = vadd.f32 0.0, %v781
        %783 = vmatmul.f32.gmra.mxu0 %v705
        %v784 = vpop.f32.mrf.mxu0
        %v785 = vadd.f32 0.0, %v784
        %786 = vmatmul.f32.gmra.mxu0 %v708
        %v787 = vpop.f32.mrf.mxu0
        %v788 = vadd.f32 0.0, %v787
        %789 = vmatmul.f32.gmra.mxu0 %v711
        %v790 = vpop.f32.mrf.mxu0
        %v791 = vadd.f32 0.0, %v790
        %792 = vmatmul.f32.gmra.mxu0 %v714
        %v793 = vpop.f32.mrf.mxu0
        %v794 = vadd.f32 0.0, %v793
        %795 = vmatmul.f32.gmra.mxu0 %v717
        %v796 = vpop.f32.mrf.mxu0
        %v797 = vadd.f32 0.0, %v796
        %798 = vmatmul.f32.gmra.mxu0 %v720
        %v799 = vpop.f32.mrf.mxu0
        %v800 = vadd.f32 0.0, %v799
        %801 = vmatmul.f32.gmra.mxu0 %v723
        %v802 = vpop.f32.mrf.mxu0
        %v803 = vadd.f32 0.0, %v802
        %804 = vmatmul.f32.gmra.mxu0 %v726
        %v805 = vpop.f32.mrf.mxu0
        %v806 = vadd.f32 0.0, %v805
        %807 = vmatmul.f32.gmra.mxu0 %v729
        %v808 = vpop.f32.mrf.mxu0
        %v809 = vadd.f32 0.0, %v808
        %810 = vmatmul.f32.gmra.mxu0 %v732
        %v811 = vpop.f32.mrf.mxu0
        %v812 = vadd.f32 0.0, %v811
        %813 = vmatmul.f32.gmra.mxu0 %v735
        %v814 = vpop.f32.mrf.mxu0
        %v815 = vadd.f32 0.0, %v814
        %816 = vmatmul.f32.gmra.mxu0 %v738
        %v817 = vpop.f32.mrf.mxu0
        %v818 = vadd.f32 0.0, %v817
        %819 = vmatmul.f32.gmra.mxu0 %v741
        %v820 = vpop.f32.mrf.mxu0
        %v821 = vadd.f32 0.0, %v820
        %822 = vmatmul.f32.gmra.mxu0 %v744
        %v823 = vpop.f32.mrf.mxu0
        %v824 = vadd.f32 0.0, %v823
        %825 = vmatmul.f32.gmra.mxu0 %v747
        %v826 = vpop.f32.mrf.mxu0
        %v827 = vadd.f32 0.0, %v826
        %828 = vdwg.mxu0
        %v829 = vadd.f32 %v598, %v767
        %v830 = vadd.f32 %v601, %v770
        %v831 = vadd.f32 %v604, %v773
        %v832 = vadd.f32 %v607, %v776
        %v833 = vadd.f32 %v610, %v779
        %v834 = vadd.f32 %v613, %v782
        %v835 = vadd.f32 %v616, %v785
        %v836 = vadd.f32 %v619, %v788
        %v837 = vadd.f32 %v622, %v791
        %v838 = vadd.f32 %v625, %v794
        %v839 = vadd.f32 %v628, %v797
        %v840 = vadd.f32 %v631, %v800
        %v841 = vadd.f32 %v634, %v803
        %v842 = vadd.f32 %v637, %v806
        %v843 = vadd.f32 %v640, %v809
        %v844 = vadd.f32 %v643, %v812
        %v845 = vadd.f32 %v646, %v815
        %v846 = vadd.f32 %v649, %v818
        %v847 = vadd.f32 %v652, %v821
        %v848 = vadd.f32 %v655, %v824
        %v849 = vadd.f32 %v658, %v827
        %v850 = vld [vmem:[#allocation2 + $0x3] sm:$0xff]
        %v851 = vld [vmem:[#allocation2 + $0xb] sm:$0xff]
        %v852 = vld [vmem:[#allocation2 + $0x13] sm:$0xff]
        %v853 = vld [vmem:[#allocation2 + $0x1b] sm:$0xff]
        %v854 = vld [vmem:[#allocation2 + $0x23] sm:$0xff]
        %v855 = vld [vmem:[#allocation2 + $0x2b] sm:$0xff]
        %v856 = vld [vmem:[#allocation2 + $0x33] sm:$0xff]
        %v857 = vld [vmem:[#allocation2 + $0x3b] sm:$0xff]
        %v858 = vld [vmem:[#allocation2 + $0x43] sm:$0xff]
        %v859 = vld [vmem:[#allocation2 + $0x4b] sm:$0xff]
        %v860 = vld [vmem:[#allocation2 + $0x53] sm:$0xff]
        %v861 = vld [vmem:[#allocation2 + $0x5b] sm:$0xff]
        %v862 = vld [vmem:[#allocation2 + $0x63] sm:$0xff]
        %v863 = vld [vmem:[#allocation2 + $0x6b] sm:$0xff]
        %v864 = vld [vmem:[#allocation2 + $0x73] sm:$0xff]
        %v865 = vld [vmem:[#allocation2 + $0x7b] sm:$0xff]
        %v866 = vld [vmem:[#allocation2 + $0x83] sm:$0xff]
        %v867 = vld [vmem:[#allocation2 + $0x8b] sm:$0xff]
        %v868 = vld [vmem:[#allocation2 + $0x93] sm:$0xff]
        %v869 = vld [vmem:[#allocation2 + $0x9b] sm:$0xff]
        %v870 = vld [vmem:[#allocation2 + $0xa3] sm:$0xff]
        %s871 = scalar_lea.vmem [#allocation4], 96
        %v872 = vld [vmem:[%s871] sm:$0xff]
        %v873 = vld [vmem:[%s871 + $0x8] sm:$0xff]
        %v874 = vld [vmem:[%s871 + $0x10] sm:$0xff]
        %v875 = vld [vmem:[%s871 + $0x18] sm:$0xff]
        %v877 = vsel %vm256, %v850, 0
        %v880 = vsel %vm256, %v851, 0
        %v883 = vsel %vm256, %v852, 0
        %v886 = vsel %vm256, %v853, 0
        %v889 = vsel %vm256, %v854, 0
        %v892 = vsel %vm256, %v855, 0
        %v895 = vsel %vm256, %v856, 0
        %v898 = vsel %vm256, %v857, 0
        %v901 = vsel %vm256, %v858, 0
        %v904 = vsel %vm256, %v859, 0
        %v907 = vsel %vm256, %v860, 0
        %v910 = vsel %vm256, %v861, 0
        %v913 = vsel %vm256, %v862, 0
        %v916 = vsel %vm256, %v863, 0
        %v919 = vsel %vm256, %v864, 0
        %v922 = vsel %vm256, %v865, 0
        %v925 = vsel %vm256, %v866, 0
        %v928 = vsel %vm256, %v867, 0
        %v931 = vsel %vm256, %v868, 0
        %v934 = vsel %vm256, %v869, 0
        %v937 = vsel %vm256, %v870, 0
        %939 = vmatpush.msra.mxu0 0.0
        %940 = vmatpush.msra.mxu0 0.0
        %941 = vmatpush.msra.mxu0 0.0
        %942 = vmatpush.msra.mxu0 0.0
        %943 = vmatpush.msra.mxu0 0.0
        %944 = vmatpush.msra.mxu0 0.0
        %945 = vmatpush.msra.mxu0 0.0
        %946 = vmatpush.msra.mxu0 0.0
        %947 = vmatpush.msra.mxu0 0.0
        %948 = vmatpush.msra.mxu0 0.0
        %949 = vmatpush.msra.mxu0 0.0
        %950 = vmatpush.msra.mxu0 0.0
        %951 = vmatpush.msra.mxu0 %v875
        %952 = vmatpush.msra.mxu0 %v874
        %953 = vmatpush.msra.mxu0 %v873
        %954 = vmatpush.msra.mxu0 %v872
        %955 = vmatmul.f32.gmra.mxu0 %v877
        %v956 = vpop.f32.mrf.mxu0
        %v957 = vadd.f32 0.0, %v956
        %958 = vmatmul.f32.gmra.mxu0 %v880
        %v959 = vpop.f32.mrf.mxu0
        %v960 = vadd.f32 0.0, %v959
        %961 = vmatmul.f32.gmra.mxu0 %v883
        %v962 = vpop.f32.mrf.mxu0
        %v963 = vadd.f32 0.0, %v962
        %964 = vmatmul.f32.gmra.mxu0 %v886
        %v965 = vpop.f32.mrf.mxu0
        %v966 = vadd.f32 0.0, %v965
        %967 = vmatmul.f32.gmra.mxu0 %v889
        %v968 = vpop.f32.mrf.mxu0
        %v969 = vadd.f32 0.0, %v968
        %970 = vmatmul.f32.gmra.mxu0 %v892
        %v971 = vpop.f32.mrf.mxu0
        %v972 = vadd.f32 0.0, %v971
        %973 = vmatmul.f32.gmra.mxu0 %v895
        %v974 = vpop.f32.mrf.mxu0
        %v975 = vadd.f32 0.0, %v974
        %976 = vmatmul.f32.gmra.mxu0 %v898
        %v977 = vpop.f32.mrf.mxu0
        %v978 = vadd.f32 0.0, %v977
        %979 = vmatmul.f32.gmra.mxu0 %v901
        %v980 = vpop.f32.mrf.mxu0
        %v981 = vadd.f32 0.0, %v980
        %982 = vmatmul.f32.gmra.mxu0 %v904
        %v983 = vpop.f32.mrf.mxu0
        %v984 = vadd.f32 0.0, %v983
        %985 = vmatmul.f32.gmra.mxu0 %v907
        %v986 = vpop.f32.mrf.mxu0
        %v987 = vadd.f32 0.0, %v986
        %988 = vmatmul.f32.gmra.mxu0 %v910
        %v989 = vpop.f32.mrf.mxu0
        %v990 = vadd.f32 0.0, %v989
        %991 = vmatmul.f32.gmra.mxu0 %v913
        %v992 = vpop.f32.mrf.mxu0
        %v993 = vadd.f32 0.0, %v992
        %994 = vmatmul.f32.gmra.mxu0 %v916
        %v995 = vpop.f32.mrf.mxu0
        %v996 = vadd.f32 0.0, %v995
        %997 = vmatmul.f32.gmra.mxu0 %v919
        %v998 = vpop.f32.mrf.mxu0
        %v999 = vadd.f32 0.0, %v998
        %1000 = vmatmul.f32.gmra.mxu0 %v922
        %v1001 = vpop.f32.mrf.mxu0
        %v1002 = vadd.f32 0.0, %v1001
        %1003 = vmatmul.f32.gmra.mxu0 %v925
        %v1004 = vpop.f32.mrf.mxu0
        %v1005 = vadd.f32 0.0, %v1004
        %1006 = vmatmul.f32.gmra.mxu0 %v928
        %v1007 = vpop.f32.mrf.mxu0
        %v1008 = vadd.f32 0.0, %v1007
        %1009 = vmatmul.f32.gmra.mxu0 %v931
        %v1010 = vpop.f32.mrf.mxu0
        %v1011 = vadd.f32 0.0, %v1010
        %1012 = vmatmul.f32.gmra.mxu0 %v934
        %v1013 = vpop.f32.mrf.mxu0
        %v1014 = vadd.f32 0.0, %v1013
        %1015 = vmatmul.f32.gmra.mxu0 %v937
        %v1016 = vpop.f32.mrf.mxu0
        %v1017 = vadd.f32 0.0, %v1016
        %1018 = vdwg.mxu0
        %v1019 = vadd.f32 %v829, %v957
        %v1020 = vadd.f32 %v830, %v960
        %v1021 = vadd.f32 %v831, %v963
        %v1022 = vadd.f32 %v832, %v966
        %v1023 = vadd.f32 %v833, %v969
        %v1024 = vadd.f32 %v834, %v972
        %v1025 = vadd.f32 %v835, %v975
        %v1026 = vadd.f32 %v836, %v978
        %v1027 = vadd.f32 %v837, %v981
        %v1028 = vadd.f32 %v838, %v984
        %v1029 = vadd.f32 %v839, %v987
        %v1030 = vadd.f32 %v840, %v990
        %v1031 = vadd.f32 %v841, %v993
        %v1032 = vadd.f32 %v842, %v996
        %v1033 = vadd.f32 %v843, %v999
        %v1034 = vadd.f32 %v844, %v1002
        %v1035 = vadd.f32 %v845, %v1005
        %v1036 = vadd.f32 %v846, %v1008
        %v1037 = vadd.f32 %v847, %v1011
        %v1038 = vadd.f32 %v848, %v1014
        %v1039 = vadd.f32 %v849, %v1017
        %v1040 = vld [vmem:[#allocation2 + $0x4] sm:$0xff]
        %v1041 = vld [vmem:[#allocation2 + $0xc] sm:$0xff]
        %v1042 = vld [vmem:[#allocation2 + $0x14] sm:$0xff]
        %v1043 = vld [vmem:[#allocation2 + $0x1c] sm:$0xff]
        %v1044 = vld [vmem:[#allocation2 + $0x24] sm:$0xff]
        %v1045 = vld [vmem:[#allocation2 + $0x2c] sm:$0xff]
        %v1046 = vld [vmem:[#allocation2 + $0x34] sm:$0xff]
        %v1047 = vld [vmem:[#allocation2 + $0x3c] sm:$0xff]
        %v1048 = vld [vmem:[#allocation2 + $0x44] sm:$0xff]
        %v1049 = vld [vmem:[#allocation2 + $0x4c] sm:$0xff]
        %v1050 = vld [vmem:[#allocation2 + $0x54] sm:$0xff]
        %v1051 = vld [vmem:[#allocation2 + $0x5c] sm:$0xff]
        %v1052 = vld [vmem:[#allocation2 + $0x64] sm:$0xff]
        %v1053 = vld [vmem:[#allocation2 + $0x6c] sm:$0xff]
        %v1054 = vld [vmem:[#allocation2 + $0x74] sm:$0xff]
        %v1055 = vld [vmem:[#allocation2 + $0x7c] sm:$0xff]
        %v1056 = vld [vmem:[#allocation2 + $0x84] sm:$0xff]
        %v1057 = vld [vmem:[#allocation2 + $0x8c] sm:$0xff]
        %v1058 = vld [vmem:[#allocation2 + $0x94] sm:$0xff]
        %v1059 = vld [vmem:[#allocation2 + $0x9c] sm:$0xff]
        %v1060 = vld [vmem:[#allocation2 + $0xa4] sm:$0xff]
        %s1061 = scalar_lea.vmem [#allocation4], 128
        %v1062 = vld [vmem:[%s1061] sm:$0xff]
        %v1063 = vld [vmem:[%s1061 + $0x8] sm:$0xff]
        %v1064 = vld [vmem:[%s1061 + $0x10] sm:$0xff]
        %v1065 = vld [vmem:[%s1061 + $0x18] sm:$0xff]
        %v1067 = vsel %vm256, %v1040, 0
        %v1070 = vsel %vm256, %v1041, 0
        %v1073 = vsel %vm256, %v1042, 0
        %v1076 = vsel %vm256, %v1043, 0
        %v1079 = vsel %vm256, %v1044, 0
        %v1082 = vsel %vm256, %v1045, 0
        %v1085 = vsel %vm256, %v1046, 0
        %v1088 = vsel %vm256, %v1047, 0
        %v1091 = vsel %vm256, %v1048, 0
        %v1094 = vsel %vm256, %v1049, 0
        %v1097 = vsel %vm256, %v1050, 0
        %v1100 = vsel %vm256, %v1051, 0
        %v1103 = vsel %vm256, %v1052, 0
        %v1106 = vsel %vm256, %v1053, 0
        %v1109 = vsel %vm256, %v1054, 0
        %v1112 = vsel %vm256, %v1055, 0
        %v1115 = vsel %vm256, %v1056, 0
        %v1118 = vsel %vm256, %v1057, 0
        %v1121 = vsel %vm256, %v1058, 0
        %v1124 = vsel %vm256, %v1059, 0
        %v1127 = vsel %vm256, %v1060, 0
        %1129 = vmatpush.msra.mxu0 0.0
        %1130 = vmatpush.msra.mxu0 0.0
        %1131 = vmatpush.msra.mxu0 0.0
        %1132 = vmatpush.msra.mxu0 0.0
        %1133 = vmatpush.msra.mxu0 0.0
        %1134 = vmatpush.msra.mxu0 0.0
        %1135 = vmatpush.msra.mxu0 0.0
        %1136 = vmatpush.msra.mxu0 0.0
        %1137 = vmatpush.msra.mxu0 0.0
        %1138 = vmatpush.msra.mxu0 0.0
        %1139 = vmatpush.msra.mxu0 0.0
        %1140 = vmatpush.msra.mxu0 0.0
        %1141 = vmatpush.msra.mxu0 %v1065
        %1142 = vmatpush.msra.mxu0 %v1064
        %1143 = vmatpush.msra.mxu0 %v1063
        %1144 = vmatpush.msra.mxu0 %v1062
        %1145 = vmatmul.f32.gmra.mxu0 %v1067
        %v1146 = vpop.f32.mrf.mxu0
        %v1147 = vadd.f32 0.0, %v1146
        %1148 = vmatmul.f32.gmra.mxu0 %v1070
        %v1149 = vpop.f32.mrf.mxu0
        %v1150 = vadd.f32 0.0, %v1149
        %1151 = vmatmul.f32.gmra.mxu0 %v1073
        %v1152 = vpop.f32.mrf.mxu0
        %v1153 = vadd.f32 0.0, %v1152
        %1154 = vmatmul.f32.gmra.mxu0 %v1076
        %v1155 = vpop.f32.mrf.mxu0
        %v1156 = vadd.f32 0.0, %v1155
        %1157 = vmatmul.f32.gmra.mxu0 %v1079
        %v1158 = vpop.f32.mrf.mxu0
        %v1159 = vadd.f32 0.0, %v1158
        %1160 = vmatmul.f32.gmra.mxu0 %v1082
        %v1161 = vpop.f32.mrf.mxu0
        %v1162 = vadd.f32 0.0, %v1161
        %1163 = vmatmul.f32.gmra.mxu0 %v1085
        %v1164 = vpop.f32.mrf.mxu0
        %v1165 = vadd.f32 0.0, %v1164
        %1166 = vmatmul.f32.gmra.mxu0 %v1088
        %v1167 = vpop.f32.mrf.mxu0
        %v1168 = vadd.f32 0.0, %v1167
        %1169 = vmatmul.f32.gmra.mxu0 %v1091
        %v1170 = vpop.f32.mrf.mxu0
        %v1171 = vadd.f32 0.0, %v1170
        %1172 = vmatmul.f32.gmra.mxu0 %v1094
        %v1173 = vpop.f32.mrf.mxu0
        %v1174 = vadd.f32 0.0, %v1173
        %1175 = vmatmul.f32.gmra.mxu0 %v1097
        %v1176 = vpop.f32.mrf.mxu0
        %v1177 = vadd.f32 0.0, %v1176
        %1178 = vmatmul.f32.gmra.mxu0 %v1100
        %v1179 = vpop.f32.mrf.mxu0
        %v1180 = vadd.f32 0.0, %v1179
        %1181 = vmatmul.f32.gmra.mxu0 %v1103
        %v1182 = vpop.f32.mrf.mxu0
        %v1183 = vadd.f32 0.0, %v1182
        %1184 = vmatmul.f32.gmra.mxu0 %v1106
        %v1185 = vpop.f32.mrf.mxu0
        %v1186 = vadd.f32 0.0, %v1185
        %1187 = vmatmul.f32.gmra.mxu0 %v1109
        %v1188 = vpop.f32.mrf.mxu0
        %v1189 = vadd.f32 0.0, %v1188
        %1190 = vmatmul.f32.gmra.mxu0 %v1112
        %v1191 = vpop.f32.mrf.mxu0
        %v1192 = vadd.f32 0.0, %v1191
        %1193 = vmatmul.f32.gmra.mxu0 %v1115
        %v1194 = vpop.f32.mrf.mxu0
        %v1195 = vadd.f32 0.0, %v1194
        %1196 = vmatmul.f32.gmra.mxu0 %v1118
        %v1197 = vpop.f32.mrf.mxu0
        %v1198 = vadd.f32 0.0, %v1197
        %1199 = vmatmul.f32.gmra.mxu0 %v1121
        %v1200 = vpop.f32.mrf.mxu0
        %v1201 = vadd.f32 0.0, %v1200
        %1202 = vmatmul.f32.gmra.mxu0 %v1124
        %v1203 = vpop.f32.mrf.mxu0
        %v1204 = vadd.f32 0.0, %v1203
        %1205 = vmatmul.f32.gmra.mxu0 %v1127
        %v1206 = vpop.f32.mrf.mxu0
        %v1207 = vadd.f32 0.0, %v1206
        %1208 = vdwg.mxu0
        %v1209 = vadd.f32 %v1019, %v1147
        %v1210 = vadd.f32 %v1020, %v1150
        %v1211 = vadd.f32 %v1021, %v1153
        %v1212 = vadd.f32 %v1022, %v1156
        %v1213 = vadd.f32 %v1023, %v1159
        %v1214 = vadd.f32 %v1024, %v1162
        %v1215 = vadd.f32 %v1025, %v1165
        %v1216 = vadd.f32 %v1026, %v1168
        %v1217 = vadd.f32 %v1027, %v1171
        %v1218 = vadd.f32 %v1028, %v1174
        %v1219 = vadd.f32 %v1029, %v1177
        %v1220 = vadd.f32 %v1030, %v1180
        %v1221 = vadd.f32 %v1031, %v1183
        %v1222 = vadd.f32 %v1032, %v1186
        %v1223 = vadd.f32 %v1033, %v1189
        %v1224 = vadd.f32 %v1034, %v1192
        %v1225 = vadd.f32 %v1035, %v1195
        %v1226 = vadd.f32 %v1036, %v1198
        %v1227 = vadd.f32 %v1037, %v1201
        %v1228 = vadd.f32 %v1038, %v1204
        %v1229 = vadd.f32 %v1039, %v1207
        %v1230 = vld [vmem:[#allocation2 + $0x5] sm:$0xff]
        %v1231 = vld [vmem:[#allocation2 + $0xd] sm:$0xff]
        %v1232 = vld [vmem:[#allocation2 + $0x15] sm:$0xff]
        %v1233 = vld [vmem:[#allocation2 + $0x1d] sm:$0xff]
        %v1234 = vld [vmem:[#allocation2 + $0x25] sm:$0xff]
        %v1235 = vld [vmem:[#allocation2 + $0x2d] sm:$0xff]
        %v1236 = vld [vmem:[#allocation2 + $0x35] sm:$0xff]
        %v1237 = vld [vmem:[#allocation2 + $0x3d] sm:$0xff]
        %v1238 = vld [vmem:[#allocation2 + $0x45] sm:$0xff]
        %v1239 = vld [vmem:[#allocation2 + $0x4d] sm:$0xff]
        %v1240 = vld [vmem:[#allocation2 + $0x55] sm:$0xff]
        %v1241 = vld [vmem:[#allocation2 + $0x5d] sm:$0xff]
        %v1242 = vld [vmem:[#allocation2 + $0x65] sm:$0xff]
        %v1243 = vld [vmem:[#allocation2 + $0x6d] sm:$0xff]
        %v1244 = vld [vmem:[#allocation2 + $0x75] sm:$0xff]
        %v1245 = vld [vmem:[#allocation2 + $0x7d] sm:$0xff]
        %v1246 = vld [vmem:[#allocation2 + $0x85] sm:$0xff]
        %v1247 = vld [vmem:[#allocation2 + $0x8d] sm:$0xff]
        %v1248 = vld [vmem:[#allocation2 + $0x95] sm:$0xff]
        %v1249 = vld [vmem:[#allocation2 + $0x9d] sm:$0xff]
        %v1250 = vld [vmem:[#allocation2 + $0xa5] sm:$0xff]
        %s1251 = scalar_lea.vmem [#allocation4], 160
        %v1252 = vld [vmem:[%s1251] sm:$0xff]
        %v1253 = vld [vmem:[%s1251 + $0x8] sm:$0xff]
        %v1254 = vld [vmem:[%s1251 + $0x10] sm:$0xff]
        %v1255 = vld [vmem:[%s1251 + $0x18] sm:$0xff]
        %v1257 = vsel %vm256, %v1230, 0
        %v1260 = vsel %vm256, %v1231, 0
        %v1263 = vsel %vm256, %v1232, 0
        %v1266 = vsel %vm256, %v1233, 0
        %v1269 = vsel %vm256, %v1234, 0
        %v1272 = vsel %vm256, %v1235, 0
        %v1275 = vsel %vm256, %v1236, 0
        %v1278 = vsel %vm256, %v1237, 0
        %v1281 = vsel %vm256, %v1238, 0
        %v1284 = vsel %vm256, %v1239, 0
        %v1287 = vsel %vm256, %v1240, 0
        %v1290 = vsel %vm256, %v1241, 0
        %v1293 = vsel %vm256, %v1242, 0
        %v1296 = vsel %vm256, %v1243, 0
        %v1299 = vsel %vm256, %v1244, 0
        %v1302 = vsel %vm256, %v1245, 0
        %v1305 = vsel %vm256, %v1246, 0
        %v1308 = vsel %vm256, %v1247, 0
        %v1311 = vsel %vm256, %v1248, 0
        %v1314 = vsel %vm256, %v1249, 0
        %v1317 = vsel %vm256, %v1250, 0
        %1319 = vmatpush.msra.mxu0 0.0
        %1320 = vmatpush.msra.mxu0 0.0
        %1321 = vmatpush.msra.mxu0 0.0
        %1322 = vmatpush.msra.mxu0 0.0
        %1323 = vmatpush.msra.mxu0 0.0
        %1324 = vmatpush.msra.mxu0 0.0
        %1325 = vmatpush.msra.mxu0 0.0
        %1326 = vmatpush.msra.mxu0 0.0
        %1327 = vmatpush.msra.mxu0 0.0
        %1328 = vmatpush.msra.mxu0 0.0
        %1329 = vmatpush.msra.mxu0 0.0
        %1330 = vmatpush.msra.mxu0 0.0
        %1331 = vmatpush.msra.mxu0 %v1255
        %1332 = vmatpush.msra.mxu0 %v1254
        %1333 = vmatpush.msra.mxu0 %v1253
        %1334 = vmatpush.msra.mxu0 %v1252
        %1335 = vmatmul.f32.gmra.mxu0 %v1257
        %v1336 = vpop.f32.mrf.mxu0
        %v1337 = vadd.f32 0.0, %v1336
        %1338 = vmatmul.f32.gmra.mxu0 %v1260
        %v1339 = vpop.f32.mrf.mxu0
        %v1340 = vadd.f32 0.0, %v1339
        %1341 = vmatmul.f32.gmra.mxu0 %v1263
        %v1342 = vpop.f32.mrf.mxu0
        %v1343 = vadd.f32 0.0, %v1342
        %1344 = vmatmul.f32.gmra.mxu0 %v1266
        %v1345 = vpop.f32.mrf.mxu0
        %v1346 = vadd.f32 0.0, %v1345
        %1347 = vmatmul.f32.gmra.mxu0 %v1269
        %v1348 = vpop.f32.mrf.mxu0
        %v1349 = vadd.f32 0.0, %v1348
        %1350 = vmatmul.f32.gmra.mxu0 %v1272
        %v1351 = vpop.f32.mrf.mxu0
        %v1352 = vadd.f32 0.0, %v1351
        %1353 = vmatmul.f32.gmra.mxu0 %v1275
        %v1354 = vpop.f32.mrf.mxu0
        %v1355 = vadd.f32 0.0, %v1354
        %1356 = vmatmul.f32.gmra.mxu0 %v1278
        %v1357 = vpop.f32.mrf.mxu0
        %v1358 = vadd.f32 0.0, %v1357
        %1359 = vmatmul.f32.gmra.mxu0 %v1281
        %v1360 = vpop.f32.mrf.mxu0
        %v1361 = vadd.f32 0.0, %v1360
        %1362 = vmatmul.f32.gmra.mxu0 %v1284
        %v1363 = vpop.f32.mrf.mxu0
        %v1364 = vadd.f32 0.0, %v1363
        %1365 = vmatmul.f32.gmra.mxu0 %v1287
        %v1366 = vpop.f32.mrf.mxu0
        %v1367 = vadd.f32 0.0, %v1366
        %1368 = vmatmul.f32.gmra.mxu0 %v1290
        %v1369 = vpop.f32.mrf.mxu0
        %v1370 = vadd.f32 0.0, %v1369
        %1371 = vmatmul.f32.gmra.mxu0 %v1293
        %v1372 = vpop.f32.mrf.mxu0
        %v1373 = vadd.f32 0.0, %v1372
        %1374 = vmatmul.f32.gmra.mxu0 %v1296
        %v1375 = vpop.f32.mrf.mxu0
        %v1376 = vadd.f32 0.0, %v1375
        %1377 = vmatmul.f32.gmra.mxu0 %v1299
        %v1378 = vpop.f32.mrf.mxu0
        %v1379 = vadd.f32 0.0, %v1378
        %1380 = vmatmul.f32.gmra.mxu0 %v1302
        %v1381 = vpop.f32.mrf.mxu0
        %v1382 = vadd.f32 0.0, %v1381
        %1383 = vmatmul.f32.gmra.mxu0 %v1305
        %v1384 = vpop.f32.mrf.mxu0
        %v1385 = vadd.f32 0.0, %v1384
        %1386 = vmatmul.f32.gmra.mxu0 %v1308
        %v1387 = vpop.f32.mrf.mxu0
        %v1388 = vadd.f32 0.0, %v1387
        %1389 = vmatmul.f32.gmra.mxu0 %v1311
        %v1390 = vpop.f32.mrf.mxu0
        %v1391 = vadd.f32 0.0, %v1390
        %1392 = vmatmul.f32.gmra.mxu0 %v1314
        %v1393 = vpop.f32.mrf.mxu0
        %v1394 = vadd.f32 0.0, %v1393
        %1395 = vmatmul.f32.gmra.mxu0 %v1317
        %v1396 = vpop.f32.mrf.mxu0
        %v1397 = vadd.f32 0.0, %v1396
        %1398 = vdwg.mxu0
        %v1399 = vadd.f32 %v1209, %v1337
        %v1400 = vadd.f32 %v1210, %v1340
        %v1401 = vadd.f32 %v1211, %v1343
        %v1402 = vadd.f32 %v1212, %v1346
        %v1403 = vadd.f32 %v1213, %v1349
        %v1404 = vadd.f32 %v1214, %v1352
        %v1405 = vadd.f32 %v1215, %v1355
        %v1406 = vadd.f32 %v1216, %v1358
        %v1407 = vadd.f32 %v1217, %v1361
        %v1408 = vadd.f32 %v1218, %v1364
        %v1409 = vadd.f32 %v1219, %v1367
        %v1410 = vadd.f32 %v1220, %v1370
        %v1411 = vadd.f32 %v1221, %v1373
        %v1412 = vadd.f32 %v1222, %v1376
        %v1413 = vadd.f32 %v1223, %v1379
        %v1414 = vadd.f32 %v1224, %v1382
        %v1415 = vadd.f32 %v1225, %v1385
        %v1416 = vadd.f32 %v1226, %v1388
        %v1417 = vadd.f32 %v1227, %v1391
        %v1418 = vadd.f32 %v1228, %v1394
        %v1419 = vadd.f32 %v1229, %v1397
        %v1420 = vld [vmem:[#allocation2 + $0x6] sm:$0xff]
        %v1421 = vld [vmem:[#allocation2 + $0xe] sm:$0xff]
        %v1422 = vld [vmem:[#allocation2 + $0x16] sm:$0xff]
        %v1423 = vld [vmem:[#allocation2 + $0x1e] sm:$0xff]
        %v1424 = vld [vmem:[#allocation2 + $0x26] sm:$0xff]
        %v1425 = vld [vmem:[#allocation2 + $0x2e] sm:$0xff]
        %v1426 = vld [vmem:[#allocation2 + $0x36] sm:$0xff]
        %v1427 = vld [vmem:[#allocation2 + $0x3e] sm:$0xff]
        %v1428 = vld [vmem:[#allocation2 + $0x46] sm:$0xff]
        %v1429 = vld [vmem:[#allocation2 + $0x4e] sm:$0xff]
        %v1430 = vld [vmem:[#allocation2 + $0x56] sm:$0xff]
        %v1431 = vld [vmem:[#allocation2 + $0x5e] sm:$0xff]
        %v1432 = vld [vmem:[#allocation2 + $0x66] sm:$0xff]
        %v1433 = vld [vmem:[#allocation2 + $0x6e] sm:$0xff]
        %v1434 = vld [vmem:[#allocation2 + $0x76] sm:$0xff]
        %v1435 = vld [vmem:[#allocation2 + $0x7e] sm:$0xff]
        %v1436 = vld [vmem:[#allocation2 + $0x86] sm:$0xff]
        %v1437 = vld [vmem:[#allocation2 + $0x8e] sm:$0xff]
        %v1438 = vld [vmem:[#allocation2 + $0x96] sm:$0xff]
        %v1439 = vld [vmem:[#allocation2 + $0x9e] sm:$0xff]
        %v1440 = vld [vmem:[#allocation2 + $0xa6] sm:$0xff]
        %s1441 = scalar_lea.vmem [#allocation4], 192
        %v1442 = vld [vmem:[%s1441] sm:$0xff]
        %v1443 = vld [vmem:[%s1441 + $0x8] sm:$0xff]
        %v1444 = vld [vmem:[%s1441 + $0x10] sm:$0xff]
        %v1445 = vld [vmem:[%s1441 + $0x18] sm:$0xff]
        %v1447 = vsel %vm256, %v1420, 0
        %v1450 = vsel %vm256, %v1421, 0
        %v1453 = vsel %vm256, %v1422, 0
        %v1456 = vsel %vm256, %v1423, 0
        %v1459 = vsel %vm256, %v1424, 0
        %v1462 = vsel %vm256, %v1425, 0
        %v1465 = vsel %vm256, %v1426, 0
        %v1468 = vsel %vm256, %v1427, 0
        %v1471 = vsel %vm256, %v1428, 0
        %v1474 = vsel %vm256, %v1429, 0
        %v1477 = vsel %vm256, %v1430, 0
        %v1480 = vsel %vm256, %v1431, 0
        %v1483 = vsel %vm256, %v1432, 0
        %v1486 = vsel %vm256, %v1433, 0
        %v1489 = vsel %vm256, %v1434, 0
        %v1492 = vsel %vm256, %v1435, 0
        %v1495 = vsel %vm256, %v1436, 0
        %v1498 = vsel %vm256, %v1437, 0
        %v1501 = vsel %vm256, %v1438, 0
        %v1504 = vsel %vm256, %v1439, 0
        %v1507 = vsel %vm256, %v1440, 0
        %1509 = vmatpush.msra.mxu0 0.0
        %1510 = vmatpush.msra.mxu0 0.0
        %1511 = vmatpush.msra.mxu0 0.0
        %1512 = vmatpush.msra.mxu0 0.0
        %1513 = vmatpush.msra.mxu0 0.0
        %1514 = vmatpush.msra.mxu0 0.0
        %1515 = vmatpush.msra.mxu0 0.0
        %1516 = vmatpush.msra.mxu0 0.0
        %1517 = vmatpush.msra.mxu0 0.0
        %1518 = vmatpush.msra.mxu0 0.0
        %1519 = vmatpush.msra.mxu0 0.0
        %1520 = vmatpush.msra.mxu0 0.0
        %1521 = vmatpush.msra.mxu0 %v1445
        %1522 = vmatpush.msra.mxu0 %v1444
        %1523 = vmatpush.msra.mxu0 %v1443
        %1524 = vmatpush.msra.mxu0 %v1442
        %1525 = vmatmul.f32.gmra.mxu0 %v1447
        %v1526 = vpop.f32.mrf.mxu0
        %v1527 = vadd.f32 0.0, %v1526
        %1528 = vmatmul.f32.gmra.mxu0 %v1450
        %v1529 = vpop.f32.mrf.mxu0
        %v1530 = vadd.f32 0.0, %v1529
        %1531 = vmatmul.f32.gmra.mxu0 %v1453
        %v1532 = vpop.f32.mrf.mxu0
        %v1533 = vadd.f32 0.0, %v1532
        %1534 = vmatmul.f32.gmra.mxu0 %v1456
        %v1535 = vpop.f32.mrf.mxu0
        %v1536 = vadd.f32 0.0, %v1535
        %1537 = vmatmul.f32.gmra.mxu0 %v1459
        %v1538 = vpop.f32.mrf.mxu0
        %v1539 = vadd.f32 0.0, %v1538
        %1540 = vmatmul.f32.gmra.mxu0 %v1462
        %v1541 = vpop.f32.mrf.mxu0
        %v1542 = vadd.f32 0.0, %v1541
        %1543 = vmatmul.f32.gmra.mxu0 %v1465
        %v1544 = vpop.f32.mrf.mxu0
        %v1545 = vadd.f32 0.0, %v1544
        %1546 = vmatmul.f32.gmra.mxu0 %v1468
        %v1547 = vpop.f32.mrf.mxu0
        %v1548 = vadd.f32 0.0, %v1547
        %1549 = vmatmul.f32.gmra.mxu0 %v1471
        %v1550 = vpop.f32.mrf.mxu0
        %v1551 = vadd.f32 0.0, %v1550
        %1552 = vmatmul.f32.gmra.mxu0 %v1474
        %v1553 = vpop.f32.mrf.mxu0
        %v1554 = vadd.f32 0.0, %v1553
        %1555 = vmatmul.f32.gmra.mxu0 %v1477
        %v1556 = vpop.f32.mrf.mxu0
        %v1557 = vadd.f32 0.0, %v1556
        %1558 = vmatmul.f32.gmra.mxu0 %v1480
        %v1559 = vpop.f32.mrf.mxu0
        %v1560 = vadd.f32 0.0, %v1559
        %1561 = vmatmul.f32.gmra.mxu0 %v1483
        %v1562 = vpop.f32.mrf.mxu0
        %v1563 = vadd.f32 0.0, %v1562
        %1564 = vmatmul.f32.gmra.mxu0 %v1486
        %v1565 = vpop.f32.mrf.mxu0
        %v1566 = vadd.f32 0.0, %v1565
        %1567 = vmatmul.f32.gmra.mxu0 %v1489
        %v1568 = vpop.f32.mrf.mxu0
        %v1569 = vadd.f32 0.0, %v1568
        %1570 = vmatmul.f32.gmra.mxu0 %v1492
        %v1571 = vpop.f32.mrf.mxu0
        %v1572 = vadd.f32 0.0, %v1571
        %1573 = vmatmul.f32.gmra.mxu0 %v1495
        %v1574 = vpop.f32.mrf.mxu0
        %v1575 = vadd.f32 0.0, %v1574
        %1576 = vmatmul.f32.gmra.mxu0 %v1498
        %v1577 = vpop.f32.mrf.mxu0
        %v1578 = vadd.f32 0.0, %v1577
        %1579 = vmatmul.f32.gmra.mxu0 %v1501
        %v1580 = vpop.f32.mrf.mxu0
        %v1581 = vadd.f32 0.0, %v1580
        %1582 = vmatmul.f32.gmra.mxu0 %v1504
        %v1583 = vpop.f32.mrf.mxu0
        %v1584 = vadd.f32 0.0, %v1583
        %1585 = vmatmul.f32.gmra.mxu0 %v1507
        %v1586 = vpop.f32.mrf.mxu0
        %v1587 = vadd.f32 0.0, %v1586
        %1588 = vdwg.mxu0
        %v1589 = vadd.f32 %v1399, %v1527
        %v1590 = vadd.f32 %v1400, %v1530
        %v1591 = vadd.f32 %v1401, %v1533
        %v1592 = vadd.f32 %v1402, %v1536
        %v1593 = vadd.f32 %v1403, %v1539
        %v1594 = vadd.f32 %v1404, %v1542
        %v1595 = vadd.f32 %v1405, %v1545
        %v1596 = vadd.f32 %v1406, %v1548
        %v1597 = vadd.f32 %v1407, %v1551
        %v1598 = vadd.f32 %v1408, %v1554
        %v1599 = vadd.f32 %v1409, %v1557
        %v1600 = vadd.f32 %v1410, %v1560
        %v1601 = vadd.f32 %v1411, %v1563
        %v1602 = vadd.f32 %v1412, %v1566
        %v1603 = vadd.f32 %v1413, %v1569
        %v1604 = vadd.f32 %v1414, %v1572
        %v1605 = vadd.f32 %v1415, %v1575
        %v1606 = vadd.f32 %v1416, %v1578
        %v1607 = vadd.f32 %v1417, %v1581
        %v1608 = vadd.f32 %v1418, %v1584
        %v1609 = vadd.f32 %v1419, %v1587
        %v1610 = vld [vmem:[#allocation2 + $0x7] sm:$0xff]
        %v1611 = vld [vmem:[#allocation2 + $0xf] sm:$0xff]
        %v1612 = vld [vmem:[#allocation2 + $0x17] sm:$0xff]
        %v1613 = vld [vmem:[#allocation2 + $0x1f] sm:$0xff]
        %v1614 = vld [vmem:[#allocation2 + $0x27] sm:$0xff]
        %v1615 = vld [vmem:[#allocation2 + $0x2f] sm:$0xff]
        %v1616 = vld [vmem:[#allocation2 + $0x37] sm:$0xff]
        %v1617 = vld [vmem:[#allocation2 + $0x3f] sm:$0xff]
        %v1618 = vld [vmem:[#allocation2 + $0x47] sm:$0xff]
        %v1619 = vld [vmem:[#allocation2 + $0x4f] sm:$0xff]
        %v1620 = vld [vmem:[#allocation2 + $0x57] sm:$0xff]
        %v1621 = vld [vmem:[#allocation2 + $0x5f] sm:$0xff]
        %v1622 = vld [vmem:[#allocation2 + $0x67] sm:$0xff]
        %v1623 = vld [vmem:[#allocation2 + $0x6f] sm:$0xff]
        %v1624 = vld [vmem:[#allocation2 + $0x77] sm:$0xff]
        %v1625 = vld [vmem:[#allocation2 + $0x7f] sm:$0xff]
        %v1626 = vld [vmem:[#allocation2 + $0x87] sm:$0xff]
        %v1627 = vld [vmem:[#allocation2 + $0x8f] sm:$0xff]
        %v1628 = vld [vmem:[#allocation2 + $0x97] sm:$0xff]
        %v1629 = vld [vmem:[#allocation2 + $0x9f] sm:$0xff]
        %v1630 = vld [vmem:[#allocation2 + $0xa7] sm:$0xff]
        %s1631 = scalar_lea.vmem [#allocation4], 224
        %v1632 = vld [vmem:[%s1631] sm:$0xff]
        %v1633 = vld [vmem:[%s1631 + $0x8] sm:$0xff]
        %v1634 = vld [vmem:[%s1631 + $0x10] sm:$0xff]
        %v1635 = vld [vmem:[%s1631 + $0x18] sm:$0xff]
        %v1637 = vsel %vm256, %v1610, 0
        %v1640 = vsel %vm256, %v1611, 0
        %v1643 = vsel %vm256, %v1612, 0
        %v1646 = vsel %vm256, %v1613, 0
        %v1649 = vsel %vm256, %v1614, 0
        %v1652 = vsel %vm256, %v1615, 0
        %v1655 = vsel %vm256, %v1616, 0
        %v1658 = vsel %vm256, %v1617, 0
        %v1661 = vsel %vm256, %v1618, 0
        %v1664 = vsel %vm256, %v1619, 0
        %v1667 = vsel %vm256, %v1620, 0
        %v1670 = vsel %vm256, %v1621, 0
        %v1673 = vsel %vm256, %v1622, 0
        %v1676 = vsel %vm256, %v1623, 0
        %v1679 = vsel %vm256, %v1624, 0
        %v1682 = vsel %vm256, %v1625, 0
        %v1685 = vsel %vm256, %v1626, 0
        %v1688 = vsel %vm256, %v1627, 0
        %v1691 = vsel %vm256, %v1628, 0
        %v1694 = vsel %vm256, %v1629, 0
        %v1697 = vsel %vm256, %v1630, 0
        %1699 = vmatpush.msra.mxu0 0.0
        %1700 = vmatpush.msra.mxu0 0.0
        %1701 = vmatpush.msra.mxu0 0.0
        %1702 = vmatpush.msra.mxu0 0.0
        %1703 = vmatpush.msra.mxu0 0.0
        %1704 = vmatpush.msra.mxu0 0.0
        %1705 = vmatpush.msra.mxu0 0.0
        %1706 = vmatpush.msra.mxu0 0.0
        %1707 = vmatpush.msra.mxu0 0.0
        %1708 = vmatpush.msra.mxu0 0.0
        %1709 = vmatpush.msra.mxu0 0.0
        %1710 = vmatpush.msra.mxu0 0.0
        %1711 = vmatpush.msra.mxu0 %v1635
        %1712 = vmatpush.msra.mxu0 %v1634
        %1713 = vmatpush.msra.mxu0 %v1633
        %1714 = vmatpush.msra.mxu0 %v1632
        %1715 = vmatmul.f32.gmra.mxu0 %v1637
        %v1716 = vpop.f32.mrf.mxu0
        %v1717 = vadd.f32 0.0, %v1716
        %1718 = vmatmul.f32.gmra.mxu0 %v1640
        %v1719 = vpop.f32.mrf.mxu0
        %v1720 = vadd.f32 0.0, %v1719
        %1721 = vmatmul.f32.gmra.mxu0 %v1643
        %v1722 = vpop.f32.mrf.mxu0
        %v1723 = vadd.f32 0.0, %v1722
        %1724 = vmatmul.f32.gmra.mxu0 %v1646
        %v1725 = vpop.f32.mrf.mxu0
        %v1726 = vadd.f32 0.0, %v1725
        %1727 = vmatmul.f32.gmra.mxu0 %v1649
        %v1728 = vpop.f32.mrf.mxu0
        %v1729 = vadd.f32 0.0, %v1728
        %1730 = vmatmul.f32.gmra.mxu0 %v1652
        %v1731 = vpop.f32.mrf.mxu0
        %v1732 = vadd.f32 0.0, %v1731
        %1733 = vmatmul.f32.gmra.mxu0 %v1655
        %v1734 = vpop.f32.mrf.mxu0
        %v1735 = vadd.f32 0.0, %v1734
        %1736 = vmatmul.f32.gmra.mxu0 %v1658
        %v1737 = vpop.f32.mrf.mxu0
        %v1738 = vadd.f32 0.0, %v1737
        %1739 = vmatmul.f32.gmra.mxu0 %v1661
        %v1740 = vpop.f32.mrf.mxu0
        %v1741 = vadd.f32 0.0, %v1740
        %1742 = vmatmul.f32.gmra.mxu0 %v1664
        %v1743 = vpop.f32.mrf.mxu0
        %v1744 = vadd.f32 0.0, %v1743
        %1745 = vmatmul.f32.gmra.mxu0 %v1667
        %v1746 = vpop.f32.mrf.mxu0
        %v1747 = vadd.f32 0.0, %v1746
        %1748 = vmatmul.f32.gmra.mxu0 %v1670
        %v1749 = vpop.f32.mrf.mxu0
        %v1750 = vadd.f32 0.0, %v1749
        %1751 = vmatmul.f32.gmra.mxu0 %v1673
        %v1752 = vpop.f32.mrf.mxu0
        %v1753 = vadd.f32 0.0, %v1752
        %1754 = vmatmul.f32.gmra.mxu0 %v1676
        %v1755 = vpop.f32.mrf.mxu0
        %v1756 = vadd.f32 0.0, %v1755
        %1757 = vmatmul.f32.gmra.mxu0 %v1679
        %v1758 = vpop.f32.mrf.mxu0
        %v1759 = vadd.f32 0.0, %v1758
        %1760 = vmatmul.f32.gmra.mxu0 %v1682
        %v1761 = vpop.f32.mrf.mxu0
        %v1762 = vadd.f32 0.0, %v1761
        %1763 = vmatmul.f32.gmra.mxu0 %v1685
        %v1764 = vpop.f32.mrf.mxu0
        %v1765 = vadd.f32 0.0, %v1764
        %1766 = vmatmul.f32.gmra.mxu0 %v1688
        %v1767 = vpop.f32.mrf.mxu0
        %v1768 = vadd.f32 0.0, %v1767
        %1769 = vmatmul.f32.gmra.mxu0 %v1691
        %v1770 = vpop.f32.mrf.mxu0
        %v1771 = vadd.f32 0.0, %v1770
        %1772 = vmatmul.f32.gmra.mxu0 %v1694
        %v1773 = vpop.f32.mrf.mxu0
        %v1774 = vadd.f32 0.0, %v1773
        %1775 = vmatmul.f32.gmra.mxu0 %v1697
        %v1776 = vpop.f32.mrf.mxu0
        %v1777 = vadd.f32 0.0, %v1776
        %1778 = vdwg.mxu0
        %v1779 = vadd.f32 %v1589, %v1717
        %v1780 = vadd.f32 %v1590, %v1720
        %v1781 = vadd.f32 %v1591, %v1723
        %v1782 = vadd.f32 %v1592, %v1726
        %v1783 = vadd.f32 %v1593, %v1729
        %v1784 = vadd.f32 %v1594, %v1732
        %v1785 = vadd.f32 %v1595, %v1735
        %v1786 = vadd.f32 %v1596, %v1738
        %v1787 = vadd.f32 %v1597, %v1741
        %v1788 = vadd.f32 %v1598, %v1744
        %v1789 = vadd.f32 %v1599, %v1747
        %v1790 = vadd.f32 %v1600, %v1750
        %v1791 = vadd.f32 %v1601, %v1753
        %v1792 = vadd.f32 %v1602, %v1756
        %v1793 = vadd.f32 %v1603, %v1759
        %v1794 = vadd.f32 %v1604, %v1762
        %v1795 = vadd.f32 %v1605, %v1765
        %v1796 = vadd.f32 %v1606, %v1768
        %v1797 = vadd.f32 %v1607, %v1771
        %v1798 = vadd.f32 %v1608, %v1774
        %v1799 = vadd.f32 %v1609, %v1777
        %v1800 = vld [vmem:[#allocation2 + $0x8] sm:$0xff]
        %v1801 = vld [vmem:[#allocation2 + $0x10] sm:$0xff]
        %v1802 = vld [vmem:[#allocation2 + $0x18] sm:$0xff]
        %v1803 = vld [vmem:[#allocation2 + $0x20] sm:$0xff]
        %v1804 = vld [vmem:[#allocation2 + $0x28] sm:$0xff]
        %v1805 = vld [vmem:[#allocation2 + $0x30] sm:$0xff]
        %v1806 = vld [vmem:[#allocation2 + $0x38] sm:$0xff]
        %v1807 = vld [vmem:[#allocation2 + $0x40] sm:$0xff]
        %v1808 = vld [vmem:[#allocation2 + $0x48] sm:$0xff]
        %v1809 = vld [vmem:[#allocation2 + $0x50] sm:$0xff]
        %v1810 = vld [vmem:[#allocation2 + $0x58] sm:$0xff]
        %v1811 = vld [vmem:[#allocation2 + $0x60] sm:$0xff]
        %v1812 = vld [vmem:[#allocation2 + $0x68] sm:$0xff]
        %v1813 = vld [vmem:[#allocation2 + $0x70] sm:$0xff]
        %v1814 = vld [vmem:[#allocation2 + $0x78] sm:$0xff]
        %v1815 = vld [vmem:[#allocation2 + $0x80] sm:$0xff]
        %v1816 = vld [vmem:[#allocation2 + $0x88] sm:$0xff]
        %v1817 = vld [vmem:[#allocation2 + $0x90] sm:$0xff]
        %v1818 = vld [vmem:[#allocation2 + $0x98] sm:$0xff]
        %v1819 = vld [vmem:[#allocation2 + $0xa0] sm:$0xff]
        %v1820 = vld [vmem:[#allocation2 + $0xa8] sm:$0xff]
        %s1821 = scalar_lea.vmem [#allocation4], 256
        %v1822 = vld [vmem:[%s1821] sm:$0xff]
        %v1823 = vld [vmem:[%s1821 + $0x8] sm:$0xff]
        %v1824 = vld [vmem:[%s1821 + $0x10] sm:$0xff]
        %v1825 = vld [vmem:[%s1821 + $0x18] sm:$0xff]
        %v1827 = vsel %vm256, %v1800, 0
        %v1830 = vsel %vm256, %v1801, 0
        %v1833 = vsel %vm256, %v1802, 0
        %v1836 = vsel %vm256, %v1803, 0
        %v1839 = vsel %vm256, %v1804, 0
        %v1842 = vsel %vm256, %v1805, 0
        %v1845 = vsel %vm256, %v1806, 0
        %v1848 = vsel %vm256, %v1807, 0
        %v1851 = vsel %vm256, %v1808, 0
        %v1854 = vsel %vm256, %v1809, 0
        %v1857 = vsel %vm256, %v1810, 0
        %v1860 = vsel %vm256, %v1811, 0
        %v1863 = vsel %vm256, %v1812, 0
        %v1866 = vsel %vm256, %v1813, 0
        %v1869 = vsel %vm256, %v1814, 0
        %v1872 = vsel %vm256, %v1815, 0
        %v1875 = vsel %vm256, %v1816, 0
        %v1878 = vsel %vm256, %v1817, 0
        %v1881 = vsel %vm256, %v1818, 0
        %v1884 = vsel %vm256, %v1819, 0
        %v1887 = vsel %vm256, %v1820, 0
        %1889 = vmatpush.msra.mxu0 0.0
        %1890 = vmatpush.msra.mxu0 0.0
        %1891 = vmatpush.msra.mxu0 0.0
        %1892 = vmatpush.msra.mxu0 0.0
        %1893 = vmatpush.msra.mxu0 0.0
        %1894 = vmatpush.msra.mxu0 0.0
        %1895 = vmatpush.msra.mxu0 0.0
        %1896 = vmatpush.msra.mxu0 0.0
        %1897 = vmatpush.msra.mxu0 0.0
        %1898 = vmatpush.msra.mxu0 0.0
        %1899 = vmatpush.msra.mxu0 0.0
        %1900 = vmatpush.msra.mxu0 0.0
        %1901 = vmatpush.msra.mxu0 %v1825
        %1902 = vmatpush.msra.mxu0 %v1824
        %1903 = vmatpush.msra.mxu0 %v1823
        %1904 = vmatpush.msra.mxu0 %v1822
        %1905 = vmatmul.f32.gmra.mxu0 %v1827
        %v1906 = vpop.f32.mrf.mxu0
        %v1907 = vadd.f32 0.0, %v1906
        %1908 = vmatmul.f32.gmra.mxu0 %v1830
        %v1909 = vpop.f32.mrf.mxu0
        %v1910 = vadd.f32 0.0, %v1909
        %1911 = vmatmul.f32.gmra.mxu0 %v1833
        %v1912 = vpop.f32.mrf.mxu0
        %v1913 = vadd.f32 0.0, %v1912
        %1914 = vmatmul.f32.gmra.mxu0 %v1836
        %v1915 = vpop.f32.mrf.mxu0
        %v1916 = vadd.f32 0.0, %v1915
        %1917 = vmatmul.f32.gmra.mxu0 %v1839
        %v1918 = vpop.f32.mrf.mxu0
        %v1919 = vadd.f32 0.0, %v1918
        %1920 = vmatmul.f32.gmra.mxu0 %v1842
        %v1921 = vpop.f32.mrf.mxu0
        %v1922 = vadd.f32 0.0, %v1921
        %1923 = vmatmul.f32.gmra.mxu0 %v1845
        %v1924 = vpop.f32.mrf.mxu0
        %v1925 = vadd.f32 0.0, %v1924
        %1926 = vmatmul.f32.gmra.mxu0 %v1848
        %v1927 = vpop.f32.mrf.mxu0
        %v1928 = vadd.f32 0.0, %v1927
        %1929 = vmatmul.f32.gmra.mxu0 %v1851
        %v1930 = vpop.f32.mrf.mxu0
        %v1931 = vadd.f32 0.0, %v1930
        %1932 = vmatmul.f32.gmra.mxu0 %v1854
        %v1933 = vpop.f32.mrf.mxu0
        %v1934 = vadd.f32 0.0, %v1933
        %1935 = vmatmul.f32.gmra.mxu0 %v1857
        %v1936 = vpop.f32.mrf.mxu0
        %v1937 = vadd.f32 0.0, %v1936
        %1938 = vmatmul.f32.gmra.mxu0 %v1860
        %v1939 = vpop.f32.mrf.mxu0
        %v1940 = vadd.f32 0.0, %v1939
        %1941 = vmatmul.f32.gmra.mxu0 %v1863
        %v1942 = vpop.f32.mrf.mxu0
        %v1943 = vadd.f32 0.0, %v1942
        %1944 = vmatmul.f32.gmra.mxu0 %v1866
        %v1945 = vpop.f32.mrf.mxu0
        %v1946 = vadd.f32 0.0, %v1945
        %1947 = vmatmul.f32.gmra.mxu0 %v1869
        %v1948 = vpop.f32.mrf.mxu0
        %v1949 = vadd.f32 0.0, %v1948
        %1950 = vmatmul.f32.gmra.mxu0 %v1872
        %v1951 = vpop.f32.mrf.mxu0
        %v1952 = vadd.f32 0.0, %v1951
        %1953 = vmatmul.f32.gmra.mxu0 %v1875
        %v1954 = vpop.f32.mrf.mxu0
        %v1955 = vadd.f32 0.0, %v1954
        %1956 = vmatmul.f32.gmra.mxu0 %v1878
        %v1957 = vpop.f32.mrf.mxu0
        %v1958 = vadd.f32 0.0, %v1957
        %1959 = vmatmul.f32.gmra.mxu0 %v1881
        %v1960 = vpop.f32.mrf.mxu0
        %v1961 = vadd.f32 0.0, %v1960
        %1962 = vmatmul.f32.gmra.mxu0 %v1884
        %v1963 = vpop.f32.mrf.mxu0
        %v1964 = vadd.f32 0.0, %v1963
        %1965 = vmatmul.f32.gmra.mxu0 %v1887
        %v1966 = vpop.f32.mrf.mxu0
        %v1967 = vadd.f32 0.0, %v1966
        %1968 = vdwg.mxu0
        %v1969 = vadd.f32 %v1779, %v1907
        %v1970 = vadd.f32 %v1780, %v1910
        %v1971 = vadd.f32 %v1781, %v1913
        %v1972 = vadd.f32 %v1782, %v1916
        %v1973 = vadd.f32 %v1783, %v1919
        %v1974 = vadd.f32 %v1784, %v1922
        %v1975 = vadd.f32 %v1785, %v1925
        %v1976 = vadd.f32 %v1786, %v1928
        %v1977 = vadd.f32 %v1787, %v1931
        %v1978 = vadd.f32 %v1788, %v1934
        %v1979 = vadd.f32 %v1789, %v1937
        %v1980 = vadd.f32 %v1790, %v1940
        %v1981 = vadd.f32 %v1791, %v1943
        %v1982 = vadd.f32 %v1792, %v1946
        %v1983 = vadd.f32 %v1793, %v1949
        %v1984 = vadd.f32 %v1794, %v1952
        %v1985 = vadd.f32 %v1795, %v1955
        %v1986 = vadd.f32 %v1796, %v1958
        %v1987 = vadd.f32 %v1797, %v1961
        %v1988 = vadd.f32 %v1798, %v1964
        %v1989 = vadd.f32 %v1799, %v1967
        %v1990 = vld [vmem:[#allocation2 + $0x9] sm:$0xff]
        %v1991 = vld [vmem:[#allocation2 + $0x11] sm:$0xff]
        %v1992 = vld [vmem:[#allocation2 + $0x19] sm:$0xff]
        %v1993 = vld [vmem:[#allocation2 + $0x21] sm:$0xff]
        %v1994 = vld [vmem:[#allocation2 + $0x29] sm:$0xff]
        %v1995 = vld [vmem:[#allocation2 + $0x31] sm:$0xff]
        %v1996 = vld [vmem:[#allocation2 + $0x39] sm:$0xff]
        %v1997 = vld [vmem:[#allocation2 + $0x41] sm:$0xff]
        %v1998 = vld [vmem:[#allocation2 + $0x49] sm:$0xff]
        %v1999 = vld [vmem:[#allocation2 + $0x51] sm:$0xff]
        %v2000 = vld [vmem:[#allocation2 + $0x59] sm:$0xff]
        %v2001 = vld [vmem:[#allocation2 + $0x61] sm:$0xff]
        %v2002 = vld [vmem:[#allocation2 + $0x69] sm:$0xff]
        %v2003 = vld [vmem:[#allocation2 + $0x71] sm:$0xff]
        %v2004 = vld [vmem:[#allocation2 + $0x79] sm:$0xff]
        %v2005 = vld [vmem:[#allocation2 + $0x81] sm:$0xff]
        %v2006 = vld [vmem:[#allocation2 + $0x89] sm:$0xff]
        %v2007 = vld [vmem:[#allocation2 + $0x91] sm:$0xff]
        %v2008 = vld [vmem:[#allocation2 + $0x99] sm:$0xff]
        %v2009 = vld [vmem:[#allocation2 + $0xa1] sm:$0xff]
        %v2010 = vld [vmem:[#allocation2 + $0xa9] sm:$0xff]
        %s2011 = scalar_lea.vmem [#allocation4], 288
        %v2012 = vld [vmem:[%s2011] sm:$0xff]
        %v2013 = vld [vmem:[%s2011 + $0x8] sm:$0xff]
        %v2014 = vld [vmem:[%s2011 + $0x10] sm:$0xff]
        %v2015 = vld [vmem:[%s2011 + $0x18] sm:$0xff]
        %v2017 = vsel %vm256, %v1990, 0
        %v2020 = vsel %vm256, %v1991, 0
        %v2023 = vsel %vm256, %v1992, 0
        %v2026 = vsel %vm256, %v1993, 0
        %v2029 = vsel %vm256, %v1994, 0
        %v2032 = vsel %vm256, %v1995, 0
        %v2035 = vsel %vm256, %v1996, 0
        %v2038 = vsel %vm256, %v1997, 0
        %v2041 = vsel %vm256, %v1998, 0
        %v2044 = vsel %vm256, %v1999, 0
        %v2047 = vsel %vm256, %v2000, 0
        %v2050 = vsel %vm256, %v2001, 0
        %v2053 = vsel %vm256, %v2002, 0
        %v2056 = vsel %vm256, %v2003, 0
        %v2059 = vsel %vm256, %v2004, 0
        %v2062 = vsel %vm256, %v2005, 0
        %v2065 = vsel %vm256, %v2006, 0
        %v2068 = vsel %vm256, %v2007, 0
        %v2071 = vsel %vm256, %v2008, 0
        %v2074 = vsel %vm256, %v2009, 0
        %v2077 = vsel %vm256, %v2010, 0
        %2079 = vmatpush.msra.mxu0 0.0
        %2080 = vmatpush.msra.mxu0 0.0
        %2081 = vmatpush.msra.mxu0 0.0
        %2082 = vmatpush.msra.mxu0 0.0
        %2083 = vmatpush.msra.mxu0 0.0
        %2084 = vmatpush.msra.mxu0 0.0
        %2085 = vmatpush.msra.mxu0 0.0
        %2086 = vmatpush.msra.mxu0 0.0
        %2087 = vmatpush.msra.mxu0 0.0
        %2088 = vmatpush.msra.mxu0 0.0
        %2089 = vmatpush.msra.mxu0 0.0
        %2090 = vmatpush.msra.mxu0 0.0
        %2091 = vmatpush.msra.mxu0 %v2015
        %2092 = vmatpush.msra.mxu0 %v2014
        %2093 = vmatpush.msra.mxu0 %v2013
        %2094 = vmatpush.msra.mxu0 %v2012
        %2095 = vmatmul.f32.gmra.mxu0 %v2017
        %v2096 = vpop.f32.mrf.mxu0
        %v2097 = vadd.f32 0.0, %v2096
        %2098 = vmatmul.f32.gmra.mxu0 %v2020
        %v2099 = vpop.f32.mrf.mxu0
        %v2100 = vadd.f32 0.0, %v2099
        %2101 = vmatmul.f32.gmra.mxu0 %v2023
        %v2102 = vpop.f32.mrf.mxu0
        %v2103 = vadd.f32 0.0, %v2102
        %2104 = vmatmul.f32.gmra.mxu0 %v2026
        %v2105 = vpop.f32.mrf.mxu0
        %v2106 = vadd.f32 0.0, %v2105
        %2107 = vmatmul.f32.gmra.mxu0 %v2029
        %v2108 = vpop.f32.mrf.mxu0
        %v2109 = vadd.f32 0.0, %v2108
        %2110 = vmatmul.f32.gmra.mxu0 %v2032
        %v2111 = vpop.f32.mrf.mxu0
        %v2112 = vadd.f32 0.0, %v2111
        %2113 = vmatmul.f32.gmra.mxu0 %v2035
        %v2114 = vpop.f32.mrf.mxu0
        %v2115 = vadd.f32 0.0, %v2114
        %2116 = vmatmul.f32.gmra.mxu0 %v2038
        %v2117 = vpop.f32.mrf.mxu0
        %v2118 = vadd.f32 0.0, %v2117
        %2119 = vmatmul.f32.gmra.mxu0 %v2041
        %v2120 = vpop.f32.mrf.mxu0
        %v2121 = vadd.f32 0.0, %v2120
        %2122 = vmatmul.f32.gmra.mxu0 %v2044
        %v2123 = vpop.f32.mrf.mxu0
        %v2124 = vadd.f32 0.0, %v2123
        %2125 = vmatmul.f32.gmra.mxu0 %v2047
        %v2126 = vpop.f32.mrf.mxu0
        %v2127 = vadd.f32 0.0, %v2126
        %2128 = vmatmul.f32.gmra.mxu0 %v2050
        %v2129 = vpop.f32.mrf.mxu0
        %v2130 = vadd.f32 0.0, %v2129
        %2131 = vmatmul.f32.gmra.mxu0 %v2053
        %v2132 = vpop.f32.mrf.mxu0
        %v2133 = vadd.f32 0.0, %v2132
        %2134 = vmatmul.f32.gmra.mxu0 %v2056
        %v2135 = vpop.f32.mrf.mxu0
        %v2136 = vadd.f32 0.0, %v2135
        %2137 = vmatmul.f32.gmra.mxu0 %v2059
        %v2138 = vpop.f32.mrf.mxu0
        %v2139 = vadd.f32 0.0, %v2138
        %2140 = vmatmul.f32.gmra.mxu0 %v2062
        %v2141 = vpop.f32.mrf.mxu0
        %v2142 = vadd.f32 0.0, %v2141
        %2143 = vmatmul.f32.gmra.mxu0 %v2065
        %v2144 = vpop.f32.mrf.mxu0
        %v2145 = vadd.f32 0.0, %v2144
        %2146 = vmatmul.f32.gmra.mxu0 %v2068
        %v2147 = vpop.f32.mrf.mxu0
        %v2148 = vadd.f32 0.0, %v2147
        %2149 = vmatmul.f32.gmra.mxu0 %v2071
        %v2150 = vpop.f32.mrf.mxu0
        %v2151 = vadd.f32 0.0, %v2150
        %2152 = vmatmul.f32.gmra.mxu0 %v2074
        %v2153 = vpop.f32.mrf.mxu0
        %v2154 = vadd.f32 0.0, %v2153
        %2155 = vmatmul.f32.gmra.mxu0 %v2077
        %v2156 = vpop.f32.mrf.mxu0
        %v2157 = vadd.f32 0.0, %v2156
        %2158 = vdwg.mxu0
        %v2159 = vadd.f32 %v1969, %v2097
        %v2160 = vadd.f32 %v1970, %v2100
        %v2161 = vadd.f32 %v1971, %v2103
        %v2162 = vadd.f32 %v1972, %v2106
        %v2163 = vadd.f32 %v1973, %v2109
        %v2164 = vadd.f32 %v1974, %v2112
        %v2165 = vadd.f32 %v1975, %v2115
        %v2166 = vadd.f32 %v1976, %v2118
        %v2167 = vadd.f32 %v1977, %v2121
        %v2168 = vadd.f32 %v1978, %v2124
        %v2169 = vadd.f32 %v1979, %v2127
        %v2170 = vadd.f32 %v1980, %v2130
        %v2171 = vadd.f32 %v1981, %v2133
        %v2172 = vadd.f32 %v1982, %v2136
        %v2173 = vadd.f32 %v1983, %v2139
        %v2174 = vadd.f32 %v1984, %v2142
        %v2175 = vadd.f32 %v1985, %v2145
        %v2176 = vadd.f32 %v1986, %v2148
        %v2177 = vadd.f32 %v1987, %v2151
        %v2178 = vadd.f32 %v1988, %v2154
        %v2179 = vadd.f32 %v1989, %v2157
        %v2180 = vld [vmem:[#allocation2 + $0xa] sm:$0xff]
        %v2181 = vld [vmem:[#allocation2 + $0x12] sm:$0xff]
        %v2182 = vld [vmem:[#allocation2 + $0x1a] sm:$0xff]
        %v2183 = vld [vmem:[#allocation2 + $0x22] sm:$0xff]
        %v2184 = vld [vmem:[#allocation2 + $0x2a] sm:$0xff]
        %v2185 = vld [vmem:[#allocation2 + $0x32] sm:$0xff]
        %v2186 = vld [vmem:[#allocation2 + $0x3a] sm:$0xff]
        %v2187 = vld [vmem:[#allocation2 + $0x42] sm:$0xff]
        %v2188 = vld [vmem:[#allocation2 + $0x4a] sm:$0xff]
        %v2189 = vld [vmem:[#allocation2 + $0x52] sm:$0xff]
        %v2190 = vld [vmem:[#allocation2 + $0x5a] sm:$0xff]
        %v2191 = vld [vmem:[#allocation2 + $0x62] sm:$0xff]
        %v2192 = vld [vmem:[#allocation2 + $0x6a] sm:$0xff]
        %v2193 = vld [vmem:[#allocation2 + $0x72] sm:$0xff]
        %v2194 = vld [vmem:[#allocation2 + $0x7a] sm:$0xff]
        %v2195 = vld [vmem:[#allocation2 + $0x82] sm:$0xff]
        %v2196 = vld [vmem:[#allocation2 + $0x8a] sm:$0xff]
        %v2197 = vld [vmem:[#allocation2 + $0x92] sm:$0xff]
        %v2198 = vld [vmem:[#allocation2 + $0x9a] sm:$0xff]
        %v2199 = vld [vmem:[#allocation2 + $0xa2] sm:$0xff]
        %v2200 = vld [vmem:[#allocation2 + $0xaa] sm:$0xff]
        %s2201 = scalar_lea.vmem [#allocation4], 320
        %v2202 = vld [vmem:[%s2201] sm:$0xff]
        %v2203 = vld [vmem:[%s2201 + $0x8] sm:$0xff]
        %v2204 = vld [vmem:[%s2201 + $0x10] sm:$0xff]
        %v2205 = vld [vmem:[%s2201 + $0x18] sm:$0xff]
        %v2207 = vsel %vm256, %v2180, 0
        %v2210 = vsel %vm256, %v2181, 0
        %v2213 = vsel %vm256, %v2182, 0
        %v2216 = vsel %vm256, %v2183, 0
        %v2219 = vsel %vm256, %v2184, 0
        %v2222 = vsel %vm256, %v2185, 0
        %v2225 = vsel %vm256, %v2186, 0
        %v2228 = vsel %vm256, %v2187, 0
        %v2231 = vsel %vm256, %v2188, 0
        %v2234 = vsel %vm256, %v2189, 0
        %v2237 = vsel %vm256, %v2190, 0
        %v2240 = vsel %vm256, %v2191, 0
        %v2243 = vsel %vm256, %v2192, 0
        %v2246 = vsel %vm256, %v2193, 0
        %v2249 = vsel %vm256, %v2194, 0
        %v2252 = vsel %vm256, %v2195, 0
        %v2255 = vsel %vm256, %v2196, 0
        %v2258 = vsel %vm256, %v2197, 0
        %v2261 = vsel %vm256, %v2198, 0
        %v2264 = vsel %vm256, %v2199, 0
        %v2267 = vsel %vm256, %v2200, 0
        %2269 = vmatpush.msra.mxu0 0.0
        %2270 = vmatpush.msra.mxu0 0.0
        %2271 = vmatpush.msra.mxu0 0.0
        %2272 = vmatpush.msra.mxu0 0.0
        %2273 = vmatpush.msra.mxu0 0.0
        %2274 = vmatpush.msra.mxu0 0.0
        %2275 = vmatpush.msra.mxu0 0.0
        %2276 = vmatpush.msra.mxu0 0.0
        %2277 = vmatpush.msra.mxu0 0.0
        %2278 = vmatpush.msra.mxu0 0.0
        %2279 = vmatpush.msra.mxu0 0.0
        %2280 = vmatpush.msra.mxu0 0.0
        %2281 = vmatpush.msra.mxu0 %v2205
        %2282 = vmatpush.msra.mxu0 %v2204
        %2283 = vmatpush.msra.mxu0 %v2203
        %2284 = vmatpush.msra.mxu0 %v2202
        %2285 = vmatmul.f32.gmra.mxu0 %v2207
        %v2286 = vpop.f32.mrf.mxu0
        %v2287 = vadd.f32 0.0, %v2286
        %2288 = vmatmul.f32.gmra.mxu0 %v2210
        %v2289 = vpop.f32.mrf.mxu0
        %v2290 = vadd.f32 0.0, %v2289
        %2291 = vmatmul.f32.gmra.mxu0 %v2213
        %v2292 = vpop.f32.mrf.mxu0
        %v2293 = vadd.f32 0.0, %v2292
        %2294 = vmatmul.f32.gmra.mxu0 %v2216
        %v2295 = vpop.f32.mrf.mxu0
        %v2296 = vadd.f32 0.0, %v2295
        %2297 = vmatmul.f32.gmra.mxu0 %v2219
        %v2298 = vpop.f32.mrf.mxu0
        %v2299 = vadd.f32 0.0, %v2298
        %2300 = vmatmul.f32.gmra.mxu0 %v2222
        %v2301 = vpop.f32.mrf.mxu0
        %v2302 = vadd.f32 0.0, %v2301
        %2303 = vmatmul.f32.gmra.mxu0 %v2225
        %v2304 = vpop.f32.mrf.mxu0
        %v2305 = vadd.f32 0.0, %v2304
        %2306 = vmatmul.f32.gmra.mxu0 %v2228
        %v2307 = vpop.f32.mrf.mxu0
        %v2308 = vadd.f32 0.0, %v2307
        %2309 = vmatmul.f32.gmra.mxu0 %v2231
        %v2310 = vpop.f32.mrf.mxu0
        %v2311 = vadd.f32 0.0, %v2310
        %2312 = vmatmul.f32.gmra.mxu0 %v2234
        %v2313 = vpop.f32.mrf.mxu0
        %v2314 = vadd.f32 0.0, %v2313
        %2315 = vmatmul.f32.gmra.mxu0 %v2237
        %v2316 = vpop.f32.mrf.mxu0
        %v2317 = vadd.f32 0.0, %v2316
        %2318 = vmatmul.f32.gmra.mxu0 %v2240
        %v2319 = vpop.f32.mrf.mxu0
        %v2320 = vadd.f32 0.0, %v2319
        %2321 = vmatmul.f32.gmra.mxu0 %v2243
        %v2322 = vpop.f32.mrf.mxu0
        %v2323 = vadd.f32 0.0, %v2322
        %2324 = vmatmul.f32.gmra.mxu0 %v2246
        %v2325 = vpop.f32.mrf.mxu0
        %v2326 = vadd.f32 0.0, %v2325
        %2327 = vmatmul.f32.gmra.mxu0 %v2249
        %v2328 = vpop.f32.mrf.mxu0
        %v2329 = vadd.f32 0.0, %v2328
        %2330 = vmatmul.f32.gmra.mxu0 %v2252
        %v2331 = vpop.f32.mrf.mxu0
        %v2332 = vadd.f32 0.0, %v2331
        %2333 = vmatmul.f32.gmra.mxu0 %v2255
        %v2334 = vpop.f32.mrf.mxu0
        %v2335 = vadd.f32 0.0, %v2334
        %2336 = vmatmul.f32.gmra.mxu0 %v2258
        %v2337 = vpop.f32.mrf.mxu0
        %v2338 = vadd.f32 0.0, %v2337
        %2339 = vmatmul.f32.gmra.mxu0 %v2261
        %v2340 = vpop.f32.mrf.mxu0
        %v2341 = vadd.f32 0.0, %v2340
        %2342 = vmatmul.f32.gmra.mxu0 %v2264
        %v2343 = vpop.f32.mrf.mxu0
        %v2344 = vadd.f32 0.0, %v2343
        %2345 = vmatmul.f32.gmra.mxu0 %v2267
        %v2346 = vpop.f32.mrf.mxu0
        %v2347 = vadd.f32 0.0, %v2346
        %2348 = vdwg.mxu0
        %v2349 = vadd.f32 %v2159, %v2287
        %v2350 = vadd.f32 %v2160, %v2290
        %v2351 = vadd.f32 %v2161, %v2293
        %v2352 = vadd.f32 %v2162, %v2296
        %v2353 = vadd.f32 %v2163, %v2299
        %v2354 = vadd.f32 %v2164, %v2302
        %v2355 = vadd.f32 %v2165, %v2305
        %v2356 = vadd.f32 %v2166, %v2308
        %v2357 = vadd.f32 %v2167, %v2311
        %v2358 = vadd.f32 %v2168, %v2314
        %v2359 = vadd.f32 %v2169, %v2317
        %v2360 = vadd.f32 %v2170, %v2320
        %v2361 = vadd.f32 %v2171, %v2323
        %v2362 = vadd.f32 %v2172, %v2326
        %v2363 = vadd.f32 %v2173, %v2329
        %v2364 = vadd.f32 %v2174, %v2332
        %v2365 = vadd.f32 %v2175, %v2335
        %v2366 = vadd.f32 %v2176, %v2338
        %v2367 = vadd.f32 %v2177, %v2341
        %v2368 = vadd.f32 %v2178, %v2344
        %v2369 = vadd.f32 %v2179, %v2347
        %v2370 = vld [vmem:[#allocation2 + $0xb] sm:$0xff]
        %v2371 = vld [vmem:[#allocation2 + $0x13] sm:$0xff]
        %v2372 = vld [vmem:[#allocation2 + $0x1b] sm:$0xff]
        %v2373 = vld [vmem:[#allocation2 + $0x23] sm:$0xff]
        %v2374 = vld [vmem:[#allocation2 + $0x2b] sm:$0xff]
        %v2375 = vld [vmem:[#allocation2 + $0x33] sm:$0xff]
        %v2376 = vld [vmem:[#allocation2 + $0x3b] sm:$0xff]
        %v2377 = vld [vmem:[#allocation2 + $0x43] sm:$0xff]
        %v2378 = vld [vmem:[#allocation2 + $0x4b] sm:$0xff]
        %v2379 = vld [vmem:[#allocation2 + $0x53] sm:$0xff]
        %v2380 = vld [vmem:[#allocation2 + $0x5b] sm:$0xff]
        %v2381 = vld [vmem:[#allocation2 + $0x63] sm:$0xff]
        %v2382 = vld [vmem:[#allocation2 + $0x6b] sm:$0xff]
        %v2383 = vld [vmem:[#allocation2 + $0x73] sm:$0xff]
        %v2384 = vld [vmem:[#allocation2 + $0x7b] sm:$0xff]
        %v2385 = vld [vmem:[#allocation2 + $0x83] sm:$0xff]
        %v2386 = vld [vmem:[#allocation2 + $0x8b] sm:$0xff]
        %v2387 = vld [vmem:[#allocation2 + $0x93] sm:$0xff]
        %v2388 = vld [vmem:[#allocation2 + $0x9b] sm:$0xff]
        %v2389 = vld [vmem:[#allocation2 + $0xa3] sm:$0xff]
        %v2390 = vld [vmem:[#allocation2 + $0xab] sm:$0xff]
        %s2391 = scalar_lea.vmem [#allocation4], 352
        %v2392 = vld [vmem:[%s2391] sm:$0xff]
        %v2393 = vld [vmem:[%s2391 + $0x8] sm:$0xff]
        %v2394 = vld [vmem:[%s2391 + $0x10] sm:$0xff]
        %v2395 = vld [vmem:[%s2391 + $0x18] sm:$0xff]
        %v2397 = vsel %vm256, %v2370, 0
        %v2400 = vsel %vm256, %v2371, 0
        %v2403 = vsel %vm256, %v2372, 0
        %v2406 = vsel %vm256, %v2373, 0
        %v2409 = vsel %vm256, %v2374, 0
        %v2412 = vsel %vm256, %v2375, 0
        %v2415 = vsel %vm256, %v2376, 0
        %v2418 = vsel %vm256, %v2377, 0
        %v2421 = vsel %vm256, %v2378, 0
        %v2424 = vsel %vm256, %v2379, 0
        %v2427 = vsel %vm256, %v2380, 0
        %v2430 = vsel %vm256, %v2381, 0
        %v2433 = vsel %vm256, %v2382, 0
        %v2436 = vsel %vm256, %v2383, 0
        %v2439 = vsel %vm256, %v2384, 0
        %v2442 = vsel %vm256, %v2385, 0
        %v2445 = vsel %vm256, %v2386, 0
        %v2448 = vsel %vm256, %v2387, 0
        %v2451 = vsel %vm256, %v2388, 0
        %v2454 = vsel %vm256, %v2389, 0
        %v2457 = vsel %vm256, %v2390, 0
        %2459 = vmatpush.msra.mxu0 0.0
        %2460 = vmatpush.msra.mxu0 0.0
        %2461 = vmatpush.msra.mxu0 0.0
        %2462 = vmatpush.msra.mxu0 0.0
        %2463 = vmatpush.msra.mxu0 0.0
        %2464 = vmatpush.msra.mxu0 0.0
        %2465 = vmatpush.msra.mxu0 0.0
        %2466 = vmatpush.msra.mxu0 0.0
        %2467 = vmatpush.msra.mxu0 0.0
        %2468 = vmatpush.msra.mxu0 0.0
        %2469 = vmatpush.msra.mxu0 0.0
        %2470 = vmatpush.msra.mxu0 0.0
        %2471 = vmatpush.msra.mxu0 %v2395
        %2472 = vmatpush.msra.mxu0 %v2394
        %2473 = vmatpush.msra.mxu0 %v2393
        %2474 = vmatpush.msra.mxu0 %v2392
        %2475 = vmatmul.f32.gmra.mxu0 %v2397
        %v2476 = vpop.f32.mrf.mxu0
        %v2477 = vadd.f32 0.0, %v2476
        %2478 = vmatmul.f32.gmra.mxu0 %v2400
        %v2479 = vpop.f32.mrf.mxu0
        %v2480 = vadd.f32 0.0, %v2479
        %2481 = vmatmul.f32.gmra.mxu0 %v2403
        %v2482 = vpop.f32.mrf.mxu0
        %v2483 = vadd.f32 0.0, %v2482
        %2484 = vmatmul.f32.gmra.mxu0 %v2406
        %v2485 = vpop.f32.mrf.mxu0
        %v2486 = vadd.f32 0.0, %v2485
        %2487 = vmatmul.f32.gmra.mxu0 %v2409
        %v2488 = vpop.f32.mrf.mxu0
        %v2489 = vadd.f32 0.0, %v2488
        %2490 = vmatmul.f32.gmra.mxu0 %v2412
        %v2491 = vpop.f32.mrf.mxu0
        %v2492 = vadd.f32 0.0, %v2491
        %2493 = vmatmul.f32.gmra.mxu0 %v2415
        %v2494 = vpop.f32.mrf.mxu0
        %v2495 = vadd.f32 0.0, %v2494
        %2496 = vmatmul.f32.gmra.mxu0 %v2418
        %v2497 = vpop.f32.mrf.mxu0
        %v2498 = vadd.f32 0.0, %v2497
        %2499 = vmatmul.f32.gmra.mxu0 %v2421
        %v2500 = vpop.f32.mrf.mxu0
        %v2501 = vadd.f32 0.0, %v2500
        %2502 = vmatmul.f32.gmra.mxu0 %v2424
        %v2503 = vpop.f32.mrf.mxu0
        %v2504 = vadd.f32 0.0, %v2503
        %2505 = vmatmul.f32.gmra.mxu0 %v2427
        %v2506 = vpop.f32.mrf.mxu0
        %v2507 = vadd.f32 0.0, %v2506
        %2508 = vmatmul.f32.gmra.mxu0 %v2430
        %v2509 = vpop.f32.mrf.mxu0
        %v2510 = vadd.f32 0.0, %v2509
        %2511 = vmatmul.f32.gmra.mxu0 %v2433
        %v2512 = vpop.f32.mrf.mxu0
        %v2513 = vadd.f32 0.0, %v2512
        %2514 = vmatmul.f32.gmra.mxu0 %v2436
        %v2515 = vpop.f32.mrf.mxu0
        %v2516 = vadd.f32 0.0, %v2515
        %2517 = vmatmul.f32.gmra.mxu0 %v2439
        %v2518 = vpop.f32.mrf.mxu0
        %v2519 = vadd.f32 0.0, %v2518
        %2520 = vmatmul.f32.gmra.mxu0 %v2442
        %v2521 = vpop.f32.mrf.mxu0
        %v2522 = vadd.f32 0.0, %v2521
        %2523 = vmatmul.f32.gmra.mxu0 %v2445
        %v2524 = vpop.f32.mrf.mxu0
        %v2525 = vadd.f32 0.0, %v2524
        %2526 = vmatmul.f32.gmra.mxu0 %v2448
        %v2527 = vpop.f32.mrf.mxu0
        %v2528 = vadd.f32 0.0, %v2527
        %2529 = vmatmul.f32.gmra.mxu0 %v2451
        %v2530 = vpop.f32.mrf.mxu0
        %v2531 = vadd.f32 0.0, %v2530
        %2532 = vmatmul.f32.gmra.mxu0 %v2454
        %v2533 = vpop.f32.mrf.mxu0
        %v2534 = vadd.f32 0.0, %v2533
        %2535 = vmatmul.f32.gmra.mxu0 %v2457
        %v2536 = vpop.f32.mrf.mxu0
        %v2537 = vadd.f32 0.0, %v2536
        %2538 = vdwg.mxu0
        %v2539 = vadd.f32 %v2349, %v2477
        %v2540 = vadd.f32 %v2350, %v2480
        %v2541 = vadd.f32 %v2351, %v2483
        %v2542 = vadd.f32 %v2352, %v2486
        %v2543 = vadd.f32 %v2353, %v2489
        %v2544 = vadd.f32 %v2354, %v2492
        %v2545 = vadd.f32 %v2355, %v2495
        %v2546 = vadd.f32 %v2356, %v2498
        %v2547 = vadd.f32 %v2357, %v2501
        %v2548 = vadd.f32 %v2358, %v2504
        %v2549 = vadd.f32 %v2359, %v2507
        %v2550 = vadd.f32 %v2360, %v2510
        %v2551 = vadd.f32 %v2361, %v2513
        %v2552 = vadd.f32 %v2362, %v2516
        %v2553 = vadd.f32 %v2363, %v2519
        %v2554 = vadd.f32 %v2364, %v2522
        %v2555 = vadd.f32 %v2365, %v2525
        %v2556 = vadd.f32 %v2366, %v2528
        %v2557 = vadd.f32 %v2367, %v2531
        %v2558 = vadd.f32 %v2368, %v2534
        %v2559 = vadd.f32 %v2369, %v2537
        %v2560 = vld [vmem:[#allocation2 + $0xc] sm:$0xff]
        %v2561 = vld [vmem:[#allocation2 + $0x14] sm:$0xff]
        %v2562 = vld [vmem:[#allocation2 + $0x1c] sm:$0xff]
        %v2563 = vld [vmem:[#allocation2 + $0x24] sm:$0xff]
        %v2564 = vld [vmem:[#allocation2 + $0x2c] sm:$0xff]
        %v2565 = vld [vmem:[#allocation2 + $0x34] sm:$0xff]
        %v2566 = vld [vmem:[#allocation2 + $0x3c] sm:$0xff]
        %v2567 = vld [vmem:[#allocation2 + $0x44] sm:$0xff]
        %v2568 = vld [vmem:[#allocation2 + $0x4c] sm:$0xff]
        %v2569 = vld [vmem:[#allocation2 + $0x54] sm:$0xff]
        %v2570 = vld [vmem:[#allocation2 + $0x5c] sm:$0xff]
        %v2571 = vld [vmem:[#allocation2 + $0x64] sm:$0xff]
        %v2572 = vld [vmem:[#allocation2 + $0x6c] sm:$0xff]
        %v2573 = vld [vmem:[#allocation2 + $0x74] sm:$0xff]
        %v2574 = vld [vmem:[#allocation2 + $0x7c] sm:$0xff]
        %v2575 = vld [vmem:[#allocation2 + $0x84] sm:$0xff]
        %v2576 = vld [vmem:[#allocation2 + $0x8c] sm:$0xff]
        %v2577 = vld [vmem:[#allocation2 + $0x94] sm:$0xff]
        %v2578 = vld [vmem:[#allocation2 + $0x9c] sm:$0xff]
        %v2579 = vld [vmem:[#allocation2 + $0xa4] sm:$0xff]
        %v2580 = vld [vmem:[#allocation2 + $0xac] sm:$0xff]
        %s2581 = scalar_lea.vmem [#allocation4], 384
        %v2582 = vld [vmem:[%s2581] sm:$0xff]
        %v2583 = vld [vmem:[%s2581 + $0x8] sm:$0xff]
        %v2584 = vld [vmem:[%s2581 + $0x10] sm:$0xff]
        %v2585 = vld [vmem:[%s2581 + $0x18] sm:$0xff]
        %v2587 = vsel %vm256, %v2560, 0
        %v2590 = vsel %vm256, %v2561, 0
        %v2593 = vsel %vm256, %v2562, 0
        %v2596 = vsel %vm256, %v2563, 0
        %v2599 = vsel %vm256, %v2564, 0
        %v2602 = vsel %vm256, %v2565, 0
        %v2605 = vsel %vm256, %v2566, 0
        %v2608 = vsel %vm256, %v2567, 0
        %v2611 = vsel %vm256, %v2568, 0
        %v2614 = vsel %vm256, %v2569, 0
        %v2617 = vsel %vm256, %v2570, 0
        %v2620 = vsel %vm256, %v2571, 0
        %v2623 = vsel %vm256, %v2572, 0
        %v2626 = vsel %vm256, %v2573, 0
        %v2629 = vsel %vm256, %v2574, 0
        %v2632 = vsel %vm256, %v2575, 0
        %v2635 = vsel %vm256, %v2576, 0
        %v2638 = vsel %vm256, %v2577, 0
        %v2641 = vsel %vm256, %v2578, 0
        %v2644 = vsel %vm256, %v2579, 0
        %v2647 = vsel %vm256, %v2580, 0
        %2649 = vmatpush.msra.mxu0 0.0
        %2650 = vmatpush.msra.mxu0 0.0
        %2651 = vmatpush.msra.mxu0 0.0
        %2652 = vmatpush.msra.mxu0 0.0
        %2653 = vmatpush.msra.mxu0 0.0
        %2654 = vmatpush.msra.mxu0 0.0
        %2655 = vmatpush.msra.mxu0 0.0
        %2656 = vmatpush.msra.mxu0 0.0
        %2657 = vmatpush.msra.mxu0 0.0
        %2658 = vmatpush.msra.mxu0 0.0
        %2659 = vmatpush.msra.mxu0 0.0
        %2660 = vmatpush.msra.mxu0 0.0
        %2661 = vmatpush.msra.mxu0 %v2585
        %2662 = vmatpush.msra.mxu0 %v2584
        %2663 = vmatpush.msra.mxu0 %v2583
        %2664 = vmatpush.msra.mxu0 %v2582
        %2665 = vmatmul.f32.gmra.mxu0 %v2587
        %v2666 = vpop.f32.mrf.mxu0
        %v2667 = vadd.f32 0.0, %v2666
        %2668 = vmatmul.f32.gmra.mxu0 %v2590
        %v2669 = vpop.f32.mrf.mxu0
        %v2670 = vadd.f32 0.0, %v2669
        %2671 = vmatmul.f32.gmra.mxu0 %v2593
        %v2672 = vpop.f32.mrf.mxu0
        %v2673 = vadd.f32 0.0, %v2672
        %2674 = vmatmul.f32.gmra.mxu0 %v2596
        %v2675 = vpop.f32.mrf.mxu0
        %v2676 = vadd.f32 0.0, %v2675
        %2677 = vmatmul.f32.gmra.mxu0 %v2599
        %v2678 = vpop.f32.mrf.mxu0
        %v2679 = vadd.f32 0.0, %v2678
        %2680 = vmatmul.f32.gmra.mxu0 %v2602
        %v2681 = vpop.f32.mrf.mxu0
        %v2682 = vadd.f32 0.0, %v2681
        %2683 = vmatmul.f32.gmra.mxu0 %v2605
        %v2684 = vpop.f32.mrf.mxu0
        %v2685 = vadd.f32 0.0, %v2684
        %2686 = vmatmul.f32.gmra.mxu0 %v2608
        %v2687 = vpop.f32.mrf.mxu0
        %v2688 = vadd.f32 0.0, %v2687
        %2689 = vmatmul.f32.gmra.mxu0 %v2611
        %v2690 = vpop.f32.mrf.mxu0
        %v2691 = vadd.f32 0.0, %v2690
        %2692 = vmatmul.f32.gmra.mxu0 %v2614
        %v2693 = vpop.f32.mrf.mxu0
        %v2694 = vadd.f32 0.0, %v2693
        %2695 = vmatmul.f32.gmra.mxu0 %v2617
        %v2696 = vpop.f32.mrf.mxu0
        %v2697 = vadd.f32 0.0, %v2696
        %2698 = vmatmul.f32.gmra.mxu0 %v2620
        %v2699 = vpop.f32.mrf.mxu0
        %v2700 = vadd.f32 0.0, %v2699
        %2701 = vmatmul.f32.gmra.mxu0 %v2623
        %v2702 = vpop.f32.mrf.mxu0
        %v2703 = vadd.f32 0.0, %v2702
        %2704 = vmatmul.f32.gmra.mxu0 %v2626
        %v2705 = vpop.f32.mrf.mxu0
        %v2706 = vadd.f32 0.0, %v2705
        %2707 = vmatmul.f32.gmra.mxu0 %v2629
        %v2708 = vpop.f32.mrf.mxu0
        %v2709 = vadd.f32 0.0, %v2708
        %2710 = vmatmul.f32.gmra.mxu0 %v2632
        %v2711 = vpop.f32.mrf.mxu0
        %v2712 = vadd.f32 0.0, %v2711
        %2713 = vmatmul.f32.gmra.mxu0 %v2635
        %v2714 = vpop.f32.mrf.mxu0
        %v2715 = vadd.f32 0.0, %v2714
        %2716 = vmatmul.f32.gmra.mxu0 %v2638
        %v2717 = vpop.f32.mrf.mxu0
        %v2718 = vadd.f32 0.0, %v2717
        %2719 = vmatmul.f32.gmra.mxu0 %v2641
        %v2720 = vpop.f32.mrf.mxu0
        %v2721 = vadd.f32 0.0, %v2720
        %2722 = vmatmul.f32.gmra.mxu0 %v2644
        %v2723 = vpop.f32.mrf.mxu0
        %v2724 = vadd.f32 0.0, %v2723
        %2725 = vmatmul.f32.gmra.mxu0 %v2647
        %v2726 = vpop.f32.mrf.mxu0
        %v2727 = vadd.f32 0.0, %v2726
        %2728 = vdwg.mxu0
        %v2729 = vadd.f32 %v2539, %v2667
        %v2730 = vadd.f32 %v2540, %v2670
        %v2731 = vadd.f32 %v2541, %v2673
        %v2732 = vadd.f32 %v2542, %v2676
        %v2733 = vadd.f32 %v2543, %v2679
        %v2734 = vadd.f32 %v2544, %v2682
        %v2735 = vadd.f32 %v2545, %v2685
        %v2736 = vadd.f32 %v2546, %v2688
        %v2737 = vadd.f32 %v2547, %v2691
        %v2738 = vadd.f32 %v2548, %v2694
        %v2739 = vadd.f32 %v2549, %v2697
        %v2740 = vadd.f32 %v2550, %v2700
        %v2741 = vadd.f32 %v2551, %v2703
        %v2742 = vadd.f32 %v2552, %v2706
        %v2743 = vadd.f32 %v2553, %v2709
        %v2744 = vadd.f32 %v2554, %v2712
        %v2745 = vadd.f32 %v2555, %v2715
        %v2746 = vadd.f32 %v2556, %v2718
        %v2747 = vadd.f32 %v2557, %v2721
        %v2748 = vadd.f32 %v2558, %v2724
        %v2749 = vadd.f32 %v2559, %v2727
        %v2750 = vld [vmem:[#allocation2 + $0xd] sm:$0xff]
        %v2751 = vld [vmem:[#allocation2 + $0x15] sm:$0xff]
        %v2752 = vld [vmem:[#allocation2 + $0x1d] sm:$0xff]
        %v2753 = vld [vmem:[#allocation2 + $0x25] sm:$0xff]
        %v2754 = vld [vmem:[#allocation2 + $0x2d] sm:$0xff]
        %v2755 = vld [vmem:[#allocation2 + $0x35] sm:$0xff]
        %v2756 = vld [vmem:[#allocation2 + $0x3d] sm:$0xff]
        %v2757 = vld [vmem:[#allocation2 + $0x45] sm:$0xff]
        %v2758 = vld [vmem:[#allocation2 + $0x4d] sm:$0xff]
        %v2759 = vld [vmem:[#allocation2 + $0x55] sm:$0xff]
        %v2760 = vld [vmem:[#allocation2 + $0x5d] sm:$0xff]
        %v2761 = vld [vmem:[#allocation2 + $0x65] sm:$0xff]
        %v2762 = vld [vmem:[#allocation2 + $0x6d] sm:$0xff]
        %v2763 = vld [vmem:[#allocation2 + $0x75] sm:$0xff]
        %v2764 = vld [vmem:[#allocation2 + $0x7d] sm:$0xff]
        %v2765 = vld [vmem:[#allocation2 + $0x85] sm:$0xff]
        %v2766 = vld [vmem:[#allocation2 + $0x8d] sm:$0xff]
        %v2767 = vld [vmem:[#allocation2 + $0x95] sm:$0xff]
        %v2768 = vld [vmem:[#allocation2 + $0x9d] sm:$0xff]
        %v2769 = vld [vmem:[#allocation2 + $0xa5] sm:$0xff]
        %v2770 = vld [vmem:[#allocation2 + $0xad] sm:$0xff]
        %s2771 = scalar_lea.vmem [#allocation4], 416
        %v2772 = vld [vmem:[%s2771] sm:$0xff]
        %v2773 = vld [vmem:[%s2771 + $0x8] sm:$0xff]
        %v2774 = vld [vmem:[%s2771 + $0x10] sm:$0xff]
        %v2775 = vld [vmem:[%s2771 + $0x18] sm:$0xff]
        %v2777 = vsel %vm256, %v2750, 0
        %v2780 = vsel %vm256, %v2751, 0
        %v2783 = vsel %vm256, %v2752, 0
        %v2786 = vsel %vm256, %v2753, 0
        %v2789 = vsel %vm256, %v2754, 0
        %v2792 = vsel %vm256, %v2755, 0
        %v2795 = vsel %vm256, %v2756, 0
        %v2798 = vsel %vm256, %v2757, 0
        %v2801 = vsel %vm256, %v2758, 0
        %v2804 = vsel %vm256, %v2759, 0
        %v2807 = vsel %vm256, %v2760, 0
        %v2810 = vsel %vm256, %v2761, 0
        %v2813 = vsel %vm256, %v2762, 0
        %v2816 = vsel %vm256, %v2763, 0
        %v2819 = vsel %vm256, %v2764, 0
        %v2822 = vsel %vm256, %v2765, 0
        %v2825 = vsel %vm256, %v2766, 0
        %v2828 = vsel %vm256, %v2767, 0
        %v2831 = vsel %vm256, %v2768, 0
        %v2834 = vsel %vm256, %v2769, 0
        %v2837 = vsel %vm256, %v2770, 0
        %2839 = vmatpush.msra.mxu0 0.0
        %2840 = vmatpush.msra.mxu0 0.0
        %2841 = vmatpush.msra.mxu0 0.0
        %2842 = vmatpush.msra.mxu0 0.0
        %2843 = vmatpush.msra.mxu0 0.0
        %2844 = vmatpush.msra.mxu0 0.0
        %2845 = vmatpush.msra.mxu0 0.0
        %2846 = vmatpush.msra.mxu0 0.0
        %2847 = vmatpush.msra.mxu0 0.0
        %2848 = vmatpush.msra.mxu0 0.0
        %2849 = vmatpush.msra.mxu0 0.0
        %2850 = vmatpush.msra.mxu0 0.0
        %2851 = vmatpush.msra.mxu0 %v2775
        %2852 = vmatpush.msra.mxu0 %v2774
        %2853 = vmatpush.msra.mxu0 %v2773
        %2854 = vmatpush.msra.mxu0 %v2772
        %2855 = vmatmul.f32.gmra.mxu0 %v2777
        %v2856 = vpop.f32.mrf.mxu0
        %v2857 = vadd.f32 0.0, %v2856
        %2858 = vmatmul.f32.gmra.mxu0 %v2780
        %v2859 = vpop.f32.mrf.mxu0
        %v2860 = vadd.f32 0.0, %v2859
        %2861 = vmatmul.f32.gmra.mxu0 %v2783
        %v2862 = vpop.f32.mrf.mxu0
        %v2863 = vadd.f32 0.0, %v2862
        %2864 = vmatmul.f32.gmra.mxu0 %v2786
        %v2865 = vpop.f32.mrf.mxu0
        %v2866 = vadd.f32 0.0, %v2865
        %2867 = vmatmul.f32.gmra.mxu0 %v2789
        %v2868 = vpop.f32.mrf.mxu0
        %v2869 = vadd.f32 0.0, %v2868
        %2870 = vmatmul.f32.gmra.mxu0 %v2792
        %v2871 = vpop.f32.mrf.mxu0
        %v2872 = vadd.f32 0.0, %v2871
        %2873 = vmatmul.f32.gmra.mxu0 %v2795
        %v2874 = vpop.f32.mrf.mxu0
        %v2875 = vadd.f32 0.0, %v2874
        %2876 = vmatmul.f32.gmra.mxu0 %v2798
        %v2877 = vpop.f32.mrf.mxu0
        %v2878 = vadd.f32 0.0, %v2877
        %2879 = vmatmul.f32.gmra.mxu0 %v2801
        %v2880 = vpop.f32.mrf.mxu0
        %v2881 = vadd.f32 0.0, %v2880
        %2882 = vmatmul.f32.gmra.mxu0 %v2804
        %v2883 = vpop.f32.mrf.mxu0
        %v2884 = vadd.f32 0.0, %v2883
        %2885 = vmatmul.f32.gmra.mxu0 %v2807
        %v2886 = vpop.f32.mrf.mxu0
        %v2887 = vadd.f32 0.0, %v2886
        %2888 = vmatmul.f32.gmra.mxu0 %v2810
        %v2889 = vpop.f32.mrf.mxu0
        %v2890 = vadd.f32 0.0, %v2889
        %2891 = vmatmul.f32.gmra.mxu0 %v2813
        %v2892 = vpop.f32.mrf.mxu0
        %v2893 = vadd.f32 0.0, %v2892
        %2894 = vmatmul.f32.gmra.mxu0 %v2816
        %v2895 = vpop.f32.mrf.mxu0
        %v2896 = vadd.f32 0.0, %v2895
        %2897 = vmatmul.f32.gmra.mxu0 %v2819
        %v2898 = vpop.f32.mrf.mxu0
        %v2899 = vadd.f32 0.0, %v2898
        %2900 = vmatmul.f32.gmra.mxu0 %v2822
        %v2901 = vpop.f32.mrf.mxu0
        %v2902 = vadd.f32 0.0, %v2901
        %2903 = vmatmul.f32.gmra.mxu0 %v2825
        %v2904 = vpop.f32.mrf.mxu0
        %v2905 = vadd.f32 0.0, %v2904
        %2906 = vmatmul.f32.gmra.mxu0 %v2828
        %v2907 = vpop.f32.mrf.mxu0
        %v2908 = vadd.f32 0.0, %v2907
        %2909 = vmatmul.f32.gmra.mxu0 %v2831
        %v2910 = vpop.f32.mrf.mxu0
        %v2911 = vadd.f32 0.0, %v2910
        %2912 = vmatmul.f32.gmra.mxu0 %v2834
        %v2913 = vpop.f32.mrf.mxu0
        %v2914 = vadd.f32 0.0, %v2913
        %2915 = vmatmul.f32.gmra.mxu0 %v2837
        %v2916 = vpop.f32.mrf.mxu0
        %v2917 = vadd.f32 0.0, %v2916
        %2918 = vdwg.mxu0
        %v2919 = vadd.f32 %v2729, %v2857
        %v2920 = vadd.f32 %v2730, %v2860
        %v2921 = vadd.f32 %v2731, %v2863
        %v2922 = vadd.f32 %v2732, %v2866
        %v2923 = vadd.f32 %v2733, %v2869
        %v2924 = vadd.f32 %v2734, %v2872
        %v2925 = vadd.f32 %v2735, %v2875
        %v2926 = vadd.f32 %v2736, %v2878
        %v2927 = vadd.f32 %v2737, %v2881
        %v2928 = vadd.f32 %v2738, %v2884
        %v2929 = vadd.f32 %v2739, %v2887
        %v2930 = vadd.f32 %v2740, %v2890
        %v2931 = vadd.f32 %v2741, %v2893
        %v2932 = vadd.f32 %v2742, %v2896
        %v2933 = vadd.f32 %v2743, %v2899
        %v2934 = vadd.f32 %v2744, %v2902
        %v2935 = vadd.f32 %v2745, %v2905
        %v2936 = vadd.f32 %v2746, %v2908
        %v2937 = vadd.f32 %v2747, %v2911
        %v2938 = vadd.f32 %v2748, %v2914
        %v2939 = vadd.f32 %v2749, %v2917
        %v2940 = vld [vmem:[#allocation2 + $0xe] sm:$0xff]
        %v2941 = vld [vmem:[#allocation2 + $0x16] sm:$0xff]
        %v2942 = vld [vmem:[#allocation2 + $0x1e] sm:$0xff]
        %v2943 = vld [vmem:[#allocation2 + $0x26] sm:$0xff]
        %v2944 = vld [vmem:[#allocation2 + $0x2e] sm:$0xff]
        %v2945 = vld [vmem:[#allocation2 + $0x36] sm:$0xff]
        %v2946 = vld [vmem:[#allocation2 + $0x3e] sm:$0xff]
        %v2947 = vld [vmem:[#allocation2 + $0x46] sm:$0xff]
        %v2948 = vld [vmem:[#allocation2 + $0x4e] sm:$0xff]
        %v2949 = vld [vmem:[#allocation2 + $0x56] sm:$0xff]
        %v2950 = vld [vmem:[#allocation2 + $0x5e] sm:$0xff]
        %v2951 = vld [vmem:[#allocation2 + $0x66] sm:$0xff]
        %v2952 = vld [vmem:[#allocation2 + $0x6e] sm:$0xff]
        %v2953 = vld [vmem:[#allocation2 + $0x76] sm:$0xff]
        %v2954 = vld [vmem:[#allocation2 + $0x7e] sm:$0xff]
        %v2955 = vld [vmem:[#allocation2 + $0x86] sm:$0xff]
        %v2956 = vld [vmem:[#allocation2 + $0x8e] sm:$0xff]
        %v2957 = vld [vmem:[#allocation2 + $0x96] sm:$0xff]
        %v2958 = vld [vmem:[#allocation2 + $0x9e] sm:$0xff]
        %v2959 = vld [vmem:[#allocation2 + $0xa6] sm:$0xff]
        %v2960 = vld [vmem:[#allocation2 + $0xae] sm:$0xff]
        %s2961 = scalar_lea.vmem [#allocation4], 448
        %v2962 = vld [vmem:[%s2961] sm:$0xff]
        %v2963 = vld [vmem:[%s2961 + $0x8] sm:$0xff]
        %v2964 = vld [vmem:[%s2961 + $0x10] sm:$0xff]
        %v2965 = vld [vmem:[%s2961 + $0x18] sm:$0xff]
        %v2967 = vsel %vm256, %v2940, 0
        %v2970 = vsel %vm256, %v2941, 0
        %v2973 = vsel %vm256, %v2942, 0
        %v2976 = vsel %vm256, %v2943, 0
        %v2979 = vsel %vm256, %v2944, 0
        %v2982 = vsel %vm256, %v2945, 0
        %v2985 = vsel %vm256, %v2946, 0
        %v2988 = vsel %vm256, %v2947, 0
        %v2991 = vsel %vm256, %v2948, 0
        %v2994 = vsel %vm256, %v2949, 0
        %v2997 = vsel %vm256, %v2950, 0
        %v3000 = vsel %vm256, %v2951, 0
        %v3003 = vsel %vm256, %v2952, 0
        %v3006 = vsel %vm256, %v2953, 0
        %v3009 = vsel %vm256, %v2954, 0
        %v3012 = vsel %vm256, %v2955, 0
        %v3015 = vsel %vm256, %v2956, 0
        %v3018 = vsel %vm256, %v2957, 0
        %v3021 = vsel %vm256, %v2958, 0
        %v3024 = vsel %vm256, %v2959, 0
        %v3027 = vsel %vm256, %v2960, 0
        %3029 = vmatpush.msra.mxu0 0.0
        %3030 = vmatpush.msra.mxu0 0.0
        %3031 = vmatpush.msra.mxu0 0.0
        %3032 = vmatpush.msra.mxu0 0.0
        %3033 = vmatpush.msra.mxu0 0.0
        %3034 = vmatpush.msra.mxu0 0.0
        %3035 = vmatpush.msra.mxu0 0.0
        %3036 = vmatpush.msra.mxu0 0.0
        %3037 = vmatpush.msra.mxu0 0.0
        %3038 = vmatpush.msra.mxu0 0.0
        %3039 = vmatpush.msra.mxu0 0.0
        %3040 = vmatpush.msra.mxu0 0.0
        %3041 = vmatpush.msra.mxu0 %v2965
        %3042 = vmatpush.msra.mxu0 %v2964
        %3043 = vmatpush.msra.mxu0 %v2963
        %3044 = vmatpush.msra.mxu0 %v2962
        %3045 = vmatmul.f32.gmra.mxu0 %v2967
        %v3046 = vpop.f32.mrf.mxu0
        %v3047 = vadd.f32 0.0, %v3046
        %3048 = vmatmul.f32.gmra.mxu0 %v2970
        %v3049 = vpop.f32.mrf.mxu0
        %v3050 = vadd.f32 0.0, %v3049
        %3051 = vmatmul.f32.gmra.mxu0 %v2973
        %v3052 = vpop.f32.mrf.mxu0
        %v3053 = vadd.f32 0.0, %v3052
        %3054 = vmatmul.f32.gmra.mxu0 %v2976
        %v3055 = vpop.f32.mrf.mxu0
        %v3056 = vadd.f32 0.0, %v3055
        %3057 = vmatmul.f32.gmra.mxu0 %v2979
        %v3058 = vpop.f32.mrf.mxu0
        %v3059 = vadd.f32 0.0, %v3058
        %3060 = vmatmul.f32.gmra.mxu0 %v2982
        %v3061 = vpop.f32.mrf.mxu0
        %v3062 = vadd.f32 0.0, %v3061
        %3063 = vmatmul.f32.gmra.mxu0 %v2985
        %v3064 = vpop.f32.mrf.mxu0
        %v3065 = vadd.f32 0.0, %v3064
        %3066 = vmatmul.f32.gmra.mxu0 %v2988
        %v3067 = vpop.f32.mrf.mxu0
        %v3068 = vadd.f32 0.0, %v3067
        %3069 = vmatmul.f32.gmra.mxu0 %v2991
        %v3070 = vpop.f32.mrf.mxu0
        %v3071 = vadd.f32 0.0, %v3070
        %3072 = vmatmul.f32.gmra.mxu0 %v2994
        %v3073 = vpop.f32.mrf.mxu0
        %v3074 = vadd.f32 0.0, %v3073
        %3075 = vmatmul.f32.gmra.mxu0 %v2997
        %v3076 = vpop.f32.mrf.mxu0
        %v3077 = vadd.f32 0.0, %v3076
        %3078 = vmatmul.f32.gmra.mxu0 %v3000
        %v3079 = vpop.f32.mrf.mxu0
        %v3080 = vadd.f32 0.0, %v3079
        %3081 = vmatmul.f32.gmra.mxu0 %v3003
        %v3082 = vpop.f32.mrf.mxu0
        %v3083 = vadd.f32 0.0, %v3082
        %3084 = vmatmul.f32.gmra.mxu0 %v3006
        %v3085 = vpop.f32.mrf.mxu0
        %v3086 = vadd.f32 0.0, %v3085
        %3087 = vmatmul.f32.gmra.mxu0 %v3009
        %v3088 = vpop.f32.mrf.mxu0
        %v3089 = vadd.f32 0.0, %v3088
        %3090 = vmatmul.f32.gmra.mxu0 %v3012
        %v3091 = vpop.f32.mrf.mxu0
        %v3092 = vadd.f32 0.0, %v3091
        %3093 = vmatmul.f32.gmra.mxu0 %v3015
        %v3094 = vpop.f32.mrf.mxu0
        %v3095 = vadd.f32 0.0, %v3094
        %3096 = vmatmul.f32.gmra.mxu0 %v3018
        %v3097 = vpop.f32.mrf.mxu0
        %v3098 = vadd.f32 0.0, %v3097
        %3099 = vmatmul.f32.gmra.mxu0 %v3021
        %v3100 = vpop.f32.mrf.mxu0
        %v3101 = vadd.f32 0.0, %v3100
        %3102 = vmatmul.f32.gmra.mxu0 %v3024
        %v3103 = vpop.f32.mrf.mxu0
        %v3104 = vadd.f32 0.0, %v3103
        %3105 = vmatmul.f32.gmra.mxu0 %v3027
        %v3106 = vpop.f32.mrf.mxu0
        %v3107 = vadd.f32 0.0, %v3106
        %3108 = vdwg.mxu0
        %v3109 = vadd.f32 %v2919, %v3047
        %v3110 = vadd.f32 %v2920, %v3050
        %v3111 = vadd.f32 %v2921, %v3053
        %v3112 = vadd.f32 %v2922, %v3056
        %v3113 = vadd.f32 %v2923, %v3059
        %v3114 = vadd.f32 %v2924, %v3062
        %v3115 = vadd.f32 %v2925, %v3065
        %v3116 = vadd.f32 %v2926, %v3068
        %v3117 = vadd.f32 %v2927, %v3071
        %v3118 = vadd.f32 %v2928, %v3074
        %v3119 = vadd.f32 %v2929, %v3077
        %v3120 = vadd.f32 %v2930, %v3080
        %v3121 = vadd.f32 %v2931, %v3083
        %v3122 = vadd.f32 %v2932, %v3086
        %v3123 = vadd.f32 %v2933, %v3089
        %v3124 = vadd.f32 %v2934, %v3092
        %v3125 = vadd.f32 %v2935, %v3095
        %v3126 = vadd.f32 %v2936, %v3098
        %v3127 = vadd.f32 %v2937, %v3101
        %v3128 = vadd.f32 %v2938, %v3104
        %v3129 = vadd.f32 %v2939, %v3107
        %v3130 = vld [vmem:[#allocation2 + $0xf] sm:$0xff]
        %v3131 = vld [vmem:[#allocation2 + $0x17] sm:$0xff]
        %v3132 = vld [vmem:[#allocation2 + $0x1f] sm:$0xff]
        %v3133 = vld [vmem:[#allocation2 + $0x27] sm:$0xff]
        %v3134 = vld [vmem:[#allocation2 + $0x2f] sm:$0xff]
        %v3135 = vld [vmem:[#allocation2 + $0x37] sm:$0xff]
        %v3136 = vld [vmem:[#allocation2 + $0x3f] sm:$0xff]
        %v3137 = vld [vmem:[#allocation2 + $0x47] sm:$0xff]
        %v3138 = vld [vmem:[#allocation2 + $0x4f] sm:$0xff]
        %v3139 = vld [vmem:[#allocation2 + $0x57] sm:$0xff]
        %v3140 = vld [vmem:[#allocation2 + $0x5f] sm:$0xff]
        %v3141 = vld [vmem:[#allocation2 + $0x67] sm:$0xff]
        %v3142 = vld [vmem:[#allocation2 + $0x6f] sm:$0xff]
        %v3143 = vld [vmem:[#allocation2 + $0x77] sm:$0xff]
        %v3144 = vld [vmem:[#allocation2 + $0x7f] sm:$0xff]
        %v3145 = vld [vmem:[#allocation2 + $0x87] sm:$0xff]
        %v3146 = vld [vmem:[#allocation2 + $0x8f] sm:$0xff]
        %v3147 = vld [vmem:[#allocation2 + $0x97] sm:$0xff]
        %v3148 = vld [vmem:[#allocation2 + $0x9f] sm:$0xff]
        %v3149 = vld [vmem:[#allocation2 + $0xa7] sm:$0xff]
        %v3150 = vld [vmem:[#allocation2 + $0xaf] sm:$0xff]
        %s3151 = scalar_lea.vmem [#allocation4], 480
        %v3152 = vld [vmem:[%s3151] sm:$0xff]
        %v3153 = vld [vmem:[%s3151 + $0x8] sm:$0xff]
        %v3154 = vld [vmem:[%s3151 + $0x10] sm:$0xff]
        %v3155 = vld [vmem:[%s3151 + $0x18] sm:$0xff]
        %v3157 = vsel %vm256, %v3130, 0
        %v3160 = vsel %vm256, %v3131, 0
        %v3163 = vsel %vm256, %v3132, 0
        %v3166 = vsel %vm256, %v3133, 0
        %v3169 = vsel %vm256, %v3134, 0
        %v3172 = vsel %vm256, %v3135, 0
        %v3175 = vsel %vm256, %v3136, 0
        %v3178 = vsel %vm256, %v3137, 0
        %v3181 = vsel %vm256, %v3138, 0
        %v3184 = vsel %vm256, %v3139, 0
        %v3187 = vsel %vm256, %v3140, 0
        %v3190 = vsel %vm256, %v3141, 0
        %v3193 = vsel %vm256, %v3142, 0
        %v3196 = vsel %vm256, %v3143, 0
        %v3199 = vsel %vm256, %v3144, 0
        %v3202 = vsel %vm256, %v3145, 0
        %v3205 = vsel %vm256, %v3146, 0
        %v3208 = vsel %vm256, %v3147, 0
        %v3211 = vsel %vm256, %v3148, 0
        %v3214 = vsel %vm256, %v3149, 0
        %v3217 = vsel %vm256, %v3150, 0
        %3219 = vmatpush.msra.mxu0 0.0
        %3220 = vmatpush.msra.mxu0 0.0
        %3221 = vmatpush.msra.mxu0 0.0
        %3222 = vmatpush.msra.mxu0 0.0
        %3223 = vmatpush.msra.mxu0 0.0
        %3224 = vmatpush.msra.mxu0 0.0
        %3225 = vmatpush.msra.mxu0 0.0
        %3226 = vmatpush.msra.mxu0 0.0
        %3227 = vmatpush.msra.mxu0 0.0
        %3228 = vmatpush.msra.mxu0 0.0
        %3229 = vmatpush.msra.mxu0 0.0
        %3230 = vmatpush.msra.mxu0 0.0
        %3231 = vmatpush.msra.mxu0 %v3155
        %3232 = vmatpush.msra.mxu0 %v3154
        %3233 = vmatpush.msra.mxu0 %v3153
        %3234 = vmatpush.msra.mxu0 %v3152
        %3235 = vmatmul.f32.gmra.mxu0 %v3157
        %v3236 = vpop.f32.mrf.mxu0
        %v3237 = vadd.f32 0.0, %v3236
        %3238 = vmatmul.f32.gmra.mxu0 %v3160
        %v3239 = vpop.f32.mrf.mxu0
        %v3240 = vadd.f32 0.0, %v3239
        %3241 = vmatmul.f32.gmra.mxu0 %v3163
        %v3242 = vpop.f32.mrf.mxu0
        %v3243 = vadd.f32 0.0, %v3242
        %3244 = vmatmul.f32.gmra.mxu0 %v3166
        %v3245 = vpop.f32.mrf.mxu0
        %v3246 = vadd.f32 0.0, %v3245
        %3247 = vmatmul.f32.gmra.mxu0 %v3169
        %v3248 = vpop.f32.mrf.mxu0
        %v3249 = vadd.f32 0.0, %v3248
        %3250 = vmatmul.f32.gmra.mxu0 %v3172
        %v3251 = vpop.f32.mrf.mxu0
        %v3252 = vadd.f32 0.0, %v3251
        %3253 = vmatmul.f32.gmra.mxu0 %v3175
        %v3254 = vpop.f32.mrf.mxu0
        %v3255 = vadd.f32 0.0, %v3254
        %3256 = vmatmul.f32.gmra.mxu0 %v3178
        %v3257 = vpop.f32.mrf.mxu0
        %v3258 = vadd.f32 0.0, %v3257
        %3259 = vmatmul.f32.gmra.mxu0 %v3181
        %v3260 = vpop.f32.mrf.mxu0
        %v3261 = vadd.f32 0.0, %v3260
        %3262 = vmatmul.f32.gmra.mxu0 %v3184
        %v3263 = vpop.f32.mrf.mxu0
        %v3264 = vadd.f32 0.0, %v3263
        %3265 = vmatmul.f32.gmra.mxu0 %v3187
        %v3266 = vpop.f32.mrf.mxu0
        %v3267 = vadd.f32 0.0, %v3266
        %3268 = vmatmul.f32.gmra.mxu0 %v3190
        %v3269 = vpop.f32.mrf.mxu0
        %v3270 = vadd.f32 0.0, %v3269
        %3271 = vmatmul.f32.gmra.mxu0 %v3193
        %v3272 = vpop.f32.mrf.mxu0
        %v3273 = vadd.f32 0.0, %v3272
        %3274 = vmatmul.f32.gmra.mxu0 %v3196
        %v3275 = vpop.f32.mrf.mxu0
        %v3276 = vadd.f32 0.0, %v3275
        %3277 = vmatmul.f32.gmra.mxu0 %v3199
        %v3278 = vpop.f32.mrf.mxu0
        %v3279 = vadd.f32 0.0, %v3278
        %3280 = vmatmul.f32.gmra.mxu0 %v3202
        %v3281 = vpop.f32.mrf.mxu0
        %v3282 = vadd.f32 0.0, %v3281
        %3283 = vmatmul.f32.gmra.mxu0 %v3205
        %v3284 = vpop.f32.mrf.mxu0
        %v3285 = vadd.f32 0.0, %v3284
        %3286 = vmatmul.f32.gmra.mxu0 %v3208
        %v3287 = vpop.f32.mrf.mxu0
        %v3288 = vadd.f32 0.0, %v3287
        %3289 = vmatmul.f32.gmra.mxu0 %v3211
        %v3290 = vpop.f32.mrf.mxu0
        %v3291 = vadd.f32 0.0, %v3290
        %3292 = vmatmul.f32.gmra.mxu0 %v3214
        %v3293 = vpop.f32.mrf.mxu0
        %v3294 = vadd.f32 0.0, %v3293
        %3295 = vmatmul.f32.gmra.mxu0 %v3217
        %v3296 = vpop.f32.mrf.mxu0
        %v3297 = vadd.f32 0.0, %v3296
        %3298 = vdwg.mxu0
        %v3299 = vadd.f32 %v3109, %v3237
        %v3300 = vadd.f32 %v3110, %v3240
        %v3301 = vadd.f32 %v3111, %v3243
        %v3302 = vadd.f32 %v3112, %v3246
        %v3303 = vadd.f32 %v3113, %v3249
        %v3304 = vadd.f32 %v3114, %v3252
        %v3305 = vadd.f32 %v3115, %v3255
        %v3306 = vadd.f32 %v3116, %v3258
        %v3307 = vadd.f32 %v3117, %v3261
        %v3308 = vadd.f32 %v3118, %v3264
        %v3309 = vadd.f32 %v3119, %v3267
        %v3310 = vadd.f32 %v3120, %v3270
        %v3311 = vadd.f32 %v3121, %v3273
        %v3312 = vadd.f32 %v3122, %v3276
        %v3313 = vadd.f32 %v3123, %v3279
        %v3314 = vadd.f32 %v3124, %v3282
        %v3315 = vadd.f32 %v3125, %v3285
        %v3316 = vadd.f32 %v3126, %v3288
        %v3317 = vadd.f32 %v3127, %v3291
        %v3318 = vadd.f32 %v3128, %v3294
        %v3319 = vadd.f32 %v3129, %v3297
        %v3320 = vld [vmem:[#allocation2 + $0x10] sm:$0xff]
        %v3321 = vld [vmem:[#allocation2 + $0x18] sm:$0xff]
        %v3322 = vld [vmem:[#allocation2 + $0x20] sm:$0xff]
        %v3323 = vld [vmem:[#allocation2 + $0x28] sm:$0xff]
        %v3324 = vld [vmem:[#allocation2 + $0x30] sm:$0xff]
        %v3325 = vld [vmem:[#allocation2 + $0x38] sm:$0xff]
        %v3326 = vld [vmem:[#allocation2 + $0x40] sm:$0xff]
        %v3327 = vld [vmem:[#allocation2 + $0x48] sm:$0xff]
        %v3328 = vld [vmem:[#allocation2 + $0x50] sm:$0xff]
        %v3329 = vld [vmem:[#allocation2 + $0x58] sm:$0xff]
        %v3330 = vld [vmem:[#allocation2 + $0x60] sm:$0xff]
        %v3331 = vld [vmem:[#allocation2 + $0x68] sm:$0xff]
        %v3332 = vld [vmem:[#allocation2 + $0x70] sm:$0xff]
        %v3333 = vld [vmem:[#allocation2 + $0x78] sm:$0xff]
        %v3334 = vld [vmem:[#allocation2 + $0x80] sm:$0xff]
        %v3335 = vld [vmem:[#allocation2 + $0x88] sm:$0xff]
        %v3336 = vld [vmem:[#allocation2 + $0x90] sm:$0xff]
        %v3337 = vld [vmem:[#allocation2 + $0x98] sm:$0xff]
        %v3338 = vld [vmem:[#allocation2 + $0xa0] sm:$0xff]
        %v3339 = vld [vmem:[#allocation2 + $0xa8] sm:$0xff]
        %v3340 = vld [vmem:[#allocation2 + $0xb0] sm:$0xff]
        %s3341 = scalar_lea.vmem [#allocation4], 512
        %v3342 = vld [vmem:[%s3341] sm:$0xff]
        %v3343 = vld [vmem:[%s3341 + $0x8] sm:$0xff]
        %v3344 = vld [vmem:[%s3341 + $0x10] sm:$0xff]
        %v3345 = vld [vmem:[%s3341 + $0x18] sm:$0xff]
        %v3347 = vsel %vm256, %v3320, 0
        %v3350 = vsel %vm256, %v3321, 0
        %v3353 = vsel %vm256, %v3322, 0
        %v3356 = vsel %vm256, %v3323, 0
        %v3359 = vsel %vm256, %v3324, 0
        %v3362 = vsel %vm256, %v3325, 0
        %v3365 = vsel %vm256, %v3326, 0
        %v3368 = vsel %vm256, %v3327, 0
        %v3371 = vsel %vm256, %v3328, 0
        %v3374 = vsel %vm256, %v3329, 0
        %v3377 = vsel %vm256, %v3330, 0
        %v3380 = vsel %vm256, %v3331, 0
        %v3383 = vsel %vm256, %v3332, 0
        %v3386 = vsel %vm256, %v3333, 0
        %v3389 = vsel %vm256, %v3334, 0
        %v3392 = vsel %vm256, %v3335, 0
        %v3395 = vsel %vm256, %v3336, 0
        %v3398 = vsel %vm256, %v3337, 0
        %v3401 = vsel %vm256, %v3338, 0
        %v3404 = vsel %vm256, %v3339, 0
        %v3407 = vsel %vm256, %v3340, 0
        %3409 = vmatpush.msra.mxu0 0.0
        %3410 = vmatpush.msra.mxu0 0.0
        %3411 = vmatpush.msra.mxu0 0.0
        %3412 = vmatpush.msra.mxu0 0.0
        %3413 = vmatpush.msra.mxu0 0.0
        %3414 = vmatpush.msra.mxu0 0.0
        %3415 = vmatpush.msra.mxu0 0.0
        %3416 = vmatpush.msra.mxu0 0.0
        %3417 = vmatpush.msra.mxu0 0.0
        %3418 = vmatpush.msra.mxu0 0.0
        %3419 = vmatpush.msra.mxu0 0.0
        %3420 = vmatpush.msra.mxu0 0.0
        %3421 = vmatpush.msra.mxu0 %v3345
        %3422 = vmatpush.msra.mxu0 %v3344
        %3423 = vmatpush.msra.mxu0 %v3343
        %3424 = vmatpush.msra.mxu0 %v3342
        %3425 = vmatmul.f32.gmra.mxu0 %v3347
        %v3426 = vpop.f32.mrf.mxu0
        %v3427 = vadd.f32 0.0, %v3426
        %3428 = vmatmul.f32.gmra.mxu0 %v3350
        %v3429 = vpop.f32.mrf.mxu0
        %v3430 = vadd.f32 0.0, %v3429
        %3431 = vmatmul.f32.gmra.mxu0 %v3353
        %v3432 = vpop.f32.mrf.mxu0
        %v3433 = vadd.f32 0.0, %v3432
        %3434 = vmatmul.f32.gmra.mxu0 %v3356
        %v3435 = vpop.f32.mrf.mxu0
        %v3436 = vadd.f32 0.0, %v3435
        %3437 = vmatmul.f32.gmra.mxu0 %v3359
        %v3438 = vpop.f32.mrf.mxu0
        %v3439 = vadd.f32 0.0, %v3438
        %3440 = vmatmul.f32.gmra.mxu0 %v3362
        %v3441 = vpop.f32.mrf.mxu0
        %v3442 = vadd.f32 0.0, %v3441
        %3443 = vmatmul.f32.gmra.mxu0 %v3365
        %v3444 = vpop.f32.mrf.mxu0
        %v3445 = vadd.f32 0.0, %v3444
        %3446 = vmatmul.f32.gmra.mxu0 %v3368
        %v3447 = vpop.f32.mrf.mxu0
        %v3448 = vadd.f32 0.0, %v3447
        %3449 = vmatmul.f32.gmra.mxu0 %v3371
        %v3450 = vpop.f32.mrf.mxu0
        %v3451 = vadd.f32 0.0, %v3450
        %3452 = vmatmul.f32.gmra.mxu0 %v3374
        %v3453 = vpop.f32.mrf.mxu0
        %v3454 = vadd.f32 0.0, %v3453
        %3455 = vmatmul.f32.gmra.mxu0 %v3377
        %v3456 = vpop.f32.mrf.mxu0
        %v3457 = vadd.f32 0.0, %v3456
        %3458 = vmatmul.f32.gmra.mxu0 %v3380
        %v3459 = vpop.f32.mrf.mxu0
        %v3460 = vadd.f32 0.0, %v3459
        %3461 = vmatmul.f32.gmra.mxu0 %v3383
        %v3462 = vpop.f32.mrf.mxu0
        %v3463 = vadd.f32 0.0, %v3462
        %3464 = vmatmul.f32.gmra.mxu0 %v3386
        %v3465 = vpop.f32.mrf.mxu0
        %v3466 = vadd.f32 0.0, %v3465
        %3467 = vmatmul.f32.gmra.mxu0 %v3389
        %v3468 = vpop.f32.mrf.mxu0
        %v3469 = vadd.f32 0.0, %v3468
        %3470 = vmatmul.f32.gmra.mxu0 %v3392
        %v3471 = vpop.f32.mrf.mxu0
        %v3472 = vadd.f32 0.0, %v3471
        %3473 = vmatmul.f32.gmra.mxu0 %v3395
        %v3474 = vpop.f32.mrf.mxu0
        %v3475 = vadd.f32 0.0, %v3474
        %3476 = vmatmul.f32.gmra.mxu0 %v3398
        %v3477 = vpop.f32.mrf.mxu0
        %v3478 = vadd.f32 0.0, %v3477
        %3479 = vmatmul.f32.gmra.mxu0 %v3401
        %v3480 = vpop.f32.mrf.mxu0
        %v3481 = vadd.f32 0.0, %v3480
        %3482 = vmatmul.f32.gmra.mxu0 %v3404
        %v3483 = vpop.f32.mrf.mxu0
        %v3484 = vadd.f32 0.0, %v3483
        %3485 = vmatmul.f32.gmra.mxu0 %v3407
        %v3486 = vpop.f32.mrf.mxu0
        %v3487 = vadd.f32 0.0, %v3486
        %3488 = vdwg.mxu0
        %v3489 = vadd.f32 %v3299, %v3427
        %v3490 = vadd.f32 %v3300, %v3430
        %v3491 = vadd.f32 %v3301, %v3433
        %v3492 = vadd.f32 %v3302, %v3436
        %v3493 = vadd.f32 %v3303, %v3439
        %v3494 = vadd.f32 %v3304, %v3442
        %v3495 = vadd.f32 %v3305, %v3445
        %v3496 = vadd.f32 %v3306, %v3448
        %v3497 = vadd.f32 %v3307, %v3451
        %v3498 = vadd.f32 %v3308, %v3454
        %v3499 = vadd.f32 %v3309, %v3457
        %v3500 = vadd.f32 %v3310, %v3460
        %v3501 = vadd.f32 %v3311, %v3463
        %v3502 = vadd.f32 %v3312, %v3466
        %v3503 = vadd.f32 %v3313, %v3469
        %v3504 = vadd.f32 %v3314, %v3472
        %v3505 = vadd.f32 %v3315, %v3475
        %v3506 = vadd.f32 %v3316, %v3478
        %v3507 = vadd.f32 %v3317, %v3481
        %v3508 = vadd.f32 %v3318, %v3484
        %v3509 = vadd.f32 %v3319, %v3487
        %v3510 = vld [vmem:[%s2] sm:$0x1]
        %v3511 = vperm.slane %v3510, 0
        %v3512 = vadd.f32 %v3489, %v3511
        %v3513 = vadd.f32 %v3490, %v3511
        %v3514 = vadd.f32 %v3491, %v3511
        %v3515 = vadd.f32 %v3492, %v3511
        %v3516 = vadd.f32 %v3493, %v3511
        %v3517 = vadd.f32 %v3494, %v3511
        %v3518 = vadd.f32 %v3495, %v3511
        %v3519 = vadd.f32 %v3496, %v3511
        %v3520 = vadd.f32 %v3497, %v3511
        %v3521 = vadd.f32 %v3498, %v3511
        %v3522 = vadd.f32 %v3499, %v3511
        %v3523 = vadd.f32 %v3500, %v3511
        %v3524 = vadd.f32 %v3501, %v3511
        %v3525 = vadd.f32 %v3502, %v3511
        %v3526 = vadd.f32 %v3503, %v3511
        %v3527 = vadd.f32 %v3504, %v3511
        %v3528 = vadd.f32 %v3505, %v3511
        %v3529 = vadd.f32 %v3506, %v3511
        %v3530 = vadd.f32 %v3507, %v3511
        %v3531 = vadd.f32 %v3508, %v3511
        %v3532 = vadd.f32 %v3509, %v3511
        %v3533 = vmul.f32 %v3512, 0.5
        %v3534 = vmul.f32 %v3513, 0.5
        %v3535 = vmul.f32 %v3514, 0.5
        %v3536 = vmul.f32 %v3515, 0.5
        %v3537 = vmul.f32 %v3516, 0.5
        %v3538 = vmul.f32 %v3517, 0.5
        %v3539 = vmul.f32 %v3518, 0.5
        %v3540 = vmul.f32 %v3519, 0.5
        %v3541 = vmul.f32 %v3520, 0.5
        %v3542 = vmul.f32 %v3521, 0.5
        %v3543 = vmul.f32 %v3522, 0.5
        %v3544 = vmul.f32 %v3523, 0.5
        %v3545 = vmul.f32 %v3524, 0.5
        %v3546 = vmul.f32 %v3525, 0.5
        %v3547 = vmul.f32 %v3526, 0.5
        %v3548 = vmul.f32 %v3527, 0.5
        %v3549 = vmul.f32 %v3528, 0.5
        %v3550 = vmul.f32 %v3529, 0.5
        %v3551 = vmul.f32 %v3530, 0.5
        %v3552 = vmul.f32 %v3531, 0.5
        %v3553 = vmul.f32 %v3532, 0.5
        %v3554 = vmul.f32 %v3512, 0.70710677
        %v3555 = vmul.f32 %v3513, 0.70710677
        %v3556 = vmul.f32 %v3514, 0.70710677
        %v3557 = vmul.f32 %v3515, 0.70710677
        %v3558 = vmul.f32 %v3516, 0.70710677
        %v3559 = vmul.f32 %v3517, 0.70710677
        %v3560 = vmul.f32 %v3518, 0.70710677
        %v3561 = vmul.f32 %v3519, 0.70710677
        %v3562 = vmul.f32 %v3520, 0.70710677
        %v3563 = vmul.f32 %v3521, 0.70710677
        %v3564 = vmul.f32 %v3522, 0.70710677
        %v3565 = vmul.f32 %v3523, 0.70710677
        %v3566 = vmul.f32 %v3524, 0.70710677
        %v3567 = vmul.f32 %v3525, 0.70710677
        %v3568 = vmul.f32 %v3526, 0.70710677
        %v3569 = vmul.f32 %v3527, 0.70710677
        %v3570 = vmul.f32 %v3528, 0.70710677
        %v3571 = vmul.f32 %v3529, 0.70710677
        %v3572 = vmul.f32 %v3530, 0.70710677
        %v3573 = vmul.f32 %v3531, 0.70710677
        %v3574 = vmul.f32 %v3532, 0.70710677
        %v3575 = vand.u32 2147483647, %v3554
        %v3576 = vand.u32 2147483647, %v3555
        %v3577 = vand.u32 2147483647, %v3556
        %v3578 = vand.u32 2147483647, %v3557
        %v3579 = vand.u32 2147483647, %v3558
        %v3580 = vand.u32 2147483647, %v3559
        %v3581 = vand.u32 2147483647, %v3560
        %v3582 = vand.u32 2147483647, %v3561
        %v3583 = vand.u32 2147483647, %v3562
        %v3584 = vand.u32 2147483647, %v3563
        %v3585 = vand.u32 2147483647, %v3564
        %v3586 = vand.u32 2147483647, %v3565
        %v3587 = vand.u32 2147483647, %v3566
        %v3588 = vand.u32 2147483647, %v3567
        %v3589 = vand.u32 2147483647, %v3568
        %v3590 = vand.u32 2147483647, %v3569
        %v3591 = vand.u32 2147483647, %v3570
        %v3592 = vand.u32 2147483647, %v3571
        %v3593 = vand.u32 2147483647, %v3572
        %v3594 = vand.u32 2147483647, %v3573
        %v3595 = vand.u32 2147483647, %v3574
        %v3596 = vmul.f32 %v3575, 0.5
        %v3597 = vmul.f32 %v3576, 0.5
        %v3598 = vmul.f32 %v3577, 0.5
        %v3599 = vmul.f32 %v3578, 0.5
        %v3600 = vmul.f32 %v3579, 0.5
        %v3601 = vmul.f32 %v3580, 0.5
        %v3602 = vmul.f32 %v3581, 0.5
        %v3603 = vmul.f32 %v3582, 0.5
        %v3604 = vmul.f32 %v3583, 0.5
        %v3605 = vmul.f32 %v3584, 0.5
        %v3606 = vmul.f32 %v3585, 0.5
        %v3607 = vmul.f32 %v3586, 0.5
        %v3608 = vmul.f32 %v3587, 0.5
        %v3609 = vmul.f32 %v3588, 0.5
        %v3610 = vmul.f32 %v3589, 0.5
        %v3611 = vmul.f32 %v3590, 0.5
        %v3612 = vmul.f32 %v3591, 0.5
        %v3613 = vmul.f32 %v3592, 0.5
        %v3614 = vmul.f32 %v3593, 0.5
        %v3615 = vmul.f32 %v3594, 0.5
        %v3616 = vmul.f32 %v3595, 0.5
        %v3617 = vadd.f32 %v3596, 1.0
        %v3618 = vadd.f32 %v3597, 1.0
        %v3619 = vadd.f32 %v3598, 1.0
        %v3620 = vadd.f32 %v3599, 1.0
        %v3621 = vadd.f32 %v3600, 1.0
        %v3622 = vadd.f32 %v3601, 1.0
        %v3623 = vadd.f32 %v3602, 1.0
        %v3624 = vadd.f32 %v3603, 1.0
        %v3625 = vadd.f32 %v3604, 1.0
        %v3626 = vadd.f32 %v3605, 1.0
        %v3627 = vadd.f32 %v3606, 1.0
        %v3628 = vadd.f32 %v3607, 1.0
        %v3629 = vadd.f32 %v3608, 1.0
        %v3630 = vadd.f32 %v3609, 1.0
        %v3631 = vadd.f32 %v3610, 1.0
        %v3632 = vadd.f32 %v3611, 1.0
        %v3633 = vadd.f32 %v3612, 1.0
        %v3634 = vadd.f32 %v3613, 1.0
        %v3635 = vadd.f32 %v3614, 1.0
        %v3636 = vadd.f32 %v3615, 1.0
        %v3637 = vadd.f32 %v3616, 1.0
        %v3638 = vrcp.pop %v3617
        %v3639 = vmul.f32 %v3617, %v3638
        %v3640 = vsub.f32 1.0, %v3639
        %v3641 = vmul.f32 %v3638, %v3640
        %v3642 = vadd.f32 %v3638, %v3641
        %vm3643 = vweird.f32 %v3617
        %vm3644 = vweird.f32 %v3638
        %vm3645 = vmor %vm3643, %vm3644
        %v3646 = vsel %vm3645, %v3638, %v3642
        %v3647 = vand.u32 2147483647, %v3617
        %vm3648 = vcmp.eq.f32.partialorder %v3647, 8.507059e+37
        %v3649 = vand.u32 %v3617, 2147483648
        %v3650 = vor.u32 1.1754944e-38, %v3649
        %v3651 = vsel %vm3648, %v3650, %v3646
        %v3652 = vmul.f32 1.0, %v3651
        %v3653 = vrcp.pop %v3618
        %v3654 = vmul.f32 %v3618, %v3653
        %v3655 = vsub.f32 1.0, %v3654
        %v3656 = vmul.f32 %v3653, %v3655
        %v3657 = vadd.f32 %v3653, %v3656
        %vm3658 = vweird.f32 %v3618
        %vm3659 = vweird.f32 %v3653
        %vm3660 = vmor %vm3658, %vm3659
        %v3661 = vsel %vm3660, %v3653, %v3657
        %v3662 = vand.u32 2147483647, %v3618
        %vm3663 = vcmp.eq.f32.partialorder %v3662, 8.507059e+37
        %v3664 = vand.u32 %v3618, 2147483648
        %v3665 = vor.u32 1.1754944e-38, %v3664
        %v3666 = vsel %vm3663, %v3665, %v3661
        %v3667 = vmul.f32 1.0, %v3666
        %v3668 = vrcp.pop %v3619
        %v3669 = vmul.f32 %v3619, %v3668
        %v3670 = vsub.f32 1.0, %v3669
        %v3671 = vmul.f32 %v3668, %v3670
        %v3672 = vadd.f32 %v3668, %v3671
        %vm3673 = vweird.f32 %v3619
        %vm3674 = vweird.f32 %v3668
        %vm3675 = vmor %vm3673, %vm3674
        %v3676 = vsel %vm3675, %v3668, %v3672
        %v3677 = vand.u32 2147483647, %v3619
        %vm3678 = vcmp.eq.f32.partialorder %v3677, 8.507059e+37
        %v3679 = vand.u32 %v3619, 2147483648
        %v3680 = vor.u32 1.1754944e-38, %v3679
        %v3681 = vsel %vm3678, %v3680, %v3676
        %v3682 = vmul.f32 1.0, %v3681
        %v3683 = vrcp.pop %v3620
        %v3684 = vmul.f32 %v3620, %v3683
        %v3685 = vsub.f32 1.0, %v3684
        %v3686 = vmul.f32 %v3683, %v3685
        %v3687 = vadd.f32 %v3683, %v3686
        %vm3688 = vweird.f32 %v3620
        %vm3689 = vweird.f32 %v3683
        %vm3690 = vmor %vm3688, %vm3689
        %v3691 = vsel %vm3690, %v3683, %v3687
        %v3692 = vand.u32 2147483647, %v3620
        %vm3693 = vcmp.eq.f32.partialorder %v3692, 8.507059e+37
        %v3694 = vand.u32 %v3620, 2147483648
        %v3695 = vor.u32 1.1754944e-38, %v3694
        %v3696 = vsel %vm3693, %v3695, %v3691
        %v3697 = vmul.f32 1.0, %v3696
        %v3698 = vrcp.pop %v3621
        %v3699 = vmul.f32 %v3621, %v3698
        %v3700 = vsub.f32 1.0, %v3699
        %v3701 = vmul.f32 %v3698, %v3700
        %v3702 = vadd.f32 %v3698, %v3701
        %vm3703 = vweird.f32 %v3621
        %vm3704 = vweird.f32 %v3698
        %vm3705 = vmor %vm3703, %vm3704
        %v3706 = vsel %vm3705, %v3698, %v3702
        %v3707 = vand.u32 2147483647, %v3621
        %vm3708 = vcmp.eq.f32.partialorder %v3707, 8.507059e+37
        %v3709 = vand.u32 %v3621, 2147483648
        %v3710 = vor.u32 1.1754944e-38, %v3709
        %v3711 = vsel %vm3708, %v3710, %v3706
        %v3712 = vmul.f32 1.0, %v3711
        %v3713 = vrcp.pop %v3622
        %v3714 = vmul.f32 %v3622, %v3713
        %v3715 = vsub.f32 1.0, %v3714
        %v3716 = vmul.f32 %v3713, %v3715
        %v3717 = vadd.f32 %v3713, %v3716
        %vm3718 = vweird.f32 %v3622
        %vm3719 = vweird.f32 %v3713
        %vm3720 = vmor %vm3718, %vm3719
        %v3721 = vsel %vm3720, %v3713, %v3717
        %v3722 = vand.u32 2147483647, %v3622
        %vm3723 = vcmp.eq.f32.partialorder %v3722, 8.507059e+37
        %v3724 = vand.u32 %v3622, 2147483648
        %v3725 = vor.u32 1.1754944e-38, %v3724
        %v3726 = vsel %vm3723, %v3725, %v3721
        %v3727 = vmul.f32 1.0, %v3726
        %v3728 = vrcp.pop %v3623
        %v3729 = vmul.f32 %v3623, %v3728
        %v3730 = vsub.f32 1.0, %v3729
        %v3731 = vmul.f32 %v3728, %v3730
        %v3732 = vadd.f32 %v3728, %v3731
        %vm3733 = vweird.f32 %v3623
        %vm3734 = vweird.f32 %v3728
        %vm3735 = vmor %vm3733, %vm3734
        %v3736 = vsel %vm3735, %v3728, %v3732
        %v3737 = vand.u32 2147483647, %v3623
        %vm3738 = vcmp.eq.f32.partialorder %v3737, 8.507059e+37
        %v3739 = vand.u32 %v3623, 2147483648
        %v3740 = vor.u32 1.1754944e-38, %v3739
        %v3741 = vsel %vm3738, %v3740, %v3736
        %v3742 = vmul.f32 1.0, %v3741
        %v3743 = vrcp.pop %v3624
        %v3744 = vmul.f32 %v3624, %v3743
        %v3745 = vsub.f32 1.0, %v3744
        %v3746 = vmul.f32 %v3743, %v3745
        %v3747 = vadd.f32 %v3743, %v3746
        %vm3748 = vweird.f32 %v3624
        %vm3749 = vweird.f32 %v3743
        %vm3750 = vmor %vm3748, %vm3749
        %v3751 = vsel %vm3750, %v3743, %v3747
        %v3752 = vand.u32 2147483647, %v3624
        %vm3753 = vcmp.eq.f32.partialorder %v3752, 8.507059e+37
        %v3754 = vand.u32 %v3624, 2147483648
        %v3755 = vor.u32 1.1754944e-38, %v3754
        %v3756 = vsel %vm3753, %v3755, %v3751
        %v3757 = vmul.f32 1.0, %v3756
        %v3758 = vrcp.pop %v3625
        %v3759 = vmul.f32 %v3625, %v3758
        %v3760 = vsub.f32 1.0, %v3759
        %v3761 = vmul.f32 %v3758, %v3760
        %v3762 = vadd.f32 %v3758, %v3761
        %vm3763 = vweird.f32 %v3625
        %vm3764 = vweird.f32 %v3758
        %vm3765 = vmor %vm3763, %vm3764
        %v3766 = vsel %vm3765, %v3758, %v3762
        %v3767 = vand.u32 2147483647, %v3625
        %vm3768 = vcmp.eq.f32.partialorder %v3767, 8.507059e+37
        %v3769 = vand.u32 %v3625, 2147483648
        %v3770 = vor.u32 1.1754944e-38, %v3769
        %v3771 = vsel %vm3768, %v3770, %v3766
        %v3772 = vmul.f32 1.0, %v3771
        %v3773 = vrcp.pop %v3626
        %v3774 = vmul.f32 %v3626, %v3773
        %v3775 = vsub.f32 1.0, %v3774
        %v3776 = vmul.f32 %v3773, %v3775
        %v3777 = vadd.f32 %v3773, %v3776
        %vm3778 = vweird.f32 %v3626
        %vm3779 = vweird.f32 %v3773
        %vm3780 = vmor %vm3778, %vm3779
        %v3781 = vsel %vm3780, %v3773, %v3777
        %v3782 = vand.u32 2147483647, %v3626
        %vm3783 = vcmp.eq.f32.partialorder %v3782, 8.507059e+37
        %v3784 = vand.u32 %v3626, 2147483648
        %v3785 = vor.u32 1.1754944e-38, %v3784
        %v3786 = vsel %vm3783, %v3785, %v3781
        %v3787 = vmul.f32 1.0, %v3786
        %v3788 = vrcp.pop %v3627
        %v3789 = vmul.f32 %v3627, %v3788
        %v3790 = vsub.f32 1.0, %v3789
        %v3791 = vmul.f32 %v3788, %v3790
        %v3792 = vadd.f32 %v3788, %v3791
        %vm3793 = vweird.f32 %v3627
        %vm3794 = vweird.f32 %v3788
        %vm3795 = vmor %vm3793, %vm3794
        %v3796 = vsel %vm3795, %v3788, %v3792
        %v3797 = vand.u32 2147483647, %v3627
        %vm3798 = vcmp.eq.f32.partialorder %v3797, 8.507059e+37
        %v3799 = vand.u32 %v3627, 2147483648
        %v3800 = vor.u32 1.1754944e-38, %v3799
        %v3801 = vsel %vm3798, %v3800, %v3796
        %v3802 = vmul.f32 1.0, %v3801
        %v3803 = vrcp.pop %v3628
        %v3804 = vmul.f32 %v3628, %v3803
        %v3805 = vsub.f32 1.0, %v3804
        %v3806 = vmul.f32 %v3803, %v3805
        %v3807 = vadd.f32 %v3803, %v3806
        %vm3808 = vweird.f32 %v3628
        %vm3809 = vweird.f32 %v3803
        %vm3810 = vmor %vm3808, %vm3809
        %v3811 = vsel %vm3810, %v3803, %v3807
        %v3812 = vand.u32 2147483647, %v3628
        %vm3813 = vcmp.eq.f32.partialorder %v3812, 8.507059e+37
        %v3814 = vand.u32 %v3628, 2147483648
        %v3815 = vor.u32 1.1754944e-38, %v3814
        %v3816 = vsel %vm3813, %v3815, %v3811
        %v3817 = vmul.f32 1.0, %v3816
        %v3818 = vrcp.pop %v3629
        %v3819 = vmul.f32 %v3629, %v3818
        %v3820 = vsub.f32 1.0, %v3819
        %v3821 = vmul.f32 %v3818, %v3820
        %v3822 = vadd.f32 %v3818, %v3821
        %vm3823 = vweird.f32 %v3629
        %vm3824 = vweird.f32 %v3818
        %vm3825 = vmor %vm3823, %vm3824
        %v3826 = vsel %vm3825, %v3818, %v3822
        %v3827 = vand.u32 2147483647, %v3629
        %vm3828 = vcmp.eq.f32.partialorder %v3827, 8.507059e+37
        %v3829 = vand.u32 %v3629, 2147483648
        %v3830 = vor.u32 1.1754944e-38, %v3829
        %v3831 = vsel %vm3828, %v3830, %v3826
        %v3832 = vmul.f32 1.0, %v3831
        %v3833 = vrcp.pop %v3630
        %v3834 = vmul.f32 %v3630, %v3833
        %v3835 = vsub.f32 1.0, %v3834
        %v3836 = vmul.f32 %v3833, %v3835
        %v3837 = vadd.f32 %v3833, %v3836
        %vm3838 = vweird.f32 %v3630
        %vm3839 = vweird.f32 %v3833
        %vm3840 = vmor %vm3838, %vm3839
        %v3841 = vsel %vm3840, %v3833, %v3837
        %v3842 = vand.u32 2147483647, %v3630
        %vm3843 = vcmp.eq.f32.partialorder %v3842, 8.507059e+37
        %v3844 = vand.u32 %v3630, 2147483648
        %v3845 = vor.u32 1.1754944e-38, %v3844
        %v3846 = vsel %vm3843, %v3845, %v3841
        %v3847 = vmul.f32 1.0, %v3846
        %v3848 = vrcp.pop %v3631
        %v3849 = vmul.f32 %v3631, %v3848
        %v3850 = vsub.f32 1.0, %v3849
        %v3851 = vmul.f32 %v3848, %v3850
        %v3852 = vadd.f32 %v3848, %v3851
        %vm3853 = vweird.f32 %v3631
        %vm3854 = vweird.f32 %v3848
        %vm3855 = vmor %vm3853, %vm3854
        %v3856 = vsel %vm3855, %v3848, %v3852
        %v3857 = vand.u32 2147483647, %v3631
        %vm3858 = vcmp.eq.f32.partialorder %v3857, 8.507059e+37
        %v3859 = vand.u32 %v3631, 2147483648
        %v3860 = vor.u32 1.1754944e-38, %v3859
        %v3861 = vsel %vm3858, %v3860, %v3856
        %v3862 = vmul.f32 1.0, %v3861
        %v3863 = vrcp.pop %v3632
        %v3864 = vmul.f32 %v3632, %v3863
        %v3865 = vsub.f32 1.0, %v3864
        %v3866 = vmul.f32 %v3863, %v3865
        %v3867 = vadd.f32 %v3863, %v3866
        %vm3868 = vweird.f32 %v3632
        %vm3869 = vweird.f32 %v3863
        %vm3870 = vmor %vm3868, %vm3869
        %v3871 = vsel %vm3870, %v3863, %v3867
        %v3872 = vand.u32 2147483647, %v3632
        %vm3873 = vcmp.eq.f32.partialorder %v3872, 8.507059e+37
        %v3874 = vand.u32 %v3632, 2147483648
        %v3875 = vor.u32 1.1754944e-38, %v3874
        %v3876 = vsel %vm3873, %v3875, %v3871
        %v3877 = vmul.f32 1.0, %v3876
        %v3878 = vrcp.pop %v3633
        %v3879 = vmul.f32 %v3633, %v3878
        %v3880 = vsub.f32 1.0, %v3879
        %v3881 = vmul.f32 %v3878, %v3880
        %v3882 = vadd.f32 %v3878, %v3881
        %vm3883 = vweird.f32 %v3633
        %vm3884 = vweird.f32 %v3878
        %vm3885 = vmor %vm3883, %vm3884
        %v3886 = vsel %vm3885, %v3878, %v3882
        %v3887 = vand.u32 2147483647, %v3633
        %vm3888 = vcmp.eq.f32.partialorder %v3887, 8.507059e+37
        %v3889 = vand.u32 %v3633, 2147483648
        %v3890 = vor.u32 1.1754944e-38, %v3889
        %v3891 = vsel %vm3888, %v3890, %v3886
        %v3892 = vmul.f32 1.0, %v3891
        %v3893 = vrcp.pop %v3634
        %v3894 = vmul.f32 %v3634, %v3893
        %v3895 = vsub.f32 1.0, %v3894
        %v3896 = vmul.f32 %v3893, %v3895
        %v3897 = vadd.f32 %v3893, %v3896
        %vm3898 = vweird.f32 %v3634
        %vm3899 = vweird.f32 %v3893
        %vm3900 = vmor %vm3898, %vm3899
        %v3901 = vsel %vm3900, %v3893, %v3897
        %v3902 = vand.u32 2147483647, %v3634
        %vm3903 = vcmp.eq.f32.partialorder %v3902, 8.507059e+37
        %v3904 = vand.u32 %v3634, 2147483648
        %v3905 = vor.u32 1.1754944e-38, %v3904
        %v3906 = vsel %vm3903, %v3905, %v3901
        %v3907 = vmul.f32 1.0, %v3906
        %v3908 = vrcp.pop %v3635
        %v3909 = vmul.f32 %v3635, %v3908
        %v3910 = vsub.f32 1.0, %v3909
        %v3911 = vmul.f32 %v3908, %v3910
        %v3912 = vadd.f32 %v3908, %v3911
        %vm3913 = vweird.f32 %v3635
        %vm3914 = vweird.f32 %v3908
        %vm3915 = vmor %vm3913, %vm3914
        %v3916 = vsel %vm3915, %v3908, %v3912
        %v3917 = vand.u32 2147483647, %v3635
        %vm3918 = vcmp.eq.f32.partialorder %v3917, 8.507059e+37
        %v3919 = vand.u32 %v3635, 2147483648
        %v3920 = vor.u32 1.1754944e-38, %v3919
        %v3921 = vsel %vm3918, %v3920, %v3916
        %v3922 = vmul.f32 1.0, %v3921
        %v3923 = vrcp.pop %v3636
        %v3924 = vmul.f32 %v3636, %v3923
        %v3925 = vsub.f32 1.0, %v3924
        %v3926 = vmul.f32 %v3923, %v3925
        %v3927 = vadd.f32 %v3923, %v3926
        %vm3928 = vweird.f32 %v3636
        %vm3929 = vweird.f32 %v3923
        %vm3930 = vmor %vm3928, %vm3929
        %v3931 = vsel %vm3930, %v3923, %v3927
        %v3932 = vand.u32 2147483647, %v3636
        %vm3933 = vcmp.eq.f32.partialorder %v3932, 8.507059e+37
        %v3934 = vand.u32 %v3636, 2147483648
        %v3935 = vor.u32 1.1754944e-38, %v3934
        %v3936 = vsel %vm3933, %v3935, %v3931
        %v3937 = vmul.f32 1.0, %v3936
        %v3938 = vrcp.pop %v3637
        %v3939 = vmul.f32 %v3637, %v3938
        %v3940 = vsub.f32 1.0, %v3939
        %v3941 = vmul.f32 %v3938, %v3940
        %v3942 = vadd.f32 %v3938, %v3941
        %vm3943 = vweird.f32 %v3637
        %vm3944 = vweird.f32 %v3938
        %vm3945 = vmor %vm3943, %vm3944
        %v3946 = vsel %vm3945, %v3938, %v3942
        %v3947 = vand.u32 2147483647, %v3637
        %vm3948 = vcmp.eq.f32.partialorder %v3947, 8.507059e+37
        %v3949 = vand.u32 %v3637, 2147483648
        %v3950 = vor.u32 1.1754944e-38, %v3949
        %v3951 = vsel %vm3948, %v3950, %v3946
        %v3952 = vmul.f32 1.0, %v3951
        %v3953 = vmul.f32 %v3652, 0.17087276
        %v3954 = vmul.f32 %v3667, 0.17087276
        %v3955 = vmul.f32 %v3682, 0.17087276
        %v3956 = vmul.f32 %v3697, 0.17087276
        %v3957 = vmul.f32 %v3712, 0.17087276
        %v3958 = vmul.f32 %v3727, 0.17087276
        %v3959 = vmul.f32 %v3742, 0.17087276
        %v3960 = vmul.f32 %v3757, 0.17087276
        %v3961 = vmul.f32 %v3772, 0.17087276
        %v3962 = vmul.f32 %v3787, 0.17087276
        %v3963 = vmul.f32 %v3802, 0.17087276
        %v3964 = vmul.f32 %v3817, 0.17087276
        %v3965 = vmul.f32 %v3832, 0.17087276
        %v3966 = vmul.f32 %v3847, 0.17087276
        %v3967 = vmul.f32 %v3862, 0.17087276
        %v3968 = vmul.f32 %v3877, 0.17087276
        %v3969 = vmul.f32 %v3892, 0.17087276
        %v3970 = vmul.f32 %v3907, 0.17087276
        %v3971 = vmul.f32 %v3922, 0.17087276
        %v3972 = vmul.f32 %v3937, 0.17087276
        %v3973 = vmul.f32 %v3952, 0.17087276
        %v3974 = vadd.f32 %v3953, -0.82215226
        %v3975 = vadd.f32 %v3954, -0.82215226
        %v3976 = vadd.f32 %v3955, -0.82215226
        %v3977 = vadd.f32 %v3956, -0.82215226
        %v3978 = vadd.f32 %v3957, -0.82215226
        %v3979 = vadd.f32 %v3958, -0.82215226
        %v3980 = vadd.f32 %v3959, -0.82215226
        %v3981 = vadd.f32 %v3960, -0.82215226
        %v3982 = vadd.f32 %v3961, -0.82215226
        %v3983 = vadd.f32 %v3962, -0.82215226
        %v3984 = vadd.f32 %v3963, -0.82215226
        %v3985 = vadd.f32 %v3964, -0.82215226
        %v3986 = vadd.f32 %v3965, -0.82215226
        %v3987 = vadd.f32 %v3966, -0.82215226
        %v3988 = vadd.f32 %v3967, -0.82215226
        %v3989 = vadd.f32 %v3968, -0.82215226
        %v3990 = vadd.f32 %v3969, -0.82215226
        %v3991 = vadd.f32 %v3970, -0.82215226
        %v3992 = vadd.f32 %v3971, -0.82215226
        %v3993 = vadd.f32 %v3972, -0.82215226
        %v3994 = vadd.f32 %v3973, -0.82215226
        %v3995 = vmul.f32 %v3652, %v3974
        %v3996 = vmul.f32 %v3667, %v3975
        %v3997 = vmul.f32 %v3682, %v3976
        %v3998 = vmul.f32 %v3697, %v3977
        %v3999 = vmul.f32 %v3712, %v3978
        %v4000 = vmul.f32 %v3727, %v3979
        %v4001 = vmul.f32 %v3742, %v3980
        %v4002 = vmul.f32 %v3757, %v3981
        %v4003 = vmul.f32 %v3772, %v3982
        %v4004 = vmul.f32 %v3787, %v3983
        %v4005 = vmul.f32 %v3802, %v3984
        %v4006 = vmul.f32 %v3817, %v3985
        %v4007 = vmul.f32 %v3832, %v3986
        %v4008 = vmul.f32 %v3847, %v3987
        %v4009 = vmul.f32 %v3862, %v3988
        %v4010 = vmul.f32 %v3877, %v3989
        %v4011 = vmul.f32 %v3892, %v3990
        %v4012 = vmul.f32 %v3907, %v3991
        %v4013 = vmul.f32 %v3922, %v3992
        %v4014 = vmul.f32 %v3937, %v3993
        %v4015 = vmul.f32 %v3952, %v3994
        %v4016 = vadd.f32 %v3995, 1.4885159
        %v4017 = vadd.f32 %v3996, 1.4885159
        %v4018 = vadd.f32 %v3997, 1.4885159
        %v4019 = vadd.f32 %v3998, 1.4885159
        %v4020 = vadd.f32 %v3999, 1.4885159
        %v4021 = vadd.f32 %v4000, 1.4885159
        %v4022 = vadd.f32 %v4001, 1.4885159
        %v4023 = vadd.f32 %v4002, 1.4885159
        %v4024 = vadd.f32 %v4003, 1.4885159
        %v4025 = vadd.f32 %v4004, 1.4885159
        %v4026 = vadd.f32 %v4005, 1.4885159
        %v4027 = vadd.f32 %v4006, 1.4885159
        %v4028 = vadd.f32 %v4007, 1.4885159
        %v4029 = vadd.f32 %v4008, 1.4885159
        %v4030 = vadd.f32 %v4009, 1.4885159
        %v4031 = vadd.f32 %v4010, 1.4885159
        %v4032 = vadd.f32 %v4011, 1.4885159
        %v4033 = vadd.f32 %v4012, 1.4885159
        %v4034 = vadd.f32 %v4013, 1.4885159
        %v4035 = vadd.f32 %v4014, 1.4885159
        %v4036 = vadd.f32 %v4015, 1.4885159
        %v4037 = vmul.f32 %v3652, %v4016
        %v4038 = vmul.f32 %v3667, %v4017
        %v4039 = vmul.f32 %v3682, %v4018
        %v4040 = vmul.f32 %v3697, %v4019
        %v4041 = vmul.f32 %v3712, %v4020
        %v4042 = vmul.f32 %v3727, %v4021
        %v4043 = vmul.f32 %v3742, %v4022
        %v4044 = vmul.f32 %v3757, %v4023
        %v4045 = vmul.f32 %v3772, %v4024
        %v4046 = vmul.f32 %v3787, %v4025
        %v4047 = vmul.f32 %v3802, %v4026
        %v4048 = vmul.f32 %v3817, %v4027
        %v4049 = vmul.f32 %v3832, %v4028
        %v4050 = vmul.f32 %v3847, %v4029
        %v4051 = vmul.f32 %v3862, %v4030
        %v4052 = vmul.f32 %v3877, %v4031
        %v4053 = vmul.f32 %v3892, %v4032
        %v4054 = vmul.f32 %v3907, %v4033
        %v4055 = vmul.f32 %v3922, %v4034
        %v4056 = vmul.f32 %v3937, %v4035
        %v4057 = vmul.f32 %v3952, %v4036
        %v4058 = vadd.f32 %v4037, -1.135204
        %v4059 = vadd.f32 %v4038, -1.135204
        %v4060 = vadd.f32 %v4039, -1.135204
        %v4061 = vadd.f32 %v4040, -1.135204
        %v4062 = vadd.f32 %v4041, -1.135204
        %v4063 = vadd.f32 %v4042, -1.135204
        %v4064 = vadd.f32 %v4043, -1.135204
        %v4065 = vadd.f32 %v4044, -1.135204
        %v4066 = vadd.f32 %v4045, -1.135204
        %v4067 = vadd.f32 %v4046, -1.135204
        %v4068 = vadd.f32 %v4047, -1.135204
        %v4069 = vadd.f32 %v4048, -1.135204
        %v4070 = vadd.f32 %v4049, -1.135204
        %v4071 = vadd.f32 %v4050, -1.135204
        %v4072 = vadd.f32 %v4051, -1.135204
        %v4073 = vadd.f32 %v4052, -1.135204
        %v4074 = vadd.f32 %v4053, -1.135204
        %v4075 = vadd.f32 %v4054, -1.135204
        %v4076 = vadd.f32 %v4055, -1.135204
        %v4077 = vadd.f32 %v4056, -1.135204
        %v4078 = vadd.f32 %v4057, -1.135204
        %v4079 = vmul.f32 %v3652, %v4058
        %v4080 = vmul.f32 %v3667, %v4059
        %v4081 = vmul.f32 %v3682, %v4060
        %v4082 = vmul.f32 %v3697, %v4061
        %v4083 = vmul.f32 %v3712, %v4062
        %v4084 = vmul.f32 %v3727, %v4063
        %v4085 = vmul.f32 %v3742, %v4064
        %v4086 = vmul.f32 %v3757, %v4065
        %v4087 = vmul.f32 %v3772, %v4066
        %v4088 = vmul.f32 %v3787, %v4067
        %v4089 = vmul.f32 %v3802, %v4068
        %v4090 = vmul.f32 %v3817, %v4069
        %v4091 = vmul.f32 %v3832, %v4070
        %v4092 = vmul.f32 %v3847, %v4071
        %v4093 = vmul.f32 %v3862, %v4072
        %v4094 = vmul.f32 %v3877, %v4073
        %v4095 = vmul.f32 %v3892, %v4074
        %v4096 = vmul.f32 %v3907, %v4075
        %v4097 = vmul.f32 %v3922, %v4076
        %v4098 = vmul.f32 %v3937, %v4077
        %v4099 = vmul.f32 %v3952, %v4078
        %v4100 = vadd.f32 %v4079, 0.27886808
        %v4101 = vadd.f32 %v4080, 0.27886808
        %v4102 = vadd.f32 %v4081, 0.27886808
        %v4103 = vadd.f32 %v4082, 0.27886808
        %v4104 = vadd.f32 %v4083, 0.27886808
        %v4105 = vadd.f32 %v4084, 0.27886808
        %v4106 = vadd.f32 %v4085, 0.27886808
        %v4107 = vadd.f32 %v4086, 0.27886808
        %v4108 = vadd.f32 %v4087, 0.27886808
        %v4109 = vadd.f32 %v4088, 0.27886808
        %v4110 = vadd.f32 %v4089, 0.27886808
        %v4111 = vadd.f32 %v4090, 0.27886808
        %v4112 = vadd.f32 %v4091, 0.27886808
        %v4113 = vadd.f32 %v4092, 0.27886808
        %v4114 = vadd.f32 %v4093, 0.27886808
        %v4115 = vadd.f32 %v4094, 0.27886808
        %v4116 = vadd.f32 %v4095, 0.27886808
        %v4117 = vadd.f32 %v4096, 0.27886808
        %v4118 = vadd.f32 %v4097, 0.27886808
        %v4119 = vadd.f32 %v4098, 0.27886808
        %v4120 = vadd.f32 %v4099, 0.27886808
        %v4121 = vmul.f32 %v3652, %v4100
        %v4122 = vmul.f32 %v3667, %v4101
        %v4123 = vmul.f32 %v3682, %v4102
        %v4124 = vmul.f32 %v3697, %v4103
        %v4125 = vmul.f32 %v3712, %v4104
        %v4126 = vmul.f32 %v3727, %v4105
        %v4127 = vmul.f32 %v3742, %v4106
        %v4128 = vmul.f32 %v3757, %v4107
        %v4129 = vmul.f32 %v3772, %v4108
        %v4130 = vmul.f32 %v3787, %v4109
        %v4131 = vmul.f32 %v3802, %v4110
        %v4132 = vmul.f32 %v3817, %v4111
        %v4133 = vmul.f32 %v3832, %v4112
        %v4134 = vmul.f32 %v3847, %v4113
        %v4135 = vmul.f32 %v3862, %v4114
        %v4136 = vmul.f32 %v3877, %v4115
        %v4137 = vmul.f32 %v3892, %v4116
        %v4138 = vmul.f32 %v3907, %v4117
        %v4139 = vmul.f32 %v3922, %v4118
        %v4140 = vmul.f32 %v3937, %v4119
        %v4141 = vmul.f32 %v3952, %v4120
        %v4142 = vadd.f32 %v4121, -0.18628806
        %v4143 = vadd.f32 %v4122, -0.18628806
        %v4144 = vadd.f32 %v4123, -0.18628806
        %v4145 = vadd.f32 %v4124, -0.18628806
        %v4146 = vadd.f32 %v4125, -0.18628806
        %v4147 = vadd.f32 %v4126, -0.18628806
        %v4148 = vadd.f32 %v4127, -0.18628806
        %v4149 = vadd.f32 %v4128, -0.18628806
        %v4150 = vadd.f32 %v4129, -0.18628806
        %v4151 = vadd.f32 %v4130, -0.18628806
        %v4152 = vadd.f32 %v4131, -0.18628806
        %v4153 = vadd.f32 %v4132, -0.18628806
        %v4154 = vadd.f32 %v4133, -0.18628806
        %v4155 = vadd.f32 %v4134, -0.18628806
        %v4156 = vadd.f32 %v4135, -0.18628806
        %v4157 = vadd.f32 %v4136, -0.18628806
        %v4158 = vadd.f32 %v4137, -0.18628806
        %v4159 = vadd.f32 %v4138, -0.18628806
        %v4160 = vadd.f32 %v4139, -0.18628806
        %v4161 = vadd.f32 %v4140, -0.18628806
        %v4162 = vadd.f32 %v4141, -0.18628806
        %v4163 = vmul.f32 %v3652, %v4142
        %v4164 = vmul.f32 %v3667, %v4143
        %v4165 = vmul.f32 %v3682, %v4144
        %v4166 = vmul.f32 %v3697, %v4145
        %v4167 = vmul.f32 %v3712, %v4146
        %v4168 = vmul.f32 %v3727, %v4147
        %v4169 = vmul.f32 %v3742, %v4148
        %v4170 = vmul.f32 %v3757, %v4149
        %v4171 = vmul.f32 %v3772, %v4150
        %v4172 = vmul.f32 %v3787, %v4151
        %v4173 = vmul.f32 %v3802, %v4152
        %v4174 = vmul.f32 %v3817, %v4153
        %v4175 = vmul.f32 %v3832, %v4154
        %v4176 = vmul.f32 %v3847, %v4155
        %v4177 = vmul.f32 %v3862, %v4156
        %v4178 = vmul.f32 %v3877, %v4157
        %v4179 = vmul.f32 %v3892, %v4158
        %v4180 = vmul.f32 %v3907, %v4159
        %v4181 = vmul.f32 %v3922, %v4160
        %v4182 = vmul.f32 %v3937, %v4161
        %v4183 = vmul.f32 %v3952, %v4162
        %v4184 = vadd.f32 %v4163, 0.09678418
        %v4185 = vadd.f32 %v4164, 0.09678418
        %v4186 = vadd.f32 %v4165, 0.09678418
        %v4187 = vadd.f32 %v4166, 0.09678418
        %v4188 = vadd.f32 %v4167, 0.09678418
        %v4189 = vadd.f32 %v4168, 0.09678418
        %v4190 = vadd.f32 %v4169, 0.09678418
        %v4191 = vadd.f32 %v4170, 0.09678418
        %v4192 = vadd.f32 %v4171, 0.09678418
        %v4193 = vadd.f32 %v4172, 0.09678418
        %v4194 = vadd.f32 %v4173, 0.09678418
        %v4195 = vadd.f32 %v4174, 0.09678418
        %v4196 = vadd.f32 %v4175, 0.09678418
        %v4197 = vadd.f32 %v4176, 0.09678418
        %v4198 = vadd.f32 %v4177, 0.09678418
        %v4199 = vadd.f32 %v4178, 0.09678418
        %v4200 = vadd.f32 %v4179, 0.09678418
        %v4201 = vadd.f32 %v4180, 0.09678418
        %v4202 = vadd.f32 %v4181, 0.09678418
        %v4203 = vadd.f32 %v4182, 0.09678418
        %v4204 = vadd.f32 %v4183, 0.09678418
        %v4205 = vmul.f32 %v3652, %v4184
        %v4206 = vmul.f32 %v3667, %v4185
        %v4207 = vmul.f32 %v3682, %v4186
        %v4208 = vmul.f32 %v3697, %v4187
        %v4209 = vmul.f32 %v3712, %v4188
        %v4210 = vmul.f32 %v3727, %v4189
        %v4211 = vmul.f32 %v3742, %v4190
        %v4212 = vmul.f32 %v3757, %v4191
        %v4213 = vmul.f32 %v3772, %v4192
        %v4214 = vmul.f32 %v3787, %v4193
        %v4215 = vmul.f32 %v3802, %v4194
        %v4216 = vmul.f32 %v3817, %v4195
        %v4217 = vmul.f32 %v3832, %v4196
        %v4218 = vmul.f32 %v3847, %v4197
        %v4219 = vmul.f32 %v3862, %v4198
        %v4220 = vmul.f32 %v3877, %v4199
        %v4221 = vmul.f32 %v3892, %v4200
        %v4222 = vmul.f32 %v3907, %v4201
        %v4223 = vmul.f32 %v3922, %v4202
        %v4224 = vmul.f32 %v3937, %v4203
        %v4225 = vmul.f32 %v3952, %v4204
        %v4226 = vadd.f32 %v4205, 0.37409195
        %v4227 = vadd.f32 %v4206, 0.37409195
        %v4228 = vadd.f32 %v4207, 0.37409195
        %v4229 = vadd.f32 %v4208, 0.37409195
        %v4230 = vadd.f32 %v4209, 0.37409195
        %v4231 = vadd.f32 %v4210, 0.37409195
        %v4232 = vadd.f32 %v4211, 0.37409195
        %v4233 = vadd.f32 %v4212, 0.37409195
        %v4234 = vadd.f32 %v4213, 0.37409195
        %v4235 = vadd.f32 %v4214, 0.37409195
        %v4236 = vadd.f32 %v4215, 0.37409195
        %v4237 = vadd.f32 %v4216, 0.37409195
        %v4238 = vadd.f32 %v4217, 0.37409195
        %v4239 = vadd.f32 %v4218, 0.37409195
        %v4240 = vadd.f32 %v4219, 0.37409195
        %v4241 = vadd.f32 %v4220, 0.37409195
        %v4242 = vadd.f32 %v4221, 0.37409195
        %v4243 = vadd.f32 %v4222, 0.37409195
        %v4244 = vadd.f32 %v4223, 0.37409195
        %v4245 = vadd.f32 %v4224, 0.37409195
        %v4246 = vadd.f32 %v4225, 0.37409195
        %v4247 = vmul.f32 %v3652, %v4226
        %v4248 = vmul.f32 %v3667, %v4227
        %v4249 = vmul.f32 %v3682, %v4228
        %v4250 = vmul.f32 %v3697, %v4229
        %v4251 = vmul.f32 %v3712, %v4230
        %v4252 = vmul.f32 %v3727, %v4231
        %v4253 = vmul.f32 %v3742, %v4232
        %v4254 = vmul.f32 %v3757, %v4233
        %v4255 = vmul.f32 %v3772, %v4234
        %v4256 = vmul.f32 %v3787, %v4235
        %v4257 = vmul.f32 %v3802, %v4236
        %v4258 = vmul.f32 %v3817, %v4237
        %v4259 = vmul.f32 %v3832, %v4238
        %v4260 = vmul.f32 %v3847, %v4239
        %v4261 = vmul.f32 %v3862, %v4240
        %v4262 = vmul.f32 %v3877, %v4241
        %v4263 = vmul.f32 %v3892, %v4242
        %v4264 = vmul.f32 %v3907, %v4243
        %v4265 = vmul.f32 %v3922, %v4244
        %v4266 = vmul.f32 %v3937, %v4245
        %v4267 = vmul.f32 %v3952, %v4246
        %v4268 = vadd.f32 %v4247, 1.0000237
        %v4269 = vadd.f32 %v4248, 1.0000237
        %v4270 = vadd.f32 %v4249, 1.0000237
        %v4271 = vadd.f32 %v4250, 1.0000237
        %v4272 = vadd.f32 %v4251, 1.0000237
        %v4273 = vadd.f32 %v4252, 1.0000237
        %v4274 = vadd.f32 %v4253, 1.0000237
        %v4275 = vadd.f32 %v4254, 1.0000237
        %v4276 = vadd.f32 %v4255, 1.0000237
        %v4277 = vadd.f32 %v4256, 1.0000237
        %v4278 = vadd.f32 %v4257, 1.0000237
        %v4279 = vadd.f32 %v4258, 1.0000237
        %v4280 = vadd.f32 %v4259, 1.0000237
        %v4281 = vadd.f32 %v4260, 1.0000237
        %v4282 = vadd.f32 %v4261, 1.0000237
        %v4283 = vadd.f32 %v4262, 1.0000237
        %v4284 = vadd.f32 %v4263, 1.0000237
        %v4285 = vadd.f32 %v4264, 1.0000237
        %v4286 = vadd.f32 %v4265, 1.0000237
        %v4287 = vadd.f32 %v4266, 1.0000237
        %v4288 = vadd.f32 %v4267, 1.0000237
        %v4289 = vmul.f32 %v3652, %v4268
        %v4290 = vmul.f32 %v3667, %v4269
        %v4291 = vmul.f32 %v3682, %v4270
        %v4292 = vmul.f32 %v3697, %v4271
        %v4293 = vmul.f32 %v3712, %v4272
        %v4294 = vmul.f32 %v3727, %v4273
        %v4295 = vmul.f32 %v3742, %v4274
        %v4296 = vmul.f32 %v3757, %v4275
        %v4297 = vmul.f32 %v3772, %v4276
        %v4298 = vmul.f32 %v3787, %v4277
        %v4299 = vmul.f32 %v3802, %v4278
        %v4300 = vmul.f32 %v3817, %v4279
        %v4301 = vmul.f32 %v3832, %v4280
        %v4302 = vmul.f32 %v3847, %v4281
        %v4303 = vmul.f32 %v3862, %v4282
        %v4304 = vmul.f32 %v3877, %v4283
        %v4305 = vmul.f32 %v3892, %v4284
        %v4306 = vmul.f32 %v3907, %v4285
        %v4307 = vmul.f32 %v3922, %v4286
        %v4308 = vmul.f32 %v3937, %v4287
        %v4309 = vmul.f32 %v3952, %v4288
        %v4310 = vadd.f32 %v4289, -1.2655122
        %v4311 = vadd.f32 %v4290, -1.2655122
        %v4312 = vadd.f32 %v4291, -1.2655122
        %v4313 = vadd.f32 %v4292, -1.2655122
        %v4314 = vadd.f32 %v4293, -1.2655122
        %v4315 = vadd.f32 %v4294, -1.2655122
        %v4316 = vadd.f32 %v4295, -1.2655122
        %v4317 = vadd.f32 %v4296, -1.2655122
        %v4318 = vadd.f32 %v4297, -1.2655122
        %v4319 = vadd.f32 %v4298, -1.2655122
        %v4320 = vadd.f32 %v4299, -1.2655122
        %v4321 = vadd.f32 %v4300, -1.2655122
        %v4322 = vadd.f32 %v4301, -1.2655122
        %v4323 = vadd.f32 %v4302, -1.2655122
        %v4324 = vadd.f32 %v4303, -1.2655122
        %v4325 = vadd.f32 %v4304, -1.2655122
        %v4326 = vadd.f32 %v4305, -1.2655122
        %v4327 = vadd.f32 %v4306, -1.2655122
        %v4328 = vadd.f32 %v4307, -1.2655122
        %v4329 = vadd.f32 %v4308, -1.2655122
        %v4330 = vadd.f32 %v4309, -1.2655122
        %v4331 = vsub.f32 0.0, %v3575
        %v4332 = vsub.f32 0.0, %v3576
        %v4333 = vsub.f32 0.0, %v3577
        %v4334 = vsub.f32 0.0, %v3578
        %v4335 = vsub.f32 0.0, %v3579
        %v4336 = vsub.f32 0.0, %v3580
        %v4337 = vsub.f32 0.0, %v3581
        %v4338 = vsub.f32 0.0, %v3582
        %v4339 = vsub.f32 0.0, %v3583
        %v4340 = vsub.f32 0.0, %v3584
        %v4341 = vsub.f32 0.0, %v3585
        %v4342 = vsub.f32 0.0, %v3586
        %v4343 = vsub.f32 0.0, %v3587
        %v4344 = vsub.f32 0.0, %v3588
        %v4345 = vsub.f32 0.0, %v3589
        %v4346 = vsub.f32 0.0, %v3590
        %v4347 = vsub.f32 0.0, %v3591
        %v4348 = vsub.f32 0.0, %v3592
        %v4349 = vsub.f32 0.0, %v3593
        %v4350 = vsub.f32 0.0, %v3594
        %v4351 = vsub.f32 0.0, %v3595
        %v4352 = vmul.f32 %v4331, %v3575
        %v4353 = vmul.f32 %v4332, %v3576
        %v4354 = vmul.f32 %v4333, %v3577
        %v4355 = vmul.f32 %v4334, %v3578
        %v4356 = vmul.f32 %v4335, %v3579
        %v4357 = vmul.f32 %v4336, %v3580
        %v4358 = vmul.f32 %v4337, %v3581
        %v4359 = vmul.f32 %v4338, %v3582
        %v4360 = vmul.f32 %v4339, %v3583
        %v4361 = vmul.f32 %v4340, %v3584
        %v4362 = vmul.f32 %v4341, %v3585
        %v4363 = vmul.f32 %v4342, %v3586
        %v4364 = vmul.f32 %v4343, %v3587
        %v4365 = vmul.f32 %v4344, %v3588
        %v4366 = vmul.f32 %v4345, %v3589
        %v4367 = vmul.f32 %v4346, %v3590
        %v4368 = vmul.f32 %v4347, %v3591
        %v4369 = vmul.f32 %v4348, %v3592
        %v4370 = vmul.f32 %v4349, %v3593
        %v4371 = vmul.f32 %v4350, %v3594
        %v4372 = vmul.f32 %v4351, %v3595
        %v4373 = vadd.f32 %v4352, %v4310
        %v4374 = vadd.f32 %v4353, %v4311
        %v4375 = vadd.f32 %v4354, %v4312
        %v4376 = vadd.f32 %v4355, %v4313
        %v4377 = vadd.f32 %v4356, %v4314
        %v4378 = vadd.f32 %v4357, %v4315
        %v4379 = vadd.f32 %v4358, %v4316
        %v4380 = vadd.f32 %v4359, %v4317
        %v4381 = vadd.f32 %v4360, %v4318
        %v4382 = vadd.f32 %v4361, %v4319
        %v4383 = vadd.f32 %v4362, %v4320
        %v4384 = vadd.f32 %v4363, %v4321
        %v4385 = vadd.f32 %v4364, %v4322
        %v4386 = vadd.f32 %v4365, %v4323
        %v4387 = vadd.f32 %v4366, %v4324
        %v4388 = vadd.f32 %v4367, %v4325
        %v4389 = vadd.f32 %v4368, %v4326
        %v4390 = vadd.f32 %v4369, %v4327
        %v4391 = vadd.f32 %v4370, %v4328
        %v4392 = vadd.f32 %v4371, %v4329
        %v4393 = vadd.f32 %v4372, %v4330
        %v4394 = vmul.f32 %v4373, 1.442695
        %v4395 = vpow.pop %v4394
        %v4396 = vmul.f32 %v4374, 1.442695
        %v4397 = vpow.pop %v4396
        %v4398 = vmul.f32 %v4375, 1.442695
        %v4399 = vpow.pop %v4398
        %v4400 = vmul.f32 %v4376, 1.442695
        %v4401 = vpow.pop %v4400
        %v4402 = vmul.f32 %v4377, 1.442695
        %v4403 = vpow.pop %v4402
        %v4404 = vmul.f32 %v4378, 1.442695
        %v4405 = vpow.pop %v4404
        %v4406 = vmul.f32 %v4379, 1.442695
        %v4407 = vpow.pop %v4406
        %v4408 = vmul.f32 %v4380, 1.442695
        %v4409 = vpow.pop %v4408
        %v4410 = vmul.f32 %v4381, 1.442695
        %v4411 = vpow.pop %v4410
        %v4412 = vmul.f32 %v4382, 1.442695
        %v4413 = vpow.pop %v4412
        %v4414 = vmul.f32 %v4383, 1.442695
        %v4415 = vpow.pop %v4414
        %v4416 = vmul.f32 %v4384, 1.442695
        %v4417 = vpow.pop %v4416
        %v4418 = vmul.f32 %v4385, 1.442695
        %v4419 = vpow.pop %v4418
        %v4420 = vmul.f32 %v4386, 1.442695
        %v4421 = vpow.pop %v4420
        %v4422 = vmul.f32 %v4387, 1.442695
        %v4423 = vpow.pop %v4422
        %v4424 = vmul.f32 %v4388, 1.442695
        %v4425 = vpow.pop %v4424
        %v4426 = vmul.f32 %v4389, 1.442695
        %v4427 = vpow.pop %v4426
        %v4428 = vmul.f32 %v4390, 1.442695
        %v4429 = vpow.pop %v4428
        %v4430 = vmul.f32 %v4391, 1.442695
        %v4431 = vpow.pop %v4430
        %v4432 = vmul.f32 %v4392, 1.442695
        %v4433 = vpow.pop %v4432
        %v4434 = vmul.f32 %v4393, 1.442695
        %v4435 = vpow.pop %v4434
        %v4436 = vmul.f32 %v3652, %v4395
        %v4437 = vmul.f32 %v3667, %v4397
        %v4438 = vmul.f32 %v3682, %v4399
        %v4439 = vmul.f32 %v3697, %v4401
        %v4440 = vmul.f32 %v3712, %v4403
        %v4441 = vmul.f32 %v3727, %v4405
        %v4442 = vmul.f32 %v3742, %v4407
        %v4443 = vmul.f32 %v3757, %v4409
        %v4444 = vmul.f32 %v3772, %v4411
        %v4445 = vmul.f32 %v3787, %v4413
        %v4446 = vmul.f32 %v3802, %v4415
        %v4447 = vmul.f32 %v3817, %v4417
        %v4448 = vmul.f32 %v3832, %v4419
        %v4449 = vmul.f32 %v3847, %v4421
        %v4450 = vmul.f32 %v3862, %v4423
        %v4451 = vmul.f32 %v3877, %v4425
        %v4452 = vmul.f32 %v3892, %v4427
        %v4453 = vmul.f32 %v3907, %v4429
        %v4454 = vmul.f32 %v3922, %v4431
        %v4455 = vmul.f32 %v3937, %v4433
        %v4456 = vmul.f32 %v3952, %v4435
        %vm4457 = vcmp.ge.f32.partialorder %v3554, 0.0
        %vm4458 = vcmp.ge.f32.partialorder %v3555, 0.0
        %vm4459 = vcmp.ge.f32.partialorder %v3556, 0.0
        %vm4460 = vcmp.ge.f32.partialorder %v3557, 0.0
        %vm4461 = vcmp.ge.f32.partialorder %v3558, 0.0
        %vm4462 = vcmp.ge.f32.partialorder %v3559, 0.0
        %vm4463 = vcmp.ge.f32.partialorder %v3560, 0.0
        %vm4464 = vcmp.ge.f32.partialorder %v3561, 0.0
        %vm4465 = vcmp.ge.f32.partialorder %v3562, 0.0
        %vm4466 = vcmp.ge.f32.partialorder %v3563, 0.0
        %vm4467 = vcmp.ge.f32.partialorder %v3564, 0.0
        %vm4468 = vcmp.ge.f32.partialorder %v3565, 0.0
        %vm4469 = vcmp.ge.f32.partialorder %v3566, 0.0
        %vm4470 = vcmp.ge.f32.partialorder %v3567, 0.0
        %vm4471 = vcmp.ge.f32.partialorder %v3568, 0.0
        %vm4472 = vcmp.ge.f32.partialorder %v3569, 0.0
        %vm4473 = vcmp.ge.f32.partialorder %v3570, 0.0
        %vm4474 = vcmp.ge.f32.partialorder %v3571, 0.0
        %vm4475 = vcmp.ge.f32.partialorder %v3572, 0.0
        %vm4476 = vcmp.ge.f32.partialorder %v3573, 0.0
        %vm4477 = vcmp.ge.f32.partialorder %v3574, 0.0
        %v4478 = vsub.f32 2.0, %v4436
        %v4479 = vsub.f32 2.0, %v4437
        %v4480 = vsub.f32 2.0, %v4438
        %v4481 = vsub.f32 2.0, %v4439
        %v4482 = vsub.f32 2.0, %v4440
        %v4483 = vsub.f32 2.0, %v4441
        %v4484 = vsub.f32 2.0, %v4442
        %v4485 = vsub.f32 2.0, %v4443
        %v4486 = vsub.f32 2.0, %v4444
        %v4487 = vsub.f32 2.0, %v4445
        %v4488 = vsub.f32 2.0, %v4446
        %v4489 = vsub.f32 2.0, %v4447
        %v4490 = vsub.f32 2.0, %v4448
        %v4491 = vsub.f32 2.0, %v4449
        %v4492 = vsub.f32 2.0, %v4450
        %v4493 = vsub.f32 2.0, %v4451
        %v4494 = vsub.f32 2.0, %v4452
        %v4495 = vsub.f32 2.0, %v4453
        %v4496 = vsub.f32 2.0, %v4454
        %v4497 = vsub.f32 2.0, %v4455
        %v4498 = vsub.f32 2.0, %v4456
        %v4499 = vsel %vm4457, %v4436, %v4478
        %v4500 = vsel %vm4458, %v4437, %v4479
        %v4501 = vsel %vm4459, %v4438, %v4480
        %v4502 = vsel %vm4460, %v4439, %v4481
        %v4503 = vsel %vm4461, %v4440, %v4482
        %v4504 = vsel %vm4462, %v4441, %v4483
        %v4505 = vsel %vm4463, %v4442, %v4484
        %v4506 = vsel %vm4464, %v4443, %v4485
        %v4507 = vsel %vm4465, %v4444, %v4486
        %v4508 = vsel %vm4466, %v4445, %v4487
        %v4509 = vsel %vm4467, %v4446, %v4488
        %v4510 = vsel %vm4468, %v4447, %v4489
        %v4511 = vsel %vm4469, %v4448, %v4490
        %v4512 = vsel %vm4470, %v4449, %v4491
        %v4513 = vsel %vm4471, %v4450, %v4492
        %v4514 = vsel %vm4472, %v4451, %v4493
        %v4515 = vsel %vm4473, %v4452, %v4494
        %v4516 = vsel %vm4474, %v4453, %v4495
        %v4517 = vsel %vm4475, %v4454, %v4496
        %v4518 = vsel %vm4476, %v4455, %v4497
        %v4519 = vsel %vm4477, %v4456, %v4498
        %v4520 = vsub.f32 1.0, %v4499
        %v4521 = vsub.f32 1.0, %v4500
        %v4522 = vsub.f32 1.0, %v4501
        %v4523 = vsub.f32 1.0, %v4502
        %v4524 = vsub.f32 1.0, %v4503
        %v4525 = vsub.f32 1.0, %v4504
        %v4526 = vsub.f32 1.0, %v4505
        %v4527 = vsub.f32 1.0, %v4506
        %v4528 = vsub.f32 1.0, %v4507
        %v4529 = vsub.f32 1.0, %v4508
        %v4530 = vsub.f32 1.0, %v4509
        %v4531 = vsub.f32 1.0, %v4510
        %v4532 = vsub.f32 1.0, %v4511
        %v4533 = vsub.f32 1.0, %v4512
        %v4534 = vsub.f32 1.0, %v4513
        %v4535 = vsub.f32 1.0, %v4514
        %v4536 = vsub.f32 1.0, %v4515
        %v4537 = vsub.f32 1.0, %v4516
        %v4538 = vsub.f32 1.0, %v4517
        %v4539 = vsub.f32 1.0, %v4518
        %v4540 = vsub.f32 1.0, %v4519
        %v4541 = vadd.f32 %v4520, 1.0
        %v4542 = vadd.f32 %v4521, 1.0
        %v4543 = vadd.f32 %v4522, 1.0
        %v4544 = vadd.f32 %v4523, 1.0
        %v4545 = vadd.f32 %v4524, 1.0
        %v4546 = vadd.f32 %v4525, 1.0
        %v4547 = vadd.f32 %v4526, 1.0
        %v4548 = vadd.f32 %v4527, 1.0
        %v4549 = vadd.f32 %v4528, 1.0
        %v4550 = vadd.f32 %v4529, 1.0
        %v4551 = vadd.f32 %v4530, 1.0
        %v4552 = vadd.f32 %v4531, 1.0
        %v4553 = vadd.f32 %v4532, 1.0
        %v4554 = vadd.f32 %v4533, 1.0
        %v4555 = vadd.f32 %v4534, 1.0
        %v4556 = vadd.f32 %v4535, 1.0
        %v4557 = vadd.f32 %v4536, 1.0
        %v4558 = vadd.f32 %v4537, 1.0
        %v4559 = vadd.f32 %v4538, 1.0
        %v4560 = vadd.f32 %v4539, 1.0
        %v4561 = vadd.f32 %v4540, 1.0
        %v4562 = vmul.f32 %v3533, %v4541
        %v4563 = vmul.f32 %v3534, %v4542
        %v4564 = vmul.f32 %v3535, %v4543
        %v4565 = vmul.f32 %v3536, %v4544
        %v4566 = vmul.f32 %v3537, %v4545
        %v4567 = vmul.f32 %v3538, %v4546
        %v4568 = vmul.f32 %v3539, %v4547
        %v4569 = vmul.f32 %v3540, %v4548
        %v4570 = vmul.f32 %v3541, %v4549
        %v4571 = vmul.f32 %v3542, %v4550
        %v4572 = vmul.f32 %v3543, %v4551
        %v4573 = vmul.f32 %v3544, %v4552
        %v4574 = vmul.f32 %v3545, %v4553
        %v4575 = vmul.f32 %v3546, %v4554
        %v4576 = vmul.f32 %v3547, %v4555
        %v4577 = vmul.f32 %v3548, %v4556
        %v4578 = vmul.f32 %v3549, %v4557
        %v4579 = vmul.f32 %v3550, %v4558
        %v4580 = vmul.f32 %v3551, %v4559
        %v4581 = vmul.f32 %v3552, %v4560
        %v4582 = vmul.f32 %v3553, %v4561
        %4583 = vst.msk [vmem:[#allocation3] sm:$0xff] %vm256, %v4562
        %4584 = vst.msk [vmem:[#allocation3 + $0x8] sm:$0xff] %vm256, %v4563
        %4585 = vst.msk [vmem:[#allocation3 + $0x10] sm:$0xff] %vm256, %v4564
        %4586 = vst.msk [vmem:[#allocation3 + $0x18] sm:$0xff] %vm256, %v4565
        %4587 = vst.msk [vmem:[#allocation3 + $0x20] sm:$0xff] %vm256, %v4566
        %4588 = vst.msk [vmem:[#allocation3 + $0x28] sm:$0xff] %vm256, %v4567
        %4589 = vst.msk [vmem:[#allocation3 + $0x30] sm:$0xff] %vm256, %v4568
        %4590 = vst.msk [vmem:[#allocation3 + $0x38] sm:$0xff] %vm256, %v4569
        %4591 = vst.msk [vmem:[#allocation3 + $0x40] sm:$0xff] %vm256, %v4570
        %4592 = vst.msk [vmem:[#allocation3 + $0x48] sm:$0xff] %vm256, %v4571
        %4593 = vst.msk [vmem:[#allocation3 + $0x50] sm:$0xff] %vm256, %v4572
        %4594 = vst.msk [vmem:[#allocation3 + $0x58] sm:$0xff] %vm256, %v4573
        %4595 = vst.msk [vmem:[#allocation3 + $0x60] sm:$0xff] %vm256, %v4574
        %4596 = vst.msk [vmem:[#allocation3 + $0x68] sm:$0xff] %vm256, %v4575
        %4597 = vst.msk [vmem:[#allocation3 + $0x70] sm:$0xff] %vm256, %v4576
        %4598 = vst.msk [vmem:[#allocation3 + $0x78] sm:$0xff] %vm256, %v4577
        %4599 = vst.msk [vmem:[#allocation3 + $0x80] sm:$0xff] %vm256, %v4578
        %4600 = vst.msk [vmem:[#allocation3 + $0x88] sm:$0xff] %vm256, %v4579
        %4601 = vst.msk [vmem:[#allocation3 + $0x90] sm:$0xff] %vm256, %v4580
        %4602 = vst.msk [vmem:[#allocation3 + $0x98] sm:$0xff] %vm256, %v4581
        %4603 = vst.msk [vmem:[#allocation3 + $0xa0] sm:$0xff] %vm256, %v4582
        %v4604 = vld [vmem:[#allocation3] ss:$3 sm:$0xff]
        %s4605 = scalar_lea.vmem [#allocation3], 24
        %v4606 = vld [vmem:[%s4605] ss:$3 sm:$0xff]
        %s4607 = scalar_lea.vmem [#allocation3], 48
        %v4608 = vld [vmem:[%s4607] ss:$3 sm:$0xff]
        %s4609 = scalar_lea.vmem [#allocation3], 72
        %v4610 = vld [vmem:[%s4609] ss:$3 sm:$0xff]
        %s4611 = scalar_lea.vmem [#allocation3], 96
        %v4612 = vld [vmem:[%s4611] ss:$3 sm:$0xff]
        %s4613 = scalar_lea.vmem [#allocation3], 120
        %v4614 = vld [vmem:[%s4613] ss:$3 sm:$0xff]
        %s4615 = scalar_lea.vmem [#allocation3], 144
        %v4616 = vld [vmem:[%s4615] ss:$3 sm:$0xff]
        %s4617 = scalar_lea.vmem [#allocation3], 1
        %v4618 = vld [vmem:[%s4617] ss:$3 sm:$0xff]
        %s4619 = scalar_lea.vmem [#allocation3], 25
        %v4620 = vld [vmem:[%s4619] ss:$3 sm:$0xff]
        %s4621 = scalar_lea.vmem [#allocation3], 49
        %v4622 = vld [vmem:[%s4621] ss:$3 sm:$0xff]
        %s4623 = scalar_lea.vmem [#allocation3], 73
        %v4624 = vld [vmem:[%s4623] ss:$3 sm:$0xff]
        %s4625 = scalar_lea.vmem [#allocation3], 97
        %v4626 = vld [vmem:[%s4625] ss:$3 sm:$0xff]
        %s4627 = scalar_lea.vmem [#allocation3], 121
        %v4628 = vld [vmem:[%s4627] ss:$3 sm:$0xff]
        %s4629 = scalar_lea.vmem [#allocation3], 145
        %v4630 = vld [vmem:[%s4629] ss:$3 sm:$0xff]
        %v4631 = vmax.f32 %v4604, %v4618
        %v4632 = vmax.f32 %v4606, %v4620
        %v4633 = vmax.f32 %v4608, %v4622
        %v4634 = vmax.f32 %v4610, %v4624
        %v4635 = vmax.f32 %v4612, %v4626
        %v4636 = vmax.f32 %v4614, %v4628
        %v4637 = vmax.f32 %v4616, %v4630
        %s4638 = scalar_lea.vmem [#allocation3], 2
        %v4639 = vld [vmem:[%s4638] ss:$3 sm:$0xff]
        %s4640 = scalar_lea.vmem [#allocation3], 26
        %v4641 = vld [vmem:[%s4640] ss:$3 sm:$0xff]
        %s4642 = scalar_lea.vmem [#allocation3], 50
        %v4643 = vld [vmem:[%s4642] ss:$3 sm:$0xff]
        %s4644 = scalar_lea.vmem [#allocation3], 74
        %v4645 = vld [vmem:[%s4644] ss:$3 sm:$0xff]
        %s4646 = scalar_lea.vmem [#allocation3], 98
        %v4647 = vld [vmem:[%s4646] ss:$3 sm:$0xff]
        %s4648 = scalar_lea.vmem [#allocation3], 122
        %v4649 = vld [vmem:[%s4648] ss:$3 sm:$0xff]
        %s4650 = scalar_lea.vmem [#allocation3], 146
        %v4651 = vld [vmem:[%s4650] ss:$3 sm:$0xff]
        %v4652 = vmax.f32 %v4631, %v4639
        %v4653 = vmax.f32 %v4632, %v4641
        %v4654 = vmax.f32 %v4633, %v4643
        %v4655 = vmax.f32 %v4634, %v4645
        %v4656 = vmax.f32 %v4635, %v4647
        %v4657 = vmax.f32 %v4636, %v4649
        %v4658 = vmax.f32 %v4637, %v4651
        %4659 = vst.msk [vmem:[#allocation2] sm:$0xff] %vm256, 0.0
        %4660 = vst.msk [vmem:[#allocation2 + $0x8] sm:$0xff] %vm256, 0.0
        %4661 = vst.msk [vmem:[#allocation2 + $0x10] sm:$0xff] %vm256, 0.0
        %4662 = vst.msk [vmem:[#allocation2 + $0x18] sm:$0xff] %vm256, 0.0
        %4663 = vst.msk [vmem:[#allocation2 + $0x20] sm:$0xff] %vm256, 0.0
        %4664 = vst.msk [vmem:[#allocation2 + $0x28] sm:$0xff] %vm256, 0.0
        %4665 = vst.msk [vmem:[#allocation2 + $0x30] sm:$0xff] %vm256, 0.0
        %4666 = vst.msk [vmem:[#allocation2 + $0x38] sm:$0xff] %vm256, 0.0
        %4667 = vst.msk [vmem:[#allocation2 + $0x40] sm:$0xff] %vm256, 0.0
        %4668 = vst.msk [vmem:[#allocation2 + $0x48] sm:$0xff] %vm256, 0.0
        %4669 = vst.msk [vmem:[#allocation2 + $0x50] sm:$0xff] %vm256, 0.0
        %4670 = vst.msk [vmem:[#allocation2 + $0x58] sm:$0xff] %vm256, 0.0
        %4671 = vst.msk [vmem:[#allocation2 + $0x60] sm:$0xff] %vm256, 0.0
        %4672 = vst.msk [vmem:[#allocation2 + $0x68] sm:$0xff] %vm256, 0.0
        %4673 = vst.msk [vmem:[#allocation2 + $0x70] sm:$0xff] %vm256, 0.0
        %4674 = vst.msk [vmem:[#allocation2 + $0x78] sm:$0xff] %vm256, 0.0
        %4675 = vst.msk [vmem:[#allocation2 + $0x80] sm:$0xff] %vm256, 0.0
        %4676 = vst.msk [vmem:[#allocation2 + $0x88] sm:$0xff] %vm256, 0.0
        %4677 = vst.msk [vmem:[#allocation2 + $0x90] sm:$0xff] %vm256, 0.0
        %4678 = vst.msk [vmem:[#allocation2 + $0x98] sm:$0xff] %vm256, 0.0
        %4679 = vst.msk [vmem:[#allocation2 + $0xa0] sm:$0xff] %vm256, 0.0
        %4680 = vst.msk [vmem:[#allocation2 + $0xa8] sm:$0xff] %vm256, 0.0
        %4681 = vst.msk [vmem:[#allocation2 + $0xb0] sm:$0xff] %vm256, 0.0
        %4682 = vst.msk [vmem:[#allocation2 + $0x3] sm:$0xff] %vm256, %v4652
        %4683 = vst.msk [vmem:[#allocation2 + $0xb] sm:$0xff] %vm256, %v4653
        %4684 = vst.msk [vmem:[#allocation2 + $0x13] sm:$0xff] %vm256, %v4654
        %4685 = vst.msk [vmem:[#allocation2 + $0x1b] sm:$0xff] %vm256, %v4655
        %4686 = vst.msk [vmem:[#allocation2 + $0x23] sm:$0xff] %vm256, %v4656
        %4687 = vst.msk [vmem:[#allocation2 + $0x2b] sm:$0xff] %vm256, %v4657
        %4688 = vst.msk [vmem:[#allocation2 + $0x33] sm:$0xff] %vm256, %v4658
        %v4689 = vld [vmem:[#allocation2] sm:$0xff]
        %v4690 = vld [vmem:[#allocation2 + $0x8] sm:$0xff]
        %v4691 = vld [vmem:[#allocation2 + $0x10] sm:$0xff]
        %v4692 = vld [vmem:[#allocation2 + $0x18] sm:$0xff]
        %v4693 = vld [vmem:[#allocation2 + $0x20] sm:$0xff]
        %v4694 = vld [vmem:[#allocation2 + $0x28] sm:$0xff]
        %v4695 = vld [vmem:[#allocation2 + $0x30] sm:$0xff]
        %v4696 = vld [vmem:[#allocation2 + $0x38] sm:$0x1]
        %s4697 = scalar_lea.vmem [#allocation4], 544
        %v4698 = vld [vmem:[%s4697] sm:$0xff]
        %v4699 = vld [vmem:[%s4697 + $0x8] sm:$0xff]
        %v4700 = vld [vmem:[%s4697 + $0x10] sm:$0xff]
        %v4701 = vld [vmem:[%s4697 + $0x18] sm:$0xff]
        %v4702 = vld [vmem:[#allocation2 + $0x1] sm:$0xff]
        %v4703 = vld [vmem:[#allocation2 + $0x9] sm:$0xff]
        %v4704 = vld [vmem:[#allocation2 + $0x11] sm:$0xff]
        %v4705 = vld [vmem:[#allocation2 + $0x19] sm:$0xff]
        %v4706 = vld [vmem:[#allocation2 + $0x21] sm:$0xff]
        %v4707 = vld [vmem:[#allocation2 + $0x29] sm:$0xff]
        %v4708 = vld [vmem:[#allocation2 + $0x31] sm:$0xff]
        %v4709 = vld [vmem:[#allocation2 + $0x39] sm:$0x1]
        %s4710 = scalar_lea.vmem [#allocation4], 576
        %v4711 = vld [vmem:[%s4710] sm:$0xff]
        %v4712 = vld [vmem:[%s4710 + $0x8] sm:$0xff]
        %v4713 = vld [vmem:[%s4710 + $0x10] sm:$0xff]
        %v4714 = vld [vmem:[%s4710 + $0x18] sm:$0xff]
        %v4716 = vsel %vm256, %v4702, 0
        %v4719 = vsel %vm256, %v4703, 0
        %v4722 = vsel %vm256, %v4704, 0
        %v4725 = vsel %vm256, %v4705, 0
        %v4728 = vsel %vm256, %v4706, 0
        %v4731 = vsel %vm256, %v4707, 0
        %v4734 = vsel %vm256, %v4708, 0
        %v4737 = vsel %vm256, %v4709, 0
        %4739 = vmatpush.msra.mxu0 0.0
        %4740 = vmatpush.msra.mxu0 0.0
        %4741 = vmatpush.msra.mxu0 0.0
        %4742 = vmatpush.msra.mxu0 0.0
        %4743 = vmatpush.msra.mxu0 0.0
        %4744 = vmatpush.msra.mxu0 0.0
        %4745 = vmatpush.msra.mxu0 0.0
        %4746 = vmatpush.msra.mxu0 0.0
        %4747 = vmatpush.msra.mxu0 0.0
        %4748 = vmatpush.msra.mxu0 0.0
        %4749 = vmatpush.msra.mxu0 0.0
        %4750 = vmatpush.msra.mxu0 0.0
        %4751 = vmatpush.msra.mxu0 %v4714
        %4752 = vmatpush.msra.mxu0 %v4713
        %4753 = vmatpush.msra.mxu0 %v4712
        %4754 = vmatpush.msra.mxu0 %v4711
        %4755 = vmatmul.f32.gmra.mxu0 %v4716
        %v4756 = vpop.f32.mrf.mxu0
        %v4757 = vadd.f32 0.0, %v4756
        %4758 = vmatmul.f32.gmra.mxu0 %v4719
        %v4759 = vpop.f32.mrf.mxu0
        %v4760 = vadd.f32 0.0, %v4759
        %4761 = vmatmul.f32.gmra.mxu0 %v4722
        %v4762 = vpop.f32.mrf.mxu0
        %v4763 = vadd.f32 0.0, %v4762
        %4764 = vmatmul.f32.gmra.mxu0 %v4725
        %v4765 = vpop.f32.mrf.mxu0
        %v4766 = vadd.f32 0.0, %v4765
        %4767 = vmatmul.f32.gmra.mxu0 %v4728
        %v4768 = vpop.f32.mrf.mxu0
        %v4769 = vadd.f32 0.0, %v4768
        %4770 = vmatmul.f32.gmra.mxu0 %v4731
        %v4771 = vpop.f32.mrf.mxu0
        %v4772 = vadd.f32 0.0, %v4771
        %4773 = vmatmul.f32.gmra.mxu0 %v4734
        %v4774 = vpop.f32.mrf.mxu0
        %v4775 = vadd.f32 0.0, %v4774
        %4776 = vmatmul.f32.gmra.mxu0 %v4737
        %v4777 = vpop.f32.mrf.mxu0
        %v4778 = vadd.f32 0.0, %v4777
        %4779 = vdwg.mxu0
        %v4781 = vsel %vm256, %v4689, 0
        %v4784 = vsel %vm256, %v4690, 0
        %v4787 = vsel %vm256, %v4691, 0
        %v4790 = vsel %vm256, %v4692, 0
        %v4793 = vsel %vm256, %v4693, 0
        %v4796 = vsel %vm256, %v4694, 0
        %v4799 = vsel %vm256, %v4695, 0
        %v4802 = vsel %vm256, %v4696, 0
        %4804 = vmatpush.msra.mxu0 0.0
        %4805 = vmatpush.msra.mxu0 0.0
        %4806 = vmatpush.msra.mxu0 0.0
        %4807 = vmatpush.msra.mxu0 0.0
        %4808 = vmatpush.msra.mxu0 0.0
        %4809 = vmatpush.msra.mxu0 0.0
        %4810 = vmatpush.msra.mxu0 0.0
        %4811 = vmatpush.msra.mxu0 0.0
        %4812 = vmatpush.msra.mxu0 0.0
        %4813 = vmatpush.msra.mxu0 0.0
        %4814 = vmatpush.msra.mxu0 0.0
        %4815 = vmatpush.msra.mxu0 0.0
        %4816 = vmatpush.msra.mxu0 %v4701
        %4817 = vmatpush.msra.mxu0 %v4700
        %4818 = vmatpush.msra.mxu0 %v4699
        %4819 = vmatpush.msra.mxu0 %v4698
        %4820 = vmatmul.f32.gmra.mxu0 %v4781
        %v4821 = vpop.f32.mrf.mxu0
        %v4822 = vadd.f32 %v4757, %v4821
        %4823 = vmatmul.f32.gmra.mxu0 %v4784
        %v4824 = vpop.f32.mrf.mxu0
        %v4825 = vadd.f32 %v4760, %v4824
        %4826 = vmatmul.f32.gmra.mxu0 %v4787
        %v4827 = vpop.f32.mrf.mxu0
        %v4828 = vadd.f32 %v4763, %v4827
        %4829 = vmatmul.f32.gmra.mxu0 %v4790
        %v4830 = vpop.f32.mrf.mxu0
        %v4831 = vadd.f32 %v4766, %v4830
        %4832 = vmatmul.f32.gmra.mxu0 %v4793
        %v4833 = vpop.f32.mrf.mxu0
        %v4834 = vadd.f32 %v4769, %v4833
        %4835 = vmatmul.f32.gmra.mxu0 %v4796
        %v4836 = vpop.f32.mrf.mxu0
        %v4837 = vadd.f32 %v4772, %v4836
        %4838 = vmatmul.f32.gmra.mxu0 %v4799
        %v4839 = vpop.f32.mrf.mxu0
        %v4840 = vadd.f32 %v4775, %v4839
        %4841 = vmatmul.f32.gmra.mxu0 %v4802
        %v4842 = vpop.f32.mrf.mxu0
        %v4843 = vadd.f32 %v4778, %v4842
        %4844 = vdwg.mxu0
        %v4845 = vld [vmem:[#allocation2 + $0x2] sm:$0xff]
        %v4846 = vld [vmem:[#allocation2 + $0xa] sm:$0xff]
        %v4847 = vld [vmem:[#allocation2 + $0x12] sm:$0xff]
        %v4848 = vld [vmem:[#allocation2 + $0x1a] sm:$0xff]
        %v4849 = vld [vmem:[#allocation2 + $0x22] sm:$0xff]
        %v4850 = vld [vmem:[#allocation2 + $0x2a] sm:$0xff]
        %v4851 = vld [vmem:[#allocation2 + $0x32] sm:$0xff]
        %v4852 = vld [vmem:[#allocation2 + $0x3a] sm:$0x1]
        %s4853 = scalar_lea.vmem [#allocation4], 608
        %v4854 = vld [vmem:[%s4853] sm:$0xff]
        %v4855 = vld [vmem:[%s4853 + $0x8] sm:$0xff]
        %v4856 = vld [vmem:[%s4853 + $0x10] sm:$0xff]
        %v4857 = vld [vmem:[%s4853 + $0x18] sm:$0xff]
        %v4859 = vsel %vm256, %v4845, 0
        %v4862 = vsel %vm256, %v4846, 0
        %v4865 = vsel %vm256, %v4847, 0
        %v4868 = vsel %vm256, %v4848, 0
        %v4871 = vsel %vm256, %v4849, 0
        %v4874 = vsel %vm256, %v4850, 0
        %v4877 = vsel %vm256, %v4851, 0
        %v4880 = vsel %vm256, %v4852, 0
        %4882 = vmatpush.msra.mxu0 0.0
        %4883 = vmatpush.msra.mxu0 0.0
        %4884 = vmatpush.msra.mxu0 0.0
        %4885 = vmatpush.msra.mxu0 0.0
        %4886 = vmatpush.msra.mxu0 0.0
        %4887 = vmatpush.msra.mxu0 0.0
        %4888 = vmatpush.msra.mxu0 0.0
        %4889 = vmatpush.msra.mxu0 0.0
        %4890 = vmatpush.msra.mxu0 0.0
        %4891 = vmatpush.msra.mxu0 0.0
        %4892 = vmatpush.msra.mxu0 0.0
        %4893 = vmatpush.msra.mxu0 0.0
        %4894 = vmatpush.msra.mxu0 %v4857
        %4895 = vmatpush.msra.mxu0 %v4856
        %4896 = vmatpush.msra.mxu0 %v4855
        %4897 = vmatpush.msra.mxu0 %v4854
        %4898 = vmatmul.f32.gmra.mxu0 %v4859
        %v4899 = vpop.f32.mrf.mxu0
        %v4900 = vadd.f32 0.0, %v4899
        %4901 = vmatmul.f32.gmra.mxu0 %v4862
        %v4902 = vpop.f32.mrf.mxu0
        %v4903 = vadd.f32 0.0, %v4902
        %4904 = vmatmul.f32.gmra.mxu0 %v4865
        %v4905 = vpop.f32.mrf.mxu0
        %v4906 = vadd.f32 0.0, %v4905
        %4907 = vmatmul.f32.gmra.mxu0 %v4868
        %v4908 = vpop.f32.mrf.mxu0
        %v4909 = vadd.f32 0.0, %v4908
        %4910 = vmatmul.f32.gmra.mxu0 %v4871
        %v4911 = vpop.f32.mrf.mxu0
        %v4912 = vadd.f32 0.0, %v4911
        %4913 = vmatmul.f32.gmra.mxu0 %v4874
        %v4914 = vpop.f32.mrf.mxu0
        %v4915 = vadd.f32 0.0, %v4914
        %4916 = vmatmul.f32.gmra.mxu0 %v4877
        %v4917 = vpop.f32.mrf.mxu0
        %v4918 = vadd.f32 0.0, %v4917
        %4919 = vmatmul.f32.gmra.mxu0 %v4880
        %v4920 = vpop.f32.mrf.mxu0
        %v4921 = vadd.f32 0.0, %v4920
        %4922 = vdwg.mxu0
        %v4923 = vadd.f32 %v4822, %v4900
        %v4924 = vadd.f32 %v4825, %v4903
        %v4925 = vadd.f32 %v4828, %v4906
        %v4926 = vadd.f32 %v4831, %v4909
        %v4927 = vadd.f32 %v4834, %v4912
        %v4928 = vadd.f32 %v4837, %v4915
        %v4929 = vadd.f32 %v4840, %v4918
        %v4930 = vadd.f32 %v4843, %v4921
        %v4931 = vld [vmem:[#allocation2 + $0x3] sm:$0xff]
        %v4932 = vld [vmem:[#allocation2 + $0xb] sm:$0xff]
        %v4933 = vld [vmem:[#allocation2 + $0x13] sm:$0xff]
        %v4934 = vld [vmem:[#allocation2 + $0x1b] sm:$0xff]
        %v4935 = vld [vmem:[#allocation2 + $0x23] sm:$0xff]
        %v4936 = vld [vmem:[#allocation2 + $0x2b] sm:$0xff]
        %v4937 = vld [vmem:[#allocation2 + $0x33] sm:$0xff]
        %v4938 = vld [vmem:[#allocation2 + $0x3b] sm:$0x1]
        %s4939 = scalar_lea.vmem [#allocation4], 640
        %v4940 = vld [vmem:[%s4939] sm:$0xff]
        %v4941 = vld [vmem:[%s4939 + $0x8] sm:$0xff]
        %v4942 = vld [vmem:[%s4939 + $0x10] sm:$0xff]
        %v4943 = vld [vmem:[%s4939 + $0x18] sm:$0xff]
        %v4945 = vsel %vm256, %v4931, 0
        %v4948 = vsel %vm256, %v4932, 0
        %v4951 = vsel %vm256, %v4933, 0
        %v4954 = vsel %vm256, %v4934, 0
        %v4957 = vsel %vm256, %v4935, 0
        %v4960 = vsel %vm256, %v4936, 0
        %v4963 = vsel %vm256, %v4937, 0
        %v4966 = vsel %vm256, %v4938, 0
        %4968 = vmatpush.msra.mxu0 0.0
        %4969 = vmatpush.msra.mxu0 0.0
        %4970 = vmatpush.msra.mxu0 0.0
        %4971 = vmatpush.msra.mxu0 0.0
        %4972 = vmatpush.msra.mxu0 0.0
        %4973 = vmatpush.msra.mxu0 0.0
        %4974 = vmatpush.msra.mxu0 0.0
        %4975 = vmatpush.msra.mxu0 0.0
        %4976 = vmatpush.msra.mxu0 0.0
        %4977 = vmatpush.msra.mxu0 0.0
        %4978 = vmatpush.msra.mxu0 0.0
        %4979 = vmatpush.msra.mxu0 0.0
        %4980 = vmatpush.msra.mxu0 %v4943
        %4981 = vmatpush.msra.mxu0 %v4942
        %4982 = vmatpush.msra.mxu0 %v4941
        %4983 = vmatpush.msra.mxu0 %v4940
        %4984 = vmatmul.f32.gmra.mxu0 %v4945
        %v4985 = vpop.f32.mrf.mxu0
        %v4986 = vadd.f32 0.0, %v4985
        %4987 = vmatmul.f32.gmra.mxu0 %v4948
        %v4988 = vpop.f32.mrf.mxu0
        %v4989 = vadd.f32 0.0, %v4988
        %4990 = vmatmul.f32.gmra.mxu0 %v4951
        %v4991 = vpop.f32.mrf.mxu0
        %v4992 = vadd.f32 0.0, %v4991
        %4993 = vmatmul.f32.gmra.mxu0 %v4954
        %v4994 = vpop.f32.mrf.mxu0
        %v4995 = vadd.f32 0.0, %v4994
        %4996 = vmatmul.f32.gmra.mxu0 %v4957
        %v4997 = vpop.f32.mrf.mxu0
        %v4998 = vadd.f32 0.0, %v4997
        %4999 = vmatmul.f32.gmra.mxu0 %v4960
        %v5000 = vpop.f32.mrf.mxu0
        %v5001 = vadd.f32 0.0, %v5000
        %5002 = vmatmul.f32.gmra.mxu0 %v4963
        %v5003 = vpop.f32.mrf.mxu0
        %v5004 = vadd.f32 0.0, %v5003
        %5005 = vmatmul.f32.gmra.mxu0 %v4966
        %v5006 = vpop.f32.mrf.mxu0
        %v5007 = vadd.f32 0.0, %v5006
        %5008 = vdwg.mxu0
        %v5009 = vadd.f32 %v4923, %v4986
        %v5010 = vadd.f32 %v4924, %v4989
        %v5011 = vadd.f32 %v4925, %v4992
        %v5012 = vadd.f32 %v4926, %v4995
        %v5013 = vadd.f32 %v4927, %v4998
        %v5014 = vadd.f32 %v4928, %v5001
        %v5015 = vadd.f32 %v4929, %v5004
        %v5016 = vadd.f32 %v4930, %v5007
        %v5017 = vld [vmem:[#allocation2 + $0x4] sm:$0xff]
        %v5018 = vld [vmem:[#allocation2 + $0xc] sm:$0xff]
        %v5019 = vld [vmem:[#allocation2 + $0x14] sm:$0xff]
        %v5020 = vld [vmem:[#allocation2 + $0x1c] sm:$0xff]
        %v5021 = vld [vmem:[#allocation2 + $0x24] sm:$0xff]
        %v5022 = vld [vmem:[#allocation2 + $0x2c] sm:$0xff]
        %v5023 = vld [vmem:[#allocation2 + $0x34] sm:$0xff]
        %v5024 = vld [vmem:[#allocation2 + $0x3c] sm:$0x1]
        %s5025 = scalar_lea.vmem [#allocation4], 672
        %v5026 = vld [vmem:[%s5025] sm:$0xff]
        %v5027 = vld [vmem:[%s5025 + $0x8] sm:$0xff]
        %v5028 = vld [vmem:[%s5025 + $0x10] sm:$0xff]
        %v5029 = vld [vmem:[%s5025 + $0x18] sm:$0xff]
        %v5031 = vsel %vm256, %v5017, 0
        %v5034 = vsel %vm256, %v5018, 0
        %v5037 = vsel %vm256, %v5019, 0
        %v5040 = vsel %vm256, %v5020, 0
        %v5043 = vsel %vm256, %v5021, 0
        %v5046 = vsel %vm256, %v5022, 0
        %v5049 = vsel %vm256, %v5023, 0
        %v5052 = vsel %vm256, %v5024, 0
        %5054 = vmatpush.msra.mxu0 0.0
        %5055 = vmatpush.msra.mxu0 0.0
        %5056 = vmatpush.msra.mxu0 0.0
        %5057 = vmatpush.msra.mxu0 0.0
        %5058 = vmatpush.msra.mxu0 0.0
        %5059 = vmatpush.msra.mxu0 0.0
        %5060 = vmatpush.msra.mxu0 0.0
        %5061 = vmatpush.msra.mxu0 0.0
        %5062 = vmatpush.msra.mxu0 0.0
        %5063 = vmatpush.msra.mxu0 0.0
        %5064 = vmatpush.msra.mxu0 0.0
        %5065 = vmatpush.msra.mxu0 0.0
        %5066 = vmatpush.msra.mxu0 %v5029
        %5067 = vmatpush.msra.mxu0 %v5028
        %5068 = vmatpush.msra.mxu0 %v5027
        %5069 = vmatpush.msra.mxu0 %v5026
        %5070 = vmatmul.f32.gmra.mxu0 %v5031
        %v5071 = vpop.f32.mrf.mxu0
        %v5072 = vadd.f32 0.0, %v5071
        %5073 = vmatmul.f32.gmra.mxu0 %v5034
        %v5074 = vpop.f32.mrf.mxu0
        %v5075 = vadd.f32 0.0, %v5074
        %5076 = vmatmul.f32.gmra.mxu0 %v5037
        %v5077 = vpop.f32.mrf.mxu0
        %v5078 = vadd.f32 0.0, %v5077
        %5079 = vmatmul.f32.gmra.mxu0 %v5040
        %v5080 = vpop.f32.mrf.mxu0
        %v5081 = vadd.f32 0.0, %v5080
        %5082 = vmatmul.f32.gmra.mxu0 %v5043
        %v5083 = vpop.f32.mrf.mxu0
        %v5084 = vadd.f32 0.0, %v5083
        %5085 = vmatmul.f32.gmra.mxu0 %v5046
        %v5086 = vpop.f32.mrf.mxu0
        %v5087 = vadd.f32 0.0, %v5086
        %5088 = vmatmul.f32.gmra.mxu0 %v5049
        %v5089 = vpop.f32.mrf.mxu0
        %v5090 = vadd.f32 0.0, %v5089
        %5091 = vmatmul.f32.gmra.mxu0 %v5052
        %v5092 = vpop.f32.mrf.mxu0
        %v5093 = vadd.f32 0.0, %v5092
        %5094 = vdwg.mxu0
        %v5095 = vadd.f32 %v5009, %v5072
        %v5096 = vadd.f32 %v5010, %v5075
        %v5097 = vadd.f32 %v5011, %v5078
        %v5098 = vadd.f32 %v5012, %v5081
        %v5099 = vadd.f32 %v5013, %v5084
        %v5100 = vadd.f32 %v5014, %v5087
        %v5101 = vadd.f32 %v5015, %v5090
        %v5102 = vadd.f32 %v5016, %v5093
        %v5103 = vld [vmem:[#allocation2 + $0x5] sm:$0xff]
        %v5104 = vld [vmem:[#allocation2 + $0xd] sm:$0xff]
        %v5105 = vld [vmem:[#allocation2 + $0x15] sm:$0xff]
        %v5106 = vld [vmem:[#allocation2 + $0x1d] sm:$0xff]
        %v5107 = vld [vmem:[#allocation2 + $0x25] sm:$0xff]
        %v5108 = vld [vmem:[#allocation2 + $0x2d] sm:$0xff]
        %v5109 = vld [vmem:[#allocation2 + $0x35] sm:$0xff]
        %v5110 = vld [vmem:[#allocation2 + $0x3d] sm:$0x1]
        %s5111 = scalar_lea.vmem [#allocation4], 704
        %v5112 = vld [vmem:[%s5111] sm:$0xff]
        %v5113 = vld [vmem:[%s5111 + $0x8] sm:$0xff]
        %v5114 = vld [vmem:[%s5111 + $0x10] sm:$0xff]
        %v5115 = vld [vmem:[%s5111 + $0x18] sm:$0xff]
        %v5117 = vsel %vm256, %v5103, 0
        %v5120 = vsel %vm256, %v5104, 0
        %v5123 = vsel %vm256, %v5105, 0
        %v5126 = vsel %vm256, %v5106, 0
        %v5129 = vsel %vm256, %v5107, 0
        %v5132 = vsel %vm256, %v5108, 0
        %v5135 = vsel %vm256, %v5109, 0
        %v5138 = vsel %vm256, %v5110, 0
        %5140 = vmatpush.msra.mxu0 0.0
        %5141 = vmatpush.msra.mxu0 0.0
        %5142 = vmatpush.msra.mxu0 0.0
        %5143 = vmatpush.msra.mxu0 0.0
        %5144 = vmatpush.msra.mxu0 0.0
        %5145 = vmatpush.msra.mxu0 0.0
        %5146 = vmatpush.msra.mxu0 0.0
        %5147 = vmatpush.msra.mxu0 0.0
        %5148 = vmatpush.msra.mxu0 0.0
        %5149 = vmatpush.msra.mxu0 0.0
        %5150 = vmatpush.msra.mxu0 0.0
        %5151 = vmatpush.msra.mxu0 0.0
        %5152 = vmatpush.msra.mxu0 %v5115
        %5153 = vmatpush.msra.mxu0 %v5114
        %5154 = vmatpush.msra.mxu0 %v5113
        %5155 = vmatpush.msra.mxu0 %v5112
        %5156 = vmatmul.f32.gmra.mxu0 %v5117
        %v5157 = vpop.f32.mrf.mxu0
        %v5158 = vadd.f32 0.0, %v5157
        %5159 = vmatmul.f32.gmra.mxu0 %v5120
        %v5160 = vpop.f32.mrf.mxu0
        %v5161 = vadd.f32 0.0, %v5160
        %5162 = vmatmul.f32.gmra.mxu0 %v5123
        %v5163 = vpop.f32.mrf.mxu0
        %v5164 = vadd.f32 0.0, %v5163
        %5165 = vmatmul.f32.gmra.mxu0 %v5126
        %v5166 = vpop.f32.mrf.mxu0
        %v5167 = vadd.f32 0.0, %v5166
        %5168 = vmatmul.f32.gmra.mxu0 %v5129
        %v5169 = vpop.f32.mrf.mxu0
        %v5170 = vadd.f32 0.0, %v5169
        %5171 = vmatmul.f32.gmra.mxu0 %v5132
        %v5172 = vpop.f32.mrf.mxu0
        %v5173 = vadd.f32 0.0, %v5172
        %5174 = vmatmul.f32.gmra.mxu0 %v5135
        %v5175 = vpop.f32.mrf.mxu0
        %v5176 = vadd.f32 0.0, %v5175
        %5177 = vmatmul.f32.gmra.mxu0 %v5138
        %v5178 = vpop.f32.mrf.mxu0
        %v5179 = vadd.f32 0.0, %v5178
        %5180 = vdwg.mxu0
        %v5181 = vadd.f32 %v5095, %v5158
        %v5182 = vadd.f32 %v5096, %v5161
        %v5183 = vadd.f32 %v5097, %v5164
        %v5184 = vadd.f32 %v5098, %v5167
        %v5185 = vadd.f32 %v5099, %v5170
        %v5186 = vadd.f32 %v5100, %v5173
        %v5187 = vadd.f32 %v5101, %v5176
        %v5188 = vadd.f32 %v5102, %v5179
        %v5189 = vld [vmem:[%s2 + $0x1] sm:$0x1]
        %v5190 = vperm.slane %v5189, 0
        %v5191 = vadd.f32 %v5181, %v5190
        %v5192 = vadd.f32 %v5182, %v5190
        %v5193 = vadd.f32 %v5183, %v5190
        %v5194 = vadd.f32 %v5184, %v5190
        %v5195 = vadd.f32 %v5185, %v5190
        %v5196 = vadd.f32 %v5186, %v5190
        %v5197 = vadd.f32 %v5187, %v5190
        %v5198 = vadd.f32 %v5188, %v5190
        %v5199 = vmul.f32 %v5191, 0.5
        %v5200 = vmul.f32 %v5192, 0.5
        %v5201 = vmul.f32 %v5193, 0.5
        %v5202 = vmul.f32 %v5194, 0.5
        %v5203 = vmul.f32 %v5195, 0.5
        %v5204 = vmul.f32 %v5196, 0.5
        %v5205 = vmul.f32 %v5197, 0.5
        %v5206 = vmul.f32 %v5198, 0.5
        %v5207 = vmul.f32 %v5191, 0.70710677
        %v5208 = vmul.f32 %v5192, 0.70710677
        %v5209 = vmul.f32 %v5193, 0.70710677
        %v5210 = vmul.f32 %v5194, 0.70710677
        %v5211 = vmul.f32 %v5195, 0.70710677
        %v5212 = vmul.f32 %v5196, 0.70710677
        %v5213 = vmul.f32 %v5197, 0.70710677
        %v5214 = vmul.f32 %v5198, 0.70710677
        %v5215 = vand.u32 2147483647, %v5207
        %v5216 = vand.u32 2147483647, %v5208
        %v5217 = vand.u32 2147483647, %v5209
        %v5218 = vand.u32 2147483647, %v5210
        %v5219 = vand.u32 2147483647, %v5211
        %v5220 = vand.u32 2147483647, %v5212
        %v5221 = vand.u32 2147483647, %v5213
        %v5222 = vand.u32 2147483647, %v5214
        %v5223 = vmul.f32 %v5215, 0.5
        %v5224 = vmul.f32 %v5216, 0.5
        %v5225 = vmul.f32 %v5217, 0.5
        %v5226 = vmul.f32 %v5218, 0.5
        %v5227 = vmul.f32 %v5219, 0.5
        %v5228 = vmul.f32 %v5220, 0.5
        %v5229 = vmul.f32 %v5221, 0.5
        %v5230 = vmul.f32 %v5222, 0.5
        %v5231 = vadd.f32 %v5223, 1.0
        %v5232 = vadd.f32 %v5224, 1.0
        %v5233 = vadd.f32 %v5225, 1.0
        %v5234 = vadd.f32 %v5226, 1.0
        %v5235 = vadd.f32 %v5227, 1.0
        %v5236 = vadd.f32 %v5228, 1.0
        %v5237 = vadd.f32 %v5229, 1.0
        %v5238 = vadd.f32 %v5230, 1.0
        %v5239 = vrcp.pop %v5231
        %v5240 = vmul.f32 %v5231, %v5239
        %v5241 = vsub.f32 1.0, %v5240
        %v5242 = vmul.f32 %v5239, %v5241
        %v5243 = vadd.f32 %v5239, %v5242
        %vm5244 = vweird.f32 %v5231
        %vm5245 = vweird.f32 %v5239
        %vm5246 = vmor %vm5244, %vm5245
        %v5247 = vsel %vm5246, %v5239, %v5243
        %v5248 = vand.u32 2147483647, %v5231
        %vm5249 = vcmp.eq.f32.partialorder %v5248, 8.507059e+37
        %v5250 = vand.u32 %v5231, 2147483648
        %v5251 = vor.u32 1.1754944e-38, %v5250
        %v5252 = vsel %vm5249, %v5251, %v5247
        %v5253 = vmul.f32 1.0, %v5252
        %v5254 = vrcp.pop %v5232
        %v5255 = vmul.f32 %v5232, %v5254
        %v5256 = vsub.f32 1.0, %v5255
        %v5257 = vmul.f32 %v5254, %v5256
        %v5258 = vadd.f32 %v5254, %v5257
        %vm5259 = vweird.f32 %v5232
        %vm5260 = vweird.f32 %v5254
        %vm5261 = vmor %vm5259, %vm5260
        %v5262 = vsel %vm5261, %v5254, %v5258
        %v5263 = vand.u32 2147483647, %v5232
        %vm5264 = vcmp.eq.f32.partialorder %v5263, 8.507059e+37
        %v5265 = vand.u32 %v5232, 2147483648
        %v5266 = vor.u32 1.1754944e-38, %v5265
        %v5267 = vsel %vm5264, %v5266, %v5262
        %v5268 = vmul.f32 1.0, %v5267
        %v5269 = vrcp.pop %v5233
        %v5270 = vmul.f32 %v5233, %v5269
        %v5271 = vsub.f32 1.0, %v5270
        %v5272 = vmul.f32 %v5269, %v5271
        %v5273 = vadd.f32 %v5269, %v5272
        %vm5274 = vweird.f32 %v5233
        %vm5275 = vweird.f32 %v5269
        %vm5276 = vmor %vm5274, %vm5275
        %v5277 = vsel %vm5276, %v5269, %v5273
        %v5278 = vand.u32 2147483647, %v5233
        %vm5279 = vcmp.eq.f32.partialorder %v5278, 8.507059e+37
        %v5280 = vand.u32 %v5233, 2147483648
        %v5281 = vor.u32 1.1754944e-38, %v5280
        %v5282 = vsel %vm5279, %v5281, %v5277
        %v5283 = vmul.f32 1.0, %v5282
        %v5284 = vrcp.pop %v5234
        %v5285 = vmul.f32 %v5234, %v5284
        %v5286 = vsub.f32 1.0, %v5285
        %v5287 = vmul.f32 %v5284, %v5286
        %v5288 = vadd.f32 %v5284, %v5287
        %vm5289 = vweird.f32 %v5234
        %vm5290 = vweird.f32 %v5284
        %vm5291 = vmor %vm5289, %vm5290
        %v5292 = vsel %vm5291, %v5284, %v5288
        %v5293 = vand.u32 2147483647, %v5234
        %vm5294 = vcmp.eq.f32.partialorder %v5293, 8.507059e+37
        %v5295 = vand.u32 %v5234, 2147483648
        %v5296 = vor.u32 1.1754944e-38, %v5295
        %v5297 = vsel %vm5294, %v5296, %v5292
        %v5298 = vmul.f32 1.0, %v5297
        %v5299 = vrcp.pop %v5235
        %v5300 = vmul.f32 %v5235, %v5299
        %v5301 = vsub.f32 1.0, %v5300
        %v5302 = vmul.f32 %v5299, %v5301
        %v5303 = vadd.f32 %v5299, %v5302
        %vm5304 = vweird.f32 %v5235
        %vm5305 = vweird.f32 %v5299
        %vm5306 = vmor %vm5304, %vm5305
        %v5307 = vsel %vm5306, %v5299, %v5303
        %v5308 = vand.u32 2147483647, %v5235
        %vm5309 = vcmp.eq.f32.partialorder %v5308, 8.507059e+37
        %v5310 = vand.u32 %v5235, 2147483648
        %v5311 = vor.u32 1.1754944e-38, %v5310
        %v5312 = vsel %vm5309, %v5311, %v5307
        %v5313 = vmul.f32 1.0, %v5312
        %v5314 = vrcp.pop %v5236
        %v5315 = vmul.f32 %v5236, %v5314
        %v5316 = vsub.f32 1.0, %v5315
        %v5317 = vmul.f32 %v5314, %v5316
        %v5318 = vadd.f32 %v5314, %v5317
        %vm5319 = vweird.f32 %v5236
        %vm5320 = vweird.f32 %v5314
        %vm5321 = vmor %vm5319, %vm5320
        %v5322 = vsel %vm5321, %v5314, %v5318
        %v5323 = vand.u32 2147483647, %v5236
        %vm5324 = vcmp.eq.f32.partialorder %v5323, 8.507059e+37
        %v5325 = vand.u32 %v5236, 2147483648
        %v5326 = vor.u32 1.1754944e-38, %v5325
        %v5327 = vsel %vm5324, %v5326, %v5322
        %v5328 = vmul.f32 1.0, %v5327
        %v5329 = vrcp.pop %v5237
        %v5330 = vmul.f32 %v5237, %v5329
        %v5331 = vsub.f32 1.0, %v5330
        %v5332 = vmul.f32 %v5329, %v5331
        %v5333 = vadd.f32 %v5329, %v5332
        %vm5334 = vweird.f32 %v5237
        %vm5335 = vweird.f32 %v5329
        %vm5336 = vmor %vm5334, %vm5335
        %v5337 = vsel %vm5336, %v5329, %v5333
        %v5338 = vand.u32 2147483647, %v5237
        %vm5339 = vcmp.eq.f32.partialorder %v5338, 8.507059e+37
        %v5340 = vand.u32 %v5237, 2147483648
        %v5341 = vor.u32 1.1754944e-38, %v5340
        %v5342 = vsel %vm5339, %v5341, %v5337
        %v5343 = vmul.f32 1.0, %v5342
        %v5344 = vrcp.pop %v5238
        %v5345 = vmul.f32 %v5238, %v5344
        %v5346 = vsub.f32 1.0, %v5345
        %v5347 = vmul.f32 %v5344, %v5346
        %v5348 = vadd.f32 %v5344, %v5347
        %vm5349 = vweird.f32 %v5238
        %vm5350 = vweird.f32 %v5344
        %vm5351 = vmor %vm5349, %vm5350
        %v5352 = vsel %vm5351, %v5344, %v5348
        %v5353 = vand.u32 2147483647, %v5238
        %vm5354 = vcmp.eq.f32.partialorder %v5353, 8.507059e+37
        %v5355 = vand.u32 %v5238, 2147483648
        %v5356 = vor.u32 1.1754944e-38, %v5355
        %v5357 = vsel %vm5354, %v5356, %v5352
        %v5358 = vmul.f32 1.0, %v5357
        %v5359 = vmul.f32 %v5253, 0.17087276
        %v5360 = vmul.f32 %v5268, 0.17087276
        %v5361 = vmul.f32 %v5283, 0.17087276
        %v5362 = vmul.f32 %v5298, 0.17087276
        %v5363 = vmul.f32 %v5313, 0.17087276
        %v5364 = vmul.f32 %v5328, 0.17087276
        %v5365 = vmul.f32 %v5343, 0.17087276
        %v5366 = vmul.f32 %v5358, 0.17087276
        %v5367 = vadd.f32 %v5359, -0.82215226
        %v5368 = vadd.f32 %v5360, -0.82215226
        %v5369 = vadd.f32 %v5361, -0.82215226
        %v5370 = vadd.f32 %v5362, -0.82215226
        %v5371 = vadd.f32 %v5363, -0.82215226
        %v5372 = vadd.f32 %v5364, -0.82215226
        %v5373 = vadd.f32 %v5365, -0.82215226
        %v5374 = vadd.f32 %v5366, -0.82215226
        %v5375 = vmul.f32 %v5253, %v5367
        %v5376 = vmul.f32 %v5268, %v5368
        %v5377 = vmul.f32 %v5283, %v5369
        %v5378 = vmul.f32 %v5298, %v5370
        %v5379 = vmul.f32 %v5313, %v5371
        %v5380 = vmul.f32 %v5328, %v5372
        %v5381 = vmul.f32 %v5343, %v5373
        %v5382 = vmul.f32 %v5358, %v5374
        %v5383 = vadd.f32 %v5375, 1.4885159
        %v5384 = vadd.f32 %v5376, 1.4885159
        %v5385 = vadd.f32 %v5377, 1.4885159
        %v5386 = vadd.f32 %v5378, 1.4885159
        %v5387 = vadd.f32 %v5379, 1.4885159
        %v5388 = vadd.f32 %v5380, 1.4885159
        %v5389 = vadd.f32 %v5381, 1.4885159
        %v5390 = vadd.f32 %v5382, 1.4885159
        %v5391 = vmul.f32 %v5253, %v5383
        %v5392 = vmul.f32 %v5268, %v5384
        %v5393 = vmul.f32 %v5283, %v5385
        %v5394 = vmul.f32 %v5298, %v5386
        %v5395 = vmul.f32 %v5313, %v5387
        %v5396 = vmul.f32 %v5328, %v5388
        %v5397 = vmul.f32 %v5343, %v5389
        %v5398 = vmul.f32 %v5358, %v5390
        %v5399 = vadd.f32 %v5391, -1.135204
        %v5400 = vadd.f32 %v5392, -1.135204
        %v5401 = vadd.f32 %v5393, -1.135204
        %v5402 = vadd.f32 %v5394, -1.135204
        %v5403 = vadd.f32 %v5395, -1.135204
        %v5404 = vadd.f32 %v5396, -1.135204
        %v5405 = vadd.f32 %v5397, -1.135204
        %v5406 = vadd.f32 %v5398, -1.135204
        %v5407 = vmul.f32 %v5253, %v5399
        %v5408 = vmul.f32 %v5268, %v5400
        %v5409 = vmul.f32 %v5283, %v5401
        %v5410 = vmul.f32 %v5298, %v5402
        %v5411 = vmul.f32 %v5313, %v5403
        %v5412 = vmul.f32 %v5328, %v5404
        %v5413 = vmul.f32 %v5343, %v5405
        %v5414 = vmul.f32 %v5358, %v5406
        %v5415 = vadd.f32 %v5407, 0.27886808
        %v5416 = vadd.f32 %v5408, 0.27886808
        %v5417 = vadd.f32 %v5409, 0.27886808
        %v5418 = vadd.f32 %v5410, 0.27886808
        %v5419 = vadd.f32 %v5411, 0.27886808
        %v5420 = vadd.f32 %v5412, 0.27886808
        %v5421 = vadd.f32 %v5413, 0.27886808
        %v5422 = vadd.f32 %v5414, 0.27886808
        %v5423 = vmul.f32 %v5253, %v5415
        %v5424 = vmul.f32 %v5268, %v5416
        %v5425 = vmul.f32 %v5283, %v5417
        %v5426 = vmul.f32 %v5298, %v5418
        %v5427 = vmul.f32 %v5313, %v5419
        %v5428 = vmul.f32 %v5328, %v5420
        %v5429 = vmul.f32 %v5343, %v5421
        %v5430 = vmul.f32 %v5358, %v5422
        %v5431 = vadd.f32 %v5423, -0.18628806
        %v5432 = vadd.f32 %v5424, -0.18628806
        %v5433 = vadd.f32 %v5425, -0.18628806
        %v5434 = vadd.f32 %v5426, -0.18628806
        %v5435 = vadd.f32 %v5427, -0.18628806
        %v5436 = vadd.f32 %v5428, -0.18628806
        %v5437 = vadd.f32 %v5429, -0.18628806
        %v5438 = vadd.f32 %v5430, -0.18628806
        %v5439 = vmul.f32 %v5253, %v5431
        %v5440 = vmul.f32 %v5268, %v5432
        %v5441 = vmul.f32 %v5283, %v5433
        %v5442 = vmul.f32 %v5298, %v5434
        %v5443 = vmul.f32 %v5313, %v5435
        %v5444 = vmul.f32 %v5328, %v5436
        %v5445 = vmul.f32 %v5343, %v5437
        %v5446 = vmul.f32 %v5358, %v5438
        %v5447 = vadd.f32 %v5439, 0.09678418
        %v5448 = vadd.f32 %v5440, 0.09678418
        %v5449 = vadd.f32 %v5441, 0.09678418
        %v5450 = vadd.f32 %v5442, 0.09678418
        %v5451 = vadd.f32 %v5443, 0.09678418
        %v5452 = vadd.f32 %v5444, 0.09678418
        %v5453 = vadd.f32 %v5445, 0.09678418
        %v5454 = vadd.f32 %v5446, 0.09678418
        %v5455 = vmul.f32 %v5253, %v5447
        %v5456 = vmul.f32 %v5268, %v5448
        %v5457 = vmul.f32 %v5283, %v5449
        %v5458 = vmul.f32 %v5298, %v5450
        %v5459 = vmul.f32 %v5313, %v5451
        %v5460 = vmul.f32 %v5328, %v5452
        %v5461 = vmul.f32 %v5343, %v5453
        %v5462 = vmul.f32 %v5358, %v5454
        %v5463 = vadd.f32 %v5455, 0.37409195
        %v5464 = vadd.f32 %v5456, 0.37409195
        %v5465 = vadd.f32 %v5457, 0.37409195
        %v5466 = vadd.f32 %v5458, 0.37409195
        %v5467 = vadd.f32 %v5459, 0.37409195
        %v5468 = vadd.f32 %v5460, 0.37409195
        %v5469 = vadd.f32 %v5461, 0.37409195
        %v5470 = vadd.f32 %v5462, 0.37409195
        %v5471 = vmul.f32 %v5253, %v5463
        %v5472 = vmul.f32 %v5268, %v5464
        %v5473 = vmul.f32 %v5283, %v5465
        %v5474 = vmul.f32 %v5298, %v5466
        %v5475 = vmul.f32 %v5313, %v5467
        %v5476 = vmul.f32 %v5328, %v5468
        %v5477 = vmul.f32 %v5343, %v5469
        %v5478 = vmul.f32 %v5358, %v5470
        %v5479 = vadd.f32 %v5471, 1.0000237
        %v5480 = vadd.f32 %v5472, 1.0000237
        %v5481 = vadd.f32 %v5473, 1.0000237
        %v5482 = vadd.f32 %v5474, 1.0000237
        %v5483 = vadd.f32 %v5475, 1.0000237
        %v5484 = vadd.f32 %v5476, 1.0000237
        %v5485 = vadd.f32 %v5477, 1.0000237
        %v5486 = vadd.f32 %v5478, 1.0000237
        %v5487 = vmul.f32 %v5253, %v5479
        %v5488 = vmul.f32 %v5268, %v5480
        %v5489 = vmul.f32 %v5283, %v5481
        %v5490 = vmul.f32 %v5298, %v5482
        %v5491 = vmul.f32 %v5313, %v5483
        %v5492 = vmul.f32 %v5328, %v5484
        %v5493 = vmul.f32 %v5343, %v5485
        %v5494 = vmul.f32 %v5358, %v5486
        %v5495 = vadd.f32 %v5487, -1.2655122
        %v5496 = vadd.f32 %v5488, -1.2655122
        %v5497 = vadd.f32 %v5489, -1.2655122
        %v5498 = vadd.f32 %v5490, -1.2655122
        %v5499 = vadd.f32 %v5491, -1.2655122
        %v5500 = vadd.f32 %v5492, -1.2655122
        %v5501 = vadd.f32 %v5493, -1.2655122
        %v5502 = vadd.f32 %v5494, -1.2655122
        %v5503 = vsub.f32 0.0, %v5215
        %v5504 = vsub.f32 0.0, %v5216
        %v5505 = vsub.f32 0.0, %v5217
        %v5506 = vsub.f32 0.0, %v5218
        %v5507 = vsub.f32 0.0, %v5219
        %v5508 = vsub.f32 0.0, %v5220
        %v5509 = vsub.f32 0.0, %v5221
        %v5510 = vsub.f32 0.0, %v5222
        %v5511 = vmul.f32 %v5503, %v5215
        %v5512 = vmul.f32 %v5504, %v5216
        %v5513 = vmul.f32 %v5505, %v5217
        %v5514 = vmul.f32 %v5506, %v5218
        %v5515 = vmul.f32 %v5507, %v5219
        %v5516 = vmul.f32 %v5508, %v5220
        %v5517 = vmul.f32 %v5509, %v5221
        %v5518 = vmul.f32 %v5510, %v5222
        %v5519 = vadd.f32 %v5511, %v5495
        %v5520 = vadd.f32 %v5512, %v5496
        %v5521 = vadd.f32 %v5513, %v5497
        %v5522 = vadd.f32 %v5514, %v5498
        %v5523 = vadd.f32 %v5515, %v5499
        %v5524 = vadd.f32 %v5516, %v5500
        %v5525 = vadd.f32 %v5517, %v5501
        %v5526 = vadd.f32 %v5518, %v5502
        %v5527 = vmul.f32 %v5519, 1.442695
        %v5528 = vpow.pop %v5527
        %v5529 = vmul.f32 %v5520, 1.442695
        %v5530 = vpow.pop %v5529
        %v5531 = vmul.f32 %v5521, 1.442695
        %v5532 = vpow.pop %v5531
        %v5533 = vmul.f32 %v5522, 1.442695
        %v5534 = vpow.pop %v5533
        %v5535 = vmul.f32 %v5523, 1.442695
        %v5536 = vpow.pop %v5535
        %v5537 = vmul.f32 %v5524, 1.442695
        %v5538 = vpow.pop %v5537
        %v5539 = vmul.f32 %v5525, 1.442695
        %v5540 = vpow.pop %v5539
        %v5541 = vmul.f32 %v5526, 1.442695
        %v5542 = vpow.pop %v5541
        %v5543 = vmul.f32 %v5253, %v5528
        %v5544 = vmul.f32 %v5268, %v5530
        %v5545 = vmul.f32 %v5283, %v5532
        %v5546 = vmul.f32 %v5298, %v5534
        %v5547 = vmul.f32 %v5313, %v5536
        %v5548 = vmul.f32 %v5328, %v5538
        %v5549 = vmul.f32 %v5343, %v5540
        %v5550 = vmul.f32 %v5358, %v5542
        %vm5551 = vcmp.ge.f32.partialorder %v5207, 0.0
        %vm5552 = vcmp.ge.f32.partialorder %v5208, 0.0
        %vm5553 = vcmp.ge.f32.partialorder %v5209, 0.0
        %vm5554 = vcmp.ge.f32.partialorder %v5210, 0.0
        %vm5555 = vcmp.ge.f32.partialorder %v5211, 0.0
        %vm5556 = vcmp.ge.f32.partialorder %v5212, 0.0
        %vm5557 = vcmp.ge.f32.partialorder %v5213, 0.0
        %vm5558 = vcmp.ge.f32.partialorder %v5214, 0.0
        %v5559 = vsub.f32 2.0, %v5543
        %v5560 = vsub.f32 2.0, %v5544
        %v5561 = vsub.f32 2.0, %v5545
        %v5562 = vsub.f32 2.0, %v5546
        %v5563 = vsub.f32 2.0, %v5547
        %v5564 = vsub.f32 2.0, %v5548
        %v5565 = vsub.f32 2.0, %v5549
        %v5566 = vsub.f32 2.0, %v5550
        %v5567 = vsel %vm5551, %v5543, %v5559
        %v5568 = vsel %vm5552, %v5544, %v5560
        %v5569 = vsel %vm5553, %v5545, %v5561
        %v5570 = vsel %vm5554, %v5546, %v5562
        %v5571 = vsel %vm5555, %v5547, %v5563
        %v5572 = vsel %vm5556, %v5548, %v5564
        %v5573 = vsel %vm5557, %v5549, %v5565
        %v5574 = vsel %vm5558, %v5550, %v5566
        %v5575 = vsub.f32 1.0, %v5567
        %v5576 = vsub.f32 1.0, %v5568
        %v5577 = vsub.f32 1.0, %v5569
        %v5578 = vsub.f32 1.0, %v5570
        %v5579 = vsub.f32 1.0, %v5571
        %v5580 = vsub.f32 1.0, %v5572
        %v5581 = vsub.f32 1.0, %v5573
        %v5582 = vsub.f32 1.0, %v5574
        %v5583 = vadd.f32 %v5575, 1.0
        %v5584 = vadd.f32 %v5576, 1.0
        %v5585 = vadd.f32 %v5577, 1.0
        %v5586 = vadd.f32 %v5578, 1.0
        %v5587 = vadd.f32 %v5579, 1.0
        %v5588 = vadd.f32 %v5580, 1.0
        %v5589 = vadd.f32 %v5581, 1.0
        %v5590 = vadd.f32 %v5582, 1.0
        %v5591 = vmul.f32 %v5199, %v5583
        %v5592 = vmul.f32 %v5200, %v5584
        %v5593 = vmul.f32 %v5201, %v5585
        %v5594 = vmul.f32 %v5202, %v5586
        %v5595 = vmul.f32 %v5203, %v5587
        %v5596 = vmul.f32 %v5204, %v5588
        %v5597 = vmul.f32 %v5205, %v5589
        %v5598 = vmul.f32 %v5206, %v5590
        %5599 = vst.msk [vmem:[#allocation3] sm:$0xff] %vm256, %v5591
        %5600 = vst.msk [vmem:[#allocation3 + $0x8] sm:$0xff] %vm256, %v5592
        %5601 = vst.msk [vmem:[#allocation3 + $0x10] sm:$0xff] %vm256, %v5593
        %5602 = vst.msk [vmem:[#allocation3 + $0x18] sm:$0xff] %vm256, %v5594
        %5603 = vst.msk [vmem:[#allocation3 + $0x20] sm:$0xff] %vm256, %v5595
        %5604 = vst.msk [vmem:[#allocation3 + $0x28] sm:$0xff] %vm256, %v5596
        %5605 = vst.msk [vmem:[#allocation3 + $0x30] sm:$0xff] %vm256, %v5597
        %vm5606 = vcmask 253952
        %5607 = vst.msk [vmem:[#allocation3 + $0x38] sm:$0x1] %vm5606, %v5598
        %v5608 = vld [vmem:[#allocation3] ss:$2 sm:$0xff]
        %s5609 = scalar_lea.vmem [#allocation3], 16
        %v5610 = vld [vmem:[%s5609] ss:$2 sm:$0xff]
        %s5611 = scalar_lea.vmem [#allocation3], 32
        %v5612 = vld [vmem:[%s5611] ss:$2 sm:$0xff]
        %v5613 = vld [vmem:[%s4607] ss:$2 sm:$0xf]
        %v5614 = vld [vmem:[%s4617] ss:$2 sm:$0xff]
        %s5615 = scalar_lea.vmem [#allocation3], 17
        %v5616 = vld [vmem:[%s5615] ss:$2 sm:$0xff]
        %s5617 = scalar_lea.vmem [#allocation3], 33
        %v5618 = vld [vmem:[%s5617] ss:$2 sm:$0xff]
        %v5619 = vld [vmem:[%s4621] ss:$2 sm:$0xf]
        %v5620 = vmax.f32 %v5608, %v5614
        %v5621 = vmax.f32 %v5610, %v5616
        %v5622 = vmax.f32 %v5612, %v5618
        %v5623 = vmax.f32 %v5613, %v5619
        %5624 = vst.msk [vmem:[#allocation2] sm:$0xff] %vm256, 0.0
        %5625 = vst.msk [vmem:[#allocation2 + $0x8] sm:$0xff] %vm256, 0.0
        %5626 = vst.msk [vmem:[#allocation2 + $0x10] sm:$0xff] %vm256, 0.0
        %5627 = vst.msk [vmem:[#allocation2 + $0x18] sm:$0xff] %vm256, 0.0
        %5628 = vst.msk [vmem:[#allocation2 + $0x20] sm:$0xff] %vm256, 0.0
        %5629 = vst.msk [vmem:[#allocation2 + $0x28] sm:$0xff] %vm256, 0.0
        %5630 = vst.msk [vmem:[#allocation2 + $0x30] sm:$0xff] %vm256, 0.0
        %5631 = vst.msk [vmem:[#allocation2 + $0x38] sm:$0xff] %vm256, 0.0
        %5632 = vst.msk [vmem:[#allocation2 + $0x40] sm:$0xff] %vm256, 0.0
        %5633 = vst.msk [vmem:[#allocation2 + $0x48] sm:$0xff] %vm256, 0.0
        %5634 = vst.msk [vmem:[#allocation2 + $0x50] sm:$0xff] %vm256, 0.0
        %5635 = vst.msk [vmem:[#allocation2 + $0x58] sm:$0xff] %vm256, 0.0
        %5636 = vst.msk [vmem:[#allocation2 + $0x60] sm:$0xff] %vm256, 0.0
        %5637 = vst.msk [vmem:[#allocation2 + $0x68] sm:$0xff] %vm256, 0.0
        %5638 = vst.msk [vmem:[#allocation2 + $0x70] sm:$0xff] %vm256, 0.0
        %5639 = vst.msk [vmem:[#allocation2 + $0x78] sm:$0xff] %vm256, 0.0
        %5640 = vst.msk [vmem:[#allocation2 + $0x80] sm:$0xff] %vm256, 0.0
        %5641 = vst.msk [vmem:[#allocation2 + $0x88] sm:$0xff] %vm256, 0.0
        %5642 = vst.msk [vmem:[#allocation2 + $0x90] sm:$0xff] %vm256, 0.0
        %5643 = vst.msk [vmem:[#allocation2 + $0x98] sm:$0xff] %vm256, 0.0
        %5644 = vst.msk [vmem:[#allocation2 + $0xa0] sm:$0xff] %vm256, 0.0
        %5645 = vst.msk [vmem:[#allocation2 + $0xa8] sm:$0xff] %vm256, 0.0
        %5646 = vst.msk [vmem:[#allocation2 + $0xb0] sm:$0xff] %vm256, 0.0
        %5647 = vst.msk [vmem:[#allocation2 + $0x3] sm:$0xff] %vm256, %v5620
        %5648 = vst.msk [vmem:[#allocation2 + $0xb] sm:$0xff] %vm256, %v5621
        %5649 = vst.msk [vmem:[#allocation2 + $0x13] sm:$0xff] %vm256, %v5622
        %vm5650 = vcmask 257024
        %5651 = vst.msk [vmem:[#allocation2 + $0x1b] sm:$0xf] %vm5650, %v5623
        %v5652 = vld [vmem:[#allocation2] sm:$0xff]
        %v5653 = vld [vmem:[#allocation2 + $0x8] sm:$0xff]
        %v5654 = vld [vmem:[#allocation2 + $0x10] sm:$0xff]
        %v5655 = vld [vmem:[#allocation2 + $0x18] sm:$0x1f]
        %s5656 = scalar_lea.vmem [#allocation4], 736
        %v5657 = vld [vmem:[%s5656] sm:$0xff]
        %v5658 = vld [vmem:[%s5656 + $0x8] sm:$0xff]
        %v5659 = vld [vmem:[%s5656 + $0x10] sm:$0xff]
        %v5660 = vld [vmem:[%s5656 + $0x18] sm:$0xff]
        %v5661 = vld [vmem:[#allocation2 + $0x1] sm:$0xff]
        %v5662 = vld [vmem:[#allocation2 + $0x9] sm:$0xff]
        %v5663 = vld [vmem:[#allocation2 + $0x11] sm:$0xff]
        %v5664 = vld [vmem:[#allocation2 + $0x19] sm:$0x1f]
        %s5665 = scalar_lea.vmem [#allocation4], 768
        %v5666 = vld [vmem:[%s5665] sm:$0xff]
        %v5667 = vld [vmem:[%s5665 + $0x8] sm:$0xff]
        %v5668 = vld [vmem:[%s5665 + $0x10] sm:$0xff]
        %v5669 = vld [vmem:[%s5665 + $0x18] sm:$0xff]
        %v5671 = vsel %vm256, %v5661, 0
        %v5674 = vsel %vm256, %v5662, 0
        %v5677 = vsel %vm256, %v5663, 0
        %v5680 = vsel %vm256, %v5664, 0
        %5682 = vmatpush.msra.mxu0 0.0
        %5683 = vmatpush.msra.mxu0 0.0
        %5684 = vmatpush.msra.mxu0 0.0
        %5685 = vmatpush.msra.mxu0 0.0
        %5686 = vmatpush.msra.mxu0 0.0
        %5687 = vmatpush.msra.mxu0 0.0
        %5688 = vmatpush.msra.mxu0 0.0
        %5689 = vmatpush.msra.mxu0 0.0
        %5690 = vmatpush.msra.mxu0 0.0
        %5691 = vmatpush.msra.mxu0 0.0
        %5692 = vmatpush.msra.mxu0 0.0
        %5693 = vmatpush.msra.mxu0 0.0
        %5694 = vmatpush.msra.mxu0 %v5669
        %5695 = vmatpush.msra.mxu0 %v5668
        %5696 = vmatpush.msra.mxu0 %v5667
        %5697 = vmatpush.msra.mxu0 %v5666
        %5698 = vmatmul.f32.gmra.mxu0 %v5671
        %v5699 = vpop.f32.mrf.mxu0
        %v5700 = vadd.f32 0.0, %v5699
        %5701 = vmatmul.f32.gmra.mxu0 %v5674
        %v5702 = vpop.f32.mrf.mxu0
        %v5703 = vadd.f32 0.0, %v5702
        %5704 = vmatmul.f32.gmra.mxu0 %v5677
        %v5705 = vpop.f32.mrf.mxu0
        %v5706 = vadd.f32 0.0, %v5705
        %5707 = vmatmul.f32.gmra.mxu0 %v5680
        %v5708 = vpop.f32.mrf.mxu0
        %v5709 = vadd.f32 0.0, %v5708
        %5710 = vdwg.mxu0
        %v5712 = vsel %vm256, %v5652, 0
        %v5715 = vsel %vm256, %v5653, 0
        %v5718 = vsel %vm256, %v5654, 0
        %v5721 = vsel %vm256, %v5655, 0
        %5723 = vmatpush.msra.mxu0 0.0
        %5724 = vmatpush.msra.mxu0 0.0
        %5725 = vmatpush.msra.mxu0 0.0
        %5726 = vmatpush.msra.mxu0 0.0
        %5727 = vmatpush.msra.mxu0 0.0
        %5728 = vmatpush.msra.mxu0 0.0
        %5729 = vmatpush.msra.mxu0 0.0
        %5730 = vmatpush.msra.mxu0 0.0
        %5731 = vmatpush.msra.mxu0 0.0
        %5732 = vmatpush.msra.mxu0 0.0
        %5733 = vmatpush.msra.mxu0 0.0
        %5734 = vmatpush.msra.mxu0 0.0
        %5735 = vmatpush.msra.mxu0 %v5660
        %5736 = vmatpush.msra.mxu0 %v5659
        %5737 = vmatpush.msra.mxu0 %v5658
        %5738 = vmatpush.msra.mxu0 %v5657
        %5739 = vmatmul.f32.gmra.mxu0 %v5712
        %v5740 = vpop.f32.mrf.mxu0
        %v5741 = vadd.f32 %v5700, %v5740
        %5742 = vmatmul.f32.gmra.mxu0 %v5715
        %v5743 = vpop.f32.mrf.mxu0
        %v5744 = vadd.f32 %v5703, %v5743
        %5745 = vmatmul.f32.gmra.mxu0 %v5718
        %v5746 = vpop.f32.mrf.mxu0
        %v5747 = vadd.f32 %v5706, %v5746
        %5748 = vmatmul.f32.gmra.mxu0 %v5721
        %v5749 = vpop.f32.mrf.mxu0
        %v5750 = vadd.f32 %v5709, %v5749
        %5751 = vdwg.mxu0
        %v5752 = vld [vmem:[#allocation2 + $0x2] sm:$0xff]
        %v5753 = vld [vmem:[#allocation2 + $0xa] sm:$0xff]
        %v5754 = vld [vmem:[#allocation2 + $0x12] sm:$0xff]
        %v5755 = vld [vmem:[#allocation2 + $0x1a] sm:$0x1f]
        %s5756 = scalar_lea.vmem [#allocation4], 800
        %v5757 = vld [vmem:[%s5756] sm:$0xff]
        %v5758 = vld [vmem:[%s5756 + $0x8] sm:$0xff]
        %v5759 = vld [vmem:[%s5756 + $0x10] sm:$0xff]
        %v5760 = vld [vmem:[%s5756 + $0x18] sm:$0xff]
        %v5762 = vsel %vm256, %v5752, 0
        %v5765 = vsel %vm256, %v5753, 0
        %v5768 = vsel %vm256, %v5754, 0
        %v5771 = vsel %vm256, %v5755, 0
        %5773 = vmatpush.msra.mxu0 0.0
        %5774 = vmatpush.msra.mxu0 0.0
        %5775 = vmatpush.msra.mxu0 0.0
        %5776 = vmatpush.msra.mxu0 0.0
        %5777 = vmatpush.msra.mxu0 0.0
        %5778 = vmatpush.msra.mxu0 0.0
        %5779 = vmatpush.msra.mxu0 0.0
        %5780 = vmatpush.msra.mxu0 0.0
        %5781 = vmatpush.msra.mxu0 0.0
        %5782 = vmatpush.msra.mxu0 0.0
        %5783 = vmatpush.msra.mxu0 0.0
        %5784 = vmatpush.msra.mxu0 0.0
        %5785 = vmatpush.msra.mxu0 %v5760
        %5786 = vmatpush.msra.mxu0 %v5759
        %5787 = vmatpush.msra.mxu0 %v5758
        %5788 = vmatpush.msra.mxu0 %v5757
        %5789 = vmatmul.f32.gmra.mxu0 %v5762
        %v5790 = vpop.f32.mrf.mxu0
        %v5791 = vadd.f32 0.0, %v5790
        %5792 = vmatmul.f32.gmra.mxu0 %v5765
        %v5793 = vpop.f32.mrf.mxu0
        %v5794 = vadd.f32 0.0, %v5793
        %5795 = vmatmul.f32.gmra.mxu0 %v5768
        %v5796 = vpop.f32.mrf.mxu0
        %v5797 = vadd.f32 0.0, %v5796
        %5798 = vmatmul.f32.gmra.mxu0 %v5771
        %v5799 = vpop.f32.mrf.mxu0
        %v5800 = vadd.f32 0.0, %v5799
        %5801 = vdwg.mxu0
        %v5802 = vadd.f32 %v5741, %v5791
        %v5803 = vadd.f32 %v5744, %v5794
        %v5804 = vadd.f32 %v5747, %v5797
        %v5805 = vadd.f32 %v5750, %v5800
        %v5806 = vld [vmem:[#allocation2 + $0x3] sm:$0xff]
        %v5807 = vld [vmem:[#allocation2 + $0xb] sm:$0xff]
        %v5808 = vld [vmem:[#allocation2 + $0x13] sm:$0xff]
        %v5809 = vld [vmem:[#allocation2 + $0x1b] sm:$0x1f]
        %s5810 = scalar_lea.vmem [#allocation4], 832
        %v5811 = vld [vmem:[%s5810] sm:$0xff]
        %v5812 = vld [vmem:[%s5810 + $0x8] sm:$0xff]
        %v5813 = vld [vmem:[%s5810 + $0x10] sm:$0xff]
        %v5814 = vld [vmem:[%s5810 + $0x18] sm:$0xff]
        %v5816 = vsel %vm256, %v5806, 0
        %v5819 = vsel %vm256, %v5807, 0
        %v5822 = vsel %vm256, %v5808, 0
        %v5825 = vsel %vm256, %v5809, 0
        %5827 = vmatpush.msra.mxu0 0.0
        %5828 = vmatpush.msra.mxu0 0.0
        %5829 = vmatpush.msra.mxu0 0.0
        %5830 = vmatpush.msra.mxu0 0.0
        %5831 = vmatpush.msra.mxu0 0.0
        %5832 = vmatpush.msra.mxu0 0.0
        %5833 = vmatpush.msra.mxu0 0.0
        %5834 = vmatpush.msra.mxu0 0.0
        %5835 = vmatpush.msra.mxu0 0.0
        %5836 = vmatpush.msra.mxu0 0.0
        %5837 = vmatpush.msra.mxu0 0.0
        %5838 = vmatpush.msra.mxu0 0.0
        %5839 = vmatpush.msra.mxu0 %v5814
        %5840 = vmatpush.msra.mxu0 %v5813
        %5841 = vmatpush.msra.mxu0 %v5812
        %5842 = vmatpush.msra.mxu0 %v5811
        %5843 = vmatmul.f32.gmra.mxu0 %v5816
        %v5844 = vpop.f32.mrf.mxu0
        %v5845 = vadd.f32 0.0, %v5844
        %5846 = vmatmul.f32.gmra.mxu0 %v5819
        %v5847 = vpop.f32.mrf.mxu0
        %v5848 = vadd.f32 0.0, %v5847
        %5849 = vmatmul.f32.gmra.mxu0 %v5822
        %v5850 = vpop.f32.mrf.mxu0
        %v5851 = vadd.f32 0.0, %v5850
        %5852 = vmatmul.f32.gmra.mxu0 %v5825
        %v5853 = vpop.f32.mrf.mxu0
        %v5854 = vadd.f32 0.0, %v5853
        %5855 = vdwg.mxu0
        %v5856 = vadd.f32 %v5802, %v5845
        %v5857 = vadd.f32 %v5803, %v5848
        %v5858 = vadd.f32 %v5804, %v5851
        %v5859 = vadd.f32 %v5805, %v5854
        %v5860 = vld [vmem:[#allocation2 + $0x4] sm:$0xff]
        %v5861 = vld [vmem:[#allocation2 + $0xc] sm:$0xff]
        %v5862 = vld [vmem:[#allocation2 + $0x14] sm:$0xff]
        %v5863 = vld [vmem:[#allocation2 + $0x1c] sm:$0x1f]
        %s5864 = scalar_lea.vmem [#allocation4], 864
        %v5865 = vld [vmem:[%s5864] sm:$0xff]
        %v5866 = vld [vmem:[%s5864 + $0x8] sm:$0xff]
        %v5867 = vld [vmem:[%s5864 + $0x10] sm:$0xff]
        %v5868 = vld [vmem:[%s5864 + $0x18] sm:$0xff]
        %v5870 = vsel %vm256, %v5860, 0
        %v5873 = vsel %vm256, %v5861, 0
        %v5876 = vsel %vm256, %v5862, 0
        %v5879 = vsel %vm256, %v5863, 0
        %5881 = vmatpush.msra.mxu0 0.0
        %5882 = vmatpush.msra.mxu0 0.0
        %5883 = vmatpush.msra.mxu0 0.0
        %5884 = vmatpush.msra.mxu0 0.0
        %5885 = vmatpush.msra.mxu0 0.0
        %5886 = vmatpush.msra.mxu0 0.0
        %5887 = vmatpush.msra.mxu0 0.0
        %5888 = vmatpush.msra.mxu0 0.0
        %5889 = vmatpush.msra.mxu0 0.0
        %5890 = vmatpush.msra.mxu0 0.0
        %5891 = vmatpush.msra.mxu0 0.0
        %5892 = vmatpush.msra.mxu0 0.0
        %5893 = vmatpush.msra.mxu0 %v5868
        %5894 = vmatpush.msra.mxu0 %v5867
        %5895 = vmatpush.msra.mxu0 %v5866
        %5896 = vmatpush.msra.mxu0 %v5865
        %5897 = vmatmul.f32.gmra.mxu0 %v5870
        %v5898 = vpop.f32.mrf.mxu0
        %v5899 = vadd.f32 0.0, %v5898
        %5900 = vmatmul.f32.gmra.mxu0 %v5873
        %v5901 = vpop.f32.mrf.mxu0
        %v5902 = vadd.f32 0.0, %v5901
        %5903 = vmatmul.f32.gmra.mxu0 %v5876
        %v5904 = vpop.f32.mrf.mxu0
        %v5905 = vadd.f32 0.0, %v5904
        %5906 = vmatmul.f32.gmra.mxu0 %v5879
        %v5907 = vpop.f32.mrf.mxu0
        %v5908 = vadd.f32 0.0, %v5907
        %5909 = vdwg.mxu0
        %v5910 = vadd.f32 %v5856, %v5899
        %v5911 = vadd.f32 %v5857, %v5902
        %v5912 = vadd.f32 %v5858, %v5905
        %v5913 = vadd.f32 %v5859, %v5908
        %v5914 = vld [vmem:[#allocation2 + $0x5] sm:$0xff]
        %v5915 = vld [vmem:[#allocation2 + $0xd] sm:$0xff]
        %v5916 = vld [vmem:[#allocation2 + $0x15] sm:$0xff]
        %v5917 = vld [vmem:[#allocation2 + $0x1d] sm:$0x1f]
        %s5918 = scalar_lea.vmem [#allocation4], 896
        %v5919 = vld [vmem:[%s5918] sm:$0xff]
        %v5920 = vld [vmem:[%s5918 + $0x8] sm:$0xff]
        %v5921 = vld [vmem:[%s5918 + $0x10] sm:$0xff]
        %v5922 = vld [vmem:[%s5918 + $0x18] sm:$0xff]
        %v5924 = vsel %vm256, %v5914, 0
        %v5927 = vsel %vm256, %v5915, 0
        %v5930 = vsel %vm256, %v5916, 0
        %v5933 = vsel %vm256, %v5917, 0
        %5935 = vmatpush.msra.mxu0 0.0
        %5936 = vmatpush.msra.mxu0 0.0
        %5937 = vmatpush.msra.mxu0 0.0
        %5938 = vmatpush.msra.mxu0 0.0
        %5939 = vmatpush.msra.mxu0 0.0
        %5940 = vmatpush.msra.mxu0 0.0
        %5941 = vmatpush.msra.mxu0 0.0
        %5942 = vmatpush.msra.mxu0 0.0
        %5943 = vmatpush.msra.mxu0 0.0
        %5944 = vmatpush.msra.mxu0 0.0
        %5945 = vmatpush.msra.mxu0 0.0
        %5946 = vmatpush.msra.mxu0 0.0
        %5947 = vmatpush.msra.mxu0 %v5922
        %5948 = vmatpush.msra.mxu0 %v5921
        %5949 = vmatpush.msra.mxu0 %v5920
        %5950 = vmatpush.msra.mxu0 %v5919
        %5951 = vmatmul.f32.gmra.mxu0 %v5924
        %v5952 = vpop.f32.mrf.mxu0
        %v5953 = vadd.f32 0.0, %v5952
        %5954 = vmatmul.f32.gmra.mxu0 %v5927
        %v5955 = vpop.f32.mrf.mxu0
        %v5956 = vadd.f32 0.0, %v5955
        %5957 = vmatmul.f32.gmra.mxu0 %v5930
        %v5958 = vpop.f32.mrf.mxu0
        %v5959 = vadd.f32 0.0, %v5958
        %5960 = vmatmul.f32.gmra.mxu0 %v5933
        %v5961 = vpop.f32.mrf.mxu0
        %v5962 = vadd.f32 0.0, %v5961
        %5963 = vdwg.mxu0
        %v5964 = vadd.f32 %v5910, %v5953
        %v5965 = vadd.f32 %v5911, %v5956
        %v5966 = vadd.f32 %v5912, %v5959
        %v5967 = vadd.f32 %v5913, %v5962
        %v5968 = vld [vmem:[%s2 + $0x2] sm:$0x1]
        %v5969 = vperm.slane %v5968, 0
        %v5970 = vadd.f32 %v5964, %v5969
        %v5971 = vadd.f32 %v5965, %v5969
        %v5972 = vadd.f32 %v5966, %v5969
        %v5973 = vadd.f32 %v5967, %v5969
        %v5974 = vmul.f32 %v5970, 0.5
        %v5975 = vmul.f32 %v5971, 0.5
        %v5976 = vmul.f32 %v5972, 0.5
        %v5977 = vmul.f32 %v5973, 0.5
        %v5978 = vmul.f32 %v5970, 0.70710677
        %v5979 = vmul.f32 %v5971, 0.70710677
        %v5980 = vmul.f32 %v5972, 0.70710677
        %v5981 = vmul.f32 %v5973, 0.70710677
        %v5982 = vand.u32 2147483647, %v5978
        %v5983 = vand.u32 2147483647, %v5979
        %v5984 = vand.u32 2147483647, %v5980
        %v5985 = vand.u32 2147483647, %v5981
        %v5986 = vmul.f32 %v5982, 0.5
        %v5987 = vmul.f32 %v5983, 0.5
        %v5988 = vmul.f32 %v5984, 0.5
        %v5989 = vmul.f32 %v5985, 0.5
        %v5990 = vadd.f32 %v5986, 1.0
        %v5991 = vadd.f32 %v5987, 1.0
        %v5992 = vadd.f32 %v5988, 1.0
        %v5993 = vadd.f32 %v5989, 1.0
        %v5994 = vrcp.pop %v5990
        %v5995 = vmul.f32 %v5990, %v5994
        %v5996 = vsub.f32 1.0, %v5995
        %v5997 = vmul.f32 %v5994, %v5996
        %v5998 = vadd.f32 %v5994, %v5997
        %vm5999 = vweird.f32 %v5990
        %vm6000 = vweird.f32 %v5994
        %vm6001 = vmor %vm5999, %vm6000
        %v6002 = vsel %vm6001, %v5994, %v5998
        %v6003 = vand.u32 2147483647, %v5990
        %vm6004 = vcmp.eq.f32.partialorder %v6003, 8.507059e+37
        %v6005 = vand.u32 %v5990, 2147483648
        %v6006 = vor.u32 1.1754944e-38, %v6005
        %v6007 = vsel %vm6004, %v6006, %v6002
        %v6008 = vmul.f32 1.0, %v6007
        %v6009 = vrcp.pop %v5991
        %v6010 = vmul.f32 %v5991, %v6009
        %v6011 = vsub.f32 1.0, %v6010
        %v6012 = vmul.f32 %v6009, %v6011
        %v6013 = vadd.f32 %v6009, %v6012
        %vm6014 = vweird.f32 %v5991
        %vm6015 = vweird.f32 %v6009
        %vm6016 = vmor %vm6014, %vm6015
        %v6017 = vsel %vm6016, %v6009, %v6013
        %v6018 = vand.u32 2147483647, %v5991
        %vm6019 = vcmp.eq.f32.partialorder %v6018, 8.507059e+37
        %v6020 = vand.u32 %v5991, 2147483648
        %v6021 = vor.u32 1.1754944e-38, %v6020
        %v6022 = vsel %vm6019, %v6021, %v6017
        %v6023 = vmul.f32 1.0, %v6022
        %v6024 = vrcp.pop %v5992
        %v6025 = vmul.f32 %v5992, %v6024
        %v6026 = vsub.f32 1.0, %v6025
        %v6027 = vmul.f32 %v6024, %v6026
        %v6028 = vadd.f32 %v6024, %v6027
        %vm6029 = vweird.f32 %v5992
        %vm6030 = vweird.f32 %v6024
        %vm6031 = vmor %vm6029, %vm6030
        %v6032 = vsel %vm6031, %v6024, %v6028
        %v6033 = vand.u32 2147483647, %v5992
        %vm6034 = vcmp.eq.f32.partialorder %v6033, 8.507059e+37
        %v6035 = vand.u32 %v5992, 2147483648
        %v6036 = vor.u32 1.1754944e-38, %v6035
        %v6037 = vsel %vm6034, %v6036, %v6032
        %v6038 = vmul.f32 1.0, %v6037
        %v6039 = vrcp.pop %v5993
        %v6040 = vmul.f32 %v5993, %v6039
        %v6041 = vsub.f32 1.0, %v6040
        %v6042 = vmul.f32 %v6039, %v6041
        %v6043 = vadd.f32 %v6039, %v6042
        %vm6044 = vweird.f32 %v5993
        %vm6045 = vweird.f32 %v6039
        %vm6046 = vmor %vm6044, %vm6045
        %v6047 = vsel %vm6046, %v6039, %v6043
        %v6048 = vand.u32 2147483647, %v5993
        %vm6049 = vcmp.eq.f32.partialorder %v6048, 8.507059e+37
        %v6050 = vand.u32 %v5993, 2147483648
        %v6051 = vor.u32 1.1754944e-38, %v6050
        %v6052 = vsel %vm6049, %v6051, %v6047
        %v6053 = vmul.f32 1.0, %v6052
        %v6054 = vmul.f32 %v6008, 0.17087276
        %v6055 = vmul.f32 %v6023, 0.17087276
        %v6056 = vmul.f32 %v6038, 0.17087276
        %v6057 = vmul.f32 %v6053, 0.17087276
        %v6058 = vadd.f32 %v6054, -0.82215226
        %v6059 = vadd.f32 %v6055, -0.82215226
        %v6060 = vadd.f32 %v6056, -0.82215226
        %v6061 = vadd.f32 %v6057, -0.82215226
        %v6062 = vmul.f32 %v6008, %v6058
        %v6063 = vmul.f32 %v6023, %v6059
        %v6064 = vmul.f32 %v6038, %v6060
        %v6065 = vmul.f32 %v6053, %v6061
        %v6066 = vadd.f32 %v6062, 1.4885159
        %v6067 = vadd.f32 %v6063, 1.4885159
        %v6068 = vadd.f32 %v6064, 1.4885159
        %v6069 = vadd.f32 %v6065, 1.4885159
        %v6070 = vmul.f32 %v6008, %v6066
        %v6071 = vmul.f32 %v6023, %v6067
        %v6072 = vmul.f32 %v6038, %v6068
        %v6073 = vmul.f32 %v6053, %v6069
        %v6074 = vadd.f32 %v6070, -1.135204
        %v6075 = vadd.f32 %v6071, -1.135204
        %v6076 = vadd.f32 %v6072, -1.135204
        %v6077 = vadd.f32 %v6073, -1.135204
        %v6078 = vmul.f32 %v6008, %v6074
        %v6079 = vmul.f32 %v6023, %v6075
        %v6080 = vmul.f32 %v6038, %v6076
        %v6081 = vmul.f32 %v6053, %v6077
        %v6082 = vadd.f32 %v6078, 0.27886808
        %v6083 = vadd.f32 %v6079, 0.27886808
        %v6084 = vadd.f32 %v6080, 0.27886808
        %v6085 = vadd.f32 %v6081, 0.27886808
        %v6086 = vmul.f32 %v6008, %v6082
        %v6087 = vmul.f32 %v6023, %v6083
        %v6088 = vmul.f32 %v6038, %v6084
        %v6089 = vmul.f32 %v6053, %v6085
        %v6090 = vadd.f32 %v6086, -0.18628806
        %v6091 = vadd.f32 %v6087, -0.18628806
        %v6092 = vadd.f32 %v6088, -0.18628806
        %v6093 = vadd.f32 %v6089, -0.18628806
        %v6094 = vmul.f32 %v6008, %v6090
        %v6095 = vmul.f32 %v6023, %v6091
        %v6096 = vmul.f32 %v6038, %v6092
        %v6097 = vmul.f32 %v6053, %v6093
        %v6098 = vadd.f32 %v6094, 0.09678418
        %v6099 = vadd.f32 %v6095, 0.09678418
        %v6100 = vadd.f32 %v6096, 0.09678418
        %v6101 = vadd.f32 %v6097, 0.09678418
        %v6102 = vmul.f32 %v6008, %v6098
        %v6103 = vmul.f32 %v6023, %v6099
        %v6104 = vmul.f32 %v6038, %v6100
        %v6105 = vmul.f32 %v6053, %v6101
        %v6106 = vadd.f32 %v6102, 0.37409195
        %v6107 = vadd.f32 %v6103, 0.37409195
        %v6108 = vadd.f32 %v6104, 0.37409195
        %v6109 = vadd.f32 %v6105, 0.37409195
        %v6110 = vmul.f32 %v6008, %v6106
        %v6111 = vmul.f32 %v6023, %v6107
        %v6112 = vmul.f32 %v6038, %v6108
        %v6113 = vmul.f32 %v6053, %v6109
        %v6114 = vadd.f32 %v6110, 1.0000237
        %v6115 = vadd.f32 %v6111, 1.0000237
        %v6116 = vadd.f32 %v6112, 1.0000237
        %v6117 = vadd.f32 %v6113, 1.0000237
        %v6118 = vmul.f32 %v6008, %v6114
        %v6119 = vmul.f32 %v6023, %v6115
        %v6120 = vmul.f32 %v6038, %v6116
        %v6121 = vmul.f32 %v6053, %v6117
        %v6122 = vadd.f32 %v6118, -1.2655122
        %v6123 = vadd.f32 %v6119, -1.2655122
        %v6124 = vadd.f32 %v6120, -1.2655122
        %v6125 = vadd.f32 %v6121, -1.2655122
        %v6126 = vsub.f32 0.0, %v5982
        %v6127 = vsub.f32 0.0, %v5983
        %v6128 = vsub.f32 0.0, %v5984
        %v6129 = vsub.f32 0.0, %v5985
        %v6130 = vmul.f32 %v6126, %v5982
        %v6131 = vmul.f32 %v6127, %v5983
        %v6132 = vmul.f32 %v6128, %v5984
        %v6133 = vmul.f32 %v6129, %v5985
        %v6134 = vadd.f32 %v6130, %v6122
        %v6135 = vadd.f32 %v6131, %v6123
        %v6136 = vadd.f32 %v6132, %v6124
        %v6137 = vadd.f32 %v6133, %v6125
        %v6138 = vmul.f32 %v6134, 1.442695
        %v6139 = vpow.pop %v6138
        %v6140 = vmul.f32 %v6135, 1.442695
        %v6141 = vpow.pop %v6140
        %v6142 = vmul.f32 %v6136, 1.442695
        %v6143 = vpow.pop %v6142
        %v6144 = vmul.f32 %v6137, 1.442695
        %v6145 = vpow.pop %v6144
        %v6146 = vmul.f32 %v6008, %v6139
        %v6147 = vmul.f32 %v6023, %v6141
        %v6148 = vmul.f32 %v6038, %v6143
        %v6149 = vmul.f32 %v6053, %v6145
        %vm6150 = vcmp.ge.f32.partialorder %v5978, 0.0
        %vm6151 = vcmp.ge.f32.partialorder %v5979, 0.0
        %vm6152 = vcmp.ge.f32.partialorder %v5980, 0.0
        %vm6153 = vcmp.ge.f32.partialorder %v5981, 0.0
        %v6154 = vsub.f32 2.0, %v6146
        %v6155 = vsub.f32 2.0, %v6147
        %v6156 = vsub.f32 2.0, %v6148
        %v6157 = vsub.f32 2.0, %v6149
        %v6158 = vsel %vm6150, %v6146, %v6154
        %v6159 = vsel %vm6151, %v6147, %v6155
        %v6160 = vsel %vm6152, %v6148, %v6156
        %v6161 = vsel %vm6153, %v6149, %v6157
        %v6162 = vsub.f32 1.0, %v6158
        %v6163 = vsub.f32 1.0, %v6159
        %v6164 = vsub.f32 1.0, %v6160
        %v6165 = vsub.f32 1.0, %v6161
        %v6166 = vadd.f32 %v6162, 1.0
        %v6167 = vadd.f32 %v6163, 1.0
        %v6168 = vadd.f32 %v6164, 1.0
        %v6169 = vadd.f32 %v6165, 1.0
        %v6170 = vmul.f32 %v5974, %v6166
        %v6171 = vmul.f32 %v5975, %v6167
        %v6172 = vmul.f32 %v5976, %v6168
        %v6173 = vmul.f32 %v5977, %v6169
        %6174 = vst.msk [vmem:[#allocation3] sm:$0xff] %vm256, %v6170
        %6175 = vst.msk [vmem:[#allocation3 + $0x8] sm:$0xff] %vm256, %v6171
        %6176 = vst.msk [vmem:[#allocation3 + $0x10] sm:$0xff] %vm256, %v6172
        %vm6177 = vcmask 258048
        %6178 = vst.msk [vmem:[#allocation3 + $0x18] sm:$0x1f] %vm6177, %v6173
        %v6179 = vld [vmem:[#allocation3] ss:$2 sm:$0xff]
        %v6180 = vld [vmem:[%s5609] ss:$2 sm:$0x3f]
        %v6181 = vld [vmem:[%s4617] ss:$2 sm:$0xff]
        %v6182 = vld [vmem:[%s5615] ss:$2 sm:$0x3f]
        %v6183 = vmax.f32 %v6179, %v6181
        %v6184 = vmax.f32 %v6180, %v6182
        %6185 = vst.msk [vmem:[#allocation3] sm:$0xff] %vm256, %v6183
        %vm6186 = vcmask 259072
        %6187 = vst.msk [vmem:[#allocation3 + $0x8] sm:$0x3f] %vm6186, %v6184
        %v6188 = vld [vmem:[#allocation3] sm:$0x1]
        %v6189 = vld [vmem:[#allocation7] sm:$0xff]
        %v6190 = vld [vmem:[#allocation7 + $0x8] sm:$0xff]
        %v6191 = vld [vmem:[#allocation7 + $0x10] sm:$0xff]
        %v6192 = vld [vmem:[#allocation7 + $0x18] sm:$0xff]
        %v6193 = vld [vmem:[#allocation3 + $0x1] sm:$0x1]
        %s6194 = scalar_lea.vmem [#allocation7], 32
        %v6195 = vld [vmem:[%s6194] sm:$0xff]
        %v6196 = vld [vmem:[%s6194 + $0x8] sm:$0xff]
        %v6197 = vld [vmem:[%s6194 + $0x10] sm:$0xff]
        %v6198 = vld [vmem:[%s6194 + $0x18] sm:$0xff]
        %v6200 = vsel %vm256, %v6193, 0
        %6202 = vmatpush.msra.mxu0 0.0
        %6203 = vmatpush.msra.mxu0 0.0
        %6204 = vmatpush.msra.mxu0 0.0
        %6205 = vmatpush.msra.mxu0 0.0
        %6206 = vmatpush.msra.mxu0 0.0
        %6207 = vmatpush.msra.mxu0 0.0
        %6208 = vmatpush.msra.mxu0 0.0
        %6209 = vmatpush.msra.mxu0 0.0
        %6210 = vmatpush.msra.mxu0 0.0
        %6211 = vmatpush.msra.mxu0 0.0
        %6212 = vmatpush.msra.mxu0 0.0
        %6213 = vmatpush.msra.mxu0 0.0
        %6214 = vmatpush.msra.mxu0 %v6198
        %6215 = vmatpush.msra.mxu0 %v6197
        %6216 = vmatpush.msra.mxu0 %v6196
        %6217 = vmatpush.msra.mxu0 %v6195
        %6218 = vmatmul.f32.gmra.mxu0 %v6200
        %v6219 = vpop.f32.mrf.mxu0
        %v6220 = vadd.f32 0.0, %v6219
        %6221 = vdwg.mxu0
        %v6223 = vsel %vm256, %v6188, 0
        %6225 = vmatpush.msra.mxu0 0.0
        %6226 = vmatpush.msra.mxu0 0.0
        %6227 = vmatpush.msra.mxu0 0.0
        %6228 = vmatpush.msra.mxu0 0.0
        %6229 = vmatpush.msra.mxu0 0.0
        %6230 = vmatpush.msra.mxu0 0.0
        %6231 = vmatpush.msra.mxu0 0.0
        %6232 = vmatpush.msra.mxu0 0.0
        %6233 = vmatpush.msra.mxu0 0.0
        %6234 = vmatpush.msra.mxu0 0.0
        %6235 = vmatpush.msra.mxu0 0.0
        %6236 = vmatpush.msra.mxu0 0.0
        %6237 = vmatpush.msra.mxu0 %v6192
        %6238 = vmatpush.msra.mxu0 %v6191
        %6239 = vmatpush.msra.mxu0 %v6190
        %6240 = vmatpush.msra.mxu0 %v6189
        %6241 = vmatmul.f32.gmra.mxu0 %v6223
        %v6242 = vpop.f32.mrf.mxu0
        %v6243 = vadd.f32 %v6220, %v6242
        %6244 = vdwg.mxu0
        %v6245 = vld [vmem:[#allocation3 + $0x2] sm:$0x1]
        %s6246 = scalar_lea.vmem [#allocation7], 64
        %v6247 = vld [vmem:[%s6246] sm:$0xff]
        %v6248 = vld [vmem:[%s6246 + $0x8] sm:$0xff]
        %v6249 = vld [vmem:[%s6246 + $0x10] sm:$0xff]
        %v6250 = vld [vmem:[%s6246 + $0x18] sm:$0xff]
        %v6252 = vsel %vm256, %v6245, 0
        %6254 = vmatpush.msra.mxu0 0.0
        %6255 = vmatpush.msra.mxu0 0.0
        %6256 = vmatpush.msra.mxu0 0.0
        %6257 = vmatpush.msra.mxu0 0.0
        %6258 = vmatpush.msra.mxu0 0.0
        %6259 = vmatpush.msra.mxu0 0.0
        %6260 = vmatpush.msra.mxu0 0.0
        %6261 = vmatpush.msra.mxu0 0.0
        %6262 = vmatpush.msra.mxu0 0.0
        %6263 = vmatpush.msra.mxu0 0.0
        %6264 = vmatpush.msra.mxu0 0.0
        %6265 = vmatpush.msra.mxu0 0.0
        %6266 = vmatpush.msra.mxu0 %v6250
        %6267 = vmatpush.msra.mxu0 %v6249
        %6268 = vmatpush.msra.mxu0 %v6248
        %6269 = vmatpush.msra.mxu0 %v6247
        %6270 = vmatmul.f32.gmra.mxu0 %v6252
        %v6271 = vpop.f32.mrf.mxu0
        %v6272 = vadd.f32 0.0, %v6271
        %6273 = vdwg.mxu0
        %v6274 = vadd.f32 %v6243, %v6272
        %v6275 = vld [vmem:[#allocation3 + $0x3] sm:$0x1]
        %s6276 = scalar_lea.vmem [#allocation7], 96
        %v6277 = vld [vmem:[%s6276] sm:$0xff]
        %v6278 = vld [vmem:[%s6276 + $0x8] sm:$0xff]
        %v6279 = vld [vmem:[%s6276 + $0x10] sm:$0xff]
        %v6280 = vld [vmem:[%s6276 + $0x18] sm:$0xff]
        %v6282 = vsel %vm256, %v6275, 0
        %6284 = vmatpush.msra.mxu0 0.0
        %6285 = vmatpush.msra.mxu0 0.0
        %6286 = vmatpush.msra.mxu0 0.0
        %6287 = vmatpush.msra.mxu0 0.0
        %6288 = vmatpush.msra.mxu0 0.0
        %6289 = vmatpush.msra.mxu0 0.0
        %6290 = vmatpush.msra.mxu0 0.0
        %6291 = vmatpush.msra.mxu0 0.0
        %6292 = vmatpush.msra.mxu0 0.0
        %6293 = vmatpush.msra.mxu0 0.0
        %6294 = vmatpush.msra.mxu0 0.0
        %6295 = vmatpush.msra.mxu0 0.0
        %6296 = vmatpush.msra.mxu0 %v6280
        %6297 = vmatpush.msra.mxu0 %v6279
        %6298 = vmatpush.msra.mxu0 %v6278
        %6299 = vmatpush.msra.mxu0 %v6277
        %6300 = vmatmul.f32.gmra.mxu0 %v6282
        %v6301 = vpop.f32.mrf.mxu0
        %v6302 = vadd.f32 0.0, %v6301
        %6303 = vdwg.mxu0
        %v6304 = vadd.f32 %v6274, %v6302
        %v6305 = vld [vmem:[#allocation3 + $0x4] sm:$0x1]
        %s6306 = scalar_lea.vmem [#allocation7], 128
        %v6307 = vld [vmem:[%s6306] sm:$0xff]
        %v6308 = vld [vmem:[%s6306 + $0x8] sm:$0xff]
        %v6309 = vld [vmem:[%s6306 + $0x10] sm:$0xff]
        %v6310 = vld [vmem:[%s6306 + $0x18] sm:$0xff]
        %v6312 = vsel %vm256, %v6305, 0
        %6314 = vmatpush.msra.mxu0 0.0
        %6315 = vmatpush.msra.mxu0 0.0
        %6316 = vmatpush.msra.mxu0 0.0
        %6317 = vmatpush.msra.mxu0 0.0
        %6318 = vmatpush.msra.mxu0 0.0
        %6319 = vmatpush.msra.mxu0 0.0
        %6320 = vmatpush.msra.mxu0 0.0
        %6321 = vmatpush.msra.mxu0 0.0
        %6322 = vmatpush.msra.mxu0 0.0
        %6323 = vmatpush.msra.mxu0 0.0
        %6324 = vmatpush.msra.mxu0 0.0
        %6325 = vmatpush.msra.mxu0 0.0
        %6326 = vmatpush.msra.mxu0 %v6310
        %6327 = vmatpush.msra.mxu0 %v6309
        %6328 = vmatpush.msra.mxu0 %v6308
        %6329 = vmatpush.msra.mxu0 %v6307
        %6330 = vmatmul.f32.gmra.mxu0 %v6312
        %v6331 = vpop.f32.mrf.mxu0
        %v6332 = vadd.f32 0.0, %v6331
        %6333 = vdwg.mxu0
        %v6334 = vadd.f32 %v6304, %v6332
        %v6335 = vld [vmem:[#allocation3 + $0x5] sm:$0x1]
        %s6336 = scalar_lea.vmem [#allocation7], 160
        %v6337 = vld [vmem:[%s6336] sm:$0xff]
        %v6338 = vld [vmem:[%s6336 + $0x8] sm:$0xff]
        %v6339 = vld [vmem:[%s6336 + $0x10] sm:$0xff]
        %v6340 = vld [vmem:[%s6336 + $0x18] sm:$0xff]
        %v6342 = vsel %vm256, %v6335, 0
        %6344 = vmatpush.msra.mxu0 0.0
        %6345 = vmatpush.msra.mxu0 0.0
        %6346 = vmatpush.msra.mxu0 0.0
        %6347 = vmatpush.msra.mxu0 0.0
        %6348 = vmatpush.msra.mxu0 0.0
        %6349 = vmatpush.msra.mxu0 0.0
        %6350 = vmatpush.msra.mxu0 0.0
        %6351 = vmatpush.msra.mxu0 0.0
        %6352 = vmatpush.msra.mxu0 0.0
        %6353 = vmatpush.msra.mxu0 0.0
        %6354 = vmatpush.msra.mxu0 0.0
        %6355 = vmatpush.msra.mxu0 0.0
        %6356 = vmatpush.msra.mxu0 %v6340
        %6357 = vmatpush.msra.mxu0 %v6339
        %6358 = vmatpush.msra.mxu0 %v6338
        %6359 = vmatpush.msra.mxu0 %v6337
        %6360 = vmatmul.f32.gmra.mxu0 %v6342
        %v6361 = vpop.f32.mrf.mxu0
        %v6362 = vadd.f32 0.0, %v6361
        %6363 = vdwg.mxu0
        %v6364 = vadd.f32 %v6334, %v6362
        %v6365 = vld [vmem:[#allocation3 + $0x6] sm:$0x1]
        %s6366 = scalar_lea.vmem [#allocation7], 192
        %v6367 = vld [vmem:[%s6366] sm:$0xff]
        %v6368 = vld [vmem:[%s6366 + $0x8] sm:$0xff]
        %v6369 = vld [vmem:[%s6366 + $0x10] sm:$0xff]
        %v6370 = vld [vmem:[%s6366 + $0x18] sm:$0xff]
        %v6372 = vsel %vm256, %v6365, 0
        %6374 = vmatpush.msra.mxu0 0.0
        %6375 = vmatpush.msra.mxu0 0.0
        %6376 = vmatpush.msra.mxu0 0.0
        %6377 = vmatpush.msra.mxu0 0.0
        %6378 = vmatpush.msra.mxu0 0.0
        %6379 = vmatpush.msra.mxu0 0.0
        %6380 = vmatpush.msra.mxu0 0.0
        %6381 = vmatpush.msra.mxu0 0.0
        %6382 = vmatpush.msra.mxu0 0.0
        %6383 = vmatpush.msra.mxu0 0.0
        %6384 = vmatpush.msra.mxu0 0.0
        %6385 = vmatpush.msra.mxu0 0.0
        %6386 = vmatpush.msra.mxu0 %v6370
        %6387 = vmatpush.msra.mxu0 %v6369
        %6388 = vmatpush.msra.mxu0 %v6368
        %6389 = vmatpush.msra.mxu0 %v6367
        %6390 = vmatmul.f32.gmra.mxu0 %v6372
        %v6391 = vpop.f32.mrf.mxu0
        %v6392 = vadd.f32 0.0, %v6391
        %6393 = vdwg.mxu0
        %v6394 = vadd.f32 %v6364, %v6392
        %v6395 = vld [vmem:[#allocation3 + $0x7] sm:$0x1]
        %s6396 = scalar_lea.vmem [#allocation7], 224
        %v6397 = vld [vmem:[%s6396] sm:$0xff]
        %v6398 = vld [vmem:[%s6396 + $0x8] sm:$0xff]
        %v6399 = vld [vmem:[%s6396 + $0x10] sm:$0xff]
        %v6400 = vld [vmem:[%s6396 + $0x18] sm:$0xff]
        %v6402 = vsel %vm256, %v6395, 0
        %6404 = vmatpush.msra.mxu0 0.0
        %6405 = vmatpush.msra.mxu0 0.0
        %6406 = vmatpush.msra.mxu0 0.0
        %6407 = vmatpush.msra.mxu0 0.0
        %6408 = vmatpush.msra.mxu0 0.0
        %6409 = vmatpush.msra.mxu0 0.0
        %6410 = vmatpush.msra.mxu0 0.0
        %6411 = vmatpush.msra.mxu0 0.0
        %6412 = vmatpush.msra.mxu0 0.0
        %6413 = vmatpush.msra.mxu0 0.0
        %6414 = vmatpush.msra.mxu0 0.0
        %6415 = vmatpush.msra.mxu0 0.0
        %6416 = vmatpush.msra.mxu0 %v6400
        %6417 = vmatpush.msra.mxu0 %v6399
        %6418 = vmatpush.msra.mxu0 %v6398
        %6419 = vmatpush.msra.mxu0 %v6397
        %6420 = vmatmul.f32.gmra.mxu0 %v6402
        %v6421 = vpop.f32.mrf.mxu0
        %v6422 = vadd.f32 0.0, %v6421
        %6423 = vdwg.mxu0
        %v6424 = vadd.f32 %v6394, %v6422
        %v6425 = vld [vmem:[#allocation3 + $0x8] sm:$0x1]
        %s6426 = scalar_lea.vmem [#allocation7], 256
        %v6427 = vld [vmem:[%s6426] sm:$0xff]
        %v6428 = vld [vmem:[%s6426 + $0x8] sm:$0xff]
        %v6429 = vld [vmem:[%s6426 + $0x10] sm:$0xff]
        %v6430 = vld [vmem:[%s6426 + $0x18] sm:$0xff]
        %v6432 = vsel %vm256, %v6425, 0
        %6434 = vmatpush.msra.mxu0 0.0
        %6435 = vmatpush.msra.mxu0 0.0
        %6436 = vmatpush.msra.mxu0 0.0
        %6437 = vmatpush.msra.mxu0 0.0
        %6438 = vmatpush.msra.mxu0 0.0
        %6439 = vmatpush.msra.mxu0 0.0
        %6440 = vmatpush.msra.mxu0 0.0
        %6441 = vmatpush.msra.mxu0 0.0
        %6442 = vmatpush.msra.mxu0 0.0
        %6443 = vmatpush.msra.mxu0 0.0
        %6444 = vmatpush.msra.mxu0 0.0
        %6445 = vmatpush.msra.mxu0 0.0
        %6446 = vmatpush.msra.mxu0 %v6430
        %6447 = vmatpush.msra.mxu0 %v6429
        %6448 = vmatpush.msra.mxu0 %v6428
        %6449 = vmatpush.msra.mxu0 %v6427
        %6450 = vmatmul.f32.gmra.mxu0 %v6432
        %v6451 = vpop.f32.mrf.mxu0
        %v6452 = vadd.f32 0.0, %v6451
        %6453 = vdwg.mxu0
        %v6454 = vadd.f32 %v6424, %v6452
        %v6455 = vld [vmem:[#allocation3 + $0x9] sm:$0x1]
        %s6456 = scalar_lea.vmem [#allocation7], 288
        %v6457 = vld [vmem:[%s6456] sm:$0xff]
        %v6458 = vld [vmem:[%s6456 + $0x8] sm:$0xff]
        %v6459 = vld [vmem:[%s6456 + $0x10] sm:$0xff]
        %v6460 = vld [vmem:[%s6456 + $0x18] sm:$0xff]
        %v6462 = vsel %vm256, %v6455, 0
        %6464 = vmatpush.msra.mxu0 0.0
        %6465 = vmatpush.msra.mxu0 0.0
        %6466 = vmatpush.msra.mxu0 0.0
        %6467 = vmatpush.msra.mxu0 0.0
        %6468 = vmatpush.msra.mxu0 0.0
        %6469 = vmatpush.msra.mxu0 0.0
        %6470 = vmatpush.msra.mxu0 0.0
        %6471 = vmatpush.msra.mxu0 0.0
        %6472 = vmatpush.msra.mxu0 0.0
        %6473 = vmatpush.msra.mxu0 0.0
        %6474 = vmatpush.msra.mxu0 0.0
        %6475 = vmatpush.msra.mxu0 0.0
        %6476 = vmatpush.msra.mxu0 %v6460
        %6477 = vmatpush.msra.mxu0 %v6459
        %6478 = vmatpush.msra.mxu0 %v6458
        %6479 = vmatpush.msra.mxu0 %v6457
        %6480 = vmatmul.f32.gmra.mxu0 %v6462
        %v6481 = vpop.f32.mrf.mxu0
        %v6482 = vadd.f32 0.0, %v6481
        %6483 = vdwg.mxu0
        %v6484 = vadd.f32 %v6454, %v6482
        %v6485 = vld [vmem:[#allocation3 + $0xa] sm:$0x1]
        %s6486 = scalar_lea.vmem [#allocation7], 320
        %v6487 = vld [vmem:[%s6486] sm:$0xff]
        %v6488 = vld [vmem:[%s6486 + $0x8] sm:$0xff]
        %v6489 = vld [vmem:[%s6486 + $0x10] sm:$0xff]
        %v6490 = vld [vmem:[%s6486 + $0x18] sm:$0xff]
        %v6492 = vsel %vm256, %v6485, 0
        %6494 = vmatpush.msra.mxu0 0.0
        %6495 = vmatpush.msra.mxu0 0.0
        %6496 = vmatpush.msra.mxu0 0.0
        %6497 = vmatpush.msra.mxu0 0.0
        %6498 = vmatpush.msra.mxu0 0.0
        %6499 = vmatpush.msra.mxu0 0.0
        %6500 = vmatpush.msra.mxu0 0.0
        %6501 = vmatpush.msra.mxu0 0.0
        %6502 = vmatpush.msra.mxu0 0.0
        %6503 = vmatpush.msra.mxu0 0.0
        %6504 = vmatpush.msra.mxu0 0.0
        %6505 = vmatpush.msra.mxu0 0.0
        %6506 = vmatpush.msra.mxu0 %v6490
        %6507 = vmatpush.msra.mxu0 %v6489
        %6508 = vmatpush.msra.mxu0 %v6488
        %6509 = vmatpush.msra.mxu0 %v6487
        %6510 = vmatmul.f32.gmra.mxu0 %v6492
        %v6511 = vpop.f32.mrf.mxu0
        %v6512 = vadd.f32 0.0, %v6511
        %6513 = vdwg.mxu0
        %v6514 = vadd.f32 %v6484, %v6512
        %v6515 = vld [vmem:[#allocation3 + $0xb] sm:$0x1]
        %s6516 = scalar_lea.vmem [#allocation7], 352
        %v6517 = vld [vmem:[%s6516] sm:$0xff]
        %v6518 = vld [vmem:[%s6516 + $0x8] sm:$0xff]
        %v6519 = vld [vmem:[%s6516 + $0x10] sm:$0xff]
        %v6520 = vld [vmem:[%s6516 + $0x18] sm:$0xff]
        %v6522 = vsel %vm256, %v6515, 0
        %6524 = vmatpush.msra.mxu0 0.0
        %6525 = vmatpush.msra.mxu0 0.0
        %6526 = vmatpush.msra.mxu0 0.0
        %6527 = vmatpush.msra.mxu0 0.0
        %6528 = vmatpush.msra.mxu0 0.0
        %6529 = vmatpush.msra.mxu0 0.0
        %6530 = vmatpush.msra.mxu0 0.0
        %6531 = vmatpush.msra.mxu0 0.0
        %6532 = vmatpush.msra.mxu0 0.0
        %6533 = vmatpush.msra.mxu0 0.0
        %6534 = vmatpush.msra.mxu0 0.0
        %6535 = vmatpush.msra.mxu0 0.0
        %6536 = vmatpush.msra.mxu0 %v6520
        %6537 = vmatpush.msra.mxu0 %v6519
        %6538 = vmatpush.msra.mxu0 %v6518
        %6539 = vmatpush.msra.mxu0 %v6517
        %6540 = vmatmul.f32.gmra.mxu0 %v6522
        %v6541 = vpop.f32.mrf.mxu0
        %v6542 = vadd.f32 0.0, %v6541
        %6543 = vdwg.mxu0
        %v6544 = vadd.f32 %v6514, %v6542
        %v6545 = vld [vmem:[#allocation3 + $0xc] sm:$0x1]
        %s6546 = scalar_lea.vmem [#allocation7], 384
        %v6547 = vld [vmem:[%s6546] sm:$0xff]
        %v6548 = vld [vmem:[%s6546 + $0x8] sm:$0xff]
        %v6549 = vld [vmem:[%s6546 + $0x10] sm:$0xff]
        %v6550 = vld [vmem:[%s6546 + $0x18] sm:$0xff]
        %v6552 = vsel %vm256, %v6545, 0
        %6554 = vmatpush.msra.mxu0 0.0
        %6555 = vmatpush.msra.mxu0 0.0
        %6556 = vmatpush.msra.mxu0 0.0
        %6557 = vmatpush.msra.mxu0 0.0
        %6558 = vmatpush.msra.mxu0 0.0
        %6559 = vmatpush.msra.mxu0 0.0
        %6560 = vmatpush.msra.mxu0 0.0
        %6561 = vmatpush.msra.mxu0 0.0
        %6562 = vmatpush.msra.mxu0 0.0
        %6563 = vmatpush.msra.mxu0 0.0
        %6564 = vmatpush.msra.mxu0 0.0
        %6565 = vmatpush.msra.mxu0 0.0
        %6566 = vmatpush.msra.mxu0 %v6550
        %6567 = vmatpush.msra.mxu0 %v6549
        %6568 = vmatpush.msra.mxu0 %v6548
        %6569 = vmatpush.msra.mxu0 %v6547
        %6570 = vmatmul.f32.gmra.mxu0 %v6552
        %v6571 = vpop.f32.mrf.mxu0
        %v6572 = vadd.f32 0.0, %v6571
        %6573 = vdwg.mxu0
        %v6574 = vadd.f32 %v6544, %v6572
        %v6575 = vld [vmem:[#allocation3 + $0xd] sm:$0x1]
        %s6576 = scalar_lea.vmem [#allocation7], 416
        %v6577 = vld [vmem:[%s6576] sm:$0xff]
        %v6578 = vld [vmem:[%s6576 + $0x8] sm:$0xff]
        %v6579 = vld [vmem:[%s6576 + $0x10] sm:$0xff]
        %v6580 = vld [vmem:[%s6576 + $0x18] sm:$0xff]
        %v6582 = vsel %vm256, %v6575, 0
        %6584 = vmatpush.msra.mxu0 0.0
        %6585 = vmatpush.msra.mxu0 0.0
        %6586 = vmatpush.msra.mxu0 0.0
        %6587 = vmatpush.msra.mxu0 0.0
        %6588 = vmatpush.msra.mxu0 0.0
        %6589 = vmatpush.msra.mxu0 0.0
        %6590 = vmatpush.msra.mxu0 0.0
        %6591 = vmatpush.msra.mxu0 0.0
        %6592 = vmatpush.msra.mxu0 0.0
        %6593 = vmatpush.msra.mxu0 0.0
        %6594 = vmatpush.msra.mxu0 0.0
        %6595 = vmatpush.msra.mxu0 0.0
        %6596 = vmatpush.msra.mxu0 %v6580
        %6597 = vmatpush.msra.mxu0 %v6579
        %6598 = vmatpush.msra.mxu0 %v6578
        %6599 = vmatpush.msra.mxu0 %v6577
        %6600 = vmatmul.f32.gmra.mxu0 %v6582
        %v6601 = vpop.f32.mrf.mxu0
        %v6602 = vadd.f32 0.0, %v6601
        %6603 = vdwg.mxu0
        %v6604 = vadd.f32 %v6574, %v6602
        %v6605 = vld [vmem:[%s4] sm:$0x1]
        %v6606 = vadd.f32 %v6604, %v6605
        %6607 = vst.msk [vmem:[%s250] sm:$0x1] %vm5606, %v6606
        %s6608 = sand.u32 %s139, 1
        %s6609 = scalar_lea.sflag [#allocation6], %s6608
        %s6610 = sand.u32 %s139, 1
        %s6611 = scalar_lea.vmem [#allocation9], %s6610
        // Predicated region
        $region49: #{gene_bac_encoder_forward.1} parent=39 // pred_check
          %p6612 = pneg %p149
        $region50: #{gene_bac_encoder_forward.1} parent=39 // pred_check_branch
          %6614 = sbr.rel (%p6612) target = $region52
        $region51: #{gene_bac_encoder_forward.1} parent=39 // pred_region
          %6616 = vsyncadd %s6609, 0
          %s6617 = scalar_lea.hbm %s5, %s21
          %s6619 = sshll.u32 %s6611, 4
          %s6620 = int_to_ptr.vmem [resolvable:$true] %s6619
          %s6621 = sshll.u32 %s6617, 4
          %s6622 = int_to_ptr.hbm [resolvable:$true] %s6621
          %6624 = dma.vmem_to_hbm [thread:$0]  %s6620, 16, %s6622, %s6609
        $region52: #{gene_bac_encoder_forward.1} parent=39 // pred_fallthru
          _
      $region40: #{gene_bac_encoder_forward.1} parent=5 // pred_fallthru
        _
      %p6625 = scmp.le.s32.totalorder 2, %s16
      // Predicated region
      $region53: #{gene_bac_encoder_forward.1} parent=5 // pred_check
        %p6626 = pneg %p6625
      $region54: #{gene_bac_encoder_forward.1} parent=5 // pred_check_branch
        %6628 = sbr.rel (%p6626) target = $region56
      $region55: #{gene_bac_encoder_forward.1} parent=5 // pred_region
        %s6629 = ssub.s32 %s16, 2
        // Predicated region
        $region57: #{gene_bac_encoder_forward.1} parent=55 // pred_check
          %p6630 = pneg %p155
        $region58: #{gene_bac_encoder_forward.1} parent=55 // pred_check_branch
          %6632 = sbr.rel (%p6630) target = $region60
        $region59: #{gene_bac_encoder_forward.1} parent=55 // pred_region
          %s6633 = sand.u32 %s140, 1
          %s6634 = scalar_lea.sflag [#allocation6], %s6633
          %s6635 = sand.u32 %s140, 1
          %s6636 = scalar_lea.vmem [#allocation9], %s6635
          %6638 = dma.done %s6634, 16
        $region60: #{gene_bac_encoder_forward.1} parent=55 // pred_fallthru
          _
      $region56: #{gene_bac_encoder_forward.1} parent=5 // pred_fallthru
        _
    $region6: #{gene_bac_encoder_forward.1} parent=1 // loop_footer
      %s20 = sadd.s32 1, %s16
    $region7: #{gene_bac_encoder_forward.1} parent=1 // loop_footer_branch
      %15 = sbr.rel target = $region3
    $region8: #{gene_bac_encoder_forward.1} parent=1 // loop_exit
      _
    %6639 = vsyncpa [#allocation5], 1
    %s6640 = scalar_lea.sflag [#allocation5], 1
    %6641 = vsyncpa %s6640, 1
    %6642 = vsyncpa [#allocation8], 1
    %6643 = vsyncpa [#allocation6], 1
    %s6644 = scalar_lea.sflag [#allocation6], 1
    %6645 = vsyncpa %s6644, 1

</llo_original>
